<compile_context>
chip_gen: v5e
topology: v5e:2x2
jax: 0.10.0
libtpu: 0.0.40
codegen_flags: <defaults>
</compile_context>

<pallas_src>
import numpy as np
import jax
import jax.numpy as jnp
from jax.experimental import pallas as pl
from jax.experimental.pallas import tpu as pltpu


def _vmem_limit_bytes():
    """Generation-aware scoped-VMEM limit (~half of physical VMEM)."""
    try:
        info = pltpu.get_tpu_info()
        cap = getattr(info, "vmem_capacity_bytes", None)
        if cap:
            return int(min(cap // 2, 96 * 1024 * 1024))
    except Exception:
        pass
    return 32 * 1024 * 1024


# --------------------------------------------------------------------------- #
# Constant 0/1 selection matrices (built once with numpy at trace time).
# --------------------------------------------------------------------------- #
def _conv_tap_selectors(H, W):
    """T[t, p, q] = 1 iff output position p = h*W + w of the 'same' 3x3 conv reads input
    position q = (h+kh-1)*W + (w+kw-1), t = kh*3 + kw.  Out-of-range taps stay zero rows
    (this implements the padding=1 zeros)."""
    T = np.zeros((9, H * W, H * W), np.float32)
    for kh in range(3):
        for kw in range(3):
            t = kh * 3 + kw
            for h in range(H):
                sh = h + kh - 1
                if not (0 <= sh < H):
                    continue
                for w in range(W):
                    sw = w + kw - 1
                    if 0 <= sw < W:
                        T[t, h * W + w, sh * W + sw] = 1.0
    return T


def _pool_selectors(H, W):
    """P[i, p, q] = 1 iff pooled position p = h2*(W//2) + w2 with offset i = dh*2 + dw reads
    full-resolution position q = (2*h2+dh)*W + (2*w2+dw)."""
    H2, W2 = H // 2, W // 2
    P = np.zeros((4, H2 * W2, H * W), np.float32)
    for dh in range(2):
        for dw in range(2):
            i = dh * 2 + dw
            for h2 in range(H2):
                for w2 in range(W2):
                    P[i, h2 * W2 + w2, (2 * h2 + dh) * W + (2 * w2 + dw)] = 1.0
    return P


# --------------------------------------------------------------------------- #
# Fused whole-network kernel (one grid step per sample).
# --------------------------------------------------------------------------- #
def _make_cnn_kernel(n_fc):
    """n_fc = number of Linear layers.  Layer 0 consumes the pooled (S, C2) feature map via
    the row-folded weight W1r (torch .view(N,-1) ordering folded into the weight)."""

    def kernel(x_ref, t1_ref, w1_ref, b1_ref, p1_ref,
               t2_ref, w2_ref, b2_ref, p2_ref, *fc_refs):
        out_ref = fc_refs[-1]
        w1r_ref, bf0_ref = fc_refs[0], fc_refs[1]
        rest = fc_refs[2:-1]                     # (W, b) pairs for layers 1..n_fc-1

        x = x_ref[0]                             # (H*W, Cin) bf16

        # ---- conv1 (3x3, 'same') + bias + ReLU -------------------------------
        c1 = w1_ref.shape[2]
        acc1 = jnp.zeros((x.shape[0], c1), jnp.float32)
        for t in range(9):
            tap = jnp.dot(t1_ref[t], x, preferred_element_type=jnp.float32)
            acc1 = acc1 + jnp.dot(tap.astype(jnp.bfloat16), w1_ref[t],
                                  preferred_element_type=jnp.float32)
        h1 = jnp.maximum(acc1 + b1_ref[...], 0.0).astype(jnp.bfloat16)

        # ---- maxpool 2x2 (max over the four offset selections) ---------------
        pool1 = None
        for i in range(4):
            s = jnp.dot(p1_ref[i], h1, preferred_element_type=jnp.float32)
            pool1 = s if pool1 is None else jnp.maximum(pool1, s)
        h1p = pool1.astype(jnp.bfloat16)         # (H2*W2, C1)

        # ---- conv2 (3x3, 'same') + bias + ReLU -------------------------------
        c2 = w2_ref.shape[2]
        acc2 = jnp.zeros((h1p.shape[0], c2), jnp.float32)
        for t in range(9):
            tap = jnp.dot(t2_ref[t], h1p, preferred_element_type=jnp.float32)
            acc2 = acc2 + jnp.dot(tap.astype(jnp.bfloat16), w2_ref[t],
                                  preferred_element_type=jnp.float32)
        h2 = jnp.maximum(acc2 + b2_ref[...], 0.0).astype(jnp.bfloat16)

        # ---- maxpool 2x2 ------------------------------------------------------
        pool2 = None
        for i in range(4):
            s = jnp.dot(p2_ref[i], h2, preferred_element_type=jnp.float32)
            pool2 = s if pool2 is None else jnp.maximum(pool2, s)
        feat = pool2.astype(jnp.bfloat16)        # (S, C2), row r = h4*W4 + w4

        # ---- FC layer 0 (flatten order folded into W1r[r, c, :]) -------------
        acc = jnp.zeros((1, w1r_ref.shape[2]), jnp.float32)
        for r in range(feat.shape[0]):
            acc = acc + jnp.dot(feat[r:r + 1, :], w1r_ref[r],
                                preferred_element_type=jnp.float32)
        y = acc + bf0_ref[...]
        # TODO(synk): nn.Dropout(p=0.01) after each hidden ReLU is stochastic only in train
        # mode; implemented as identity (eval mode).
        if n_fc == 1:
            out_ref[0] = y
            return
        h = jnp.maximum(y, 0.0).astype(jnp.bfloat16)

        # ---- remaining FC layers ----------------------------------------------
        for k in range(n_fc - 1):
            w_ref, b_ref = rest[2 * k], rest[2 * k + 1]
            y = jnp.dot(h, w_ref[...], preferred_element_type=jnp.float32) + b_ref[...]
            if k < n_fc - 2:
                h = jnp.maximum(y, 0.0).astype(jnp.bfloat16)
        out_ref[0] = y

    return kernel


# --------------------------------------------------------------------------- #
# Wrapper: tiny layout prep + one pallas_call for the full forward pass.
# --------------------------------------------------------------------------- #
def cnn_forward(x, params):
    """x: (N, Cin, H, W) f32 NCHW, eval-mode forward of the PyTorch CNN."""
    N, Cin, H, W = x.shape
    assert H % 4 == 0 and W % 4 == 0
    w1, b1 = params["conv1_w"], params["conv1_b"]
    w2, b2 = params["conv2_w"], params["conv2_b"]
    fc = params["fc"]
    C1, C2 = w1.shape[0], w2.shape[0]
    H2, W2 = H // 2, W // 2
    H4, W4 = H2 // 2, W2 // 2
    S = H4 * W4
    n_fc = len(fc)

    # Cheap one-off layout prep on tiny tensors (no im2col, no patch blow-up).
    x_rows = x.transpose(0, 2, 3, 1).reshape(N, H * W, Cin).astype(jnp.bfloat16)
    w1t = w1.transpose(2, 3, 1, 0).reshape(9, Cin, C1).astype(jnp.bfloat16)
    w2t = w2.transpose(2, 3, 1, 0).reshape(9, C1, C2).astype(jnp.bfloat16)
    b1r = b1.reshape(1, C1).astype(jnp.float32)
    b2r = b2.reshape(1, C2).astype(jnp.float32)

    # Compile-time constant 0/1 selection matrices (exact in bf16).
    t1 = jnp.asarray(_conv_tap_selectors(H, W), jnp.bfloat16)
    p1 = jnp.asarray(_pool_selectors(H, W), jnp.bfloat16)
    t2 = jnp.asarray(_conv_tap_selectors(H2, W2), jnp.bfloat16)
    p2 = jnp.asarray(_pool_selectors(H2, W2), jnp.bfloat16)

    # FC layer 0: fold the torch .view(N, -1) ordering (c*S + r) into the weight.
    w_fc0, b_fc0 = fc[0]
    hid0 = w_fc0.shape[1]
    w1r = w_fc0.reshape(C2, S, hid0).transpose(1, 0, 2).astype(jnp.bfloat16)   # (S, C2, hid0)

    operands = [x_rows, t1, w1t, b1r, p1, t2, w2t, b2r, p2,
                w1r, b_fc0.reshape(1, hid0).astype(jnp.float32)]
    in_specs = [
        pl.BlockSpec((1, H * W, Cin), lambda i: (i, 0, 0)),
        pl.BlockSpec(t1.shape, lambda i: (0, 0, 0)),
        pl.BlockSpec(w1t.shape, lambda i: (0, 0, 0)),
        pl.BlockSpec(b1r.shape, lambda i: (0, 0)),
        pl.BlockSpec(p1.shape, lambda i: (0, 0, 0)),
        pl.BlockSpec(t2.shape, lambda i: (0, 0, 0)),
        pl.BlockSpec(w2t.shape, lambda i: (0, 0, 0)),
        pl.BlockSpec(b2r.shape, lambda i: (0, 0)),
        pl.BlockSpec(p2.shape, lambda i: (0, 0, 0)),
        pl.BlockSpec(w1r.shape, lambda i: (0, 0, 0)),
        pl.BlockSpec((1, hid0), lambda i: (0, 0)),
    ]
    for w, b in fc[1:]:
        kin, kout = w.shape
        operands.append(w.astype(jnp.bfloat16))
        in_specs.append(pl.BlockSpec((kin, kout), lambda i: (0, 0)))
        operands.append(b.reshape(1, kout).astype(jnp.float32))
        in_specs.append(pl.BlockSpec((1, kout), lambda i: (0, 0)))

    out_size = fc[-1][0].shape[1]
    out = pl.pallas_call(
        _make_cnn_kernel(n_fc),
        out_shape=jax.ShapeDtypeStruct((N, 1, out_size), jnp.float32),
        grid=(N,),
        in_specs=in_specs,
        out_specs=pl.BlockSpec((1, 1, out_size), lambda i: (i, 0, 0)),
        compiler_params=pltpu.CompilerParams(
            dimension_semantics=("parallel",),
            vmem_limit_bytes=_vmem_limit_bytes(),
        ),
    )(*operands)
    return out.reshape(N, out_size)


# --------------------------------------------------------------------------- #
# Deterministic parameter init (shapes from CNN.__init__)
# --------------------------------------------------------------------------- #
def init_params(key, input_dim, output_size, input_channels, conv_channels, hidden_widths):
    keys = iter(jax.random.split(key, 16))

    def dense(k, shape, fan_in):
        return (jax.random.normal(k, shape, jnp.float32) / np.sqrt(fan_in)).astype(jnp.float32)

    params = {}
    params["conv1_w"] = dense(next(keys), (conv_channels[0], input_channels, 3, 3), input_channels * 9)
    params["conv1_b"] = dense(next(keys), (conv_channels[0],), input_channels * 9)
    params["conv2_w"] = dense(next(keys), (conv_channels[1], conv_channels[0], 3, 3), conv_channels[0] * 9)
    params["conv2_b"] = dense(next(keys), (conv_channels[1],), conv_channels[0] * 9)

    fc = []
    in_size = (input_dim // 4) ** 2 * conv_channels[1]
    for size in list(hidden_widths) + [output_size]:
        w = dense(next(keys), (in_size, size), in_size)   # stored (in, out): y = x @ w + b
        b = dense(next(keys), (size,), in_size)
        fc.append((w, b))
        in_size = size
    params["fc"] = fc
    return params


# --------------------------------------------------------------------------- #
# Pure-JAX f32 reference (torch semantics) for the correctness check.
# --------------------------------------------------------------------------- #
def cnn_forward_ref(x, params):
    def conv(x, w, b):
        y = jax.lax.conv_general_dilated(
            x, w, window_strides=(1, 1), padding=((1, 1), (1, 1)),
            dimension_numbers=("NCHW", "OIHW", "NCHW"),
            precision=jax.lax.Precision.HIGHEST,
        )
        return jnp.maximum(y + b[None, :, None, None], 0.0)

    def pool(x):
        N, C, H, W = x.shape
        return jnp.max(x.reshape(N, C, H // 2, 2, W // 2, 2), axis=(3, 5))

    x = pool(conv(x, params["conv1_w"], params["conv1_b"]))
    x = pool(conv(x, params["conv2_w"], params["conv2_b"]))
    x = x.reshape(x.shape[0], -1)
    n_fc = len(params["fc"])
    for i, (w, b) in enumerate(params["fc"]):
        x = jnp.dot(x, w, precision=jax.lax.Precision.HIGHEST) + b
        if i != n_fc - 1:
            x = jnp.maximum(x, 0.0)
    return x


# --------------------------------------------------------------------------- #
if __name__ == "__main__":
    # Shapes consistent with the module's forward:
    # input_dim=16, input_channels=4, conv_channels=[8, 16], hidden_widths=[32], output_size=10
    batch, input_channels, input_dim = 2, 4, 16
    conv_channels = [8, 16]
    hidden_widths = [32]
    output_size = 10

    key = jax.random.PRNGKey(0)
    k_x, k_p = jax.random.split(key)
    x = jax.random.normal(k_x, (batch, input_channels, input_dim, input_dim), jnp.float32)
    params = init_params(k_p, input_dim, output_size, input_channels, conv_channels, hidden_widths)

    fwd = jax.jit(cnn_forward)
    out = jax.block_until_ready(fwd(x, params))
    assert out.shape == (batch, output_size), out.shape

    # Loose tolerance: kernel uses bf16 MXU inputs (f32 accumulation) vs. a true-f32 reference.
    ref = jax.block_until_ready(cnn_forward_ref(x, params))
    np.testing.assert_allclose(np.asarray(out), np.asarray(ref), rtol=2e-2, atol=5e-2)

    print("KERNEL_OK")
</pallas_src>

<mosaic_0001>
module attributes {stable_mosaic.version = 11 : i64} {
  func.func @kernel(%arg0: i32, %arg1: memref<1x256x4xbf16, #tpu.memory_space<vmem>>, %arg2: memref<9x256x256xbf16, #tpu.memory_space<vmem>>, %arg3: memref<9x4x8xbf16, #tpu.memory_space<vmem>>, %arg4: memref<1x8xf32, #tpu.memory_space<vmem>>, %arg5: memref<4x64x256xbf16, #tpu.memory_space<vmem>>, %arg6: memref<9x64x64xbf16, #tpu.memory_space<vmem>>, %arg7: memref<9x8x16xbf16, #tpu.memory_space<vmem>>, %arg8: memref<1x16xf32, #tpu.memory_space<vmem>>, %arg9: memref<4x16x64xbf16, #tpu.memory_space<vmem>>, %arg10: memref<16x16x32xbf16, #tpu.memory_space<vmem>>, %arg11: memref<1x32xf32, #tpu.memory_space<vmem>>, %arg12: memref<32x10xbf16, #tpu.memory_space<vmem>>, %arg13: memref<1x10xf32, #tpu.memory_space<vmem>>, %arg14: memref<1x1x10xf32, #tpu.memory_space<vmem>>) attributes {dimension_semantics = [#tpu.dimension_semantics<parallel>], iteration_bounds = array<i64: 2>, scalar_prefetch = 0 : i64, scratch_operands = 0 : i64, tpu.core_type = #tpu.core_type<tc>, window_params = [{transform_indices = @transform_0, window_bounds = array<i64: 1, 256, 4>}, {pipeline_mode = #tpu.pipeline_mode<synchronous>, transform_indices = @transform_1, window_bounds = array<i64: 9, 256, 256>}, {pipeline_mode = #tpu.pipeline_mode<synchronous>, transform_indices = @transform_2, window_bounds = array<i64: 9, 4, 8>}, {pipeline_mode = #tpu.pipeline_mode<synchronous>, transform_indices = @transform_3, window_bounds = array<i64: 1, 8>}, {pipeline_mode = #tpu.pipeline_mode<synchronous>, transform_indices = @transform_4, window_bounds = array<i64: 4, 64, 256>}, {pipeline_mode = #tpu.pipeline_mode<synchronous>, transform_indices = @transform_5, window_bounds = array<i64: 9, 64, 64>}, {pipeline_mode = #tpu.pipeline_mode<synchronous>, transform_indices = @transform_6, window_bounds = array<i64: 9, 8, 16>}, {pipeline_mode = #tpu.pipeline_mode<synchronous>, transform_indices = @transform_7, window_bounds = array<i64: 1, 16>}, {pipeline_mode = #tpu.pipeline_mode<synchronous>, transform_indices = @transform_8, window_bounds = array<i64: 4, 16, 64>}, {pipeline_mode = #tpu.pipeline_mode<synchronous>, transform_indices = @transform_9, window_bounds = array<i64: 16, 16, 32>}, {pipeline_mode = #tpu.pipeline_mode<synchronous>, transform_indices = @transform_10, window_bounds = array<i64: 1, 32>}, {pipeline_mode = #tpu.pipeline_mode<synchronous>, transform_indices = @transform_11, window_bounds = array<i64: 32, 10>}, {pipeline_mode = #tpu.pipeline_mode<synchronous>, transform_indices = @transform_12, window_bounds = array<i64: 1, 10>}, {transform_indices = @transform_13, window_bounds = array<i64: 1, 1, 10>}]} {
    %c0 = arith.constant 0 : index
    %c0_0 = arith.constant 0 : index
    %c0_1 = arith.constant 0 : index
    %0 = vector.load %arg1[%c0, %c0_0, %c0_1] : memref<1x256x4xbf16, #tpu.memory_space<vmem>>, vector<1x256x4xbf16>
    %1 = vector.shape_cast %0 : vector<1x256x4xbf16> to vector<256x4xbf16>
    %cst = arith.constant 0.000000e+00 : f32
    %2 = vector.broadcast %cst : f32 to vector<256x8xf32>
    %c0_2 = arith.constant 0 : index
    %c0_3 = arith.constant 0 : index
    %c0_4 = arith.constant 0 : index
    %3 = vector.load %arg2[%c0_2, %c0_3, %c0_4] : memref<9x256x256xbf16, #tpu.memory_space<vmem>>, vector<1x256x256xbf16>
    %4 = vector.shape_cast %3 : vector<1x256x256xbf16> to vector<256x256xbf16>
    %cst_5 = arith.constant dense<0.000000e+00> : vector<256x4xf32>
    %5 = tpu.matmul %4, %1, %cst_5 {dimension_numbers = #tpu.dot_dimension_numbers<[1], [0], [0], [1], [0, 0, 1, 1], [], []>} : vector<256x256xbf16>, vector<256x4xbf16>, vector<256x4xf32> -> vector<256x4xf32>
    %6 = arith.truncf %5 : vector<256x4xf32> to vector<256x4xbf16>
    %c0_6 = arith.constant 0 : index
    %c0_7 = arith.constant 0 : index
    %c0_8 = arith.constant 0 : index
    %7 = vector.load %arg3[%c0_6, %c0_7, %c0_8] : memref<9x4x8xbf16, #tpu.memory_space<vmem>>, vector<1x4x8xbf16>
    %8 = vector.shape_cast %7 : vector<1x4x8xbf16> to vector<4x8xbf16>
    %cst_9 = arith.constant dense<0.000000e+00> : vector<256x8xf32>
    %9 = tpu.matmul %6, %8, %cst_9 {dimension_numbers = #tpu.dot_dimension_numbers<[1], [0], [0], [1], [0, 0, 1, 1], [], []>} : vector<256x4xbf16>, vector<4x8xbf16>, vector<256x8xf32> -> vector<256x8xf32>
    %10 = arith.addf %2, %9 : vector<256x8xf32>
    %c1 = arith.constant 1 : index
    %c0_10 = arith.constant 0 : index
    %c0_11 = arith.constant 0 : index
    %11 = vector.load %arg2[%c1, %c0_10, %c0_11] : memref<9x256x256xbf16, #tpu.memory_space<vmem>>, vector<1x256x256xbf16>
    %12 = vector.shape_cast %11 : vector<1x256x256xbf16> to vector<256x256xbf16>
    %cst_12 = arith.constant dense<0.000000e+00> : vector<256x4xf32>
    %13 = tpu.matmul %12, %1, %cst_12 {dimension_numbers = #tpu.dot_dimension_numbers<[1], [0], [0], [1], [0, 0, 1, 1], [], []>} : vector<256x256xbf16>, vector<256x4xbf16>, vector<256x4xf32> -> vector<256x4xf32>
    %14 = arith.truncf %13 : vector<256x4xf32> to vector<256x4xbf16>
    %c1_13 = arith.constant 1 : index
    %c0_14 = arith.constant 0 : index
    %c0_15 = arith.constant 0 : index
    %15 = vector.load %arg3[%c1_13, %c0_14, %c0_15] : memref<9x4x8xbf16, #tpu.memory_space<vmem>>, vector<1x4x8xbf16>
    %16 = vector.shape_cast %15 : vector<1x4x8xbf16> to vector<4x8xbf16>
    %cst_16 = arith.constant dense<0.000000e+00> : vector<256x8xf32>
    %17 = tpu.matmul %14, %16, %cst_16 {dimension_numbers = #tpu.dot_dimension_numbers<[1], [0], [0], [1], [0, 0, 1, 1], [], []>} : vector<256x4xbf16>, vector<4x8xbf16>, vector<256x8xf32> -> vector<256x8xf32>
    %18 = arith.addf %10, %17 : vector<256x8xf32>
    %c2 = arith.constant 2 : index
    %c0_17 = arith.constant 0 : index
    %c0_18 = arith.constant 0 : index
    %19 = vector.load %arg2[%c2, %c0_17, %c0_18] : memref<9x256x256xbf16, #tpu.memory_space<vmem>>, vector<1x256x256xbf16>
    %20 = vector.shape_cast %19 : vector<1x256x256xbf16> to vector<256x256xbf16>
    %cst_19 = arith.constant dense<0.000000e+00> : vector<256x4xf32>
    %21 = tpu.matmul %20, %1, %cst_19 {dimension_numbers = #tpu.dot_dimension_numbers<[1], [0], [0], [1], [0, 0, 1, 1], [], []>} : vector<256x256xbf16>, vector<256x4xbf16>, vector<256x4xf32> -> vector<256x4xf32>
    %22 = arith.truncf %21 : vector<256x4xf32> to vector<256x4xbf16>
    %c2_20 = arith.constant 2 : index
    %c0_21 = arith.constant 0 : index
    %c0_22 = arith.constant 0 : index
    %23 = vector.load %arg3[%c2_20, %c0_21, %c0_22] : memref<9x4x8xbf16, #tpu.memory_space<vmem>>, vector<1x4x8xbf16>
    %24 = vector.shape_cast %23 : vector<1x4x8xbf16> to vector<4x8xbf16>
    %cst_23 = arith.constant dense<0.000000e+00> : vector<256x8xf32>
    %25 = tpu.matmul %22, %24, %cst_23 {dimension_numbers = #tpu.dot_dimension_numbers<[1], [0], [0], [1], [0, 0, 1, 1], [], []>} : vector<256x4xbf16>, vector<4x8xbf16>, vector<256x8xf32> -> vector<256x8xf32>
    %26 = arith.addf %18, %25 : vector<256x8xf32>
    %c3 = arith.constant 3 : index
    %c0_24 = arith.constant 0 : index
    %c0_25 = arith.constant 0 : index
    %27 = vector.load %arg2[%c3, %c0_24, %c0_25] : memref<9x256x256xbf16, #tpu.memory_space<vmem>>, vector<1x256x256xbf16>
    %28 = vector.shape_cast %27 : vector<1x256x256xbf16> to vector<256x256xbf16>
    %cst_26 = arith.constant dense<0.000000e+00> : vector<256x4xf32>
    %29 = tpu.matmul %28, %1, %cst_26 {dimension_numbers = #tpu.dot_dimension_numbers<[1], [0], [0], [1], [0, 0, 1, 1], [], []>} : vector<256x256xbf16>, vector<256x4xbf16>, vector<256x4xf32> -> vector<256x4xf32>
    %30 = arith.truncf %29 : vector<256x4xf32> to vector<256x4xbf16>
    %c3_27 = arith.constant 3 : index
    %c0_28 = arith.constant 0 : index
    %c0_29 = arith.constant 0 : index
    %31 = vector.load %arg3[%c3_27, %c0_28, %c0_29] : memref<9x4x8xbf16, #tpu.memory_space<vmem>>, vector<1x4x8xbf16>
    %32 = vector.shape_cast %31 : vector<1x4x8xbf16> to vector<4x8xbf16>
    %cst_30 = arith.constant dense<0.000000e+00> : vector<256x8xf32>
    %33 = tpu.matmul %30, %32, %cst_30 {dimension_numbers = #tpu.dot_dimension_numbers<[1], [0], [0], [1], [0, 0, 1, 1], [], []>} : vector<256x4xbf16>, vector<4x8xbf16>, vector<256x8xf32> -> vector<256x8xf32>
    %34 = arith.addf %26, %33 : vector<256x8xf32>
    %c4 = arith.constant 4 : index
    %c0_31 = arith.constant 0 : index
    %c0_32 = arith.constant 0 : index
    %35 = vector.load %arg2[%c4, %c0_31, %c0_32] : memref<9x256x256xbf16, #tpu.memory_space<vmem>>, vector<1x256x256xbf16>
    %36 = vector.shape_cast %35 : vector<1x256x256xbf16> to vector<256x256xbf16>
    %cst_33 = arith.constant dense<0.000000e+00> : vector<256x4xf32>
    %37 = tpu.matmul %36, %1, %cst_33 {dimension_numbers = #tpu.dot_dimension_numbers<[1], [0], [0], [1], [0, 0, 1, 1], [], []>} : vector<256x256xbf16>, vector<256x4xbf16>, vector<256x4xf32> -> vector<256x4xf32>
    %38 = arith.truncf %37 : vector<256x4xf32> to vector<256x4xbf16>
    %c4_34 = arith.constant 4 : index
    %c0_35 = arith.constant 0 : index
    %c0_36 = arith.constant 0 : index
    %39 = vector.load %arg3[%c4_34, %c0_35, %c0_36] : memref<9x4x8xbf16, #tpu.memory_space<vmem>>, vector<1x4x8xbf16>
    %40 = vector.shape_cast %39 : vector<1x4x8xbf16> to vector<4x8xbf16>
    %cst_37 = arith.constant dense<0.000000e+00> : vector<256x8xf32>
    %41 = tpu.matmul %38, %40, %cst_37 {dimension_numbers = #tpu.dot_dimension_numbers<[1], [0], [0], [1], [0, 0, 1, 1], [], []>} : vector<256x4xbf16>, vector<4x8xbf16>, vector<256x8xf32> -> vector<256x8xf32>
    %42 = arith.addf %34, %41 : vector<256x8xf32>
    %c5 = arith.constant 5 : index
    %c0_38 = arith.constant 0 : index
    %c0_39 = arith.constant 0 : index
    %43 = vector.load %arg2[%c5, %c0_38, %c0_39] : memref<9x256x256xbf16, #tpu.memory_space<vmem>>, vector<1x256x256xbf16>
    %44 = vector.shape_cast %43 : vector<1x256x256xbf16> to vector<256x256xbf16>
    %cst_40 = arith.constant dense<0.000000e+00> : vector<256x4xf32>
    %45 = tpu.matmul %44, %1, %cst_40 {dimension_numbers = #tpu.dot_dimension_numbers<[1], [0], [0], [1], [0, 0, 1, 1], [], []>} : vector<256x256xbf16>, vector<256x4xbf16>, vector<256x4xf32> -> vector<256x4xf32>
    %46 = arith.truncf %45 : vector<256x4xf32> to vector<256x4xbf16>
    %c5_41 = arith.constant 5 : index
    %c0_42 = arith.constant 0 : index
    %c0_43 = arith.constant 0 : index
    %47 = vector.load %arg3[%c5_41, %c0_42, %c0_43] : memref<9x4x8xbf16, #tpu.memory_space<vmem>>, vector<1x4x8xbf16>
    %48 = vector.shape_cast %47 : vector<1x4x8xbf16> to vector<4x8xbf16>
    %cst_44 = arith.constant dense<0.000000e+00> : vector<256x8xf32>
    %49 = tpu.matmul %46, %48, %cst_44 {dimension_numbers = #tpu.dot_dimension_numbers<[1], [0], [0], [1], [0, 0, 1, 1], [], []>} : vector<256x4xbf16>, vector<4x8xbf16>, vector<256x8xf32> -> vector<256x8xf32>
    %50 = arith.addf %42, %49 : vector<256x8xf32>
    %c6 = arith.constant 6 : index
    %c0_45 = arith.constant 0 : index
    %c0_46 = arith.constant 0 : index
    %51 = vector.load %arg2[%c6, %c0_45, %c0_46] : memref<9x256x256xbf16, #tpu.memory_space<vmem>>, vector<1x256x256xbf16>
    %52 = vector.shape_cast %51 : vector<1x256x256xbf16> to vector<256x256xbf16>
    %cst_47 = arith.constant dense<0.000000e+00> : vector<256x4xf32>
    %53 = tpu.matmul %52, %1, %cst_47 {dimension_numbers = #tpu.dot_dimension_numbers<[1], [0], [0], [1], [0, 0, 1, 1], [], []>} : vector<256x256xbf16>, vector<256x4xbf16>, vector<256x4xf32> -> vector<256x4xf32>
    %54 = arith.truncf %53 : vector<256x4xf32> to vector<256x4xbf16>
    %c6_48 = arith.constant 6 : index
    %c0_49 = arith.constant 0 : index
    %c0_50 = arith.constant 0 : index
    %55 = vector.load %arg3[%c6_48, %c0_49, %c0_50] : memref<9x4x8xbf16, #tpu.memory_space<vmem>>, vector<1x4x8xbf16>
    %56 = vector.shape_cast %55 : vector<1x4x8xbf16> to vector<4x8xbf16>
    %cst_51 = arith.constant dense<0.000000e+00> : vector<256x8xf32>
    %57 = tpu.matmul %54, %56, %cst_51 {dimension_numbers = #tpu.dot_dimension_numbers<[1], [0], [0], [1], [0, 0, 1, 1], [], []>} : vector<256x4xbf16>, vector<4x8xbf16>, vector<256x8xf32> -> vector<256x8xf32>
    %58 = arith.addf %50, %57 : vector<256x8xf32>
    %c7 = arith.constant 7 : index
    %c0_52 = arith.constant 0 : index
    %c0_53 = arith.constant 0 : index
    %59 = vector.load %arg2[%c7, %c0_52, %c0_53] : memref<9x256x256xbf16, #tpu.memory_space<vmem>>, vector<1x256x256xbf16>
    %60 = vector.shape_cast %59 : vector<1x256x256xbf16> to vector<256x256xbf16>
    %cst_54 = arith.constant dense<0.000000e+00> : vector<256x4xf32>
    %61 = tpu.matmul %60, %1, %cst_54 {dimension_numbers = #tpu.dot_dimension_numbers<[1], [0], [0], [1], [0, 0, 1, 1], [], []>} : vector<256x256xbf16>, vector<256x4xbf16>, vector<256x4xf32> -> vector<256x4xf32>
    %62 = arith.truncf %61 : vector<256x4xf32> to vector<256x4xbf16>
    %c7_55 = arith.constant 7 : index
    %c0_56 = arith.constant 0 : index
    %c0_57 = arith.constant 0 : index
    %63 = vector.load %arg3[%c7_55, %c0_56, %c0_57] : memref<9x4x8xbf16, #tpu.memory_space<vmem>>, vector<1x4x8xbf16>
    %64 = vector.shape_cast %63 : vector<1x4x8xbf16> to vector<4x8xbf16>
    %cst_58 = arith.constant dense<0.000000e+00> : vector<256x8xf32>
    %65 = tpu.matmul %62, %64, %cst_58 {dimension_numbers = #tpu.dot_dimension_numbers<[1], [0], [0], [1], [0, 0, 1, 1], [], []>} : vector<256x4xbf16>, vector<4x8xbf16>, vector<256x8xf32> -> vector<256x8xf32>
    %66 = arith.addf %58, %65 : vector<256x8xf32>
    %c8 = arith.constant 8 : index
    %c0_59 = arith.constant 0 : index
    %c0_60 = arith.constant 0 : index
    %67 = vector.load %arg2[%c8, %c0_59, %c0_60] : memref<9x256x256xbf16, #tpu.memory_space<vmem>>, vector<1x256x256xbf16>
    %68 = vector.shape_cast %67 : vector<1x256x256xbf16> to vector<256x256xbf16>
    %cst_61 = arith.constant dense<0.000000e+00> : vector<256x4xf32>
    %69 = tpu.matmul %68, %1, %cst_61 {dimension_numbers = #tpu.dot_dimension_numbers<[1], [0], [0], [1], [0, 0, 1, 1], [], []>} : vector<256x256xbf16>, vector<256x4xbf16>, vector<256x4xf32> -> vector<256x4xf32>
    %70 = arith.truncf %69 : vector<256x4xf32> to vector<256x4xbf16>
    %c8_62 = arith.constant 8 : index
    %c0_63 = arith.constant 0 : index
    %c0_64 = arith.constant 0 : index
    %71 = vector.load %arg3[%c8_62, %c0_63, %c0_64] : memref<9x4x8xbf16, #tpu.memory_space<vmem>>, vector<1x4x8xbf16>
    %72 = vector.shape_cast %71 : vector<1x4x8xbf16> to vector<4x8xbf16>
    %cst_65 = arith.constant dense<0.000000e+00> : vector<256x8xf32>
    %73 = tpu.matmul %70, %72, %cst_65 {dimension_numbers = #tpu.dot_dimension_numbers<[1], [0], [0], [1], [0, 0, 1, 1], [], []>} : vector<256x4xbf16>, vector<4x8xbf16>, vector<256x8xf32> -> vector<256x8xf32>
    %74 = arith.addf %66, %73 : vector<256x8xf32>
    %c0_66 = arith.constant 0 : index
    %c0_67 = arith.constant 0 : index
    %75 = vector.load %arg4[%c0_66, %c0_67] : memref<1x8xf32, #tpu.memory_space<vmem>>, vector<1x8xf32>
    %76 = vector.broadcast %75 : vector<1x8xf32> to vector<256x8xf32>
    %77 = arith.addf %74, %76 : vector<256x8xf32>
    %cst_68 = arith.constant 0.000000e+00 : f32
    %78 = vector.broadcast %cst_68 : f32 to vector<256x8xf32>
    %79 = arith.maximumf %77, %78 : vector<256x8xf32>
    %80 = arith.truncf %79 : vector<256x8xf32> to vector<256x8xbf16>
    %c0_69 = arith.constant 0 : index
    %c0_70 = arith.constant 0 : index
    %c0_71 = arith.constant 0 : index
    %81 = vector.load %arg5[%c0_69, %c0_70, %c0_71] : memref<4x64x256xbf16, #tpu.memory_space<vmem>>, vector<1x64x256xbf16>
    %82 = vector.shape_cast %81 : vector<1x64x256xbf16> to vector<64x256xbf16>
    %cst_72 = arith.constant dense<0.000000e+00> : vector<64x8xf32>
    %83 = tpu.matmul %82, %80, %cst_72 {dimension_numbers = #tpu.dot_dimension_numbers<[1], [0], [0], [1], [0, 0, 1, 1], [], []>} : vector<64x256xbf16>, vector<256x8xbf16>, vector<64x8xf32> -> vector<64x8xf32>
    %c1_73 = arith.constant 1 : index
    %c0_74 = arith.constant 0 : index
    %c0_75 = arith.constant 0 : index
    %84 = vector.load %arg5[%c1_73, %c0_74, %c0_75] : memref<4x64x256xbf16, #tpu.memory_space<vmem>>, vector<1x64x256xbf16>
    %85 = vector.shape_cast %84 : vector<1x64x256xbf16> to vector<64x256xbf16>
    %cst_76 = arith.constant dense<0.000000e+00> : vector<64x8xf32>
    %86 = tpu.matmul %85, %80, %cst_76 {dimension_numbers = #tpu.dot_dimension_numbers<[1], [0], [0], [1], [0, 0, 1, 1], [], []>} : vector<64x256xbf16>, vector<256x8xbf16>, vector<64x8xf32> -> vector<64x8xf32>
    %87 = arith.maximumf %83, %86 : vector<64x8xf32>
    %c2_77 = arith.constant 2 : index
    %c0_78 = arith.constant 0 : index
    %c0_79 = arith.constant 0 : index
    %88 = vector.load %arg5[%c2_77, %c0_78, %c0_79] : memref<4x64x256xbf16, #tpu.memory_space<vmem>>, vector<1x64x256xbf16>
    %89 = vector.shape_cast %88 : vector<1x64x256xbf16> to vector<64x256xbf16>
    %cst_80 = arith.constant dense<0.000000e+00> : vector<64x8xf32>
    %90 = tpu.matmul %89, %80, %cst_80 {dimension_numbers = #tpu.dot_dimension_numbers<[1], [0], [0], [1], [0, 0, 1, 1], [], []>} : vector<64x256xbf16>, vector<256x8xbf16>, vector<64x8xf32> -> vector<64x8xf32>
    %91 = arith.maximumf %87, %90 : vector<64x8xf32>
    %c3_81 = arith.constant 3 : index
    %c0_82 = arith.constant 0 : index
    %c0_83 = arith.constant 0 : index
    %92 = vector.load %arg5[%c3_81, %c0_82, %c0_83] : memref<4x64x256xbf16, #tpu.memory_space<vmem>>, vector<1x64x256xbf16>
    %93 = vector.shape_cast %92 : vector<1x64x256xbf16> to vector<64x256xbf16>
    %cst_84 = arith.constant dense<0.000000e+00> : vector<64x8xf32>
    %94 = tpu.matmul %93, %80, %cst_84 {dimension_numbers = #tpu.dot_dimension_numbers<[1], [0], [0], [1], [0, 0, 1, 1], [], []>} : vector<64x256xbf16>, vector<256x8xbf16>, vector<64x8xf32> -> vector<64x8xf32>
    %95 = arith.maximumf %91, %94 : vector<64x8xf32>
    %96 = arith.truncf %95 : vector<64x8xf32> to vector<64x8xbf16>
    %cst_85 = arith.constant 0.000000e+00 : f32
    %97 = vector.broadcast %cst_85 : f32 to vector<64x16xf32>
    %c0_86 = arith.constant 0 : index
    %c0_87 = arith.constant 0 : index
    %c0_88 = arith.constant 0 : index
    %98 = vector.load %arg6[%c0_86, %c0_87, %c0_88] : memref<9x64x64xbf16, #tpu.memory_space<vmem>>, vector<1x64x64xbf16>
    %99 = vector.shape_cast %98 : vector<1x64x64xbf16> to vector<64x64xbf16>
    %cst_89 = arith.constant dense<0.000000e+00> : vector<64x8xf32>
    %100 = tpu.matmul %99, %96, %cst_89 {dimension_numbers = #tpu.dot_dimension_numbers<[1], [0], [0], [1], [0, 0, 1, 1], [], []>} : vector<64x64xbf16>, vector<64x8xbf16>, vector<64x8xf32> -> vector<64x8xf32>
    %101 = arith.truncf %100 : vector<64x8xf32> to vector<64x8xbf16>
    %c0_90 = arith.constant 0 : index
    %c0_91 = arith.constant 0 : index
    %c0_92 = arith.constant 0 : index
    %102 = vector.load %arg7[%c0_90, %c0_91, %c0_92] : memref<9x8x16xbf16, #tpu.memory_space<vmem>>, vector<1x8x16xbf16>
    %103 = vector.shape_cast %102 : vector<1x8x16xbf16> to vector<8x16xbf16>
    %cst_93 = arith.constant dense<0.000000e+00> : vector<64x16xf32>
    %104 = tpu.matmul %101, %103, %cst_93 {dimension_numbers = #tpu.dot_dimension_numbers<[1], [0], [0], [1], [0, 0, 1, 1], [], []>} : vector<64x8xbf16>, vector<8x16xbf16>, vector<64x16xf32> -> vector<64x16xf32>
    %105 = arith.addf %97, %104 : vector<64x16xf32>
    %c1_94 = arith.constant 1 : index
    %c0_95 = arith.constant 0 : index
    %c0_96 = arith.constant 0 : index
    %106 = vector.load %arg6[%c1_94, %c0_95, %c0_96] : memref<9x64x64xbf16, #tpu.memory_space<vmem>>, vector<1x64x64xbf16>
    %107 = vector.shape_cast %106 : vector<1x64x64xbf16> to vector<64x64xbf16>
    %cst_97 = arith.constant dense<0.000000e+00> : vector<64x8xf32>
    %108 = tpu.matmul %107, %96, %cst_97 {dimension_numbers = #tpu.dot_dimension_numbers<[1], [0], [0], [1], [0, 0, 1, 1], [], []>} : vector<64x64xbf16>, vector<64x8xbf16>, vector<64x8xf32> -> vector<64x8xf32>
    %109 = arith.truncf %108 : vector<64x8xf32> to vector<64x8xbf16>
    %c1_98 = arith.constant 1 : index
    %c0_99 = arith.constant 0 : index
    %c0_100 = arith.constant 0 : index
    %110 = vector.load %arg7[%c1_98, %c0_99, %c0_100] : memref<9x8x16xbf16, #tpu.memory_space<vmem>>, vector<1x8x16xbf16>
    %111 = vector.shape_cast %110 : vector<1x8x16xbf16> to vector<8x16xbf16>
    %cst_101 = arith.constant dense<0.000000e+00> : vector<64x16xf32>
    %112 = tpu.matmul %109, %111, %cst_101 {dimension_numbers = #tpu.dot_dimension_numbers<[1], [0], [0], [1], [0, 0, 1, 1], [], []>} : vector<64x8xbf16>, vector<8x16xbf16>, vector<64x16xf32> -> vector<64x16xf32>
    %113 = arith.addf %105, %112 : vector<64x16xf32>
    %c2_102 = arith.constant 2 : index
    %c0_103 = arith.constant 0 : index
    %c0_104 = arith.constant 0 : index
    %114 = vector.load %arg6[%c2_102, %c0_103, %c0_104] : memref<9x64x64xbf16, #tpu.memory_space<vmem>>, vector<1x64x64xbf16>
    %115 = vector.shape_cast %114 : vector<1x64x64xbf16> to vector<64x64xbf16>
    %cst_105 = arith.constant dense<0.000000e+00> : vector<64x8xf32>
    %116 = tpu.matmul %115, %96, %cst_105 {dimension_numbers = #tpu.dot_dimension_numbers<[1], [0], [0], [1], [0, 0, 1, 1], [], []>} : vector<64x64xbf16>, vector<64x8xbf16>, vector<64x8xf32> -> vector<64x8xf32>
    %117 = arith.truncf %116 : vector<64x8xf32> to vector<64x8xbf16>
    %c2_106 = arith.constant 2 : index
    %c0_107 = arith.constant 0 : index
    %c0_108 = arith.constant 0 : index
    %118 = vector.load %arg7[%c2_106, %c0_107, %c0_108] : memref<9x8x16xbf16, #tpu.memory_space<vmem>>, vector<1x8x16xbf16>
    %119 = vector.shape_cast %118 : vector<1x8x16xbf16> to vector<8x16xbf16>
    %cst_109 = arith.constant dense<0.000000e+00> : vector<64x16xf32>
    %120 = tpu.matmul %117, %119, %cst_109 {dimension_numbers = #tpu.dot_dimension_numbers<[1], [0], [0], [1], [0, 0, 1, 1], [], []>} : vector<64x8xbf16>, vector<8x16xbf16>, vector<64x16xf32> -> vector<64x16xf32>
    %121 = arith.addf %113, %120 : vector<64x16xf32>
    %c3_110 = arith.constant 3 : index
    %c0_111 = arith.constant 0 : index
    %c0_112 = arith.constant 0 : index
    %122 = vector.load %arg6[%c3_110, %c0_111, %c0_112] : memref<9x64x64xbf16, #tpu.memory_space<vmem>>, vector<1x64x64xbf16>
    %123 = vector.shape_cast %122 : vector<1x64x64xbf16> to vector<64x64xbf16>
    %cst_113 = arith.constant dense<0.000000e+00> : vector<64x8xf32>
    %124 = tpu.matmul %123, %96, %cst_113 {dimension_numbers = #tpu.dot_dimension_numbers<[1], [0], [0], [1], [0, 0, 1, 1], [], []>} : vector<64x64xbf16>, vector<64x8xbf16>, vector<64x8xf32> -> vector<64x8xf32>
    %125 = arith.truncf %124 : vector<64x8xf32> to vector<64x8xbf16>
    %c3_114 = arith.constant 3 : index
    %c0_115 = arith.constant 0 : index
    %c0_116 = arith.constant 0 : index
    %126 = vector.load %arg7[%c3_114, %c0_115, %c0_116] : memref<9x8x16xbf16, #tpu.memory_space<vmem>>, vector<1x8x16xbf16>
    %127 = vector.shape_cast %126 : vector<1x8x16xbf16> to vector<8x16xbf16>
    %cst_117 = arith.constant dense<0.000000e+00> : vector<64x16xf32>
    %128 = tpu.matmul %125, %127, %cst_117 {dimension_numbers = #tpu.dot_dimension_numbers<[1], [0], [0], [1], [0, 0, 1, 1], [], []>} : vector<64x8xbf16>, vector<8x16xbf16>, vector<64x16xf32> -> vector<64x16xf32>
    %129 = arith.addf %121, %128 : vector<64x16xf32>
    %c4_118 = arith.constant 4 : index
    %c0_119 = arith.constant 0 : index
    %c0_120 = arith.constant 0 : index
    %130 = vector.load %arg6[%c4_118, %c0_119, %c0_120] : memref<9x64x64xbf16, #tpu.memory_space<vmem>>, vector<1x64x64xbf16>
    %131 = vector.shape_cast %130 : vector<1x64x64xbf16> to vector<64x64xbf16>
    %cst_121 = arith.constant dense<0.000000e+00> : vector<64x8xf32>
    %132 = tpu.matmul %131, %96, %cst_121 {dimension_numbers = #tpu.dot_dimension_numbers<[1], [0], [0], [1], [0, 0, 1, 1], [], []>} : vector<64x64xbf16>, vector<64x8xbf16>, vector<64x8xf32> -> vector<64x8xf32>
    %133 = arith.truncf %132 : vector<64x8xf32> to vector<64x8xbf16>
    %c4_122 = arith.constant 4 : index
    %c0_123 = arith.constant 0 : index
    %c0_124 = arith.constant 0 : index
    %134 = vector.load %arg7[%c4_122, %c0_123, %c0_124] : memref<9x8x16xbf16, #tpu.memory_space<vmem>>, vector<1x8x16xbf16>
    %135 = vector.shape_cast %134 : vector<1x8x16xbf16> to vector<8x16xbf16>
    %cst_125 = arith.constant dense<0.000000e+00> : vector<64x16xf32>
    %136 = tpu.matmul %133, %135, %cst_125 {dimension_numbers = #tpu.dot_dimension_numbers<[1], [0], [0], [1], [0, 0, 1, 1], [], []>} : vector<64x8xbf16>, vector<8x16xbf16>, vector<64x16xf32> -> vector<64x16xf32>
    %137 = arith.addf %129, %136 : vector<64x16xf32>
    %c5_126 = arith.constant 5 : index
    %c0_127 = arith.constant 0 : index
    %c0_128 = arith.constant 0 : index
    %138 = vector.load %arg6[%c5_126, %c0_127, %c0_128] : memref<9x64x64xbf16, #tpu.memory_space<vmem>>, vector<1x64x64xbf16>
    %139 = vector.shape_cast %138 : vector<1x64x64xbf16> to vector<64x64xbf16>
    %cst_129 = arith.constant dense<0.000000e+00> : vector<64x8xf32>
    %140 = tpu.matmul %139, %96, %cst_129 {dimension_numbers = #tpu.dot_dimension_numbers<[1], [0], [0], [1], [0, 0, 1, 1], [], []>} : vector<64x64xbf16>, vector<64x8xbf16>, vector<64x8xf32> -> vector<64x8xf32>
    %141 = arith.truncf %140 : vector<64x8xf32> to vector<64x8xbf16>
    %c5_130 = arith.constant 5 : index
    %c0_131 = arith.constant 0 : index
    %c0_132 = arith.constant 0 : index
    %142 = vector.load %arg7[%c5_130, %c0_131, %c0_132] : memref<9x8x16xbf16, #tpu.memory_space<vmem>>, vector<1x8x16xbf16>
    %143 = vector.shape_cast %142 : vector<1x8x16xbf16> to vector<8x16xbf16>
    %cst_133 = arith.constant dense<0.000000e+00> : vector<64x16xf32>
    %144 = tpu.matmul %141, %143, %cst_133 {dimension_numbers = #tpu.dot_dimension_numbers<[1], [0], [0], [1], [0, 0, 1, 1], [], []>} : vector<64x8xbf16>, vector<8x16xbf16>, vector<64x16xf32> -> vector<64x16xf32>
    %145 = arith.addf %137, %144 : vector<64x16xf32>
    %c6_134 = arith.constant 6 : index
    %c0_135 = arith.constant 0 : index
    %c0_136 = arith.constant 0 : index
    %146 = vector.load %arg6[%c6_134, %c0_135, %c0_136] : memref<9x64x64xbf16, #tpu.memory_space<vmem>>, vector<1x64x64xbf16>
    %147 = vector.shape_cast %146 : vector<1x64x64xbf16> to vector<64x64xbf16>
    %cst_137 = arith.constant dense<0.000000e+00> : vector<64x8xf32>
    %148 = tpu.matmul %147, %96, %cst_137 {dimension_numbers = #tpu.dot_dimension_numbers<[1], [0], [0], [1], [0, 0, 1, 1], [], []>} : vector<64x64xbf16>, vector<64x8xbf16>, vector<64x8xf32> -> vector<64x8xf32>
    %149 = arith.truncf %148 : vector<64x8xf32> to vector<64x8xbf16>
    %c6_138 = arith.constant 6 : index
    %c0_139 = arith.constant 0 : index
    %c0_140 = arith.constant 0 : index
    %150 = vector.load %arg7[%c6_138, %c0_139, %c0_140] : memref<9x8x16xbf16, #tpu.memory_space<vmem>>, vector<1x8x16xbf16>
    %151 = vector.shape_cast %150 : vector<1x8x16xbf16> to vector<8x16xbf16>
    %cst_141 = arith.constant dense<0.000000e+00> : vector<64x16xf32>
    %152 = tpu.matmul %149, %151, %cst_141 {dimension_numbers = #tpu.dot_dimension_numbers<[1], [0], [0], [1], [0, 0, 1, 1], [], []>} : vector<64x8xbf16>, vector<8x16xbf16>, vector<64x16xf32> -> vector<64x16xf32>
    %153 = arith.addf %145, %152 : vector<64x16xf32>
    %c7_142 = arith.constant 7 : index
    %c0_143 = arith.constant 0 : index
    %c0_144 = arith.constant 0 : index
    %154 = vector.load %arg6[%c7_142, %c0_143, %c0_144] : memref<9x64x64xbf16, #tpu.memory_space<vmem>>, vector<1x64x64xbf16>
    %155 = vector.shape_cast %154 : vector<1x64x64xbf16> to vector<64x64xbf16>
    %cst_145 = arith.constant dense<0.000000e+00> : vector<64x8xf32>
    %156 = tpu.matmul %155, %96, %cst_145 {dimension_numbers = #tpu.dot_dimension_numbers<[1], [0], [0], [1], [0, 0, 1, 1], [], []>} : vector<64x64xbf16>, vector<64x8xbf16>, vector<64x8xf32> -> vector<64x8xf32>
    %157 = arith.truncf %156 : vector<64x8xf32> to vector<64x8xbf16>
    %c7_146 = arith.constant 7 : index
    %c0_147 = arith.constant 0 : index
    %c0_148 = arith.constant 0 : index
    %158 = vector.load %arg7[%c7_146, %c0_147, %c0_148] : memref<9x8x16xbf16, #tpu.memory_space<vmem>>, vector<1x8x16xbf16>
    %159 = vector.shape_cast %158 : vector<1x8x16xbf16> to vector<8x16xbf16>
    %cst_149 = arith.constant dense<0.000000e+00> : vector<64x16xf32>
    %160 = tpu.matmul %157, %159, %cst_149 {dimension_numbers = #tpu.dot_dimension_numbers<[1], [0], [0], [1], [0, 0, 1, 1], [], []>} : vector<64x8xbf16>, vector<8x16xbf16>, vector<64x16xf32> -> vector<64x16xf32>
    %161 = arith.addf %153, %160 : vector<64x16xf32>
    %c8_150 = arith.constant 8 : index
    %c0_151 = arith.constant 0 : index
    %c0_152 = arith.constant 0 : index
    %162 = vector.load %arg6[%c8_150, %c0_151, %c0_152] : memref<9x64x64xbf16, #tpu.memory_space<vmem>>, vector<1x64x64xbf16>
    %163 = vector.shape_cast %162 : vector<1x64x64xbf16> to vector<64x64xbf16>
    %cst_153 = arith.constant dense<0.000000e+00> : vector<64x8xf32>
    %164 = tpu.matmul %163, %96, %cst_153 {dimension_numbers = #tpu.dot_dimension_numbers<[1], [0], [0], [1], [0, 0, 1, 1], [], []>} : vector<64x64xbf16>, vector<64x8xbf16>, vector<64x8xf32> -> vector<64x8xf32>
    %165 = arith.truncf %164 : vector<64x8xf32> to vector<64x8xbf16>
    %c8_154 = arith.constant 8 : index
    %c0_155 = arith.constant 0 : index
    %c0_156 = arith.constant 0 : index
    %166 = vector.load %arg7[%c8_154, %c0_155, %c0_156] : memref<9x8x16xbf16, #tpu.memory_space<vmem>>, vector<1x8x16xbf16>
    %167 = vector.shape_cast %166 : vector<1x8x16xbf16> to vector<8x16xbf16>
    %cst_157 = arith.constant dense<0.000000e+00> : vector<64x16xf32>
    %168 = tpu.matmul %165, %167, %cst_157 {dimension_numbers = #tpu.dot_dimension_numbers<[1], [0], [0], [1], [0, 0, 1, 1], [], []>} : vector<64x8xbf16>, vector<8x16xbf16>, vector<64x16xf32> -> vector<64x16xf32>
    %169 = arith.addf %161, %168 : vector<64x16xf32>
    %c0_158 = arith.constant 0 : index
    %c0_159 = arith.constant 0 : index
    %170 = vector.load %arg8[%c0_158, %c0_159] : memref<1x16xf32, #tpu.memory_space<vmem>>, vector<1x16xf32>
    %171 = vector.broadcast %170 : vector<1x16xf32> to vector<64x16xf32>
    %172 = arith.addf %169, %171 : vector<64x16xf32>
    %cst_160 = arith.constant 0.000000e+00 : f32
    %173 = vector.broadcast %cst_160 : f32 to vector<64x16xf32>
    %174 = arith.maximumf %172, %173 : vector<64x16xf32>
    %175 = arith.truncf %174 : vector<64x16xf32> to vector<64x16xbf16>
    %c0_161 = arith.constant 0 : index
    %c0_162 = arith.constant 0 : index
    %c0_163 = arith.constant 0 : index
    %176 = vector.load %arg9[%c0_161, %c0_162, %c0_163] : memref<4x16x64xbf16, #tpu.memory_space<vmem>>, vector<1x16x64xbf16>
    %177 = vector.shape_cast %176 : vector<1x16x64xbf16> to vector<16x64xbf16>
    %cst_164 = arith.constant dense<0.000000e+00> : vector<16x16xf32>
    %178 = tpu.matmul %177, %175, %cst_164 {dimension_numbers = #tpu.dot_dimension_numbers<[1], [0], [0], [1], [0, 0, 1, 1], [], []>} : vector<16x64xbf16>, vector<64x16xbf16>, vector<16x16xf32> -> vector<16x16xf32>
    %c1_165 = arith.constant 1 : index
    %c0_166 = arith.constant 0 : index
    %c0_167 = arith.constant 0 : index
    %179 = vector.load %arg9[%c1_165, %c0_166, %c0_167] : memref<4x16x64xbf16, #tpu.memory_space<vmem>>, vector<1x16x64xbf16>
    %180 = vector.shape_cast %179 : vector<1x16x64xbf16> to vector<16x64xbf16>
    %cst_168 = arith.constant dense<0.000000e+00> : vector<16x16xf32>
    %181 = tpu.matmul %180, %175, %cst_168 {dimension_numbers = #tpu.dot_dimension_numbers<[1], [0], [0], [1], [0, 0, 1, 1], [], []>} : vector<16x64xbf16>, vector<64x16xbf16>, vector<16x16xf32> -> vector<16x16xf32>
    %182 = arith.maximumf %178, %181 : vector<16x16xf32>
    %c2_169 = arith.constant 2 : index
    %c0_170 = arith.constant 0 : index
    %c0_171 = arith.constant 0 : index
    %183 = vector.load %arg9[%c2_169, %c0_170, %c0_171] : memref<4x16x64xbf16, #tpu.memory_space<vmem>>, vector<1x16x64xbf16>
    %184 = vector.shape_cast %183 : vector<1x16x64xbf16> to vector<16x64xbf16>
    %cst_172 = arith.constant dense<0.000000e+00> : vector<16x16xf32>
    %185 = tpu.matmul %184, %175, %cst_172 {dimension_numbers = #tpu.dot_dimension_numbers<[1], [0], [0], [1], [0, 0, 1, 1], [], []>} : vector<16x64xbf16>, vector<64x16xbf16>, vector<16x16xf32> -> vector<16x16xf32>
    %186 = arith.maximumf %182, %185 : vector<16x16xf32>
    %c3_173 = arith.constant 3 : index
    %c0_174 = arith.constant 0 : index
    %c0_175 = arith.constant 0 : index
    %187 = vector.load %arg9[%c3_173, %c0_174, %c0_175] : memref<4x16x64xbf16, #tpu.memory_space<vmem>>, vector<1x16x64xbf16>
    %188 = vector.shape_cast %187 : vector<1x16x64xbf16> to vector<16x64xbf16>
    %cst_176 = arith.constant dense<0.000000e+00> : vector<16x16xf32>
    %189 = tpu.matmul %188, %175, %cst_176 {dimension_numbers = #tpu.dot_dimension_numbers<[1], [0], [0], [1], [0, 0, 1, 1], [], []>} : vector<16x64xbf16>, vector<64x16xbf16>, vector<16x16xf32> -> vector<16x16xf32>
    %190 = arith.maximumf %186, %189 : vector<16x16xf32>
    %191 = arith.truncf %190 : vector<16x16xf32> to vector<16x16xbf16>
    %cst_177 = arith.constant 0.000000e+00 : f32
    %192 = vector.broadcast %cst_177 : f32 to vector<1x32xf32>
    %193 = vector.extract_strided_slice %191 {offsets = [0, 0], sizes = [1, 16], strides = [1, 1]} : vector<16x16xbf16> to vector<1x16xbf16>
    %c0_178 = arith.constant 0 : index
    %c0_179 = arith.constant 0 : index
    %c0_180 = arith.constant 0 : index
    %194 = vector.load %arg10[%c0_178, %c0_179, %c0_180] : memref<16x16x32xbf16, #tpu.memory_space<vmem>>, vector<1x16x32xbf16>
    %195 = vector.shape_cast %194 : vector<1x16x32xbf16> to vector<16x32xbf16>
    %cst_181 = arith.constant dense<0.000000e+00> : vector<1x32xf32>
    %196 = tpu.matmul %193, %195, %cst_181 {dimension_numbers = #tpu.dot_dimension_numbers<[1], [0], [0], [1], [0, 0, 1, 1], [], []>} : vector<1x16xbf16>, vector<16x32xbf16>, vector<1x32xf32> -> vector<1x32xf32>
    %197 = arith.addf %192, %196 : vector<1x32xf32>
    %198 = vector.extract_strided_slice %191 {offsets = [1, 0], sizes = [1, 16], strides = [1, 1]} : vector<16x16xbf16> to vector<1x16xbf16>
    %c1_182 = arith.constant 1 : index
    %c0_183 = arith.constant 0 : index
    %c0_184 = arith.constant 0 : index
    %199 = vector.load %arg10[%c1_182, %c0_183, %c0_184] : memref<16x16x32xbf16, #tpu.memory_space<vmem>>, vector<1x16x32xbf16>
    %200 = vector.shape_cast %199 : vector<1x16x32xbf16> to vector<16x32xbf16>
    %cst_185 = arith.constant dense<0.000000e+00> : vector<1x32xf32>
    %201 = tpu.matmul %198, %200, %cst_185 {dimension_numbers = #tpu.dot_dimension_numbers<[1], [0], [0], [1], [0, 0, 1, 1], [], []>} : vector<1x16xbf16>, vector<16x32xbf16>, vector<1x32xf32> -> vector<1x32xf32>
    %202 = arith.addf %197, %201 : vector<1x32xf32>
    %203 = vector.extract_strided_slice %191 {offsets = [2, 0], sizes = [1, 16], strides = [1, 1]} : vector<16x16xbf16> to vector<1x16xbf16>
    %c2_186 = arith.constant 2 : index
    %c0_187 = arith.constant 0 : index
    %c0_188 = arith.constant 0 : index
    %204 = vector.load %arg10[%c2_186, %c0_187, %c0_188] : memref<16x16x32xbf16, #tpu.memory_space<vmem>>, vector<1x16x32xbf16>
    %205 = vector.shape_cast %204 : vector<1x16x32xbf16> to vector<16x32xbf16>
    %cst_189 = arith.constant dense<0.000000e+00> : vector<1x32xf32>
    %206 = tpu.matmul %203, %205, %cst_189 {dimension_numbers = #tpu.dot_dimension_numbers<[1], [0], [0], [1], [0, 0, 1, 1], [], []>} : vector<1x16xbf16>, vector<16x32xbf16>, vector<1x32xf32> -> vector<1x32xf32>
    %207 = arith.addf %202, %206 : vector<1x32xf32>
    %208 = vector.extract_strided_slice %191 {offsets = [3, 0], sizes = [1, 16], strides = [1, 1]} : vector<16x16xbf16> to vector<1x16xbf16>
    %c3_190 = arith.constant 3 : index
    %c0_191 = arith.constant 0 : index
    %c0_192 = arith.constant 0 : index
    %209 = vector.load %arg10[%c3_190, %c0_191, %c0_192] : memref<16x16x32xbf16, #tpu.memory_space<vmem>>, vector<1x16x32xbf16>
    %210 = vector.shape_cast %209 : vector<1x16x32xbf16> to vector<16x32xbf16>
    %cst_193 = arith.constant dense<0.000000e+00> : vector<1x32xf32>
    %211 = tpu.matmul %208, %210, %cst_193 {dimension_numbers = #tpu.dot_dimension_numbers<[1], [0], [0], [1], [0, 0, 1, 1], [], []>} : vector<1x16xbf16>, vector<16x32xbf16>, vector<1x32xf32> -> vector<1x32xf32>
    %212 = arith.addf %207, %211 : vector<1x32xf32>
    %213 = vector.extract_strided_slice %191 {offsets = [4, 0], sizes = [1, 16], strides = [1, 1]} : vector<16x16xbf16> to vector<1x16xbf16>
    %c4_194 = arith.constant 4 : index
    %c0_195 = arith.constant 0 : index
    %c0_196 = arith.constant 0 : index
    %214 = vector.load %arg10[%c4_194, %c0_195, %c0_196] : memref<16x16x32xbf16, #tpu.memory_space<vmem>>, vector<1x16x32xbf16>
    %215 = vector.shape_cast %214 : vector<1x16x32xbf16> to vector<16x32xbf16>
    %cst_197 = arith.constant dense<0.000000e+00> : vector<1x32xf32>
    %216 = tpu.matmul %213, %215, %cst_197 {dimension_numbers = #tpu.dot_dimension_numbers<[1], [0], [0], [1], [0, 0, 1, 1], [], []>} : vector<1x16xbf16>, vector<16x32xbf16>, vector<1x32xf32> -> vector<1x32xf32>
    %217 = arith.addf %212, %216 : vector<1x32xf32>
    %218 = vector.extract_strided_slice %191 {offsets = [5, 0], sizes = [1, 16], strides = [1, 1]} : vector<16x16xbf16> to vector<1x16xbf16>
    %c5_198 = arith.constant 5 : index
    %c0_199 = arith.constant 0 : index
    %c0_200 = arith.constant 0 : index
    %219 = vector.load %arg10[%c5_198, %c0_199, %c0_200] : memref<16x16x32xbf16, #tpu.memory_space<vmem>>, vector<1x16x32xbf16>
    %220 = vector.shape_cast %219 : vector<1x16x32xbf16> to vector<16x32xbf16>
    %cst_201 = arith.constant dense<0.000000e+00> : vector<1x32xf32>
    %221 = tpu.matmul %218, %220, %cst_201 {dimension_numbers = #tpu.dot_dimension_numbers<[1], [0], [0], [1], [0, 0, 1, 1], [], []>} : vector<1x16xbf16>, vector<16x32xbf16>, vector<1x32xf32> -> vector<1x32xf32>
    %222 = arith.addf %217, %221 : vector<1x32xf32>
    %223 = vector.extract_strided_slice %191 {offsets = [6, 0], sizes = [1, 16], strides = [1, 1]} : vector<16x16xbf16> to vector<1x16xbf16>
    %c6_202 = arith.constant 6 : index
    %c0_203 = arith.constant 0 : index
    %c0_204 = arith.constant 0 : index
    %224 = vector.load %arg10[%c6_202, %c0_203, %c0_204] : memref<16x16x32xbf16, #tpu.memory_space<vmem>>, vector<1x16x32xbf16>
    %225 = vector.shape_cast %224 : vector<1x16x32xbf16> to vector<16x32xbf16>
    %cst_205 = arith.constant dense<0.000000e+00> : vector<1x32xf32>
    %226 = tpu.matmul %223, %225, %cst_205 {dimension_numbers = #tpu.dot_dimension_numbers<[1], [0], [0], [1], [0, 0, 1, 1], [], []>} : vector<1x16xbf16>, vector<16x32xbf16>, vector<1x32xf32> -> vector<1x32xf32>
    %227 = arith.addf %222, %226 : vector<1x32xf32>
    %228 = vector.extract_strided_slice %191 {offsets = [7, 0], sizes = [1, 16], strides = [1, 1]} : vector<16x16xbf16> to vector<1x16xbf16>
    %c7_206 = arith.constant 7 : index
    %c0_207 = arith.constant 0 : index
    %c0_208 = arith.constant 0 : index
    %229 = vector.load %arg10[%c7_206, %c0_207, %c0_208] : memref<16x16x32xbf16, #tpu.memory_space<vmem>>, vector<1x16x32xbf16>
    %230 = vector.shape_cast %229 : vector<1x16x32xbf16> to vector<16x32xbf16>
    %cst_209 = arith.constant dense<0.000000e+00> : vector<1x32xf32>
    %231 = tpu.matmul %228, %230, %cst_209 {dimension_numbers = #tpu.dot_dimension_numbers<[1], [0], [0], [1], [0, 0, 1, 1], [], []>} : vector<1x16xbf16>, vector<16x32xbf16>, vector<1x32xf32> -> vector<1x32xf32>
    %232 = arith.addf %227, %231 : vector<1x32xf32>
    %233 = vector.extract_strided_slice %191 {offsets = [8, 0], sizes = [1, 16], strides = [1, 1]} : vector<16x16xbf16> to vector<1x16xbf16>
    %c8_210 = arith.constant 8 : index
    %c0_211 = arith.constant 0 : index
    %c0_212 = arith.constant 0 : index
    %234 = vector.load %arg10[%c8_210, %c0_211, %c0_212] : memref<16x16x32xbf16, #tpu.memory_space<vmem>>, vector<1x16x32xbf16>
    %235 = vector.shape_cast %234 : vector<1x16x32xbf16> to vector<16x32xbf16>
    %cst_213 = arith.constant dense<0.000000e+00> : vector<1x32xf32>
    %236 = tpu.matmul %233, %235, %cst_213 {dimension_numbers = #tpu.dot_dimension_numbers<[1], [0], [0], [1], [0, 0, 1, 1], [], []>} : vector<1x16xbf16>, vector<16x32xbf16>, vector<1x32xf32> -> vector<1x32xf32>
    %237 = arith.addf %232, %236 : vector<1x32xf32>
    %238 = vector.extract_strided_slice %191 {offsets = [9, 0], sizes = [1, 16], strides = [1, 1]} : vector<16x16xbf16> to vector<1x16xbf16>
    %c9 = arith.constant 9 : index
    %c0_214 = arith.constant 0 : index
    %c0_215 = arith.constant 0 : index
    %239 = vector.load %arg10[%c9, %c0_214, %c0_215] : memref<16x16x32xbf16, #tpu.memory_space<vmem>>, vector<1x16x32xbf16>
    %240 = vector.shape_cast %239 : vector<1x16x32xbf16> to vector<16x32xbf16>
    %cst_216 = arith.constant dense<0.000000e+00> : vector<1x32xf32>
    %241 = tpu.matmul %238, %240, %cst_216 {dimension_numbers = #tpu.dot_dimension_numbers<[1], [0], [0], [1], [0, 0, 1, 1], [], []>} : vector<1x16xbf16>, vector<16x32xbf16>, vector<1x32xf32> -> vector<1x32xf32>
    %242 = arith.addf %237, %241 : vector<1x32xf32>
    %243 = vector.extract_strided_slice %191 {offsets = [10, 0], sizes = [1, 16], strides = [1, 1]} : vector<16x16xbf16> to vector<1x16xbf16>
    %c10 = arith.constant 10 : index
    %c0_217 = arith.constant 0 : index
    %c0_218 = arith.constant 0 : index
    %244 = vector.load %arg10[%c10, %c0_217, %c0_218] : memref<16x16x32xbf16, #tpu.memory_space<vmem>>, vector<1x16x32xbf16>
    %245 = vector.shape_cast %244 : vector<1x16x32xbf16> to vector<16x32xbf16>
    %cst_219 = arith.constant dense<0.000000e+00> : vector<1x32xf32>
    %246 = tpu.matmul %243, %245, %cst_219 {dimension_numbers = #tpu.dot_dimension_numbers<[1], [0], [0], [1], [0, 0, 1, 1], [], []>} : vector<1x16xbf16>, vector<16x32xbf16>, vector<1x32xf32> -> vector<1x32xf32>
    %247 = arith.addf %242, %246 : vector<1x32xf32>
    %248 = vector.extract_strided_slice %191 {offsets = [11, 0], sizes = [1, 16], strides = [1, 1]} : vector<16x16xbf16> to vector<1x16xbf16>
    %c11 = arith.constant 11 : index
    %c0_220 = arith.constant 0 : index
    %c0_221 = arith.constant 0 : index
    %249 = vector.load %arg10[%c11, %c0_220, %c0_221] : memref<16x16x32xbf16, #tpu.memory_space<vmem>>, vector<1x16x32xbf16>
    %250 = vector.shape_cast %249 : vector<1x16x32xbf16> to vector<16x32xbf16>
    %cst_222 = arith.constant dense<0.000000e+00> : vector<1x32xf32>
    %251 = tpu.matmul %248, %250, %cst_222 {dimension_numbers = #tpu.dot_dimension_numbers<[1], [0], [0], [1], [0, 0, 1, 1], [], []>} : vector<1x16xbf16>, vector<16x32xbf16>, vector<1x32xf32> -> vector<1x32xf32>
    %252 = arith.addf %247, %251 : vector<1x32xf32>
    %253 = vector.extract_strided_slice %191 {offsets = [12, 0], sizes = [1, 16], strides = [1, 1]} : vector<16x16xbf16> to vector<1x16xbf16>
    %c12 = arith.constant 12 : index
    %c0_223 = arith.constant 0 : index
    %c0_224 = arith.constant 0 : index
    %254 = vector.load %arg10[%c12, %c0_223, %c0_224] : memref<16x16x32xbf16, #tpu.memory_space<vmem>>, vector<1x16x32xbf16>
    %255 = vector.shape_cast %254 : vector<1x16x32xbf16> to vector<16x32xbf16>
    %cst_225 = arith.constant dense<0.000000e+00> : vector<1x32xf32>
    %256 = tpu.matmul %253, %255, %cst_225 {dimension_numbers = #tpu.dot_dimension_numbers<[1], [0], [0], [1], [0, 0, 1, 1], [], []>} : vector<1x16xbf16>, vector<16x32xbf16>, vector<1x32xf32> -> vector<1x32xf32>
    %257 = arith.addf %252, %256 : vector<1x32xf32>
    %258 = vector.extract_strided_slice %191 {offsets = [13, 0], sizes = [1, 16], strides = [1, 1]} : vector<16x16xbf16> to vector<1x16xbf16>
    %c13 = arith.constant 13 : index
    %c0_226 = arith.constant 0 : index
    %c0_227 = arith.constant 0 : index
    %259 = vector.load %arg10[%c13, %c0_226, %c0_227] : memref<16x16x32xbf16, #tpu.memory_space<vmem>>, vector<1x16x32xbf16>
    %260 = vector.shape_cast %259 : vector<1x16x32xbf16> to vector<16x32xbf16>
    %cst_228 = arith.constant dense<0.000000e+00> : vector<1x32xf32>
    %261 = tpu.matmul %258, %260, %cst_228 {dimension_numbers = #tpu.dot_dimension_numbers<[1], [0], [0], [1], [0, 0, 1, 1], [], []>} : vector<1x16xbf16>, vector<16x32xbf16>, vector<1x32xf32> -> vector<1x32xf32>
    %262 = arith.addf %257, %261 : vector<1x32xf32>
    %263 = vector.extract_strided_slice %191 {offsets = [14, 0], sizes = [1, 16], strides = [1, 1]} : vector<16x16xbf16> to vector<1x16xbf16>
    %c14 = arith.constant 14 : index
    %c0_229 = arith.constant 0 : index
    %c0_230 = arith.constant 0 : index
    %264 = vector.load %arg10[%c14, %c0_229, %c0_230] : memref<16x16x32xbf16, #tpu.memory_space<vmem>>, vector<1x16x32xbf16>
    %265 = vector.shape_cast %264 : vector<1x16x32xbf16> to vector<16x32xbf16>
    %cst_231 = arith.constant dense<0.000000e+00> : vector<1x32xf32>
    %266 = tpu.matmul %263, %265, %cst_231 {dimension_numbers = #tpu.dot_dimension_numbers<[1], [0], [0], [1], [0, 0, 1, 1], [], []>} : vector<1x16xbf16>, vector<16x32xbf16>, vector<1x32xf32> -> vector<1x32xf32>
    %267 = arith.addf %262, %266 : vector<1x32xf32>
    %268 = vector.extract_strided_slice %191 {offsets = [15, 0], sizes = [1, 16], strides = [1, 1]} : vector<16x16xbf16> to vector<1x16xbf16>
    %c15 = arith.constant 15 : index
    %c0_232 = arith.constant 0 : index
    %c0_233 = arith.constant 0 : index
    %269 = vector.load %arg10[%c15, %c0_232, %c0_233] : memref<16x16x32xbf16, #tpu.memory_space<vmem>>, vector<1x16x32xbf16>
    %270 = vector.shape_cast %269 : vector<1x16x32xbf16> to vector<16x32xbf16>
    %cst_234 = arith.constant dense<0.000000e+00> : vector<1x32xf32>
    %271 = tpu.matmul %268, %270, %cst_234 {dimension_numbers = #tpu.dot_dimension_numbers<[1], [0], [0], [1], [0, 0, 1, 1], [], []>} : vector<1x16xbf16>, vector<16x32xbf16>, vector<1x32xf32> -> vector<1x32xf32>
    %272 = arith.addf %267, %271 : vector<1x32xf32>
    %c0_235 = arith.constant 0 : index
    %c0_236 = arith.constant 0 : index
    %273 = vector.load %arg11[%c0_235, %c0_236] : memref<1x32xf32, #tpu.memory_space<vmem>>, vector<1x32xf32>
    %274 = arith.addf %272, %273 : vector<1x32xf32>
    %cst_237 = arith.constant 0.000000e+00 : f32
    %275 = vector.broadcast %cst_237 : f32 to vector<1x32xf32>
    %276 = arith.maximumf %274, %275 : vector<1x32xf32>
    %277 = arith.truncf %276 : vector<1x32xf32> to vector<1x32xbf16>
    %c0_238 = arith.constant 0 : index
    %c0_239 = arith.constant 0 : index
    %278 = vector.load %arg12[%c0_238, %c0_239] : memref<32x10xbf16, #tpu.memory_space<vmem>>, vector<32x10xbf16>
    %cst_240 = arith.constant dense<0.000000e+00> : vector<1x10xf32>
    %279 = tpu.matmul %277, %278, %cst_240 {dimension_numbers = #tpu.dot_dimension_numbers<[1], [0], [0], [1], [0, 0, 1, 1], [], []>} : vector<1x32xbf16>, vector<32x10xbf16>, vector<1x10xf32> -> vector<1x10xf32>
    %c0_241 = arith.constant 0 : index
    %c0_242 = arith.constant 0 : index
    %280 = vector.load %arg13[%c0_241, %c0_242] : memref<1x10xf32, #tpu.memory_space<vmem>>, vector<1x10xf32>
    %281 = arith.addf %279, %280 : vector<1x10xf32>
    %c0_243 = arith.constant 0 : index
    %c0_244 = arith.constant 0 : index
    %c0_245 = arith.constant 0 : index
    %282 = vector.load %arg14[%c0_243, %c0_244, %c0_245] : memref<1x1x10xf32, #tpu.memory_space<vmem>>, vector<1x1x10xf32>
    %283 = vector.shape_cast %282 : vector<1x1x10xf32> to vector<1x10xf32>
    %284 = vector.shape_cast %281 : vector<1x10xf32> to vector<1x1x10xf32>
    tpu.vector_store %arg14[%c0_243, %c0_244, %c0_245], %284 {strides = array<i32>} : memref<1x1x10xf32, #tpu.memory_space<vmem>>, vector<1x1x10xf32>,
    return
  }
  func.func @transform_0(%arg0: i32) -> (i32, i32, i32) {
    %c0_i32 = arith.constant 0 : i32
    %c0_i32_0 = arith.constant 0 : i32
    %c0_i32_1 = arith.constant 0 : i32
    return %arg0, %c0_i32, %c0_i32_0 : i32, i32, i32
  }
  func.func @transform_1(%arg0: i32) -> (i32, i32, i32) {
    %c0_i32 = arith.constant 0 : i32
    %c0_i32_0 = arith.constant 0 : i32
    %c0_i32_1 = arith.constant 0 : i32
    %c0_i32_2 = arith.constant 0 : i32
    return %c0_i32, %c0_i32_0, %c0_i32_1 : i32, i32, i32
  }
  func.func @transform_2(%arg0: i32) -> (i32, i32, i32) {
    %c0_i32 = arith.constant 0 : i32
    %c0_i32_0 = arith.constant 0 : i32
    %c0_i32_1 = arith.constant 0 : i32
    %c0_i32_2 = arith.constant 0 : i32
    return %c0_i32, %c0_i32_0, %c0_i32_1 : i32, i32, i32
  }
  func.func @transform_3(%arg0: i32) -> (i32, i32) {
    %c0_i32 = arith.constant 0 : i32
    %c0_i32_0 = arith.constant 0 : i32
    %c0_i32_1 = arith.constant 0 : i32
    return %c0_i32, %c0_i32_0 : i32, i32
  }
  func.func @transform_4(%arg0: i32) -> (i32, i32, i32) {
    %c0_i32 = arith.constant 0 : i32
    %c0_i32_0 = arith.constant 0 : i32
    %c0_i32_1 = arith.constant 0 : i32
    %c0_i32_2 = arith.constant 0 : i32
    return %c0_i32, %c0_i32_0, %c0_i32_1 : i32, i32, i32
  }
  func.func @transform_5(%arg0: i32) -> (i32, i32, i32) {
    %c0_i32 = arith.constant 0 : i32
    %c0_i32_0 = arith.constant 0 : i32
    %c0_i32_1 = arith.constant 0 : i32
    %c0_i32_2 = arith.constant 0 : i32
    return %c0_i32, %c0_i32_0, %c0_i32_1 : i32, i32, i32
  }
  func.func @transform_6(%arg0: i32) -> (i32, i32, i32) {
    %c0_i32 = arith.constant 0 : i32
    %c0_i32_0 = arith.constant 0 : i32
    %c0_i32_1 = arith.constant 0 : i32
    %c0_i32_2 = arith.constant 0 : i32
    return %c0_i32, %c0_i32_0, %c0_i32_1 : i32, i32, i32
  }
  func.func @transform_7(%arg0: i32) -> (i32, i32) {
    %c0_i32 = arith.constant 0 : i32
    %c0_i32_0 = arith.constant 0 : i32
    %c0_i32_1 = arith.constant 0 : i32
    return %c0_i32, %c0_i32_0 : i32, i32
  }
  func.func @transform_8(%arg0: i32) -> (i32, i32, i32) {
    %c0_i32 = arith.constant 0 : i32
    %c0_i32_0 = arith.constant 0 : i32
    %c0_i32_1 = arith.constant 0 : i32
    %c0_i32_2 = arith.constant 0 : i32
    return %c0_i32, %c0_i32_0, %c0_i32_1 : i32, i32, i32
  }
  func.func @transform_9(%arg0: i32) -> (i32, i32, i32) {
    %c0_i32 = arith.constant 0 : i32
    %c0_i32_0 = arith.constant 0 : i32
    %c0_i32_1 = arith.constant 0 : i32
    %c0_i32_2 = arith.constant 0 : i32
    return %c0_i32, %c0_i32_0, %c0_i32_1 : i32, i32, i32
  }
  func.func @transform_10(%arg0: i32) -> (i32, i32) {
    %c0_i32 = arith.constant 0 : i32
    %c0_i32_0 = arith.constant 0 : i32
    %c0_i32_1 = arith.constant 0 : i32
    return %c0_i32, %c0_i32_0 : i32, i32
  }
  func.func @transform_11(%arg0: i32) -> (i32, i32) {
    %c0_i32 = arith.constant 0 : i32
    %c0_i32_0 = arith.constant 0 : i32
    %c0_i32_1 = arith.constant 0 : i32
    return %c0_i32, %c0_i32_0 : i32, i32
  }
  func.func @transform_12(%arg0: i32) -> (i32, i32) {
    %c0_i32 = arith.constant 0 : i32
    %c0_i32_0 = arith.constant 0 : i32
    %c0_i32_1 = arith.constant 0 : i32
    return %c0_i32, %c0_i32_0 : i32, i32
  }
  func.func @transform_13(%arg0: i32) -> (i32, i32, i32) {
    %c0_i32 = arith.constant 0 : i32
    %c0_i32_0 = arith.constant 0 : i32
    %c0_i32_1 = arith.constant 0 : i32
    return %arg0, %c0_i32, %c0_i32_0 : i32, i32, i32
  }
}

</mosaic_0001>

<llo_original>
// kernel: cnn_forward.1
$region0: #{cnn_forward.1}
  #allocation0 [shape = 'u32[]', space=smem, size = 0x4, offset = 0x4, fixed_abs, tag = 'smem constant byte address 0x4 - core index']
  #allocation1 [shape = 'u32[72,128]{1,0:T(1,128)}', space=vmem, size = 0x9000, scoped, tag = 'internal scratch']
  %s0 = inlined_call_operand.vmem [shape: bf16[2,256,4], index: 0, kind: input, shape index: {}]
  %s1 = inlined_call_operand.hbm [shape: bf16[9,256,256], index: 1, kind: input, shape index: {}]
  %s2 = inlined_call_operand.vmem [shape: bf16[9,4,8], index: 2, kind: input, shape index: {}]
  %s3 = inlined_call_operand.hbm [shape: f32[1,8], index: 3, kind: input, shape index: {}]
  %s4 = inlined_call_operand.hbm [shape: bf16[4,64,256], index: 4, kind: input, shape index: {}]
  %s5 = inlined_call_operand.hbm [shape: bf16[9,64,64], index: 5, kind: input, shape index: {}]
  %s6 = inlined_call_operand.vmem [shape: bf16[9,8,16], index: 6, kind: input, shape index: {}]
  %s7 = inlined_call_operand.hbm [shape: f32[1,16], index: 7, kind: input, shape index: {}]
  %s8 = inlined_call_operand.hbm [shape: bf16[4,16,64], index: 8, kind: input, shape index: {}]
  %s9 = inlined_call_operand.vmem [shape: bf16[16,16,32], index: 9, kind: input, shape index: {}]
  %s10 = inlined_call_operand.hbm [shape: f32[1,32], index: 10, kind: input, shape index: {}]
  %s11 = inlined_call_operand.vmem [shape: bf16[32,10], index: 11, kind: input, shape index: {}]
  %s12 = inlined_call_operand.hbm [shape: f32[1,10], index: 12, kind: input, shape index: {}]
  %s13 = inlined_call_operand.hbm [shape: f32[2,1,10], index: 13, kind: output, shape index: {}]
  %s14 = sld [smem:[#allocation0]]
  $region117: #{cnn_forward.1} parent=0
    _
  %s16 = ssub.s32 1, %s14
  %s17 = scalar_select 0, %s16, %s14
  $region1: #{cnn_forward.1} parent=0
    #allocation2 [shape = 'u8[1179648]{0}', space=vmem, size = 0x120000, scoped, tag = 'input window, operand 1, single buffered']
    #allocation3 [shape = 's32[2]{0}', space=sflag, size = 0x8, scoped, tag = 'scoped memory for cnn_forward.1']
    #allocation4 [shape = 's32[2]{0}', space=sflag, size = 0x8, scoped, tag = 'scoped memory for cnn_forward.1']
    #allocation5 [shape = 'u8[512]{0}', space=vmem, size = 0x400, scoped, tag = 'input window, operand 3, single buffered']
    #allocation6 [shape = 's32[1]{0}', space=sflag, size = 0x4, scoped, tag = 'scoped memory for cnn_forward.1']
    #allocation7 [shape = 'u8[131072]{0}', space=vmem, size = 0x20000, scoped, tag = 'input window, operand 4, single buffered']
    #allocation8 [shape = 'u8[147456]{0}', space=vmem, size = 0x24000, scoped, tag = 'input window, operand 5, single buffered']
    #allocation9 [shape = 's32[1]{0}', space=sflag, size = 0x4, scoped, tag = 'scoped memory for cnn_forward.1']
    #allocation10 [shape = 'u8[512]{0}', space=vmem, size = 0x400, scoped, tag = 'input window, operand 7, single buffered']
    #allocation11 [shape = 'u8[16384]{0}', space=vmem, size = 0x4000, scoped, tag = 'input window, operand 8, single buffered']
    #allocation12 [shape = 's32[1]{0}', space=sflag, size = 0x4, scoped, tag = 'scoped memory for cnn_forward.1']
    #allocation13 [shape = 'u8[512]{0}', space=vmem, size = 0x400, scoped, tag = 'input window, operand 10, single buffered']
    #allocation14 [shape = 'u8[512]{0}', space=vmem, size = 0x400, scoped, tag = 'input window, operand 12, single buffered']
    #allocation15 [shape = 's32[1]{0}', space=sflag, size = 0x4, scoped, tag = 'scoped memory for cnn_forward.1']
    #allocation16 [shape = 'u8[1024]{0}', space=vmem, size = 0x400, scoped, tag = 'output window, operand 0']
    %18 = vsyncpa [#allocation3], 0
    %19 = vsyncpa [#allocation6], 0
    %20 = vsyncpa [#allocation9], 0
    %21 = vsyncpa [#allocation12], 0
    %22 = vsyncpa [#allocation15], 0
    %23 = vsyncpa [#allocation4], 0
    %s24 = scalar_lea.sflag [#allocation4], 1
    %25 = vsyncpa %s24, 0
    loop: start=0, step=1, limit=4
    $region2: #{cnn_forward.1} parent=1 // loop_pre_header
      _
    $region3: #{cnn_forward.1} parent=1 // loop_header
      %s27 = sphi 0, %s31
      %p28 = scmp.ge.s32.totalorder %s27, 4
      %s37 = sphi 0, %s39
      %s40 = sphi 0, %s37
      %s41 = sphi 0, %s40
      %s57 = sphi 0, %s41
      %s61 = sphi 0, %s61
      %s63 = sphi 0, %s61
      %s64 = sphi 0, %s63
      %s78 = sphi 0, %s64
      %s82 = sphi 0, %s82
      %s84 = sphi 0, %s82
      %s85 = sphi 0, %s84
      %s99 = sphi 0, %s85
      %s103 = sphi 0, %s103
      %s105 = sphi 0, %s103
      %s106 = sphi 0, %s105
      %s120 = sphi 0, %s106
      %s124 = sphi 0, %s124
      %s126 = sphi 0, %s124
      %s127 = sphi 0, %s126
      %s141 = sphi 0, %s127
      %s145 = sphi 0, %s145
      %s147 = sphi 0, %s145
      %s148 = sphi 0, %s147
      %s162 = sphi 0, %s148
      %s166 = sphi 0, %s166
      %s168 = sphi 0, %s166
      %s169 = sphi 0, %s168
      %s183 = sphi 0, %s169
      %s187 = sphi 0, %s187
      %s189 = sphi 0, %s187
      %s190 = sphi 0, %s189
      %s204 = sphi 0, %s190
      %s208 = sphi 0, %s208
      %s210 = sphi 0, %s208
      %s211 = sphi 0, %s210
      %s225 = sphi 0, %s211
      %s229 = sphi 0, %s229
      %s231 = sphi 0, %s229
      %s232 = sphi 0, %s231
      %s246 = sphi 0, %s232
      %s250 = sphi 0, %s250
      %s252 = sphi 0, %s250
      %s253 = sphi 0, %s252
      %s267 = sphi 0, %s253
      %s271 = sphi 0, %s271
      %s273 = sphi 0, %s271
      %s274 = sphi 0, %s273
      %s288 = sphi 0, %s274
      %s292 = sphi 0, %s292
      %s294 = sphi 0, %s292
      %s295 = sphi 0, %s294
      %s309 = sphi 0, %s295
      %s315 = sphi 0, %s317
      %s318 = sphi 0, %s315
      %s319 = sphi 0, %s318
      %s335 = sphi 0, %s319
    $region4: #{cnn_forward.1} parent=1 // loop_header_branch
      %30 = sbr.rel (%p28) target = $region8
    $region5: #{cnn_forward.1} parent=1 // loop_body
      %s32 = ssub.s32 %s27, 1
      %s33 = ssub.s32 %s27, 2
      %s34 = sadd.s32 %s27, 1
      %s35 = ssub.s32 %s27, %s34
      %p36 = scmp.eq.s32.totalorder %s35, 0
      %s38 = sadd.s32 %s37, 1
      %s39 = scalar_select %p36, %s37, %s38
      %p42 = pneg %p36
      %p43 = scmp.eq.s32.totalorder %s27, 1
      %p44 = por %p42, %p43
      %p45 = scmp.ne.s32.totalorder %s37, %s40
      %p46 = scmp.eq.s32.totalorder %s27, 0
      %p47 = por %p45, %p46
      %p48 = scmp.ne.s32.totalorder %s37, %s40
      %p49 = scmp.eq.s32.totalorder %s32, 1
      %p50 = por %p48, %p49
      %p51 = scmp.ne.s32.totalorder %s40, %s41
      %p52 = scmp.eq.s32.totalorder %s32, 0
      %p53 = por %p51, %p52
      %p54 = scmp.ne.s32.totalorder %s40, %s41
      %p55 = scmp.eq.s32.totalorder %s33, 1
      %p56 = por %p54, %p55
      %p58 = scmp.ne.s32.totalorder %s41, %s57
      %p59 = scmp.eq.s32.totalorder %s33, 0
      %p60 = por %p58, %p59
      %s62 = sadd.s32 %s61, 1
      %p65 = scmp.eq.s32.totalorder %s27, 1
      %p66 = scmp.ne.s32.totalorder %s61, %s63
      %p67 = scmp.eq.s32.totalorder %s27, 0
      %p68 = por %p66, %p67
      %p69 = scmp.ne.s32.totalorder %s61, %s63
      %p70 = scmp.eq.s32.totalorder %s32, 1
      %p71 = por %p69, %p70
      %p72 = scmp.ne.s32.totalorder %s63, %s64
      %p73 = scmp.eq.s32.totalorder %s32, 0
      %p74 = por %p72, %p73
      %p75 = scmp.ne.s32.totalorder %s63, %s64
      %p76 = scmp.eq.s32.totalorder %s33, 1
      %p77 = por %p75, %p76
      %p79 = scmp.ne.s32.totalorder %s64, %s78
      %p80 = scmp.eq.s32.totalorder %s33, 0
      %p81 = por %p79, %p80
      %s83 = sadd.s32 %s82, 1
      %p86 = scmp.eq.s32.totalorder %s27, 1
      %p87 = scmp.ne.s32.totalorder %s82, %s84
      %p88 = scmp.eq.s32.totalorder %s27, 0
      %p89 = por %p87, %p88
      %p90 = scmp.ne.s32.totalorder %s82, %s84
      %p91 = scmp.eq.s32.totalorder %s32, 1
      %p92 = por %p90, %p91
      %p93 = scmp.ne.s32.totalorder %s84, %s85
      %p94 = scmp.eq.s32.totalorder %s32, 0
      %p95 = por %p93, %p94
      %p96 = scmp.ne.s32.totalorder %s84, %s85
      %p97 = scmp.eq.s32.totalorder %s33, 1
      %p98 = por %p96, %p97
      %p100 = scmp.ne.s32.totalorder %s85, %s99
      %p101 = scmp.eq.s32.totalorder %s33, 0
      %p102 = por %p100, %p101
      %s104 = sadd.s32 %s103, 1
      %p107 = scmp.eq.s32.totalorder %s27, 1
      %p108 = scmp.ne.s32.totalorder %s103, %s105
      %p109 = scmp.eq.s32.totalorder %s27, 0
      %p110 = por %p108, %p109
      %p111 = scmp.ne.s32.totalorder %s103, %s105
      %p112 = scmp.eq.s32.totalorder %s32, 1
      %p113 = por %p111, %p112
      %p114 = scmp.ne.s32.totalorder %s105, %s106
      %p115 = scmp.eq.s32.totalorder %s32, 0
      %p116 = por %p114, %p115
      %p117 = scmp.ne.s32.totalorder %s105, %s106
      %p118 = scmp.eq.s32.totalorder %s33, 1
      %p119 = por %p117, %p118
      %p121 = scmp.ne.s32.totalorder %s106, %s120
      %p122 = scmp.eq.s32.totalorder %s33, 0
      %p123 = por %p121, %p122
      %s125 = sadd.s32 %s124, 1
      %p128 = scmp.eq.s32.totalorder %s27, 1
      %p129 = scmp.ne.s32.totalorder %s124, %s126
      %p130 = scmp.eq.s32.totalorder %s27, 0
      %p131 = por %p129, %p130
      %p132 = scmp.ne.s32.totalorder %s124, %s126
      %p133 = scmp.eq.s32.totalorder %s32, 1
      %p134 = por %p132, %p133
      %p135 = scmp.ne.s32.totalorder %s126, %s127
      %p136 = scmp.eq.s32.totalorder %s32, 0
      %p137 = por %p135, %p136
      %p138 = scmp.ne.s32.totalorder %s126, %s127
      %p139 = scmp.eq.s32.totalorder %s33, 1
      %p140 = por %p138, %p139
      %p142 = scmp.ne.s32.totalorder %s127, %s141
      %p143 = scmp.eq.s32.totalorder %s33, 0
      %p144 = por %p142, %p143
      %s146 = sadd.s32 %s145, 1
      %p149 = scmp.eq.s32.totalorder %s27, 1
      %p150 = scmp.ne.s32.totalorder %s145, %s147
      %p151 = scmp.eq.s32.totalorder %s27, 0
      %p152 = por %p150, %p151
      %p153 = scmp.ne.s32.totalorder %s145, %s147
      %p154 = scmp.eq.s32.totalorder %s32, 1
      %p155 = por %p153, %p154
      %p156 = scmp.ne.s32.totalorder %s147, %s148
      %p157 = scmp.eq.s32.totalorder %s32, 0
      %p158 = por %p156, %p157
      %p159 = scmp.ne.s32.totalorder %s147, %s148
      %p160 = scmp.eq.s32.totalorder %s33, 1
      %p161 = por %p159, %p160
      %p163 = scmp.ne.s32.totalorder %s148, %s162
      %p164 = scmp.eq.s32.totalorder %s33, 0
      %p165 = por %p163, %p164
      %s167 = sadd.s32 %s166, 1
      %p170 = scmp.eq.s32.totalorder %s27, 1
      %p171 = scmp.ne.s32.totalorder %s166, %s168
      %p172 = scmp.eq.s32.totalorder %s27, 0
      %p173 = por %p171, %p172
      %p174 = scmp.ne.s32.totalorder %s166, %s168
      %p175 = scmp.eq.s32.totalorder %s32, 1
      %p176 = por %p174, %p175
      %p177 = scmp.ne.s32.totalorder %s168, %s169
      %p178 = scmp.eq.s32.totalorder %s32, 0
      %p179 = por %p177, %p178
      %p180 = scmp.ne.s32.totalorder %s168, %s169
      %p181 = scmp.eq.s32.totalorder %s33, 1
      %p182 = por %p180, %p181
      %p184 = scmp.ne.s32.totalorder %s169, %s183
      %p185 = scmp.eq.s32.totalorder %s33, 0
      %p186 = por %p184, %p185
      %s188 = sadd.s32 %s187, 1
      %p191 = scmp.eq.s32.totalorder %s27, 1
      %p192 = scmp.ne.s32.totalorder %s187, %s189
      %p193 = scmp.eq.s32.totalorder %s27, 0
      %p194 = por %p192, %p193
      %p195 = scmp.ne.s32.totalorder %s187, %s189
      %p196 = scmp.eq.s32.totalorder %s32, 1
      %p197 = por %p195, %p196
      %p198 = scmp.ne.s32.totalorder %s189, %s190
      %p199 = scmp.eq.s32.totalorder %s32, 0
      %p200 = por %p198, %p199
      %p201 = scmp.ne.s32.totalorder %s189, %s190
      %p202 = scmp.eq.s32.totalorder %s33, 1
      %p203 = por %p201, %p202
      %p205 = scmp.ne.s32.totalorder %s190, %s204
      %p206 = scmp.eq.s32.totalorder %s33, 0
      %p207 = por %p205, %p206
      %s209 = sadd.s32 %s208, 1
      %p212 = scmp.eq.s32.totalorder %s27, 1
      %p213 = scmp.ne.s32.totalorder %s208, %s210
      %p214 = scmp.eq.s32.totalorder %s27, 0
      %p215 = por %p213, %p214
      %p216 = scmp.ne.s32.totalorder %s208, %s210
      %p217 = scmp.eq.s32.totalorder %s32, 1
      %p218 = por %p216, %p217
      %p219 = scmp.ne.s32.totalorder %s210, %s211
      %p220 = scmp.eq.s32.totalorder %s32, 0
      %p221 = por %p219, %p220
      %p222 = scmp.ne.s32.totalorder %s210, %s211
      %p223 = scmp.eq.s32.totalorder %s33, 1
      %p224 = por %p222, %p223
      %p226 = scmp.ne.s32.totalorder %s211, %s225
      %p227 = scmp.eq.s32.totalorder %s33, 0
      %p228 = por %p226, %p227
      %s230 = sadd.s32 %s229, 1
      %p233 = scmp.eq.s32.totalorder %s27, 1
      %p234 = scmp.ne.s32.totalorder %s229, %s231
      %p235 = scmp.eq.s32.totalorder %s27, 0
      %p236 = por %p234, %p235
      %p237 = scmp.ne.s32.totalorder %s229, %s231
      %p238 = scmp.eq.s32.totalorder %s32, 1
      %p239 = por %p237, %p238
      %p240 = scmp.ne.s32.totalorder %s231, %s232
      %p241 = scmp.eq.s32.totalorder %s32, 0
      %p242 = por %p240, %p241
      %p243 = scmp.ne.s32.totalorder %s231, %s232
      %p244 = scmp.eq.s32.totalorder %s33, 1
      %p245 = por %p243, %p244
      %p247 = scmp.ne.s32.totalorder %s232, %s246
      %p248 = scmp.eq.s32.totalorder %s33, 0
      %p249 = por %p247, %p248
      %s251 = sadd.s32 %s250, 1
      %p254 = scmp.eq.s32.totalorder %s27, 1
      %p255 = scmp.ne.s32.totalorder %s250, %s252
      %p256 = scmp.eq.s32.totalorder %s27, 0
      %p257 = por %p255, %p256
      %p258 = scmp.ne.s32.totalorder %s250, %s252
      %p259 = scmp.eq.s32.totalorder %s32, 1
      %p260 = por %p258, %p259
      %p261 = scmp.ne.s32.totalorder %s252, %s253
      %p262 = scmp.eq.s32.totalorder %s32, 0
      %p263 = por %p261, %p262
      %p264 = scmp.ne.s32.totalorder %s252, %s253
      %p265 = scmp.eq.s32.totalorder %s33, 1
      %p266 = por %p264, %p265
      %p268 = scmp.ne.s32.totalorder %s253, %s267
      %p269 = scmp.eq.s32.totalorder %s33, 0
      %p270 = por %p268, %p269
      %s272 = sadd.s32 %s271, 1
      %p275 = scmp.eq.s32.totalorder %s27, 1
      %p276 = scmp.ne.s32.totalorder %s271, %s273
      %p277 = scmp.eq.s32.totalorder %s27, 0
      %p278 = por %p276, %p277
      %p279 = scmp.ne.s32.totalorder %s271, %s273
      %p280 = scmp.eq.s32.totalorder %s32, 1
      %p281 = por %p279, %p280
      %p282 = scmp.ne.s32.totalorder %s273, %s274
      %p283 = scmp.eq.s32.totalorder %s32, 0
      %p284 = por %p282, %p283
      %p285 = scmp.ne.s32.totalorder %s273, %s274
      %p286 = scmp.eq.s32.totalorder %s33, 1
      %p287 = por %p285, %p286
      %p289 = scmp.ne.s32.totalorder %s274, %s288
      %p290 = scmp.eq.s32.totalorder %s33, 0
      %p291 = por %p289, %p290
      %s293 = sadd.s32 %s292, 1
      %p296 = scmp.eq.s32.totalorder %s27, 1
      %p297 = scmp.ne.s32.totalorder %s292, %s294
      %p298 = scmp.eq.s32.totalorder %s27, 0
      %p299 = por %p297, %p298
      %p300 = scmp.ne.s32.totalorder %s292, %s294
      %p301 = scmp.eq.s32.totalorder %s32, 1
      %p302 = por %p300, %p301
      %p303 = scmp.ne.s32.totalorder %s294, %s295
      %p304 = scmp.eq.s32.totalorder %s32, 0
      %p305 = por %p303, %p304
      %p306 = scmp.ne.s32.totalorder %s294, %s295
      %p307 = scmp.eq.s32.totalorder %s33, 1
      %p308 = por %p306, %p307
      %p310 = scmp.ne.s32.totalorder %s295, %s309
      %p311 = scmp.eq.s32.totalorder %s33, 0
      %p312 = por %p310, %p311
      %s313 = ssub.s32 %s27, %s34
      %p314 = scmp.eq.s32.totalorder %s313, 0
      %s316 = sadd.s32 %s315, 1
      %s317 = scalar_select %p314, %s315, %s316
      %p320 = pneg %p314
      %p321 = scmp.eq.s32.totalorder %s27, 1
      %p322 = por %p320, %p321
      %p323 = scmp.ne.s32.totalorder %s315, %s318
      %p324 = scmp.eq.s32.totalorder %s27, 0
      %p325 = por %p323, %p324
      %p326 = scmp.ne.s32.totalorder %s315, %s318
      %p327 = scmp.eq.s32.totalorder %s32, 1
      %p328 = por %p326, %p327
      %p329 = scmp.ne.s32.totalorder %s318, %s319
      %p330 = scmp.eq.s32.totalorder %s32, 0
      %p331 = por %p329, %p330
      %p332 = scmp.ne.s32.totalorder %s318, %s319
      %p333 = scmp.eq.s32.totalorder %s33, 1
      %p334 = por %p332, %p333
      %p336 = scmp.ne.s32.totalorder %s319, %s335
      %p337 = scmp.eq.s32.totalorder %s33, 0
      %p338 = por %p336, %p337
      %p339 = scmp.le.s32.totalorder 1, %s27
      %p340 = scmp.lt.s32.totalorder %s27, 3
      %p341 = pnand %p339, %p340
      %p342 = pneg %p341
      // Predicated region
      $region9: #{cnn_forward.1} parent=5 // pred_check
        _
      $region10: #{cnn_forward.1} parent=5 // pred_check_branch
        %344 = sbr.rel (%p341) target = $region12
      $region11: #{cnn_forward.1} parent=5 // pred_region
        %s345 = ssub.s32 %s27, 1
        // Predicated region
        $region13: #{cnn_forward.1} parent=11 // pred_check
          %p346 = pneg %p74
        $region14: #{cnn_forward.1} parent=11 // pred_check_branch
          %348 = sbr.rel (%p346) target = $region16
        $region15: #{cnn_forward.1} parent=11 // pred_region
          %350 = vsyncadd [#allocation3], 0
          %s351 = sshll.u32 %s1, 4
          %s352 = int_to_ptr.hbm [resolvable:$true] %s351
          %s353 = sshll.u32 [#allocation2], 4
          %s354 = int_to_ptr.vmem [resolvable:$true] %s353
          %359 = dma.hbm_to_vmem [thread:$0]  %s352, 36864, %s354, [#allocation3], 128, 128, 8
        $region16: #{cnn_forward.1} parent=11 // pred_fallthru
          _
        // Predicated region
        $region17: #{cnn_forward.1} parent=11 // pred_check
          %p360 = pneg %p95
        $region18: #{cnn_forward.1} parent=11 // pred_check_branch
          %362 = sbr.rel (%p360) target = $region20
        $region19: #{cnn_forward.1} parent=11 // pred_region
          _
        $region20: #{cnn_forward.1} parent=11 // pred_fallthru
          _
        // Predicated region
        $region21: #{cnn_forward.1} parent=11 // pred_check
          %p363 = pneg %p116
        $region22: #{cnn_forward.1} parent=11 // pred_check_branch
          %365 = sbr.rel (%p363) target = $region24
        $region23: #{cnn_forward.1} parent=11 // pred_region
          %367 = vsyncadd [#allocation6], 0
          %s369 = sshll.u32 %s3, 4
          %s370 = int_to_ptr.hbm [resolvable:$true] %s369
          %s371 = sshll.u32 [#allocation5], 4
          %s372 = int_to_ptr.vmem [resolvable:$true] %s371
          %374 = dma.hbm_to_vmem [thread:$0]  %s370, 16, %s372, [#allocation6]
        $region24: #{cnn_forward.1} parent=11 // pred_fallthru
          _
        // Predicated region
        $region25: #{cnn_forward.1} parent=11 // pred_check
          %p375 = pneg %p137
        $region26: #{cnn_forward.1} parent=11 // pred_check_branch
          %377 = sbr.rel (%p375) target = $region28
        $region27: #{cnn_forward.1} parent=11 // pred_region
          %379 = vsyncadd [#allocation6], 0
          %s380 = sshll.u32 %s4, 4
          %s381 = int_to_ptr.hbm [resolvable:$true] %s380
          %s382 = sshll.u32 [#allocation7], 4
          %s383 = int_to_ptr.vmem [resolvable:$true] %s382
          %388 = dma.hbm_to_vmem [thread:$0]  %s381, 4096, %s383, [#allocation6], 128, 128, 8
        $region28: #{cnn_forward.1} parent=11 // pred_fallthru
          _
        // Predicated region
        $region29: #{cnn_forward.1} parent=11 // pred_check
          %p389 = pneg %p158
        $region30: #{cnn_forward.1} parent=11 // pred_check_branch
          %391 = sbr.rel (%p389) target = $region32
        $region31: #{cnn_forward.1} parent=11 // pred_region
          %393 = vsyncadd [#allocation9], 0
          %s394 = sshll.u32 %s5, 4
          %s395 = int_to_ptr.hbm [resolvable:$true] %s394
          %s396 = sshll.u32 [#allocation8], 4
          %s397 = int_to_ptr.vmem [resolvable:$true] %s396
          %402 = dma.hbm_to_vmem [thread:$0]  %s395, 4608, %s397, [#allocation9], 64, 64, 4
        $region32: #{cnn_forward.1} parent=11 // pred_fallthru
          _
        // Predicated region
        $region33: #{cnn_forward.1} parent=11 // pred_check
          %p403 = pneg %p179
        $region34: #{cnn_forward.1} parent=11 // pred_check_branch
          %405 = sbr.rel (%p403) target = $region36
        $region35: #{cnn_forward.1} parent=11 // pred_region
          _
        $region36: #{cnn_forward.1} parent=11 // pred_fallthru
          _
        // Predicated region
        $region37: #{cnn_forward.1} parent=11 // pred_check
          %p406 = pneg %p200
        $region38: #{cnn_forward.1} parent=11 // pred_check_branch
          %408 = sbr.rel (%p406) target = $region40
        $region39: #{cnn_forward.1} parent=11 // pred_region
          %410 = vsyncadd [#allocation9], 0
          %s412 = sshll.u32 %s7, 4
          %s413 = int_to_ptr.hbm [resolvable:$true] %s412
          %s414 = sshll.u32 [#allocation10], 4
          %s415 = int_to_ptr.vmem [resolvable:$true] %s414
          %417 = dma.hbm_to_vmem [thread:$0]  %s413, 16, %s415, [#allocation9]
        $region40: #{cnn_forward.1} parent=11 // pred_fallthru
          _
        // Predicated region
        $region41: #{cnn_forward.1} parent=11 // pred_check
          %p418 = pneg %p221
        $region42: #{cnn_forward.1} parent=11 // pred_check_branch
          %420 = sbr.rel (%p418) target = $region44
        $region43: #{cnn_forward.1} parent=11 // pred_region
          %422 = vsyncadd [#allocation12], 0
          %s423 = sshll.u32 %s8, 4
          %s424 = int_to_ptr.hbm [resolvable:$true] %s423
          %s425 = sshll.u32 [#allocation11], 4
          %s426 = int_to_ptr.vmem [resolvable:$true] %s425
          %431 = dma.hbm_to_vmem [thread:$0]  %s424, 512, %s426, [#allocation12], 64, 64, 4
        $region44: #{cnn_forward.1} parent=11 // pred_fallthru
          _
        // Predicated region
        $region45: #{cnn_forward.1} parent=11 // pred_check
          %p432 = pneg %p242
        $region46: #{cnn_forward.1} parent=11 // pred_check_branch
          %434 = sbr.rel (%p432) target = $region48
        $region47: #{cnn_forward.1} parent=11 // pred_region
          _
        $region48: #{cnn_forward.1} parent=11 // pred_fallthru
          _
        // Predicated region
        $region49: #{cnn_forward.1} parent=11 // pred_check
          %p435 = pneg %p263
        $region50: #{cnn_forward.1} parent=11 // pred_check_branch
          %437 = sbr.rel (%p435) target = $region52
        $region51: #{cnn_forward.1} parent=11 // pred_region
          %439 = vsyncadd [#allocation12], 0
          %s441 = sshll.u32 %s10, 4
          %s442 = int_to_ptr.hbm [resolvable:$true] %s441
          %s443 = sshll.u32 [#allocation13], 4
          %s444 = int_to_ptr.vmem [resolvable:$true] %s443
          %446 = dma.hbm_to_vmem [thread:$0]  %s442, 16, %s444, [#allocation12]
        $region52: #{cnn_forward.1} parent=11 // pred_fallthru
          _
        // Predicated region
        $region53: #{cnn_forward.1} parent=11 // pred_check
          %p447 = pneg %p284
        $region54: #{cnn_forward.1} parent=11 // pred_check_branch
          %449 = sbr.rel (%p447) target = $region56
        $region55: #{cnn_forward.1} parent=11 // pred_region
          _
        $region56: #{cnn_forward.1} parent=11 // pred_fallthru
          _
        // Predicated region
        $region57: #{cnn_forward.1} parent=11 // pred_check
          %p450 = pneg %p305
        $region58: #{cnn_forward.1} parent=11 // pred_check_branch
          %452 = sbr.rel (%p450) target = $region60
        $region59: #{cnn_forward.1} parent=11 // pred_region
          %454 = vsyncadd [#allocation15], 0
          %s456 = sshll.u32 %s12, 4
          %s457 = int_to_ptr.hbm [resolvable:$true] %s456
          %s458 = sshll.u32 [#allocation14], 4
          %s459 = int_to_ptr.vmem [resolvable:$true] %s458
          %461 = dma.hbm_to_vmem [thread:$0]  %s457, 16, %s459, [#allocation15]
        $region60: #{cnn_forward.1} parent=11 // pred_fallthru
          _
      $region12: #{cnn_forward.1} parent=5 // pred_fallthru
        _
      %p462 = scmp.lt.s32.totalorder %s27, 2
      // Predicated region
      $region61: #{cnn_forward.1} parent=5 // pred_check
        %p463 = pneg %p462
      $region62: #{cnn_forward.1} parent=5 // pred_check_branch
        %465 = sbr.rel (%p463) target = $region64
      $region63: #{cnn_forward.1} parent=5 // pred_region
        // Predicated region
        $region65: #{cnn_forward.1} parent=63 // pred_check
          %p466 = pneg %p47
        $region66: #{cnn_forward.1} parent=63 // pred_check_branch
          %468 = sbr.rel (%p466) target = $region68
        $region67: #{cnn_forward.1} parent=63 // pred_region
          %p469 = scmp.lt.s32.totalorder %s27, 1
          %s470 = scalar_select %p469, %s27, 1
          %s471 = smul.addr %s470, 32
          %s472 = smul.addr %s471, 4
          %s473 = scalar_lea.vmem %s0, %s472
        $region68: #{cnn_forward.1} parent=63 // pred_fallthru
          _
      $region64: #{cnn_forward.1} parent=5 // pred_fallthru
        _
      %p474 = scmp.le.s32.totalorder 1, %s27
      %p475 = scmp.lt.s32.totalorder %s27, 3
      %p476 = pnand %p474, %p475
      %p477 = pneg %p476
      // Predicated region
      $region69: #{cnn_forward.1} parent=5 // pred_check
        _
      $region70: #{cnn_forward.1} parent=5 // pred_check_branch
        %479 = sbr.rel (%p476) target = $region72
      $region71: #{cnn_forward.1} parent=5 // pred_region
        %s480 = ssub.s32 %s27, 1
        // Predicated region
        $region73: #{cnn_forward.1} parent=71 // pred_check
          %p481 = pneg %p74
        $region74: #{cnn_forward.1} parent=71 // pred_check_branch
          %483 = sbr.rel (%p481) target = $region76
        $region75: #{cnn_forward.1} parent=71 // pred_region
          %485 = dma.done [#allocation3], 36864
        $region76: #{cnn_forward.1} parent=71 // pred_fallthru
          _
        // Predicated region
        $region77: #{cnn_forward.1} parent=71 // pred_check
          %p486 = pneg %p116
        $region78: #{cnn_forward.1} parent=71 // pred_check_branch
          %488 = sbr.rel (%p486) target = $region80
        $region79: #{cnn_forward.1} parent=71 // pred_region
          %490 = dma.done [#allocation6], 16
        $region80: #{cnn_forward.1} parent=71 // pred_fallthru
          _
        // Predicated region
        $region81: #{cnn_forward.1} parent=71 // pred_check
          %p491 = pneg %p137
        $region82: #{cnn_forward.1} parent=71 // pred_check_branch
          %493 = sbr.rel (%p491) target = $region84
        $region83: #{cnn_forward.1} parent=71 // pred_region
          %495 = dma.done [#allocation6], 4096
        $region84: #{cnn_forward.1} parent=71 // pred_fallthru
          _
        // Predicated region
        $region85: #{cnn_forward.1} parent=71 // pred_check
          %p496 = pneg %p158
        $region86: #{cnn_forward.1} parent=71 // pred_check_branch
          %498 = sbr.rel (%p496) target = $region88
        $region87: #{cnn_forward.1} parent=71 // pred_region
          %500 = dma.done [#allocation9], 4608
        $region88: #{cnn_forward.1} parent=71 // pred_fallthru
          _
        // Predicated region
        $region89: #{cnn_forward.1} parent=71 // pred_check
          %p501 = pneg %p200
        $region90: #{cnn_forward.1} parent=71 // pred_check_branch
          %503 = sbr.rel (%p501) target = $region92
        $region91: #{cnn_forward.1} parent=71 // pred_region
          %505 = dma.done [#allocation9], 16
        $region92: #{cnn_forward.1} parent=71 // pred_fallthru
          _
        // Predicated region
        $region93: #{cnn_forward.1} parent=71 // pred_check
          %p506 = pneg %p221
        $region94: #{cnn_forward.1} parent=71 // pred_check_branch
          %508 = sbr.rel (%p506) target = $region96
        $region95: #{cnn_forward.1} parent=71 // pred_region
          %510 = dma.done [#allocation12], 512
        $region96: #{cnn_forward.1} parent=71 // pred_fallthru
          _
        // Predicated region
        $region97: #{cnn_forward.1} parent=71 // pred_check
          %p511 = pneg %p263
        $region98: #{cnn_forward.1} parent=71 // pred_check_branch
          %513 = sbr.rel (%p511) target = $region100
        $region99: #{cnn_forward.1} parent=71 // pred_region
          %515 = dma.done [#allocation12], 16
        $region100: #{cnn_forward.1} parent=71 // pred_fallthru
          _
        // Predicated region
        $region101: #{cnn_forward.1} parent=71 // pred_check
          %p516 = pneg %p305
        $region102: #{cnn_forward.1} parent=71 // pred_check_branch
          %518 = sbr.rel (%p516) target = $region104
        $region103: #{cnn_forward.1} parent=71 // pred_region
          %520 = dma.done [#allocation15], 16
        $region104: #{cnn_forward.1} parent=71 // pred_fallthru
          _
        %p521 = scmp.lt.s32.totalorder %s32, 1
        %s522 = scalar_select %p521, %s32, 1
        %s523 = smul.addr %s522, 32
        %s524 = smul.addr %s523, 4
        %s525 = scalar_lea.vmem %s0, %s524
        %p526 = pneg %p53
        %p527 = pneg %p50
        %p528 = pneg %p74
        %p529 = pneg %p71
        %p530 = pneg %p95
        %p531 = pneg %p92
        %p532 = pneg %p116
        %p533 = pneg %p113
        %p534 = pneg %p137
        %p535 = pneg %p134
        %p536 = pneg %p158
        %p537 = pneg %p155
        %p538 = pneg %p179
        %p539 = pneg %p176
        %p540 = pneg %p200
        %p541 = pneg %p197
        %p542 = pneg %p221
        %p543 = pneg %p218
        %p544 = pneg %p242
        %p545 = pneg %p239
        %p546 = pneg %p263
        %p547 = pneg %p260
        %p548 = pneg %p284
        %p549 = pneg %p281
        %p550 = pneg %p305
        %p551 = pneg %p302
        %p552 = pneg %p331
        %p553 = pneg %p328
        %s554 = sand.u32 %s318, 1
        %s555 = scalar_lea.sflag [#allocation4], %s554
        %s556 = sand.u32 %s318, 1
        %s557 = scalar_lea.vmem [#allocation16], %s556
        %p558 = scmp.lt.s32.totalorder %s32, 1
        %s559 = scalar_select %p558, %s32, 1
        %s560 = smul.addr %s559, 32
        %s561 = smul.addr %s560, 4
        %s562 = scalar_lea.vmem %s0, %s561
        %v564 = vld [vmem:[%s562] sm:$0xf]
        %v565 = vld [vmem:[%s562 + $0x4] sm:$0xf]
        %v566 = vld [vmem:[%s562 + $0x8] sm:$0xf]
        %v567 = vld [vmem:[%s562 + $0xc] sm:$0xf]
        %v568 = vld [vmem:[%s562 + $0x10] sm:$0xf]
        %v569 = vld [vmem:[%s562 + $0x14] sm:$0xf]
        %v570 = vld [vmem:[%s562 + $0x18] sm:$0xf]
        %v571 = vld [vmem:[%s562 + $0x1c] sm:$0xf]
        %v572 = vld [vmem:[%s562 + $0x20] sm:$0xf]
        %v573 = vld [vmem:[%s562 + $0x24] sm:$0xf]
        %v574 = vld [vmem:[%s562 + $0x28] sm:$0xf]
        %v575 = vld [vmem:[%s562 + $0x2c] sm:$0xf]
        %v576 = vld [vmem:[%s562 + $0x30] sm:$0xf]
        %v577 = vld [vmem:[%s562 + $0x34] sm:$0xf]
        %v578 = vld [vmem:[%s562 + $0x38] sm:$0xf]
        %v579 = vld [vmem:[%s562 + $0x3c] sm:$0xf]
        %v580 = vld [vmem:[%s562 + $0x40] sm:$0xf]
        %v581 = vld [vmem:[%s562 + $0x44] sm:$0xf]
        %v582 = vld [vmem:[%s562 + $0x48] sm:$0xf]
        %v583 = vld [vmem:[%s562 + $0x4c] sm:$0xf]
        %v584 = vld [vmem:[%s562 + $0x50] sm:$0xf]
        %v585 = vld [vmem:[%s562 + $0x54] sm:$0xf]
        %v586 = vld [vmem:[%s562 + $0x58] sm:$0xf]
        %v587 = vld [vmem:[%s562 + $0x5c] sm:$0xf]
        %v588 = vld [vmem:[%s562 + $0x60] sm:$0xf]
        %v589 = vld [vmem:[%s562 + $0x64] sm:$0xf]
        %v590 = vld [vmem:[%s562 + $0x68] sm:$0xf]
        %v591 = vld [vmem:[%s562 + $0x6c] sm:$0xf]
        %v592 = vld [vmem:[%s562 + $0x70] sm:$0xf]
        %v593 = vld [vmem:[%s562 + $0x74] sm:$0xf]
        %v594 = vld [vmem:[%s562 + $0x78] sm:$0xf]
        %v595 = vld [vmem:[%s562 + $0x7c] sm:$0xf]
        %v596 = vld [vmem:[#allocation2] sm:$0xff]
        %v597 = vld [vmem:[#allocation2 + $0x8] sm:$0xff]
        %v598 = vld [vmem:[#allocation2 + $0x10] sm:$0xff]
        %v599 = vld [vmem:[#allocation2 + $0x18] sm:$0xff]
        %v600 = vld [vmem:[#allocation2 + $0x20] sm:$0xff]
        %v601 = vld [vmem:[#allocation2 + $0x28] sm:$0xff]
        %v602 = vld [vmem:[#allocation2 + $0x30] sm:$0xff]
        %v603 = vld [vmem:[#allocation2 + $0x38] sm:$0xff]
        %v604 = vld [vmem:[#allocation2 + $0x40] sm:$0xff]
        %v605 = vld [vmem:[#allocation2 + $0x48] sm:$0xff]
        %v606 = vld [vmem:[#allocation2 + $0x50] sm:$0xff]
        %v607 = vld [vmem:[#allocation2 + $0x58] sm:$0xff]
        %v608 = vld [vmem:[#allocation2 + $0x60] sm:$0xff]
        %v609 = vld [vmem:[#allocation2 + $0x68] sm:$0xff]
        %v610 = vld [vmem:[#allocation2 + $0x70] sm:$0xff]
        %v611 = vld [vmem:[#allocation2 + $0x78] sm:$0xff]
        %v612 = vld [vmem:[#allocation2 + $0x80] sm:$0xff]
        %v613 = vld [vmem:[#allocation2 + $0x88] sm:$0xff]
        %v614 = vld [vmem:[#allocation2 + $0x90] sm:$0xff]
        %v615 = vld [vmem:[#allocation2 + $0x98] sm:$0xff]
        %v616 = vld [vmem:[#allocation2 + $0xa0] sm:$0xff]
        %v617 = vld [vmem:[#allocation2 + $0xa8] sm:$0xff]
        %v618 = vld [vmem:[#allocation2 + $0xb0] sm:$0xff]
        %v619 = vld [vmem:[#allocation2 + $0xb8] sm:$0xff]
        %v620 = vld [vmem:[#allocation2 + $0xc0] sm:$0xff]
        %v621 = vld [vmem:[#allocation2 + $0xc8] sm:$0xff]
        %v622 = vld [vmem:[#allocation2 + $0xd0] sm:$0xff]
        %v623 = vld [vmem:[#allocation2 + $0xd8] sm:$0xff]
        %v624 = vld [vmem:[#allocation2 + $0xe0] sm:$0xff]
        %v625 = vld [vmem:[#allocation2 + $0xe8] sm:$0xff]
        %v626 = vld [vmem:[#allocation2 + $0xf0] sm:$0xff]
        %v627 = vld [vmem:[#allocation2 + $0xf8] sm:$0xff]
        %v660 = vunpack.c.l.b16 %v596
        %v661 = vunpack.c.h.b16 %v596
        %v662 = vunpack.c.l.b16 %v597
        %v663 = vunpack.c.h.b16 %v597
        %v664 = vunpack.c.l.b16 %v598
        %v665 = vunpack.c.h.b16 %v598
        %v666 = vunpack.c.l.b16 %v599
        %v667 = vunpack.c.h.b16 %v599
        %v668 = vunpack.c.l.b16 %v600
        %v669 = vunpack.c.h.b16 %v600
        %v670 = vunpack.c.l.b16 %v601
        %v671 = vunpack.c.h.b16 %v601
        %v672 = vunpack.c.l.b16 %v602
        %v673 = vunpack.c.h.b16 %v602
        %v674 = vunpack.c.l.b16 %v603
        %v675 = vunpack.c.h.b16 %v603
        %v676 = vunpack.c.l.b16 %v604
        %v677 = vunpack.c.h.b16 %v604
        %v678 = vunpack.c.l.b16 %v605
        %v679 = vunpack.c.h.b16 %v605
        %v680 = vunpack.c.l.b16 %v606
        %v681 = vunpack.c.h.b16 %v606
        %v682 = vunpack.c.l.b16 %v607
        %v683 = vunpack.c.h.b16 %v607
        %v684 = vunpack.c.l.b16 %v608
        %v685 = vunpack.c.h.b16 %v608
        %v686 = vunpack.c.l.b16 %v609
        %v687 = vunpack.c.h.b16 %v609
        %v688 = vunpack.c.l.b16 %v610
        %v689 = vunpack.c.h.b16 %v610
        %v690 = vunpack.c.l.b16 %v611
        %v691 = vunpack.c.h.b16 %v611
        %v692 = vunpack.c.l.b16 %v612
        %v693 = vunpack.c.h.b16 %v612
        %v694 = vunpack.c.l.b16 %v613
        %v695 = vunpack.c.h.b16 %v613
        %v696 = vunpack.c.l.b16 %v614
        %v697 = vunpack.c.h.b16 %v614
        %v698 = vunpack.c.l.b16 %v615
        %v699 = vunpack.c.h.b16 %v615
        %v700 = vunpack.c.l.b16 %v616
        %v701 = vunpack.c.h.b16 %v616
        %v702 = vunpack.c.l.b16 %v617
        %v703 = vunpack.c.h.b16 %v617
        %v704 = vunpack.c.l.b16 %v618
        %v705 = vunpack.c.h.b16 %v618
        %v706 = vunpack.c.l.b16 %v619
        %v707 = vunpack.c.h.b16 %v619
        %v708 = vunpack.c.l.b16 %v620
        %v709 = vunpack.c.h.b16 %v620
        %v710 = vunpack.c.l.b16 %v621
        %v711 = vunpack.c.h.b16 %v621
        %v712 = vunpack.c.l.b16 %v622
        %v713 = vunpack.c.h.b16 %v622
        %v714 = vunpack.c.l.b16 %v623
        %v715 = vunpack.c.h.b16 %v623
        %v716 = vunpack.c.l.b16 %v624
        %v717 = vunpack.c.h.b16 %v624
        %v718 = vunpack.c.l.b16 %v625
        %v719 = vunpack.c.h.b16 %v625
        %v720 = vunpack.c.l.b16 %v626
        %v721 = vunpack.c.h.b16 %v626
        %v722 = vunpack.c.l.b16 %v627
        %v723 = vunpack.c.h.b16 %v627
        %v724 = vpack.c.b16 %v662, %v660
        %v725 = vpack.c.b16 %v663, %v661
        %v726 = vpack.c.b16 %v666, %v664
        %v727 = vpack.c.b16 %v667, %v665
        %v728 = vpack.c.b16 %v670, %v668
        %v729 = vpack.c.b16 %v671, %v669
        %v730 = vpack.c.b16 %v674, %v672
        %v731 = vpack.c.b16 %v675, %v673
        %v732 = vpack.c.b16 %v678, %v676
        %v733 = vpack.c.b16 %v679, %v677
        %v734 = vpack.c.b16 %v682, %v680
        %v735 = vpack.c.b16 %v683, %v681
        %v736 = vpack.c.b16 %v686, %v684
        %v737 = vpack.c.b16 %v687, %v685
        %v738 = vpack.c.b16 %v690, %v688
        %v739 = vpack.c.b16 %v691, %v689
        %v740 = vpack.c.b16 %v694, %v692
        %v741 = vpack.c.b16 %v695, %v693
        %v742 = vpack.c.b16 %v698, %v696
        %v743 = vpack.c.b16 %v699, %v697
        %v744 = vpack.c.b16 %v702, %v700
        %v745 = vpack.c.b16 %v703, %v701
        %v746 = vpack.c.b16 %v706, %v704
        %v747 = vpack.c.b16 %v707, %v705
        %v748 = vpack.c.b16 %v710, %v708
        %v749 = vpack.c.b16 %v711, %v709
        %v750 = vpack.c.b16 %v714, %v712
        %v751 = vpack.c.b16 %v715, %v713
        %v752 = vpack.c.b16 %v718, %v716
        %v753 = vpack.c.b16 %v719, %v717
        %v754 = vpack.c.b16 %v722, %v720
        %v755 = vpack.c.b16 %v723, %v721
        %v820 = vunpack.c.l.b16 %v564
        %v821 = vunpack.c.l.b16 %v565
        %v822 = vunpack.c.l.b16 %v566
        %v823 = vunpack.c.l.b16 %v567
        %v824 = vunpack.c.l.b16 %v568
        %v825 = vunpack.c.l.b16 %v569
        %v826 = vunpack.c.l.b16 %v570
        %v827 = vunpack.c.l.b16 %v571
        %v828 = vunpack.c.l.b16 %v572
        %v829 = vunpack.c.l.b16 %v573
        %v830 = vunpack.c.l.b16 %v574
        %v831 = vunpack.c.l.b16 %v575
        %v832 = vunpack.c.l.b16 %v576
        %v833 = vunpack.c.l.b16 %v577
        %v834 = vunpack.c.l.b16 %v578
        %v835 = vunpack.c.l.b16 %v579
        %v836 = vunpack.c.l.b16 %v580
        %v837 = vunpack.c.l.b16 %v581
        %v838 = vunpack.c.l.b16 %v582
        %v839 = vunpack.c.l.b16 %v583
        %v840 = vunpack.c.l.b16 %v584
        %v841 = vunpack.c.l.b16 %v585
        %v842 = vunpack.c.l.b16 %v586
        %v843 = vunpack.c.l.b16 %v587
        %v844 = vunpack.c.l.b16 %v588
        %v845 = vunpack.c.l.b16 %v589
        %v846 = vunpack.c.l.b16 %v590
        %v847 = vunpack.c.l.b16 %v591
        %v848 = vunpack.c.l.b16 %v592
        %v849 = vunpack.c.l.b16 %v593
        %v850 = vunpack.c.l.b16 %v594
        %v851 = vunpack.c.l.b16 %v595
        %v852 = vpack.c.b16 %v821, %v820
        %v853 = vpack.c.b16 %v823, %v822
        %v854 = vpack.c.b16 %v825, %v824
        %v855 = vpack.c.b16 %v827, %v826
        %v856 = vpack.c.b16 %v829, %v828
        %v857 = vpack.c.b16 %v831, %v830
        %v858 = vpack.c.b16 %v833, %v832
        %v859 = vpack.c.b16 %v835, %v834
        %v860 = vpack.c.b16 %v837, %v836
        %v861 = vpack.c.b16 %v839, %v838
        %v862 = vpack.c.b16 %v841, %v840
        %v863 = vpack.c.b16 %v843, %v842
        %v864 = vpack.c.b16 %v845, %v844
        %v865 = vpack.c.b16 %v847, %v846
        %v866 = vpack.c.b16 %v849, %v848
        %v867 = vpack.c.b16 %v851, %v850
        %884 = vmatpush.bf16.msra.mxu0 %v859
        %885 = vmatpush.bf16.msra.mxu0 %v858
        %886 = vmatpush.bf16.msra.mxu0 %v857
        %887 = vmatpush.bf16.msra.mxu0 %v856
        %888 = vmatpush.bf16.msra.mxu0 %v855
        %889 = vmatpush.bf16.msra.mxu0 %v854
        %890 = vmatpush.bf16.msra.mxu0 %v853
        %891 = vmatpush.bf16.msra.mxu0 %v852
        %892 = vmatmul.bf16.gmra.mxu0 %v724
        %v893 = vpop.f32.mrf.mxu0
        %v894 = vadd.f32 0.0, %v893
        %v895 = vpop.f32.mrf.mxu0
        %v896 = vadd.f32 0.0, %v895
        %897 = vmatmul.bf16.gmra.mxu0 %v726
        %v898 = vpop.f32.mrf.mxu0
        %v899 = vadd.f32 0.0, %v898
        %v900 = vpop.f32.mrf.mxu0
        %v901 = vadd.f32 0.0, %v900
        %902 = vmatmul.bf16.gmra.mxu0 %v728
        %v903 = vpop.f32.mrf.mxu0
        %v904 = vadd.f32 0.0, %v903
        %v905 = vpop.f32.mrf.mxu0
        %v906 = vadd.f32 0.0, %v905
        %907 = vmatmul.bf16.gmra.mxu0 %v730
        %v908 = vpop.f32.mrf.mxu0
        %v909 = vadd.f32 0.0, %v908
        %v910 = vpop.f32.mrf.mxu0
        %v911 = vadd.f32 0.0, %v910
        %912 = vmatmul.bf16.gmra.mxu0 %v732
        %v913 = vpop.f32.mrf.mxu0
        %v914 = vadd.f32 0.0, %v913
        %v915 = vpop.f32.mrf.mxu0
        %v916 = vadd.f32 0.0, %v915
        %917 = vmatmul.bf16.gmra.mxu0 %v734
        %v918 = vpop.f32.mrf.mxu0
        %v919 = vadd.f32 0.0, %v918
        %v920 = vpop.f32.mrf.mxu0
        %v921 = vadd.f32 0.0, %v920
        %922 = vmatmul.bf16.gmra.mxu0 %v736
        %v923 = vpop.f32.mrf.mxu0
        %v924 = vadd.f32 0.0, %v923
        %v925 = vpop.f32.mrf.mxu0
        %v926 = vadd.f32 0.0, %v925
        %927 = vmatmul.bf16.gmra.mxu0 %v738
        %v928 = vpop.f32.mrf.mxu0
        %v929 = vadd.f32 0.0, %v928
        %v930 = vpop.f32.mrf.mxu0
        %v931 = vadd.f32 0.0, %v930
        %932 = vmatmul.bf16.gmra.mxu0 %v740
        %v933 = vpop.f32.mrf.mxu0
        %v934 = vadd.f32 0.0, %v933
        %v935 = vpop.f32.mrf.mxu0
        %v936 = vadd.f32 0.0, %v935
        %937 = vmatmul.bf16.gmra.mxu0 %v742
        %v938 = vpop.f32.mrf.mxu0
        %v939 = vadd.f32 0.0, %v938
        %v940 = vpop.f32.mrf.mxu0
        %v941 = vadd.f32 0.0, %v940
        %942 = vmatmul.bf16.gmra.mxu0 %v744
        %v943 = vpop.f32.mrf.mxu0
        %v944 = vadd.f32 0.0, %v943
        %v945 = vpop.f32.mrf.mxu0
        %v946 = vadd.f32 0.0, %v945
        %947 = vmatmul.bf16.gmra.mxu0 %v746
        %v948 = vpop.f32.mrf.mxu0
        %v949 = vadd.f32 0.0, %v948
        %v950 = vpop.f32.mrf.mxu0
        %v951 = vadd.f32 0.0, %v950
        %952 = vmatmul.bf16.gmra.mxu0 %v748
        %v953 = vpop.f32.mrf.mxu0
        %v954 = vadd.f32 0.0, %v953
        %v955 = vpop.f32.mrf.mxu0
        %v956 = vadd.f32 0.0, %v955
        %957 = vmatmul.bf16.gmra.mxu0 %v750
        %v958 = vpop.f32.mrf.mxu0
        %v959 = vadd.f32 0.0, %v958
        %v960 = vpop.f32.mrf.mxu0
        %v961 = vadd.f32 0.0, %v960
        %962 = vmatmul.bf16.gmra.mxu0 %v752
        %v963 = vpop.f32.mrf.mxu0
        %v964 = vadd.f32 0.0, %v963
        %v965 = vpop.f32.mrf.mxu0
        %v966 = vadd.f32 0.0, %v965
        %967 = vmatmul.bf16.gmra.mxu0 %v754
        %v968 = vpop.f32.mrf.mxu0
        %v969 = vadd.f32 0.0, %v968
        %v970 = vpop.f32.mrf.mxu0
        %v971 = vadd.f32 0.0, %v970
        %972 = vdwg.mxu0
        %973 = vmatpush.bf16.msra.mxu0 %v867
        %974 = vmatpush.bf16.msra.mxu0 %v866
        %975 = vmatpush.bf16.msra.mxu0 %v865
        %976 = vmatpush.bf16.msra.mxu0 %v864
        %977 = vmatpush.bf16.msra.mxu0 %v863
        %978 = vmatpush.bf16.msra.mxu0 %v862
        %979 = vmatpush.bf16.msra.mxu0 %v861
        %980 = vmatpush.bf16.msra.mxu0 %v860
        %981 = vmatmul.bf16.gmra.mxu0 %v725
        %v982 = vpop.f32.mrf.mxu0
        %v983 = vadd.f32 %v894, %v982
        %v984 = vpop.f32.mrf.mxu0
        %v985 = vadd.f32 %v896, %v984
        %986 = vmatmul.bf16.gmra.mxu0 %v727
        %v987 = vpop.f32.mrf.mxu0
        %v988 = vadd.f32 %v899, %v987
        %v989 = vpop.f32.mrf.mxu0
        %v990 = vadd.f32 %v901, %v989
        %991 = vmatmul.bf16.gmra.mxu0 %v729
        %v992 = vpop.f32.mrf.mxu0
        %v993 = vadd.f32 %v904, %v992
        %v994 = vpop.f32.mrf.mxu0
        %v995 = vadd.f32 %v906, %v994
        %996 = vmatmul.bf16.gmra.mxu0 %v731
        %v997 = vpop.f32.mrf.mxu0
        %v998 = vadd.f32 %v909, %v997
        %v999 = vpop.f32.mrf.mxu0
        %v1000 = vadd.f32 %v911, %v999
        %1001 = vmatmul.bf16.gmra.mxu0 %v733
        %v1002 = vpop.f32.mrf.mxu0
        %v1003 = vadd.f32 %v914, %v1002
        %v1004 = vpop.f32.mrf.mxu0
        %v1005 = vadd.f32 %v916, %v1004
        %1006 = vmatmul.bf16.gmra.mxu0 %v735
        %v1007 = vpop.f32.mrf.mxu0
        %v1008 = vadd.f32 %v919, %v1007
        %v1009 = vpop.f32.mrf.mxu0
        %v1010 = vadd.f32 %v921, %v1009
        %1011 = vmatmul.bf16.gmra.mxu0 %v737
        %v1012 = vpop.f32.mrf.mxu0
        %v1013 = vadd.f32 %v924, %v1012
        %v1014 = vpop.f32.mrf.mxu0
        %v1015 = vadd.f32 %v926, %v1014
        %1016 = vmatmul.bf16.gmra.mxu0 %v739
        %v1017 = vpop.f32.mrf.mxu0
        %v1018 = vadd.f32 %v929, %v1017
        %v1019 = vpop.f32.mrf.mxu0
        %v1020 = vadd.f32 %v931, %v1019
        %1021 = vmatmul.bf16.gmra.mxu0 %v741
        %v1022 = vpop.f32.mrf.mxu0
        %v1023 = vadd.f32 %v934, %v1022
        %v1024 = vpop.f32.mrf.mxu0
        %v1025 = vadd.f32 %v936, %v1024
        %1026 = vmatmul.bf16.gmra.mxu0 %v743
        %v1027 = vpop.f32.mrf.mxu0
        %v1028 = vadd.f32 %v939, %v1027
        %v1029 = vpop.f32.mrf.mxu0
        %v1030 = vadd.f32 %v941, %v1029
        %1031 = vmatmul.bf16.gmra.mxu0 %v745
        %v1032 = vpop.f32.mrf.mxu0
        %v1033 = vadd.f32 %v944, %v1032
        %v1034 = vpop.f32.mrf.mxu0
        %v1035 = vadd.f32 %v946, %v1034
        %1036 = vmatmul.bf16.gmra.mxu0 %v747
        %v1037 = vpop.f32.mrf.mxu0
        %v1038 = vadd.f32 %v949, %v1037
        %v1039 = vpop.f32.mrf.mxu0
        %v1040 = vadd.f32 %v951, %v1039
        %1041 = vmatmul.bf16.gmra.mxu0 %v749
        %v1042 = vpop.f32.mrf.mxu0
        %v1043 = vadd.f32 %v954, %v1042
        %v1044 = vpop.f32.mrf.mxu0
        %v1045 = vadd.f32 %v956, %v1044
        %1046 = vmatmul.bf16.gmra.mxu0 %v751
        %v1047 = vpop.f32.mrf.mxu0
        %v1048 = vadd.f32 %v959, %v1047
        %v1049 = vpop.f32.mrf.mxu0
        %v1050 = vadd.f32 %v961, %v1049
        %1051 = vmatmul.bf16.gmra.mxu0 %v753
        %v1052 = vpop.f32.mrf.mxu0
        %v1053 = vadd.f32 %v964, %v1052
        %v1054 = vpop.f32.mrf.mxu0
        %v1055 = vadd.f32 %v966, %v1054
        %1056 = vmatmul.bf16.gmra.mxu0 %v755
        %v1057 = vpop.f32.mrf.mxu0
        %v1058 = vadd.f32 %v969, %v1057
        %v1059 = vpop.f32.mrf.mxu0
        %v1060 = vadd.f32 %v971, %v1059
        %1061 = vdwg.mxu0
        %v1062 = vpack.c.bf16 %v985, %v983
        %v1063 = vpack.c.bf16 %v990, %v988
        %v1064 = vpack.c.bf16 %v995, %v993
        %v1065 = vpack.c.bf16 %v1000, %v998
        %v1066 = vpack.c.bf16 %v1005, %v1003
        %v1067 = vpack.c.bf16 %v1010, %v1008
        %v1068 = vpack.c.bf16 %v1015, %v1013
        %v1069 = vpack.c.bf16 %v1020, %v1018
        %v1070 = vpack.c.bf16 %v1025, %v1023
        %v1071 = vpack.c.bf16 %v1030, %v1028
        %v1072 = vpack.c.bf16 %v1035, %v1033
        %v1073 = vpack.c.bf16 %v1040, %v1038
        %v1074 = vpack.c.bf16 %v1045, %v1043
        %v1075 = vpack.c.bf16 %v1050, %v1048
        %v1076 = vpack.c.bf16 %v1055, %v1053
        %v1077 = vpack.c.bf16 %v1060, %v1058
        %v1078 = vld [vmem:[%s2] sm:$0x3]
        %s1079 = scalar_lea.vmem [#allocation2], 256
        %v1080 = vld [vmem:[%s1079] sm:$0xff]
        %v1081 = vld [vmem:[%s1079 + $0x8] sm:$0xff]
        %v1082 = vld [vmem:[%s1079 + $0x10] sm:$0xff]
        %v1083 = vld [vmem:[%s1079 + $0x18] sm:$0xff]
        %v1084 = vld [vmem:[%s1079 + $0x20] sm:$0xff]
        %v1085 = vld [vmem:[%s1079 + $0x28] sm:$0xff]
        %v1086 = vld [vmem:[%s1079 + $0x30] sm:$0xff]
        %v1087 = vld [vmem:[%s1079 + $0x38] sm:$0xff]
        %v1088 = vld [vmem:[%s1079 + $0x40] sm:$0xff]
        %v1089 = vld [vmem:[%s1079 + $0x48] sm:$0xff]
        %v1090 = vld [vmem:[%s1079 + $0x50] sm:$0xff]
        %v1091 = vld [vmem:[%s1079 + $0x58] sm:$0xff]
        %v1092 = vld [vmem:[%s1079 + $0x60] sm:$0xff]
        %v1093 = vld [vmem:[%s1079 + $0x68] sm:$0xff]
        %v1094 = vld [vmem:[%s1079 + $0x70] sm:$0xff]
        %v1095 = vld [vmem:[%s1079 + $0x78] sm:$0xff]
        %v1096 = vld [vmem:[%s1079 + $0x80] sm:$0xff]
        %v1097 = vld [vmem:[%s1079 + $0x88] sm:$0xff]
        %v1098 = vld [vmem:[%s1079 + $0x90] sm:$0xff]
        %v1099 = vld [vmem:[%s1079 + $0x98] sm:$0xff]
        %v1100 = vld [vmem:[%s1079 + $0xa0] sm:$0xff]
        %v1101 = vld [vmem:[%s1079 + $0xa8] sm:$0xff]
        %v1102 = vld [vmem:[%s1079 + $0xb0] sm:$0xff]
        %v1103 = vld [vmem:[%s1079 + $0xb8] sm:$0xff]
        %v1104 = vld [vmem:[%s1079 + $0xc0] sm:$0xff]
        %v1105 = vld [vmem:[%s1079 + $0xc8] sm:$0xff]
        %v1106 = vld [vmem:[%s1079 + $0xd0] sm:$0xff]
        %v1107 = vld [vmem:[%s1079 + $0xd8] sm:$0xff]
        %v1108 = vld [vmem:[%s1079 + $0xe0] sm:$0xff]
        %v1109 = vld [vmem:[%s1079 + $0xe8] sm:$0xff]
        %v1110 = vld [vmem:[%s1079 + $0xf0] sm:$0xff]
        %v1111 = vld [vmem:[%s1079 + $0xf8] sm:$0xff]
        %v1144 = vunpack.c.l.b16 %v1080
        %v1145 = vunpack.c.h.b16 %v1080
        %v1146 = vunpack.c.l.b16 %v1081
        %v1147 = vunpack.c.h.b16 %v1081
        %v1148 = vunpack.c.l.b16 %v1082
        %v1149 = vunpack.c.h.b16 %v1082
        %v1150 = vunpack.c.l.b16 %v1083
        %v1151 = vunpack.c.h.b16 %v1083
        %v1152 = vunpack.c.l.b16 %v1084
        %v1153 = vunpack.c.h.b16 %v1084
        %v1154 = vunpack.c.l.b16 %v1085
        %v1155 = vunpack.c.h.b16 %v1085
        %v1156 = vunpack.c.l.b16 %v1086
        %v1157 = vunpack.c.h.b16 %v1086
        %v1158 = vunpack.c.l.b16 %v1087
        %v1159 = vunpack.c.h.b16 %v1087
        %v1160 = vunpack.c.l.b16 %v1088
        %v1161 = vunpack.c.h.b16 %v1088
        %v1162 = vunpack.c.l.b16 %v1089
        %v1163 = vunpack.c.h.b16 %v1089
        %v1164 = vunpack.c.l.b16 %v1090
        %v1165 = vunpack.c.h.b16 %v1090
        %v1166 = vunpack.c.l.b16 %v1091
        %v1167 = vunpack.c.h.b16 %v1091
        %v1168 = vunpack.c.l.b16 %v1092
        %v1169 = vunpack.c.h.b16 %v1092
        %v1170 = vunpack.c.l.b16 %v1093
        %v1171 = vunpack.c.h.b16 %v1093
        %v1172 = vunpack.c.l.b16 %v1094
        %v1173 = vunpack.c.h.b16 %v1094
        %v1174 = vunpack.c.l.b16 %v1095
        %v1175 = vunpack.c.h.b16 %v1095
        %v1176 = vunpack.c.l.b16 %v1096
        %v1177 = vunpack.c.h.b16 %v1096
        %v1178 = vunpack.c.l.b16 %v1097
        %v1179 = vunpack.c.h.b16 %v1097
        %v1180 = vunpack.c.l.b16 %v1098
        %v1181 = vunpack.c.h.b16 %v1098
        %v1182 = vunpack.c.l.b16 %v1099
        %v1183 = vunpack.c.h.b16 %v1099
        %v1184 = vunpack.c.l.b16 %v1100
        %v1185 = vunpack.c.h.b16 %v1100
        %v1186 = vunpack.c.l.b16 %v1101
        %v1187 = vunpack.c.h.b16 %v1101
        %v1188 = vunpack.c.l.b16 %v1102
        %v1189 = vunpack.c.h.b16 %v1102
        %v1190 = vunpack.c.l.b16 %v1103
        %v1191 = vunpack.c.h.b16 %v1103
        %v1192 = vunpack.c.l.b16 %v1104
        %v1193 = vunpack.c.h.b16 %v1104
        %v1194 = vunpack.c.l.b16 %v1105
        %v1195 = vunpack.c.h.b16 %v1105
        %v1196 = vunpack.c.l.b16 %v1106
        %v1197 = vunpack.c.h.b16 %v1106
        %v1198 = vunpack.c.l.b16 %v1107
        %v1199 = vunpack.c.h.b16 %v1107
        %v1200 = vunpack.c.l.b16 %v1108
        %v1201 = vunpack.c.h.b16 %v1108
        %v1202 = vunpack.c.l.b16 %v1109
        %v1203 = vunpack.c.h.b16 %v1109
        %v1204 = vunpack.c.l.b16 %v1110
        %v1205 = vunpack.c.h.b16 %v1110
        %v1206 = vunpack.c.l.b16 %v1111
        %v1207 = vunpack.c.h.b16 %v1111
        %v1208 = vpack.c.b16 %v1146, %v1144
        %v1209 = vpack.c.b16 %v1147, %v1145
        %v1210 = vpack.c.b16 %v1150, %v1148
        %v1211 = vpack.c.b16 %v1151, %v1149
        %v1212 = vpack.c.b16 %v1154, %v1152
        %v1213 = vpack.c.b16 %v1155, %v1153
        %v1214 = vpack.c.b16 %v1158, %v1156
        %v1215 = vpack.c.b16 %v1159, %v1157
        %v1216 = vpack.c.b16 %v1162, %v1160
        %v1217 = vpack.c.b16 %v1163, %v1161
        %v1218 = vpack.c.b16 %v1166, %v1164
        %v1219 = vpack.c.b16 %v1167, %v1165
        %v1220 = vpack.c.b16 %v1170, %v1168
        %v1221 = vpack.c.b16 %v1171, %v1169
        %v1222 = vpack.c.b16 %v1174, %v1172
        %v1223 = vpack.c.b16 %v1175, %v1173
        %v1224 = vpack.c.b16 %v1178, %v1176
        %v1225 = vpack.c.b16 %v1179, %v1177
        %v1226 = vpack.c.b16 %v1182, %v1180
        %v1227 = vpack.c.b16 %v1183, %v1181
        %v1228 = vpack.c.b16 %v1186, %v1184
        %v1229 = vpack.c.b16 %v1187, %v1185
        %v1230 = vpack.c.b16 %v1190, %v1188
        %v1231 = vpack.c.b16 %v1191, %v1189
        %v1232 = vpack.c.b16 %v1194, %v1192
        %v1233 = vpack.c.b16 %v1195, %v1193
        %v1234 = vpack.c.b16 %v1198, %v1196
        %v1235 = vpack.c.b16 %v1199, %v1197
        %v1236 = vpack.c.b16 %v1202, %v1200
        %v1237 = vpack.c.b16 %v1203, %v1201
        %v1238 = vpack.c.b16 %v1206, %v1204
        %v1239 = vpack.c.b16 %v1207, %v1205
        %1272 = vmatpush.bf16.msra.mxu0 %v859
        %1273 = vmatpush.bf16.msra.mxu0 %v858
        %1274 = vmatpush.bf16.msra.mxu0 %v857
        %1275 = vmatpush.bf16.msra.mxu0 %v856
        %1276 = vmatpush.bf16.msra.mxu0 %v855
        %1277 = vmatpush.bf16.msra.mxu0 %v854
        %1278 = vmatpush.bf16.msra.mxu0 %v853
        %1279 = vmatpush.bf16.msra.mxu0 %v852
        %1280 = vmatmul.bf16.gmra.mxu0 %v1208
        %v1281 = vpop.f32.mrf.mxu0
        %v1282 = vadd.f32 0.0, %v1281
        %v1283 = vpop.f32.mrf.mxu0
        %v1284 = vadd.f32 0.0, %v1283
        %1285 = vmatmul.bf16.gmra.mxu0 %v1210
        %v1286 = vpop.f32.mrf.mxu0
        %v1287 = vadd.f32 0.0, %v1286
        %v1288 = vpop.f32.mrf.mxu0
        %v1289 = vadd.f32 0.0, %v1288
        %1290 = vmatmul.bf16.gmra.mxu0 %v1212
        %v1291 = vpop.f32.mrf.mxu0
        %v1292 = vadd.f32 0.0, %v1291
        %v1293 = vpop.f32.mrf.mxu0
        %v1294 = vadd.f32 0.0, %v1293
        %1295 = vmatmul.bf16.gmra.mxu0 %v1214
        %v1296 = vpop.f32.mrf.mxu0
        %v1297 = vadd.f32 0.0, %v1296
        %v1298 = vpop.f32.mrf.mxu0
        %v1299 = vadd.f32 0.0, %v1298
        %1300 = vmatmul.bf16.gmra.mxu0 %v1216
        %v1301 = vpop.f32.mrf.mxu0
        %v1302 = vadd.f32 0.0, %v1301
        %v1303 = vpop.f32.mrf.mxu0
        %v1304 = vadd.f32 0.0, %v1303
        %1305 = vmatmul.bf16.gmra.mxu0 %v1218
        %v1306 = vpop.f32.mrf.mxu0
        %v1307 = vadd.f32 0.0, %v1306
        %v1308 = vpop.f32.mrf.mxu0
        %v1309 = vadd.f32 0.0, %v1308
        %1310 = vmatmul.bf16.gmra.mxu0 %v1220
        %v1311 = vpop.f32.mrf.mxu0
        %v1312 = vadd.f32 0.0, %v1311
        %v1313 = vpop.f32.mrf.mxu0
        %v1314 = vadd.f32 0.0, %v1313
        %1315 = vmatmul.bf16.gmra.mxu0 %v1222
        %v1316 = vpop.f32.mrf.mxu0
        %v1317 = vadd.f32 0.0, %v1316
        %v1318 = vpop.f32.mrf.mxu0
        %v1319 = vadd.f32 0.0, %v1318
        %1320 = vmatmul.bf16.gmra.mxu0 %v1224
        %v1321 = vpop.f32.mrf.mxu0
        %v1322 = vadd.f32 0.0, %v1321
        %v1323 = vpop.f32.mrf.mxu0
        %v1324 = vadd.f32 0.0, %v1323
        %1325 = vmatmul.bf16.gmra.mxu0 %v1226
        %v1326 = vpop.f32.mrf.mxu0
        %v1327 = vadd.f32 0.0, %v1326
        %v1328 = vpop.f32.mrf.mxu0
        %v1329 = vadd.f32 0.0, %v1328
        %1330 = vmatmul.bf16.gmra.mxu0 %v1228
        %v1331 = vpop.f32.mrf.mxu0
        %v1332 = vadd.f32 0.0, %v1331
        %v1333 = vpop.f32.mrf.mxu0
        %v1334 = vadd.f32 0.0, %v1333
        %1335 = vmatmul.bf16.gmra.mxu0 %v1230
        %v1336 = vpop.f32.mrf.mxu0
        %v1337 = vadd.f32 0.0, %v1336
        %v1338 = vpop.f32.mrf.mxu0
        %v1339 = vadd.f32 0.0, %v1338
        %1340 = vmatmul.bf16.gmra.mxu0 %v1232
        %v1341 = vpop.f32.mrf.mxu0
        %v1342 = vadd.f32 0.0, %v1341
        %v1343 = vpop.f32.mrf.mxu0
        %v1344 = vadd.f32 0.0, %v1343
        %1345 = vmatmul.bf16.gmra.mxu0 %v1234
        %v1346 = vpop.f32.mrf.mxu0
        %v1347 = vadd.f32 0.0, %v1346
        %v1348 = vpop.f32.mrf.mxu0
        %v1349 = vadd.f32 0.0, %v1348
        %1350 = vmatmul.bf16.gmra.mxu0 %v1236
        %v1351 = vpop.f32.mrf.mxu0
        %v1352 = vadd.f32 0.0, %v1351
        %v1353 = vpop.f32.mrf.mxu0
        %v1354 = vadd.f32 0.0, %v1353
        %1355 = vmatmul.bf16.gmra.mxu0 %v1238
        %v1356 = vpop.f32.mrf.mxu0
        %v1357 = vadd.f32 0.0, %v1356
        %v1358 = vpop.f32.mrf.mxu0
        %v1359 = vadd.f32 0.0, %v1358
        %1360 = vdwg.mxu0
        %1361 = vmatpush.bf16.msra.mxu0 %v867
        %1362 = vmatpush.bf16.msra.mxu0 %v866
        %1363 = vmatpush.bf16.msra.mxu0 %v865
        %1364 = vmatpush.bf16.msra.mxu0 %v864
        %1365 = vmatpush.bf16.msra.mxu0 %v863
        %1366 = vmatpush.bf16.msra.mxu0 %v862
        %1367 = vmatpush.bf16.msra.mxu0 %v861
        %1368 = vmatpush.bf16.msra.mxu0 %v860
        %1369 = vmatmul.bf16.gmra.mxu0 %v1209
        %v1370 = vpop.f32.mrf.mxu0
        %v1371 = vadd.f32 %v1282, %v1370
        %v1372 = vpop.f32.mrf.mxu0
        %v1373 = vadd.f32 %v1284, %v1372
        %1374 = vmatmul.bf16.gmra.mxu0 %v1211
        %v1375 = vpop.f32.mrf.mxu0
        %v1376 = vadd.f32 %v1287, %v1375
        %v1377 = vpop.f32.mrf.mxu0
        %v1378 = vadd.f32 %v1289, %v1377
        %1379 = vmatmul.bf16.gmra.mxu0 %v1213
        %v1380 = vpop.f32.mrf.mxu0
        %v1381 = vadd.f32 %v1292, %v1380
        %v1382 = vpop.f32.mrf.mxu0
        %v1383 = vadd.f32 %v1294, %v1382
        %1384 = vmatmul.bf16.gmra.mxu0 %v1215
        %v1385 = vpop.f32.mrf.mxu0
        %v1386 = vadd.f32 %v1297, %v1385
        %v1387 = vpop.f32.mrf.mxu0
        %v1388 = vadd.f32 %v1299, %v1387
        %1389 = vmatmul.bf16.gmra.mxu0 %v1217
        %v1390 = vpop.f32.mrf.mxu0
        %v1391 = vadd.f32 %v1302, %v1390
        %v1392 = vpop.f32.mrf.mxu0
        %v1393 = vadd.f32 %v1304, %v1392
        %1394 = vmatmul.bf16.gmra.mxu0 %v1219
        %v1395 = vpop.f32.mrf.mxu0
        %v1396 = vadd.f32 %v1307, %v1395
        %v1397 = vpop.f32.mrf.mxu0
        %v1398 = vadd.f32 %v1309, %v1397
        %1399 = vmatmul.bf16.gmra.mxu0 %v1221
        %v1400 = vpop.f32.mrf.mxu0
        %v1401 = vadd.f32 %v1312, %v1400
        %v1402 = vpop.f32.mrf.mxu0
        %v1403 = vadd.f32 %v1314, %v1402
        %1404 = vmatmul.bf16.gmra.mxu0 %v1223
        %v1405 = vpop.f32.mrf.mxu0
        %v1406 = vadd.f32 %v1317, %v1405
        %v1407 = vpop.f32.mrf.mxu0
        %v1408 = vadd.f32 %v1319, %v1407
        %1409 = vmatmul.bf16.gmra.mxu0 %v1225
        %v1410 = vpop.f32.mrf.mxu0
        %v1411 = vadd.f32 %v1322, %v1410
        %v1412 = vpop.f32.mrf.mxu0
        %v1413 = vadd.f32 %v1324, %v1412
        %1414 = vmatmul.bf16.gmra.mxu0 %v1227
        %v1415 = vpop.f32.mrf.mxu0
        %v1416 = vadd.f32 %v1327, %v1415
        %v1417 = vpop.f32.mrf.mxu0
        %v1418 = vadd.f32 %v1329, %v1417
        %1419 = vmatmul.bf16.gmra.mxu0 %v1229
        %v1420 = vpop.f32.mrf.mxu0
        %v1421 = vadd.f32 %v1332, %v1420
        %v1422 = vpop.f32.mrf.mxu0
        %v1423 = vadd.f32 %v1334, %v1422
        %1424 = vmatmul.bf16.gmra.mxu0 %v1231
        %v1425 = vpop.f32.mrf.mxu0
        %v1426 = vadd.f32 %v1337, %v1425
        %v1427 = vpop.f32.mrf.mxu0
        %v1428 = vadd.f32 %v1339, %v1427
        %1429 = vmatmul.bf16.gmra.mxu0 %v1233
        %v1430 = vpop.f32.mrf.mxu0
        %v1431 = vadd.f32 %v1342, %v1430
        %v1432 = vpop.f32.mrf.mxu0
        %v1433 = vadd.f32 %v1344, %v1432
        %1434 = vmatmul.bf16.gmra.mxu0 %v1235
        %v1435 = vpop.f32.mrf.mxu0
        %v1436 = vadd.f32 %v1347, %v1435
        %v1437 = vpop.f32.mrf.mxu0
        %v1438 = vadd.f32 %v1349, %v1437
        %1439 = vmatmul.bf16.gmra.mxu0 %v1237
        %v1440 = vpop.f32.mrf.mxu0
        %v1441 = vadd.f32 %v1352, %v1440
        %v1442 = vpop.f32.mrf.mxu0
        %v1443 = vadd.f32 %v1354, %v1442
        %1444 = vmatmul.bf16.gmra.mxu0 %v1239
        %v1445 = vpop.f32.mrf.mxu0
        %v1446 = vadd.f32 %v1357, %v1445
        %v1447 = vpop.f32.mrf.mxu0
        %v1448 = vadd.f32 %v1359, %v1447
        %1449 = vdwg.mxu0
        %v1450 = vpack.c.bf16 %v1373, %v1371
        %v1451 = vpack.c.bf16 %v1378, %v1376
        %v1452 = vpack.c.bf16 %v1383, %v1381
        %v1453 = vpack.c.bf16 %v1388, %v1386
        %v1454 = vpack.c.bf16 %v1393, %v1391
        %v1455 = vpack.c.bf16 %v1398, %v1396
        %v1456 = vpack.c.bf16 %v1403, %v1401
        %v1457 = vpack.c.bf16 %v1408, %v1406
        %v1458 = vpack.c.bf16 %v1413, %v1411
        %v1459 = vpack.c.bf16 %v1418, %v1416
        %v1460 = vpack.c.bf16 %v1423, %v1421
        %v1461 = vpack.c.bf16 %v1428, %v1426
        %v1462 = vpack.c.bf16 %v1433, %v1431
        %v1463 = vpack.c.bf16 %v1438, %v1436
        %v1464 = vpack.c.bf16 %v1443, %v1441
        %v1465 = vpack.c.bf16 %v1448, %v1446
        %s1466 = scalar_lea.vmem %s2, 2
        %v1467 = vld [vmem:[%s1466] sm:$0x3]
        %vm1468 = vcmask 31744
        %v1470 = vsel %vm1468, %v1450, 0
        %v1473 = vsel %vm1468, %v1451, 0
        %v1476 = vsel %vm1468, %v1452, 0
        %v1479 = vsel %vm1468, %v1453, 0
        %v1482 = vsel %vm1468, %v1454, 0
        %v1485 = vsel %vm1468, %v1455, 0
        %v1488 = vsel %vm1468, %v1456, 0
        %v1491 = vsel %vm1468, %v1457, 0
        %v1494 = vsel %vm1468, %v1458, 0
        %v1497 = vsel %vm1468, %v1459, 0
        %v1500 = vsel %vm1468, %v1460, 0
        %v1503 = vsel %vm1468, %v1461, 0
        %v1506 = vsel %vm1468, %v1462, 0
        %v1509 = vsel %vm1468, %v1463, 0
        %v1512 = vsel %vm1468, %v1464, 0
        %v1515 = vsel %vm1468, %v1465, 0
        %vm1517 = vcmask 1041408
        %v1519 = vsel %vm1517, %v1467, 0
        %1521 = vmatpush.bf16.msra.mxu0 0
        %1522 = vmatpush.bf16.msra.mxu0 0
        %1523 = vmatpush.bf16.msra.mxu0 0
        %1524 = vmatpush.bf16.msra.mxu0 0
        %1525 = vmatpush.bf16.msra.mxu0 0
        %1526 = vmatpush.bf16.msra.mxu0 0
        %1527 = vmatpush.bf16.msra.mxu0 0
        %1528 = vmatpush.bf16.msra.mxu0 %v1519
        %1529 = vmatmul.bf16.gmra.mxu0 %v1470
        %v1530 = vpop.f32.mrf.mxu0
        %v1531 = vadd.f32 0.0, %v1530
        %v1532 = vpop.f32.mrf.mxu0
        %v1533 = vadd.f32 0.0, %v1532
        %1534 = vmatmul.bf16.gmra.mxu0 %v1473
        %v1535 = vpop.f32.mrf.mxu0
        %v1536 = vadd.f32 0.0, %v1535
        %v1537 = vpop.f32.mrf.mxu0
        %v1538 = vadd.f32 0.0, %v1537
        %1539 = vmatmul.bf16.gmra.mxu0 %v1476
        %v1540 = vpop.f32.mrf.mxu0
        %v1541 = vadd.f32 0.0, %v1540
        %v1542 = vpop.f32.mrf.mxu0
        %v1543 = vadd.f32 0.0, %v1542
        %1544 = vmatmul.bf16.gmra.mxu0 %v1479
        %v1545 = vpop.f32.mrf.mxu0
        %v1546 = vadd.f32 0.0, %v1545
        %v1547 = vpop.f32.mrf.mxu0
        %v1548 = vadd.f32 0.0, %v1547
        %1549 = vmatmul.bf16.gmra.mxu0 %v1482
        %v1550 = vpop.f32.mrf.mxu0
        %v1551 = vadd.f32 0.0, %v1550
        %v1552 = vpop.f32.mrf.mxu0
        %v1553 = vadd.f32 0.0, %v1552
        %1554 = vmatmul.bf16.gmra.mxu0 %v1485
        %v1555 = vpop.f32.mrf.mxu0
        %v1556 = vadd.f32 0.0, %v1555
        %v1557 = vpop.f32.mrf.mxu0
        %v1558 = vadd.f32 0.0, %v1557
        %1559 = vmatmul.bf16.gmra.mxu0 %v1488
        %v1560 = vpop.f32.mrf.mxu0
        %v1561 = vadd.f32 0.0, %v1560
        %v1562 = vpop.f32.mrf.mxu0
        %v1563 = vadd.f32 0.0, %v1562
        %1564 = vmatmul.bf16.gmra.mxu0 %v1491
        %v1565 = vpop.f32.mrf.mxu0
        %v1566 = vadd.f32 0.0, %v1565
        %v1567 = vpop.f32.mrf.mxu0
        %v1568 = vadd.f32 0.0, %v1567
        %1569 = vmatmul.bf16.gmra.mxu0 %v1494
        %v1570 = vpop.f32.mrf.mxu0
        %v1571 = vadd.f32 0.0, %v1570
        %v1572 = vpop.f32.mrf.mxu0
        %v1573 = vadd.f32 0.0, %v1572
        %1574 = vmatmul.bf16.gmra.mxu0 %v1497
        %v1575 = vpop.f32.mrf.mxu0
        %v1576 = vadd.f32 0.0, %v1575
        %v1577 = vpop.f32.mrf.mxu0
        %v1578 = vadd.f32 0.0, %v1577
        %1579 = vmatmul.bf16.gmra.mxu0 %v1500
        %v1580 = vpop.f32.mrf.mxu0
        %v1581 = vadd.f32 0.0, %v1580
        %v1582 = vpop.f32.mrf.mxu0
        %v1583 = vadd.f32 0.0, %v1582
        %1584 = vmatmul.bf16.gmra.mxu0 %v1503
        %v1585 = vpop.f32.mrf.mxu0
        %v1586 = vadd.f32 0.0, %v1585
        %v1587 = vpop.f32.mrf.mxu0
        %v1588 = vadd.f32 0.0, %v1587
        %1589 = vmatmul.bf16.gmra.mxu0 %v1506
        %v1590 = vpop.f32.mrf.mxu0
        %v1591 = vadd.f32 0.0, %v1590
        %v1592 = vpop.f32.mrf.mxu0
        %v1593 = vadd.f32 0.0, %v1592
        %1594 = vmatmul.bf16.gmra.mxu0 %v1509
        %v1595 = vpop.f32.mrf.mxu0
        %v1596 = vadd.f32 0.0, %v1595
        %v1597 = vpop.f32.mrf.mxu0
        %v1598 = vadd.f32 0.0, %v1597
        %1599 = vmatmul.bf16.gmra.mxu0 %v1512
        %v1600 = vpop.f32.mrf.mxu0
        %v1601 = vadd.f32 0.0, %v1600
        %v1602 = vpop.f32.mrf.mxu0
        %v1603 = vadd.f32 0.0, %v1602
        %1604 = vmatmul.bf16.gmra.mxu0 %v1515
        %v1605 = vpop.f32.mrf.mxu0
        %v1606 = vadd.f32 0.0, %v1605
        %v1607 = vpop.f32.mrf.mxu0
        %v1608 = vadd.f32 0.0, %v1607
        %1609 = vdwg.mxu0
        %v1611 = vsel %vm1468, %v1062, 0
        %v1614 = vsel %vm1468, %v1063, 0
        %v1617 = vsel %vm1468, %v1064, 0
        %v1620 = vsel %vm1468, %v1065, 0
        %v1623 = vsel %vm1468, %v1066, 0
        %v1626 = vsel %vm1468, %v1067, 0
        %v1629 = vsel %vm1468, %v1068, 0
        %v1632 = vsel %vm1468, %v1069, 0
        %v1635 = vsel %vm1468, %v1070, 0
        %v1638 = vsel %vm1468, %v1071, 0
        %v1641 = vsel %vm1468, %v1072, 0
        %v1644 = vsel %vm1468, %v1073, 0
        %v1647 = vsel %vm1468, %v1074, 0
        %v1650 = vsel %vm1468, %v1075, 0
        %v1653 = vsel %vm1468, %v1076, 0
        %v1656 = vsel %vm1468, %v1077, 0
        %v1659 = vsel %vm1517, %v1078, 0
        %1661 = vmatpush.bf16.msra.mxu0 0
        %1662 = vmatpush.bf16.msra.mxu0 0
        %1663 = vmatpush.bf16.msra.mxu0 0
        %1664 = vmatpush.bf16.msra.mxu0 0
        %1665 = vmatpush.bf16.msra.mxu0 0
        %1666 = vmatpush.bf16.msra.mxu0 0
        %1667 = vmatpush.bf16.msra.mxu0 0
        %1668 = vmatpush.bf16.msra.mxu0 %v1659
        %1669 = vmatmul.bf16.gmra.mxu0 %v1611
        %v1670 = vpop.f32.mrf.mxu0
        %v1671 = vadd.f32 %v1531, %v1670
        %v1672 = vpop.f32.mrf.mxu0
        %v1673 = vadd.f32 %v1533, %v1672
        %1674 = vmatmul.bf16.gmra.mxu0 %v1614
        %v1675 = vpop.f32.mrf.mxu0
        %v1676 = vadd.f32 %v1536, %v1675
        %v1677 = vpop.f32.mrf.mxu0
        %v1678 = vadd.f32 %v1538, %v1677
        %1679 = vmatmul.bf16.gmra.mxu0 %v1617
        %v1680 = vpop.f32.mrf.mxu0
        %v1681 = vadd.f32 %v1541, %v1680
        %v1682 = vpop.f32.mrf.mxu0
        %v1683 = vadd.f32 %v1543, %v1682
        %1684 = vmatmul.bf16.gmra.mxu0 %v1620
        %v1685 = vpop.f32.mrf.mxu0
        %v1686 = vadd.f32 %v1546, %v1685
        %v1687 = vpop.f32.mrf.mxu0
        %v1688 = vadd.f32 %v1548, %v1687
        %1689 = vmatmul.bf16.gmra.mxu0 %v1623
        %v1690 = vpop.f32.mrf.mxu0
        %v1691 = vadd.f32 %v1551, %v1690
        %v1692 = vpop.f32.mrf.mxu0
        %v1693 = vadd.f32 %v1553, %v1692
        %1694 = vmatmul.bf16.gmra.mxu0 %v1626
        %v1695 = vpop.f32.mrf.mxu0
        %v1696 = vadd.f32 %v1556, %v1695
        %v1697 = vpop.f32.mrf.mxu0
        %v1698 = vadd.f32 %v1558, %v1697
        %1699 = vmatmul.bf16.gmra.mxu0 %v1629
        %v1700 = vpop.f32.mrf.mxu0
        %v1701 = vadd.f32 %v1561, %v1700
        %v1702 = vpop.f32.mrf.mxu0
        %v1703 = vadd.f32 %v1563, %v1702
        %1704 = vmatmul.bf16.gmra.mxu0 %v1632
        %v1705 = vpop.f32.mrf.mxu0
        %v1706 = vadd.f32 %v1566, %v1705
        %v1707 = vpop.f32.mrf.mxu0
        %v1708 = vadd.f32 %v1568, %v1707
        %1709 = vmatmul.bf16.gmra.mxu0 %v1635
        %v1710 = vpop.f32.mrf.mxu0
        %v1711 = vadd.f32 %v1571, %v1710
        %v1712 = vpop.f32.mrf.mxu0
        %v1713 = vadd.f32 %v1573, %v1712
        %1714 = vmatmul.bf16.gmra.mxu0 %v1638
        %v1715 = vpop.f32.mrf.mxu0
        %v1716 = vadd.f32 %v1576, %v1715
        %v1717 = vpop.f32.mrf.mxu0
        %v1718 = vadd.f32 %v1578, %v1717
        %1719 = vmatmul.bf16.gmra.mxu0 %v1641
        %v1720 = vpop.f32.mrf.mxu0
        %v1721 = vadd.f32 %v1581, %v1720
        %v1722 = vpop.f32.mrf.mxu0
        %v1723 = vadd.f32 %v1583, %v1722
        %1724 = vmatmul.bf16.gmra.mxu0 %v1644
        %v1725 = vpop.f32.mrf.mxu0
        %v1726 = vadd.f32 %v1586, %v1725
        %v1727 = vpop.f32.mrf.mxu0
        %v1728 = vadd.f32 %v1588, %v1727
        %1729 = vmatmul.bf16.gmra.mxu0 %v1647
        %v1730 = vpop.f32.mrf.mxu0
        %v1731 = vadd.f32 %v1591, %v1730
        %v1732 = vpop.f32.mrf.mxu0
        %v1733 = vadd.f32 %v1593, %v1732
        %1734 = vmatmul.bf16.gmra.mxu0 %v1650
        %v1735 = vpop.f32.mrf.mxu0
        %v1736 = vadd.f32 %v1596, %v1735
        %v1737 = vpop.f32.mrf.mxu0
        %v1738 = vadd.f32 %v1598, %v1737
        %1739 = vmatmul.bf16.gmra.mxu0 %v1653
        %v1740 = vpop.f32.mrf.mxu0
        %v1741 = vadd.f32 %v1601, %v1740
        %v1742 = vpop.f32.mrf.mxu0
        %v1743 = vadd.f32 %v1603, %v1742
        %1744 = vmatmul.bf16.gmra.mxu0 %v1656
        %v1745 = vpop.f32.mrf.mxu0
        %v1746 = vadd.f32 %v1606, %v1745
        %v1747 = vpop.f32.mrf.mxu0
        %v1748 = vadd.f32 %v1608, %v1747
        %1749 = vdwg.mxu0
        %s1750 = scalar_lea.vmem [#allocation2], 512
        %v1751 = vld [vmem:[%s1750] sm:$0xff]
        %v1752 = vld [vmem:[%s1750 + $0x8] sm:$0xff]
        %v1753 = vld [vmem:[%s1750 + $0x10] sm:$0xff]
        %v1754 = vld [vmem:[%s1750 + $0x18] sm:$0xff]
        %v1755 = vld [vmem:[%s1750 + $0x20] sm:$0xff]
        %v1756 = vld [vmem:[%s1750 + $0x28] sm:$0xff]
        %v1757 = vld [vmem:[%s1750 + $0x30] sm:$0xff]
        %v1758 = vld [vmem:[%s1750 + $0x38] sm:$0xff]
        %v1759 = vld [vmem:[%s1750 + $0x40] sm:$0xff]
        %v1760 = vld [vmem:[%s1750 + $0x48] sm:$0xff]
        %v1761 = vld [vmem:[%s1750 + $0x50] sm:$0xff]
        %v1762 = vld [vmem:[%s1750 + $0x58] sm:$0xff]
        %v1763 = vld [vmem:[%s1750 + $0x60] sm:$0xff]
        %v1764 = vld [vmem:[%s1750 + $0x68] sm:$0xff]
        %v1765 = vld [vmem:[%s1750 + $0x70] sm:$0xff]
        %v1766 = vld [vmem:[%s1750 + $0x78] sm:$0xff]
        %v1767 = vld [vmem:[%s1750 + $0x80] sm:$0xff]
        %v1768 = vld [vmem:[%s1750 + $0x88] sm:$0xff]
        %v1769 = vld [vmem:[%s1750 + $0x90] sm:$0xff]
        %v1770 = vld [vmem:[%s1750 + $0x98] sm:$0xff]
        %v1771 = vld [vmem:[%s1750 + $0xa0] sm:$0xff]
        %v1772 = vld [vmem:[%s1750 + $0xa8] sm:$0xff]
        %v1773 = vld [vmem:[%s1750 + $0xb0] sm:$0xff]
        %v1774 = vld [vmem:[%s1750 + $0xb8] sm:$0xff]
        %v1775 = vld [vmem:[%s1750 + $0xc0] sm:$0xff]
        %v1776 = vld [vmem:[%s1750 + $0xc8] sm:$0xff]
        %v1777 = vld [vmem:[%s1750 + $0xd0] sm:$0xff]
        %v1778 = vld [vmem:[%s1750 + $0xd8] sm:$0xff]
        %v1779 = vld [vmem:[%s1750 + $0xe0] sm:$0xff]
        %v1780 = vld [vmem:[%s1750 + $0xe8] sm:$0xff]
        %v1781 = vld [vmem:[%s1750 + $0xf0] sm:$0xff]
        %v1782 = vld [vmem:[%s1750 + $0xf8] sm:$0xff]
        %v1815 = vunpack.c.l.b16 %v1751
        %v1816 = vunpack.c.h.b16 %v1751
        %v1817 = vunpack.c.l.b16 %v1752
        %v1818 = vunpack.c.h.b16 %v1752
        %v1819 = vunpack.c.l.b16 %v1753
        %v1820 = vunpack.c.h.b16 %v1753
        %v1821 = vunpack.c.l.b16 %v1754
        %v1822 = vunpack.c.h.b16 %v1754
        %v1823 = vunpack.c.l.b16 %v1755
        %v1824 = vunpack.c.h.b16 %v1755
        %v1825 = vunpack.c.l.b16 %v1756
        %v1826 = vunpack.c.h.b16 %v1756
        %v1827 = vunpack.c.l.b16 %v1757
        %v1828 = vunpack.c.h.b16 %v1757
        %v1829 = vunpack.c.l.b16 %v1758
        %v1830 = vunpack.c.h.b16 %v1758
        %v1831 = vunpack.c.l.b16 %v1759
        %v1832 = vunpack.c.h.b16 %v1759
        %v1833 = vunpack.c.l.b16 %v1760
        %v1834 = vunpack.c.h.b16 %v1760
        %v1835 = vunpack.c.l.b16 %v1761
        %v1836 = vunpack.c.h.b16 %v1761
        %v1837 = vunpack.c.l.b16 %v1762
        %v1838 = vunpack.c.h.b16 %v1762
        %v1839 = vunpack.c.l.b16 %v1763
        %v1840 = vunpack.c.h.b16 %v1763
        %v1841 = vunpack.c.l.b16 %v1764
        %v1842 = vunpack.c.h.b16 %v1764
        %v1843 = vunpack.c.l.b16 %v1765
        %v1844 = vunpack.c.h.b16 %v1765
        %v1845 = vunpack.c.l.b16 %v1766
        %v1846 = vunpack.c.h.b16 %v1766
        %v1847 = vunpack.c.l.b16 %v1767
        %v1848 = vunpack.c.h.b16 %v1767
        %v1849 = vunpack.c.l.b16 %v1768
        %v1850 = vunpack.c.h.b16 %v1768
        %v1851 = vunpack.c.l.b16 %v1769
        %v1852 = vunpack.c.h.b16 %v1769
        %v1853 = vunpack.c.l.b16 %v1770
        %v1854 = vunpack.c.h.b16 %v1770
        %v1855 = vunpack.c.l.b16 %v1771
        %v1856 = vunpack.c.h.b16 %v1771
        %v1857 = vunpack.c.l.b16 %v1772
        %v1858 = vunpack.c.h.b16 %v1772
        %v1859 = vunpack.c.l.b16 %v1773
        %v1860 = vunpack.c.h.b16 %v1773
        %v1861 = vunpack.c.l.b16 %v1774
        %v1862 = vunpack.c.h.b16 %v1774
        %v1863 = vunpack.c.l.b16 %v1775
        %v1864 = vunpack.c.h.b16 %v1775
        %v1865 = vunpack.c.l.b16 %v1776
        %v1866 = vunpack.c.h.b16 %v1776
        %v1867 = vunpack.c.l.b16 %v1777
        %v1868 = vunpack.c.h.b16 %v1777
        %v1869 = vunpack.c.l.b16 %v1778
        %v1870 = vunpack.c.h.b16 %v1778
        %v1871 = vunpack.c.l.b16 %v1779
        %v1872 = vunpack.c.h.b16 %v1779
        %v1873 = vunpack.c.l.b16 %v1780
        %v1874 = vunpack.c.h.b16 %v1780
        %v1875 = vunpack.c.l.b16 %v1781
        %v1876 = vunpack.c.h.b16 %v1781
        %v1877 = vunpack.c.l.b16 %v1782
        %v1878 = vunpack.c.h.b16 %v1782
        %v1879 = vpack.c.b16 %v1817, %v1815
        %v1880 = vpack.c.b16 %v1818, %v1816
        %v1881 = vpack.c.b16 %v1821, %v1819
        %v1882 = vpack.c.b16 %v1822, %v1820
        %v1883 = vpack.c.b16 %v1825, %v1823
        %v1884 = vpack.c.b16 %v1826, %v1824
        %v1885 = vpack.c.b16 %v1829, %v1827
        %v1886 = vpack.c.b16 %v1830, %v1828
        %v1887 = vpack.c.b16 %v1833, %v1831
        %v1888 = vpack.c.b16 %v1834, %v1832
        %v1889 = vpack.c.b16 %v1837, %v1835
        %v1890 = vpack.c.b16 %v1838, %v1836
        %v1891 = vpack.c.b16 %v1841, %v1839
        %v1892 = vpack.c.b16 %v1842, %v1840
        %v1893 = vpack.c.b16 %v1845, %v1843
        %v1894 = vpack.c.b16 %v1846, %v1844
        %v1895 = vpack.c.b16 %v1849, %v1847
        %v1896 = vpack.c.b16 %v1850, %v1848
        %v1897 = vpack.c.b16 %v1853, %v1851
        %v1898 = vpack.c.b16 %v1854, %v1852
        %v1899 = vpack.c.b16 %v1857, %v1855
        %v1900 = vpack.c.b16 %v1858, %v1856
        %v1901 = vpack.c.b16 %v1861, %v1859
        %v1902 = vpack.c.b16 %v1862, %v1860
        %v1903 = vpack.c.b16 %v1865, %v1863
        %v1904 = vpack.c.b16 %v1866, %v1864
        %v1905 = vpack.c.b16 %v1869, %v1867
        %v1906 = vpack.c.b16 %v1870, %v1868
        %v1907 = vpack.c.b16 %v1873, %v1871
        %v1908 = vpack.c.b16 %v1874, %v1872
        %v1909 = vpack.c.b16 %v1877, %v1875
        %v1910 = vpack.c.b16 %v1878, %v1876
        %1943 = vmatpush.bf16.msra.mxu0 %v859
        %1944 = vmatpush.bf16.msra.mxu0 %v858
        %1945 = vmatpush.bf16.msra.mxu0 %v857
        %1946 = vmatpush.bf16.msra.mxu0 %v856
        %1947 = vmatpush.bf16.msra.mxu0 %v855
        %1948 = vmatpush.bf16.msra.mxu0 %v854
        %1949 = vmatpush.bf16.msra.mxu0 %v853
        %1950 = vmatpush.bf16.msra.mxu0 %v852
        %1951 = vmatmul.bf16.gmra.mxu0 %v1879
        %v1952 = vpop.f32.mrf.mxu0
        %v1953 = vadd.f32 0.0, %v1952
        %v1954 = vpop.f32.mrf.mxu0
        %v1955 = vadd.f32 0.0, %v1954
        %1956 = vmatmul.bf16.gmra.mxu0 %v1881
        %v1957 = vpop.f32.mrf.mxu0
        %v1958 = vadd.f32 0.0, %v1957
        %v1959 = vpop.f32.mrf.mxu0
        %v1960 = vadd.f32 0.0, %v1959
        %1961 = vmatmul.bf16.gmra.mxu0 %v1883
        %v1962 = vpop.f32.mrf.mxu0
        %v1963 = vadd.f32 0.0, %v1962
        %v1964 = vpop.f32.mrf.mxu0
        %v1965 = vadd.f32 0.0, %v1964
        %1966 = vmatmul.bf16.gmra.mxu0 %v1885
        %v1967 = vpop.f32.mrf.mxu0
        %v1968 = vadd.f32 0.0, %v1967
        %v1969 = vpop.f32.mrf.mxu0
        %v1970 = vadd.f32 0.0, %v1969
        %1971 = vmatmul.bf16.gmra.mxu0 %v1887
        %v1972 = vpop.f32.mrf.mxu0
        %v1973 = vadd.f32 0.0, %v1972
        %v1974 = vpop.f32.mrf.mxu0
        %v1975 = vadd.f32 0.0, %v1974
        %1976 = vmatmul.bf16.gmra.mxu0 %v1889
        %v1977 = vpop.f32.mrf.mxu0
        %v1978 = vadd.f32 0.0, %v1977
        %v1979 = vpop.f32.mrf.mxu0
        %v1980 = vadd.f32 0.0, %v1979
        %1981 = vmatmul.bf16.gmra.mxu0 %v1891
        %v1982 = vpop.f32.mrf.mxu0
        %v1983 = vadd.f32 0.0, %v1982
        %v1984 = vpop.f32.mrf.mxu0
        %v1985 = vadd.f32 0.0, %v1984
        %1986 = vmatmul.bf16.gmra.mxu0 %v1893
        %v1987 = vpop.f32.mrf.mxu0
        %v1988 = vadd.f32 0.0, %v1987
        %v1989 = vpop.f32.mrf.mxu0
        %v1990 = vadd.f32 0.0, %v1989
        %1991 = vmatmul.bf16.gmra.mxu0 %v1895
        %v1992 = vpop.f32.mrf.mxu0
        %v1993 = vadd.f32 0.0, %v1992
        %v1994 = vpop.f32.mrf.mxu0
        %v1995 = vadd.f32 0.0, %v1994
        %1996 = vmatmul.bf16.gmra.mxu0 %v1897
        %v1997 = vpop.f32.mrf.mxu0
        %v1998 = vadd.f32 0.0, %v1997
        %v1999 = vpop.f32.mrf.mxu0
        %v2000 = vadd.f32 0.0, %v1999
        %2001 = vmatmul.bf16.gmra.mxu0 %v1899
        %v2002 = vpop.f32.mrf.mxu0
        %v2003 = vadd.f32 0.0, %v2002
        %v2004 = vpop.f32.mrf.mxu0
        %v2005 = vadd.f32 0.0, %v2004
        %2006 = vmatmul.bf16.gmra.mxu0 %v1901
        %v2007 = vpop.f32.mrf.mxu0
        %v2008 = vadd.f32 0.0, %v2007
        %v2009 = vpop.f32.mrf.mxu0
        %v2010 = vadd.f32 0.0, %v2009
        %2011 = vmatmul.bf16.gmra.mxu0 %v1903
        %v2012 = vpop.f32.mrf.mxu0
        %v2013 = vadd.f32 0.0, %v2012
        %v2014 = vpop.f32.mrf.mxu0
        %v2015 = vadd.f32 0.0, %v2014
        %2016 = vmatmul.bf16.gmra.mxu0 %v1905
        %v2017 = vpop.f32.mrf.mxu0
        %v2018 = vadd.f32 0.0, %v2017
        %v2019 = vpop.f32.mrf.mxu0
        %v2020 = vadd.f32 0.0, %v2019
        %2021 = vmatmul.bf16.gmra.mxu0 %v1907
        %v2022 = vpop.f32.mrf.mxu0
        %v2023 = vadd.f32 0.0, %v2022
        %v2024 = vpop.f32.mrf.mxu0
        %v2025 = vadd.f32 0.0, %v2024
        %2026 = vmatmul.bf16.gmra.mxu0 %v1909
        %v2027 = vpop.f32.mrf.mxu0
        %v2028 = vadd.f32 0.0, %v2027
        %v2029 = vpop.f32.mrf.mxu0
        %v2030 = vadd.f32 0.0, %v2029
        %2031 = vdwg.mxu0
        %2032 = vmatpush.bf16.msra.mxu0 %v867
        %2033 = vmatpush.bf16.msra.mxu0 %v866
        %2034 = vmatpush.bf16.msra.mxu0 %v865
        %2035 = vmatpush.bf16.msra.mxu0 %v864
        %2036 = vmatpush.bf16.msra.mxu0 %v863
        %2037 = vmatpush.bf16.msra.mxu0 %v862
        %2038 = vmatpush.bf16.msra.mxu0 %v861
        %2039 = vmatpush.bf16.msra.mxu0 %v860
        %2040 = vmatmul.bf16.gmra.mxu0 %v1880
        %v2041 = vpop.f32.mrf.mxu0
        %v2042 = vadd.f32 %v1953, %v2041
        %v2043 = vpop.f32.mrf.mxu0
        %v2044 = vadd.f32 %v1955, %v2043
        %2045 = vmatmul.bf16.gmra.mxu0 %v1882
        %v2046 = vpop.f32.mrf.mxu0
        %v2047 = vadd.f32 %v1958, %v2046
        %v2048 = vpop.f32.mrf.mxu0
        %v2049 = vadd.f32 %v1960, %v2048
        %2050 = vmatmul.bf16.gmra.mxu0 %v1884
        %v2051 = vpop.f32.mrf.mxu0
        %v2052 = vadd.f32 %v1963, %v2051
        %v2053 = vpop.f32.mrf.mxu0
        %v2054 = vadd.f32 %v1965, %v2053
        %2055 = vmatmul.bf16.gmra.mxu0 %v1886
        %v2056 = vpop.f32.mrf.mxu0
        %v2057 = vadd.f32 %v1968, %v2056
        %v2058 = vpop.f32.mrf.mxu0
        %v2059 = vadd.f32 %v1970, %v2058
        %2060 = vmatmul.bf16.gmra.mxu0 %v1888
        %v2061 = vpop.f32.mrf.mxu0
        %v2062 = vadd.f32 %v1973, %v2061
        %v2063 = vpop.f32.mrf.mxu0
        %v2064 = vadd.f32 %v1975, %v2063
        %2065 = vmatmul.bf16.gmra.mxu0 %v1890
        %v2066 = vpop.f32.mrf.mxu0
        %v2067 = vadd.f32 %v1978, %v2066
        %v2068 = vpop.f32.mrf.mxu0
        %v2069 = vadd.f32 %v1980, %v2068
        %2070 = vmatmul.bf16.gmra.mxu0 %v1892
        %v2071 = vpop.f32.mrf.mxu0
        %v2072 = vadd.f32 %v1983, %v2071
        %v2073 = vpop.f32.mrf.mxu0
        %v2074 = vadd.f32 %v1985, %v2073
        %2075 = vmatmul.bf16.gmra.mxu0 %v1894
        %v2076 = vpop.f32.mrf.mxu0
        %v2077 = vadd.f32 %v1988, %v2076
        %v2078 = vpop.f32.mrf.mxu0
        %v2079 = vadd.f32 %v1990, %v2078
        %2080 = vmatmul.bf16.gmra.mxu0 %v1896
        %v2081 = vpop.f32.mrf.mxu0
        %v2082 = vadd.f32 %v1993, %v2081
        %v2083 = vpop.f32.mrf.mxu0
        %v2084 = vadd.f32 %v1995, %v2083
        %2085 = vmatmul.bf16.gmra.mxu0 %v1898
        %v2086 = vpop.f32.mrf.mxu0
        %v2087 = vadd.f32 %v1998, %v2086
        %v2088 = vpop.f32.mrf.mxu0
        %v2089 = vadd.f32 %v2000, %v2088
        %2090 = vmatmul.bf16.gmra.mxu0 %v1900
        %v2091 = vpop.f32.mrf.mxu0
        %v2092 = vadd.f32 %v2003, %v2091
        %v2093 = vpop.f32.mrf.mxu0
        %v2094 = vadd.f32 %v2005, %v2093
        %2095 = vmatmul.bf16.gmra.mxu0 %v1902
        %v2096 = vpop.f32.mrf.mxu0
        %v2097 = vadd.f32 %v2008, %v2096
        %v2098 = vpop.f32.mrf.mxu0
        %v2099 = vadd.f32 %v2010, %v2098
        %2100 = vmatmul.bf16.gmra.mxu0 %v1904
        %v2101 = vpop.f32.mrf.mxu0
        %v2102 = vadd.f32 %v2013, %v2101
        %v2103 = vpop.f32.mrf.mxu0
        %v2104 = vadd.f32 %v2015, %v2103
        %2105 = vmatmul.bf16.gmra.mxu0 %v1906
        %v2106 = vpop.f32.mrf.mxu0
        %v2107 = vadd.f32 %v2018, %v2106
        %v2108 = vpop.f32.mrf.mxu0
        %v2109 = vadd.f32 %v2020, %v2108
        %2110 = vmatmul.bf16.gmra.mxu0 %v1908
        %v2111 = vpop.f32.mrf.mxu0
        %v2112 = vadd.f32 %v2023, %v2111
        %v2113 = vpop.f32.mrf.mxu0
        %v2114 = vadd.f32 %v2025, %v2113
        %2115 = vmatmul.bf16.gmra.mxu0 %v1910
        %v2116 = vpop.f32.mrf.mxu0
        %v2117 = vadd.f32 %v2028, %v2116
        %v2118 = vpop.f32.mrf.mxu0
        %v2119 = vadd.f32 %v2030, %v2118
        %2120 = vdwg.mxu0
        %v2121 = vpack.c.bf16 %v2044, %v2042
        %v2122 = vpack.c.bf16 %v2049, %v2047
        %v2123 = vpack.c.bf16 %v2054, %v2052
        %v2124 = vpack.c.bf16 %v2059, %v2057
        %v2125 = vpack.c.bf16 %v2064, %v2062
        %v2126 = vpack.c.bf16 %v2069, %v2067
        %v2127 = vpack.c.bf16 %v2074, %v2072
        %v2128 = vpack.c.bf16 %v2079, %v2077
        %v2129 = vpack.c.bf16 %v2084, %v2082
        %v2130 = vpack.c.bf16 %v2089, %v2087
        %v2131 = vpack.c.bf16 %v2094, %v2092
        %v2132 = vpack.c.bf16 %v2099, %v2097
        %v2133 = vpack.c.bf16 %v2104, %v2102
        %v2134 = vpack.c.bf16 %v2109, %v2107
        %v2135 = vpack.c.bf16 %v2114, %v2112
        %v2136 = vpack.c.bf16 %v2119, %v2117
        %s2137 = scalar_lea.vmem %s2, 4
        %v2138 = vld [vmem:[%s2137] sm:$0x3]
        %v2140 = vsel %vm1468, %v2121, 0
        %v2143 = vsel %vm1468, %v2122, 0
        %v2146 = vsel %vm1468, %v2123, 0
        %v2149 = vsel %vm1468, %v2124, 0
        %v2152 = vsel %vm1468, %v2125, 0
        %v2155 = vsel %vm1468, %v2126, 0
        %v2158 = vsel %vm1468, %v2127, 0
        %v2161 = vsel %vm1468, %v2128, 0
        %v2164 = vsel %vm1468, %v2129, 0
        %v2167 = vsel %vm1468, %v2130, 0
        %v2170 = vsel %vm1468, %v2131, 0
        %v2173 = vsel %vm1468, %v2132, 0
        %v2176 = vsel %vm1468, %v2133, 0
        %v2179 = vsel %vm1468, %v2134, 0
        %v2182 = vsel %vm1468, %v2135, 0
        %v2185 = vsel %vm1468, %v2136, 0
        %v2188 = vsel %vm1517, %v2138, 0
        %2190 = vmatpush.bf16.msra.mxu0 0
        %2191 = vmatpush.bf16.msra.mxu0 0
        %2192 = vmatpush.bf16.msra.mxu0 0
        %2193 = vmatpush.bf16.msra.mxu0 0
        %2194 = vmatpush.bf16.msra.mxu0 0
        %2195 = vmatpush.bf16.msra.mxu0 0
        %2196 = vmatpush.bf16.msra.mxu0 0
        %2197 = vmatpush.bf16.msra.mxu0 %v2188
        %2198 = vmatmul.bf16.gmra.mxu0 %v2140
        %v2199 = vpop.f32.mrf.mxu0
        %v2200 = vadd.f32 0.0, %v2199
        %v2201 = vpop.f32.mrf.mxu0
        %v2202 = vadd.f32 0.0, %v2201
        %2203 = vmatmul.bf16.gmra.mxu0 %v2143
        %v2204 = vpop.f32.mrf.mxu0
        %v2205 = vadd.f32 0.0, %v2204
        %v2206 = vpop.f32.mrf.mxu0
        %v2207 = vadd.f32 0.0, %v2206
        %2208 = vmatmul.bf16.gmra.mxu0 %v2146
        %v2209 = vpop.f32.mrf.mxu0
        %v2210 = vadd.f32 0.0, %v2209
        %v2211 = vpop.f32.mrf.mxu0
        %v2212 = vadd.f32 0.0, %v2211
        %2213 = vmatmul.bf16.gmra.mxu0 %v2149
        %v2214 = vpop.f32.mrf.mxu0
        %v2215 = vadd.f32 0.0, %v2214
        %v2216 = vpop.f32.mrf.mxu0
        %v2217 = vadd.f32 0.0, %v2216
        %2218 = vmatmul.bf16.gmra.mxu0 %v2152
        %v2219 = vpop.f32.mrf.mxu0
        %v2220 = vadd.f32 0.0, %v2219
        %v2221 = vpop.f32.mrf.mxu0
        %v2222 = vadd.f32 0.0, %v2221
        %2223 = vmatmul.bf16.gmra.mxu0 %v2155
        %v2224 = vpop.f32.mrf.mxu0
        %v2225 = vadd.f32 0.0, %v2224
        %v2226 = vpop.f32.mrf.mxu0
        %v2227 = vadd.f32 0.0, %v2226
        %2228 = vmatmul.bf16.gmra.mxu0 %v2158
        %v2229 = vpop.f32.mrf.mxu0
        %v2230 = vadd.f32 0.0, %v2229
        %v2231 = vpop.f32.mrf.mxu0
        %v2232 = vadd.f32 0.0, %v2231
        %2233 = vmatmul.bf16.gmra.mxu0 %v2161
        %v2234 = vpop.f32.mrf.mxu0
        %v2235 = vadd.f32 0.0, %v2234
        %v2236 = vpop.f32.mrf.mxu0
        %v2237 = vadd.f32 0.0, %v2236
        %2238 = vmatmul.bf16.gmra.mxu0 %v2164
        %v2239 = vpop.f32.mrf.mxu0
        %v2240 = vadd.f32 0.0, %v2239
        %v2241 = vpop.f32.mrf.mxu0
        %v2242 = vadd.f32 0.0, %v2241
        %2243 = vmatmul.bf16.gmra.mxu0 %v2167
        %v2244 = vpop.f32.mrf.mxu0
        %v2245 = vadd.f32 0.0, %v2244
        %v2246 = vpop.f32.mrf.mxu0
        %v2247 = vadd.f32 0.0, %v2246
        %2248 = vmatmul.bf16.gmra.mxu0 %v2170
        %v2249 = vpop.f32.mrf.mxu0
        %v2250 = vadd.f32 0.0, %v2249
        %v2251 = vpop.f32.mrf.mxu0
        %v2252 = vadd.f32 0.0, %v2251
        %2253 = vmatmul.bf16.gmra.mxu0 %v2173
        %v2254 = vpop.f32.mrf.mxu0
        %v2255 = vadd.f32 0.0, %v2254
        %v2256 = vpop.f32.mrf.mxu0
        %v2257 = vadd.f32 0.0, %v2256
        %2258 = vmatmul.bf16.gmra.mxu0 %v2176
        %v2259 = vpop.f32.mrf.mxu0
        %v2260 = vadd.f32 0.0, %v2259
        %v2261 = vpop.f32.mrf.mxu0
        %v2262 = vadd.f32 0.0, %v2261
        %2263 = vmatmul.bf16.gmra.mxu0 %v2179
        %v2264 = vpop.f32.mrf.mxu0
        %v2265 = vadd.f32 0.0, %v2264
        %v2266 = vpop.f32.mrf.mxu0
        %v2267 = vadd.f32 0.0, %v2266
        %2268 = vmatmul.bf16.gmra.mxu0 %v2182
        %v2269 = vpop.f32.mrf.mxu0
        %v2270 = vadd.f32 0.0, %v2269
        %v2271 = vpop.f32.mrf.mxu0
        %v2272 = vadd.f32 0.0, %v2271
        %2273 = vmatmul.bf16.gmra.mxu0 %v2185
        %v2274 = vpop.f32.mrf.mxu0
        %v2275 = vadd.f32 0.0, %v2274
        %v2276 = vpop.f32.mrf.mxu0
        %v2277 = vadd.f32 0.0, %v2276
        %2278 = vdwg.mxu0
        %v2279 = vadd.f32 %v1671, %v2200
        %v2280 = vadd.f32 %v1673, %v2202
        %v2281 = vadd.f32 %v1676, %v2205
        %v2282 = vadd.f32 %v1678, %v2207
        %v2283 = vadd.f32 %v1681, %v2210
        %v2284 = vadd.f32 %v1683, %v2212
        %v2285 = vadd.f32 %v1686, %v2215
        %v2286 = vadd.f32 %v1688, %v2217
        %v2287 = vadd.f32 %v1691, %v2220
        %v2288 = vadd.f32 %v1693, %v2222
        %v2289 = vadd.f32 %v1696, %v2225
        %v2290 = vadd.f32 %v1698, %v2227
        %v2291 = vadd.f32 %v1701, %v2230
        %v2292 = vadd.f32 %v1703, %v2232
        %v2293 = vadd.f32 %v1706, %v2235
        %v2294 = vadd.f32 %v1708, %v2237
        %v2295 = vadd.f32 %v1711, %v2240
        %v2296 = vadd.f32 %v1713, %v2242
        %v2297 = vadd.f32 %v1716, %v2245
        %v2298 = vadd.f32 %v1718, %v2247
        %v2299 = vadd.f32 %v1721, %v2250
        %v2300 = vadd.f32 %v1723, %v2252
        %v2301 = vadd.f32 %v1726, %v2255
        %v2302 = vadd.f32 %v1728, %v2257
        %v2303 = vadd.f32 %v1731, %v2260
        %v2304 = vadd.f32 %v1733, %v2262
        %v2305 = vadd.f32 %v1736, %v2265
        %v2306 = vadd.f32 %v1738, %v2267
        %v2307 = vadd.f32 %v1741, %v2270
        %v2308 = vadd.f32 %v1743, %v2272
        %v2309 = vadd.f32 %v1746, %v2275
        %v2310 = vadd.f32 %v1748, %v2277
        %s2311 = scalar_lea.vmem [#allocation2], 768
        %v2312 = vld [vmem:[%s2311] sm:$0xff]
        %v2313 = vld [vmem:[%s2311 + $0x8] sm:$0xff]
        %v2314 = vld [vmem:[%s2311 + $0x10] sm:$0xff]
        %v2315 = vld [vmem:[%s2311 + $0x18] sm:$0xff]
        %v2316 = vld [vmem:[%s2311 + $0x20] sm:$0xff]
        %v2317 = vld [vmem:[%s2311 + $0x28] sm:$0xff]
        %v2318 = vld [vmem:[%s2311 + $0x30] sm:$0xff]
        %v2319 = vld [vmem:[%s2311 + $0x38] sm:$0xff]
        %v2320 = vld [vmem:[%s2311 + $0x40] sm:$0xff]
        %v2321 = vld [vmem:[%s2311 + $0x48] sm:$0xff]
        %v2322 = vld [vmem:[%s2311 + $0x50] sm:$0xff]
        %v2323 = vld [vmem:[%s2311 + $0x58] sm:$0xff]
        %v2324 = vld [vmem:[%s2311 + $0x60] sm:$0xff]
        %v2325 = vld [vmem:[%s2311 + $0x68] sm:$0xff]
        %v2326 = vld [vmem:[%s2311 + $0x70] sm:$0xff]
        %v2327 = vld [vmem:[%s2311 + $0x78] sm:$0xff]
        %v2328 = vld [vmem:[%s2311 + $0x80] sm:$0xff]
        %v2329 = vld [vmem:[%s2311 + $0x88] sm:$0xff]
        %v2330 = vld [vmem:[%s2311 + $0x90] sm:$0xff]
        %v2331 = vld [vmem:[%s2311 + $0x98] sm:$0xff]
        %v2332 = vld [vmem:[%s2311 + $0xa0] sm:$0xff]
        %v2333 = vld [vmem:[%s2311 + $0xa8] sm:$0xff]
        %v2334 = vld [vmem:[%s2311 + $0xb0] sm:$0xff]
        %v2335 = vld [vmem:[%s2311 + $0xb8] sm:$0xff]
        %v2336 = vld [vmem:[%s2311 + $0xc0] sm:$0xff]
        %v2337 = vld [vmem:[%s2311 + $0xc8] sm:$0xff]
        %v2338 = vld [vmem:[%s2311 + $0xd0] sm:$0xff]
        %v2339 = vld [vmem:[%s2311 + $0xd8] sm:$0xff]
        %v2340 = vld [vmem:[%s2311 + $0xe0] sm:$0xff]
        %v2341 = vld [vmem:[%s2311 + $0xe8] sm:$0xff]
        %v2342 = vld [vmem:[%s2311 + $0xf0] sm:$0xff]
        %v2343 = vld [vmem:[%s2311 + $0xf8] sm:$0xff]
        %v2376 = vunpack.c.l.b16 %v2312
        %v2377 = vunpack.c.h.b16 %v2312
        %v2378 = vunpack.c.l.b16 %v2313
        %v2379 = vunpack.c.h.b16 %v2313
        %v2380 = vunpack.c.l.b16 %v2314
        %v2381 = vunpack.c.h.b16 %v2314
        %v2382 = vunpack.c.l.b16 %v2315
        %v2383 = vunpack.c.h.b16 %v2315
        %v2384 = vunpack.c.l.b16 %v2316
        %v2385 = vunpack.c.h.b16 %v2316
        %v2386 = vunpack.c.l.b16 %v2317
        %v2387 = vunpack.c.h.b16 %v2317
        %v2388 = vunpack.c.l.b16 %v2318
        %v2389 = vunpack.c.h.b16 %v2318
        %v2390 = vunpack.c.l.b16 %v2319
        %v2391 = vunpack.c.h.b16 %v2319
        %v2392 = vunpack.c.l.b16 %v2320
        %v2393 = vunpack.c.h.b16 %v2320
        %v2394 = vunpack.c.l.b16 %v2321
        %v2395 = vunpack.c.h.b16 %v2321
        %v2396 = vunpack.c.l.b16 %v2322
        %v2397 = vunpack.c.h.b16 %v2322
        %v2398 = vunpack.c.l.b16 %v2323
        %v2399 = vunpack.c.h.b16 %v2323
        %v2400 = vunpack.c.l.b16 %v2324
        %v2401 = vunpack.c.h.b16 %v2324
        %v2402 = vunpack.c.l.b16 %v2325
        %v2403 = vunpack.c.h.b16 %v2325
        %v2404 = vunpack.c.l.b16 %v2326
        %v2405 = vunpack.c.h.b16 %v2326
        %v2406 = vunpack.c.l.b16 %v2327
        %v2407 = vunpack.c.h.b16 %v2327
        %v2408 = vunpack.c.l.b16 %v2328
        %v2409 = vunpack.c.h.b16 %v2328
        %v2410 = vunpack.c.l.b16 %v2329
        %v2411 = vunpack.c.h.b16 %v2329
        %v2412 = vunpack.c.l.b16 %v2330
        %v2413 = vunpack.c.h.b16 %v2330
        %v2414 = vunpack.c.l.b16 %v2331
        %v2415 = vunpack.c.h.b16 %v2331
        %v2416 = vunpack.c.l.b16 %v2332
        %v2417 = vunpack.c.h.b16 %v2332
        %v2418 = vunpack.c.l.b16 %v2333
        %v2419 = vunpack.c.h.b16 %v2333
        %v2420 = vunpack.c.l.b16 %v2334
        %v2421 = vunpack.c.h.b16 %v2334
        %v2422 = vunpack.c.l.b16 %v2335
        %v2423 = vunpack.c.h.b16 %v2335
        %v2424 = vunpack.c.l.b16 %v2336
        %v2425 = vunpack.c.h.b16 %v2336
        %v2426 = vunpack.c.l.b16 %v2337
        %v2427 = vunpack.c.h.b16 %v2337
        %v2428 = vunpack.c.l.b16 %v2338
        %v2429 = vunpack.c.h.b16 %v2338
        %v2430 = vunpack.c.l.b16 %v2339
        %v2431 = vunpack.c.h.b16 %v2339
        %v2432 = vunpack.c.l.b16 %v2340
        %v2433 = vunpack.c.h.b16 %v2340
        %v2434 = vunpack.c.l.b16 %v2341
        %v2435 = vunpack.c.h.b16 %v2341
        %v2436 = vunpack.c.l.b16 %v2342
        %v2437 = vunpack.c.h.b16 %v2342
        %v2438 = vunpack.c.l.b16 %v2343
        %v2439 = vunpack.c.h.b16 %v2343
        %v2440 = vpack.c.b16 %v2378, %v2376
        %v2441 = vpack.c.b16 %v2379, %v2377
        %v2442 = vpack.c.b16 %v2382, %v2380
        %v2443 = vpack.c.b16 %v2383, %v2381
        %v2444 = vpack.c.b16 %v2386, %v2384
        %v2445 = vpack.c.b16 %v2387, %v2385
        %v2446 = vpack.c.b16 %v2390, %v2388
        %v2447 = vpack.c.b16 %v2391, %v2389
        %v2448 = vpack.c.b16 %v2394, %v2392
        %v2449 = vpack.c.b16 %v2395, %v2393
        %v2450 = vpack.c.b16 %v2398, %v2396
        %v2451 = vpack.c.b16 %v2399, %v2397
        %v2452 = vpack.c.b16 %v2402, %v2400
        %v2453 = vpack.c.b16 %v2403, %v2401
        %v2454 = vpack.c.b16 %v2406, %v2404
        %v2455 = vpack.c.b16 %v2407, %v2405
        %v2456 = vpack.c.b16 %v2410, %v2408
        %v2457 = vpack.c.b16 %v2411, %v2409
        %v2458 = vpack.c.b16 %v2414, %v2412
        %v2459 = vpack.c.b16 %v2415, %v2413
        %v2460 = vpack.c.b16 %v2418, %v2416
        %v2461 = vpack.c.b16 %v2419, %v2417
        %v2462 = vpack.c.b16 %v2422, %v2420
        %v2463 = vpack.c.b16 %v2423, %v2421
        %v2464 = vpack.c.b16 %v2426, %v2424
        %v2465 = vpack.c.b16 %v2427, %v2425
        %v2466 = vpack.c.b16 %v2430, %v2428
        %v2467 = vpack.c.b16 %v2431, %v2429
        %v2468 = vpack.c.b16 %v2434, %v2432
        %v2469 = vpack.c.b16 %v2435, %v2433
        %v2470 = vpack.c.b16 %v2438, %v2436
        %v2471 = vpack.c.b16 %v2439, %v2437
        %2504 = vmatpush.bf16.msra.mxu0 %v859
        %2505 = vmatpush.bf16.msra.mxu0 %v858
        %2506 = vmatpush.bf16.msra.mxu0 %v857
        %2507 = vmatpush.bf16.msra.mxu0 %v856
        %2508 = vmatpush.bf16.msra.mxu0 %v855
        %2509 = vmatpush.bf16.msra.mxu0 %v854
        %2510 = vmatpush.bf16.msra.mxu0 %v853
        %2511 = vmatpush.bf16.msra.mxu0 %v852
        %2512 = vmatmul.bf16.gmra.mxu0 %v2440
        %v2513 = vpop.f32.mrf.mxu0
        %v2514 = vadd.f32 0.0, %v2513
        %v2515 = vpop.f32.mrf.mxu0
        %v2516 = vadd.f32 0.0, %v2515
        %2517 = vmatmul.bf16.gmra.mxu0 %v2442
        %v2518 = vpop.f32.mrf.mxu0
        %v2519 = vadd.f32 0.0, %v2518
        %v2520 = vpop.f32.mrf.mxu0
        %v2521 = vadd.f32 0.0, %v2520
        %2522 = vmatmul.bf16.gmra.mxu0 %v2444
        %v2523 = vpop.f32.mrf.mxu0
        %v2524 = vadd.f32 0.0, %v2523
        %v2525 = vpop.f32.mrf.mxu0
        %v2526 = vadd.f32 0.0, %v2525
        %2527 = vmatmul.bf16.gmra.mxu0 %v2446
        %v2528 = vpop.f32.mrf.mxu0
        %v2529 = vadd.f32 0.0, %v2528
        %v2530 = vpop.f32.mrf.mxu0
        %v2531 = vadd.f32 0.0, %v2530
        %2532 = vmatmul.bf16.gmra.mxu0 %v2448
        %v2533 = vpop.f32.mrf.mxu0
        %v2534 = vadd.f32 0.0, %v2533
        %v2535 = vpop.f32.mrf.mxu0
        %v2536 = vadd.f32 0.0, %v2535
        %2537 = vmatmul.bf16.gmra.mxu0 %v2450
        %v2538 = vpop.f32.mrf.mxu0
        %v2539 = vadd.f32 0.0, %v2538
        %v2540 = vpop.f32.mrf.mxu0
        %v2541 = vadd.f32 0.0, %v2540
        %2542 = vmatmul.bf16.gmra.mxu0 %v2452
        %v2543 = vpop.f32.mrf.mxu0
        %v2544 = vadd.f32 0.0, %v2543
        %v2545 = vpop.f32.mrf.mxu0
        %v2546 = vadd.f32 0.0, %v2545
        %2547 = vmatmul.bf16.gmra.mxu0 %v2454
        %v2548 = vpop.f32.mrf.mxu0
        %v2549 = vadd.f32 0.0, %v2548
        %v2550 = vpop.f32.mrf.mxu0
        %v2551 = vadd.f32 0.0, %v2550
        %2552 = vmatmul.bf16.gmra.mxu0 %v2456
        %v2553 = vpop.f32.mrf.mxu0
        %v2554 = vadd.f32 0.0, %v2553
        %v2555 = vpop.f32.mrf.mxu0
        %v2556 = vadd.f32 0.0, %v2555
        %2557 = vmatmul.bf16.gmra.mxu0 %v2458
        %v2558 = vpop.f32.mrf.mxu0
        %v2559 = vadd.f32 0.0, %v2558
        %v2560 = vpop.f32.mrf.mxu0
        %v2561 = vadd.f32 0.0, %v2560
        %2562 = vmatmul.bf16.gmra.mxu0 %v2460
        %v2563 = vpop.f32.mrf.mxu0
        %v2564 = vadd.f32 0.0, %v2563
        %v2565 = vpop.f32.mrf.mxu0
        %v2566 = vadd.f32 0.0, %v2565
        %2567 = vmatmul.bf16.gmra.mxu0 %v2462
        %v2568 = vpop.f32.mrf.mxu0
        %v2569 = vadd.f32 0.0, %v2568
        %v2570 = vpop.f32.mrf.mxu0
        %v2571 = vadd.f32 0.0, %v2570
        %2572 = vmatmul.bf16.gmra.mxu0 %v2464
        %v2573 = vpop.f32.mrf.mxu0
        %v2574 = vadd.f32 0.0, %v2573
        %v2575 = vpop.f32.mrf.mxu0
        %v2576 = vadd.f32 0.0, %v2575
        %2577 = vmatmul.bf16.gmra.mxu0 %v2466
        %v2578 = vpop.f32.mrf.mxu0
        %v2579 = vadd.f32 0.0, %v2578
        %v2580 = vpop.f32.mrf.mxu0
        %v2581 = vadd.f32 0.0, %v2580
        %2582 = vmatmul.bf16.gmra.mxu0 %v2468
        %v2583 = vpop.f32.mrf.mxu0
        %v2584 = vadd.f32 0.0, %v2583
        %v2585 = vpop.f32.mrf.mxu0
        %v2586 = vadd.f32 0.0, %v2585
        %2587 = vmatmul.bf16.gmra.mxu0 %v2470
        %v2588 = vpop.f32.mrf.mxu0
        %v2589 = vadd.f32 0.0, %v2588
        %v2590 = vpop.f32.mrf.mxu0
        %v2591 = vadd.f32 0.0, %v2590
        %2592 = vdwg.mxu0
        %2593 = vmatpush.bf16.msra.mxu0 %v867
        %2594 = vmatpush.bf16.msra.mxu0 %v866
        %2595 = vmatpush.bf16.msra.mxu0 %v865
        %2596 = vmatpush.bf16.msra.mxu0 %v864
        %2597 = vmatpush.bf16.msra.mxu0 %v863
        %2598 = vmatpush.bf16.msra.mxu0 %v862
        %2599 = vmatpush.bf16.msra.mxu0 %v861
        %2600 = vmatpush.bf16.msra.mxu0 %v860
        %2601 = vmatmul.bf16.gmra.mxu0 %v2441
        %v2602 = vpop.f32.mrf.mxu0
        %v2603 = vadd.f32 %v2514, %v2602
        %v2604 = vpop.f32.mrf.mxu0
        %v2605 = vadd.f32 %v2516, %v2604
        %2606 = vmatmul.bf16.gmra.mxu0 %v2443
        %v2607 = vpop.f32.mrf.mxu0
        %v2608 = vadd.f32 %v2519, %v2607
        %v2609 = vpop.f32.mrf.mxu0
        %v2610 = vadd.f32 %v2521, %v2609
        %2611 = vmatmul.bf16.gmra.mxu0 %v2445
        %v2612 = vpop.f32.mrf.mxu0
        %v2613 = vadd.f32 %v2524, %v2612
        %v2614 = vpop.f32.mrf.mxu0
        %v2615 = vadd.f32 %v2526, %v2614
        %2616 = vmatmul.bf16.gmra.mxu0 %v2447
        %v2617 = vpop.f32.mrf.mxu0
        %v2618 = vadd.f32 %v2529, %v2617
        %v2619 = vpop.f32.mrf.mxu0
        %v2620 = vadd.f32 %v2531, %v2619
        %2621 = vmatmul.bf16.gmra.mxu0 %v2449
        %v2622 = vpop.f32.mrf.mxu0
        %v2623 = vadd.f32 %v2534, %v2622
        %v2624 = vpop.f32.mrf.mxu0
        %v2625 = vadd.f32 %v2536, %v2624
        %2626 = vmatmul.bf16.gmra.mxu0 %v2451
        %v2627 = vpop.f32.mrf.mxu0
        %v2628 = vadd.f32 %v2539, %v2627
        %v2629 = vpop.f32.mrf.mxu0
        %v2630 = vadd.f32 %v2541, %v2629
        %2631 = vmatmul.bf16.gmra.mxu0 %v2453
        %v2632 = vpop.f32.mrf.mxu0
        %v2633 = vadd.f32 %v2544, %v2632
        %v2634 = vpop.f32.mrf.mxu0
        %v2635 = vadd.f32 %v2546, %v2634
        %2636 = vmatmul.bf16.gmra.mxu0 %v2455
        %v2637 = vpop.f32.mrf.mxu0
        %v2638 = vadd.f32 %v2549, %v2637
        %v2639 = vpop.f32.mrf.mxu0
        %v2640 = vadd.f32 %v2551, %v2639
        %2641 = vmatmul.bf16.gmra.mxu0 %v2457
        %v2642 = vpop.f32.mrf.mxu0
        %v2643 = vadd.f32 %v2554, %v2642
        %v2644 = vpop.f32.mrf.mxu0
        %v2645 = vadd.f32 %v2556, %v2644
        %2646 = vmatmul.bf16.gmra.mxu0 %v2459
        %v2647 = vpop.f32.mrf.mxu0
        %v2648 = vadd.f32 %v2559, %v2647
        %v2649 = vpop.f32.mrf.mxu0
        %v2650 = vadd.f32 %v2561, %v2649
        %2651 = vmatmul.bf16.gmra.mxu0 %v2461
        %v2652 = vpop.f32.mrf.mxu0
        %v2653 = vadd.f32 %v2564, %v2652
        %v2654 = vpop.f32.mrf.mxu0
        %v2655 = vadd.f32 %v2566, %v2654
        %2656 = vmatmul.bf16.gmra.mxu0 %v2463
        %v2657 = vpop.f32.mrf.mxu0
        %v2658 = vadd.f32 %v2569, %v2657
        %v2659 = vpop.f32.mrf.mxu0
        %v2660 = vadd.f32 %v2571, %v2659
        %2661 = vmatmul.bf16.gmra.mxu0 %v2465
        %v2662 = vpop.f32.mrf.mxu0
        %v2663 = vadd.f32 %v2574, %v2662
        %v2664 = vpop.f32.mrf.mxu0
        %v2665 = vadd.f32 %v2576, %v2664
        %2666 = vmatmul.bf16.gmra.mxu0 %v2467
        %v2667 = vpop.f32.mrf.mxu0
        %v2668 = vadd.f32 %v2579, %v2667
        %v2669 = vpop.f32.mrf.mxu0
        %v2670 = vadd.f32 %v2581, %v2669
        %2671 = vmatmul.bf16.gmra.mxu0 %v2469
        %v2672 = vpop.f32.mrf.mxu0
        %v2673 = vadd.f32 %v2584, %v2672
        %v2674 = vpop.f32.mrf.mxu0
        %v2675 = vadd.f32 %v2586, %v2674
        %2676 = vmatmul.bf16.gmra.mxu0 %v2471
        %v2677 = vpop.f32.mrf.mxu0
        %v2678 = vadd.f32 %v2589, %v2677
        %v2679 = vpop.f32.mrf.mxu0
        %v2680 = vadd.f32 %v2591, %v2679
        %2681 = vdwg.mxu0
        %v2682 = vpack.c.bf16 %v2605, %v2603
        %v2683 = vpack.c.bf16 %v2610, %v2608
        %v2684 = vpack.c.bf16 %v2615, %v2613
        %v2685 = vpack.c.bf16 %v2620, %v2618
        %v2686 = vpack.c.bf16 %v2625, %v2623
        %v2687 = vpack.c.bf16 %v2630, %v2628
        %v2688 = vpack.c.bf16 %v2635, %v2633
        %v2689 = vpack.c.bf16 %v2640, %v2638
        %v2690 = vpack.c.bf16 %v2645, %v2643
        %v2691 = vpack.c.bf16 %v2650, %v2648
        %v2692 = vpack.c.bf16 %v2655, %v2653
        %v2693 = vpack.c.bf16 %v2660, %v2658
        %v2694 = vpack.c.bf16 %v2665, %v2663
        %v2695 = vpack.c.bf16 %v2670, %v2668
        %v2696 = vpack.c.bf16 %v2675, %v2673
        %v2697 = vpack.c.bf16 %v2680, %v2678
        %s2698 = scalar_lea.vmem %s2, 6
        %v2699 = vld [vmem:[%s2698] sm:$0x3]
        %v2701 = vsel %vm1468, %v2682, 0
        %v2704 = vsel %vm1468, %v2683, 0
        %v2707 = vsel %vm1468, %v2684, 0
        %v2710 = vsel %vm1468, %v2685, 0
        %v2713 = vsel %vm1468, %v2686, 0
        %v2716 = vsel %vm1468, %v2687, 0
        %v2719 = vsel %vm1468, %v2688, 0
        %v2722 = vsel %vm1468, %v2689, 0
        %v2725 = vsel %vm1468, %v2690, 0
        %v2728 = vsel %vm1468, %v2691, 0
        %v2731 = vsel %vm1468, %v2692, 0
        %v2734 = vsel %vm1468, %v2693, 0
        %v2737 = vsel %vm1468, %v2694, 0
        %v2740 = vsel %vm1468, %v2695, 0
        %v2743 = vsel %vm1468, %v2696, 0
        %v2746 = vsel %vm1468, %v2697, 0
        %v2749 = vsel %vm1517, %v2699, 0
        %2751 = vmatpush.bf16.msra.mxu0 0
        %2752 = vmatpush.bf16.msra.mxu0 0
        %2753 = vmatpush.bf16.msra.mxu0 0
        %2754 = vmatpush.bf16.msra.mxu0 0
        %2755 = vmatpush.bf16.msra.mxu0 0
        %2756 = vmatpush.bf16.msra.mxu0 0
        %2757 = vmatpush.bf16.msra.mxu0 0
        %2758 = vmatpush.bf16.msra.mxu0 %v2749
        %2759 = vmatmul.bf16.gmra.mxu0 %v2701
        %v2760 = vpop.f32.mrf.mxu0
        %v2761 = vadd.f32 0.0, %v2760
        %v2762 = vpop.f32.mrf.mxu0
        %v2763 = vadd.f32 0.0, %v2762
        %2764 = vmatmul.bf16.gmra.mxu0 %v2704
        %v2765 = vpop.f32.mrf.mxu0
        %v2766 = vadd.f32 0.0, %v2765
        %v2767 = vpop.f32.mrf.mxu0
        %v2768 = vadd.f32 0.0, %v2767
        %2769 = vmatmul.bf16.gmra.mxu0 %v2707
        %v2770 = vpop.f32.mrf.mxu0
        %v2771 = vadd.f32 0.0, %v2770
        %v2772 = vpop.f32.mrf.mxu0
        %v2773 = vadd.f32 0.0, %v2772
        %2774 = vmatmul.bf16.gmra.mxu0 %v2710
        %v2775 = vpop.f32.mrf.mxu0
        %v2776 = vadd.f32 0.0, %v2775
        %v2777 = vpop.f32.mrf.mxu0
        %v2778 = vadd.f32 0.0, %v2777
        %2779 = vmatmul.bf16.gmra.mxu0 %v2713
        %v2780 = vpop.f32.mrf.mxu0
        %v2781 = vadd.f32 0.0, %v2780
        %v2782 = vpop.f32.mrf.mxu0
        %v2783 = vadd.f32 0.0, %v2782
        %2784 = vmatmul.bf16.gmra.mxu0 %v2716
        %v2785 = vpop.f32.mrf.mxu0
        %v2786 = vadd.f32 0.0, %v2785
        %v2787 = vpop.f32.mrf.mxu0
        %v2788 = vadd.f32 0.0, %v2787
        %2789 = vmatmul.bf16.gmra.mxu0 %v2719
        %v2790 = vpop.f32.mrf.mxu0
        %v2791 = vadd.f32 0.0, %v2790
        %v2792 = vpop.f32.mrf.mxu0
        %v2793 = vadd.f32 0.0, %v2792
        %2794 = vmatmul.bf16.gmra.mxu0 %v2722
        %v2795 = vpop.f32.mrf.mxu0
        %v2796 = vadd.f32 0.0, %v2795
        %v2797 = vpop.f32.mrf.mxu0
        %v2798 = vadd.f32 0.0, %v2797
        %2799 = vmatmul.bf16.gmra.mxu0 %v2725
        %v2800 = vpop.f32.mrf.mxu0
        %v2801 = vadd.f32 0.0, %v2800
        %v2802 = vpop.f32.mrf.mxu0
        %v2803 = vadd.f32 0.0, %v2802
        %2804 = vmatmul.bf16.gmra.mxu0 %v2728
        %v2805 = vpop.f32.mrf.mxu0
        %v2806 = vadd.f32 0.0, %v2805
        %v2807 = vpop.f32.mrf.mxu0
        %v2808 = vadd.f32 0.0, %v2807
        %2809 = vmatmul.bf16.gmra.mxu0 %v2731
        %v2810 = vpop.f32.mrf.mxu0
        %v2811 = vadd.f32 0.0, %v2810
        %v2812 = vpop.f32.mrf.mxu0
        %v2813 = vadd.f32 0.0, %v2812
        %2814 = vmatmul.bf16.gmra.mxu0 %v2734
        %v2815 = vpop.f32.mrf.mxu0
        %v2816 = vadd.f32 0.0, %v2815
        %v2817 = vpop.f32.mrf.mxu0
        %v2818 = vadd.f32 0.0, %v2817
        %2819 = vmatmul.bf16.gmra.mxu0 %v2737
        %v2820 = vpop.f32.mrf.mxu0
        %v2821 = vadd.f32 0.0, %v2820
        %v2822 = vpop.f32.mrf.mxu0
        %v2823 = vadd.f32 0.0, %v2822
        %2824 = vmatmul.bf16.gmra.mxu0 %v2740
        %v2825 = vpop.f32.mrf.mxu0
        %v2826 = vadd.f32 0.0, %v2825
        %v2827 = vpop.f32.mrf.mxu0
        %v2828 = vadd.f32 0.0, %v2827
        %2829 = vmatmul.bf16.gmra.mxu0 %v2743
        %v2830 = vpop.f32.mrf.mxu0
        %v2831 = vadd.f32 0.0, %v2830
        %v2832 = vpop.f32.mrf.mxu0
        %v2833 = vadd.f32 0.0, %v2832
        %2834 = vmatmul.bf16.gmra.mxu0 %v2746
        %v2835 = vpop.f32.mrf.mxu0
        %v2836 = vadd.f32 0.0, %v2835
        %v2837 = vpop.f32.mrf.mxu0
        %v2838 = vadd.f32 0.0, %v2837
        %2839 = vdwg.mxu0
        %v2840 = vadd.f32 %v2279, %v2761
        %v2841 = vadd.f32 %v2280, %v2763
        %v2842 = vadd.f32 %v2281, %v2766
        %v2843 = vadd.f32 %v2282, %v2768
        %v2844 = vadd.f32 %v2283, %v2771
        %v2845 = vadd.f32 %v2284, %v2773
        %v2846 = vadd.f32 %v2285, %v2776
        %v2847 = vadd.f32 %v2286, %v2778
        %v2848 = vadd.f32 %v2287, %v2781
        %v2849 = vadd.f32 %v2288, %v2783
        %v2850 = vadd.f32 %v2289, %v2786
        %v2851 = vadd.f32 %v2290, %v2788
        %v2852 = vadd.f32 %v2291, %v2791
        %v2853 = vadd.f32 %v2292, %v2793
        %v2854 = vadd.f32 %v2293, %v2796
        %v2855 = vadd.f32 %v2294, %v2798
        %v2856 = vadd.f32 %v2295, %v2801
        %v2857 = vadd.f32 %v2296, %v2803
        %v2858 = vadd.f32 %v2297, %v2806
        %v2859 = vadd.f32 %v2298, %v2808
        %v2860 = vadd.f32 %v2299, %v2811
        %v2861 = vadd.f32 %v2300, %v2813
        %v2862 = vadd.f32 %v2301, %v2816
        %v2863 = vadd.f32 %v2302, %v2818
        %v2864 = vadd.f32 %v2303, %v2821
        %v2865 = vadd.f32 %v2304, %v2823
        %v2866 = vadd.f32 %v2305, %v2826
        %v2867 = vadd.f32 %v2306, %v2828
        %v2868 = vadd.f32 %v2307, %v2831
        %v2869 = vadd.f32 %v2308, %v2833
        %v2870 = vadd.f32 %v2309, %v2836
        %v2871 = vadd.f32 %v2310, %v2838
        %s2872 = scalar_lea.vmem [#allocation2], 1024
        %v2873 = vld [vmem:[%s2872] sm:$0xff]
        %v2874 = vld [vmem:[%s2872 + $0x8] sm:$0xff]
        %v2875 = vld [vmem:[%s2872 + $0x10] sm:$0xff]
        %v2876 = vld [vmem:[%s2872 + $0x18] sm:$0xff]
        %v2877 = vld [vmem:[%s2872 + $0x20] sm:$0xff]
        %v2878 = vld [vmem:[%s2872 + $0x28] sm:$0xff]
        %v2879 = vld [vmem:[%s2872 + $0x30] sm:$0xff]
        %v2880 = vld [vmem:[%s2872 + $0x38] sm:$0xff]
        %v2881 = vld [vmem:[%s2872 + $0x40] sm:$0xff]
        %v2882 = vld [vmem:[%s2872 + $0x48] sm:$0xff]
        %v2883 = vld [vmem:[%s2872 + $0x50] sm:$0xff]
        %v2884 = vld [vmem:[%s2872 + $0x58] sm:$0xff]
        %v2885 = vld [vmem:[%s2872 + $0x60] sm:$0xff]
        %v2886 = vld [vmem:[%s2872 + $0x68] sm:$0xff]
        %v2887 = vld [vmem:[%s2872 + $0x70] sm:$0xff]
        %v2888 = vld [vmem:[%s2872 + $0x78] sm:$0xff]
        %v2889 = vld [vmem:[%s2872 + $0x80] sm:$0xff]
        %v2890 = vld [vmem:[%s2872 + $0x88] sm:$0xff]
        %v2891 = vld [vmem:[%s2872 + $0x90] sm:$0xff]
        %v2892 = vld [vmem:[%s2872 + $0x98] sm:$0xff]
        %v2893 = vld [vmem:[%s2872 + $0xa0] sm:$0xff]
        %v2894 = vld [vmem:[%s2872 + $0xa8] sm:$0xff]
        %v2895 = vld [vmem:[%s2872 + $0xb0] sm:$0xff]
        %v2896 = vld [vmem:[%s2872 + $0xb8] sm:$0xff]
        %v2897 = vld [vmem:[%s2872 + $0xc0] sm:$0xff]
        %v2898 = vld [vmem:[%s2872 + $0xc8] sm:$0xff]
        %v2899 = vld [vmem:[%s2872 + $0xd0] sm:$0xff]
        %v2900 = vld [vmem:[%s2872 + $0xd8] sm:$0xff]
        %v2901 = vld [vmem:[%s2872 + $0xe0] sm:$0xff]
        %v2902 = vld [vmem:[%s2872 + $0xe8] sm:$0xff]
        %v2903 = vld [vmem:[%s2872 + $0xf0] sm:$0xff]
        %v2904 = vld [vmem:[%s2872 + $0xf8] sm:$0xff]
        %v2937 = vunpack.c.l.b16 %v2873
        %v2938 = vunpack.c.h.b16 %v2873
        %v2939 = vunpack.c.l.b16 %v2874
        %v2940 = vunpack.c.h.b16 %v2874
        %v2941 = vunpack.c.l.b16 %v2875
        %v2942 = vunpack.c.h.b16 %v2875
        %v2943 = vunpack.c.l.b16 %v2876
        %v2944 = vunpack.c.h.b16 %v2876
        %v2945 = vunpack.c.l.b16 %v2877
        %v2946 = vunpack.c.h.b16 %v2877
        %v2947 = vunpack.c.l.b16 %v2878
        %v2948 = vunpack.c.h.b16 %v2878
        %v2949 = vunpack.c.l.b16 %v2879
        %v2950 = vunpack.c.h.b16 %v2879
        %v2951 = vunpack.c.l.b16 %v2880
        %v2952 = vunpack.c.h.b16 %v2880
        %v2953 = vunpack.c.l.b16 %v2881
        %v2954 = vunpack.c.h.b16 %v2881
        %v2955 = vunpack.c.l.b16 %v2882
        %v2956 = vunpack.c.h.b16 %v2882
        %v2957 = vunpack.c.l.b16 %v2883
        %v2958 = vunpack.c.h.b16 %v2883
        %v2959 = vunpack.c.l.b16 %v2884
        %v2960 = vunpack.c.h.b16 %v2884
        %v2961 = vunpack.c.l.b16 %v2885
        %v2962 = vunpack.c.h.b16 %v2885
        %v2963 = vunpack.c.l.b16 %v2886
        %v2964 = vunpack.c.h.b16 %v2886
        %v2965 = vunpack.c.l.b16 %v2887
        %v2966 = vunpack.c.h.b16 %v2887
        %v2967 = vunpack.c.l.b16 %v2888
        %v2968 = vunpack.c.h.b16 %v2888
        %v2969 = vunpack.c.l.b16 %v2889
        %v2970 = vunpack.c.h.b16 %v2889
        %v2971 = vunpack.c.l.b16 %v2890
        %v2972 = vunpack.c.h.b16 %v2890
        %v2973 = vunpack.c.l.b16 %v2891
        %v2974 = vunpack.c.h.b16 %v2891
        %v2975 = vunpack.c.l.b16 %v2892
        %v2976 = vunpack.c.h.b16 %v2892
        %v2977 = vunpack.c.l.b16 %v2893
        %v2978 = vunpack.c.h.b16 %v2893
        %v2979 = vunpack.c.l.b16 %v2894
        %v2980 = vunpack.c.h.b16 %v2894
        %v2981 = vunpack.c.l.b16 %v2895
        %v2982 = vunpack.c.h.b16 %v2895
        %v2983 = vunpack.c.l.b16 %v2896
        %v2984 = vunpack.c.h.b16 %v2896
        %v2985 = vunpack.c.l.b16 %v2897
        %v2986 = vunpack.c.h.b16 %v2897
        %v2987 = vunpack.c.l.b16 %v2898
        %v2988 = vunpack.c.h.b16 %v2898
        %v2989 = vunpack.c.l.b16 %v2899
        %v2990 = vunpack.c.h.b16 %v2899
        %v2991 = vunpack.c.l.b16 %v2900
        %v2992 = vunpack.c.h.b16 %v2900
        %v2993 = vunpack.c.l.b16 %v2901
        %v2994 = vunpack.c.h.b16 %v2901
        %v2995 = vunpack.c.l.b16 %v2902
        %v2996 = vunpack.c.h.b16 %v2902
        %v2997 = vunpack.c.l.b16 %v2903
        %v2998 = vunpack.c.h.b16 %v2903
        %v2999 = vunpack.c.l.b16 %v2904
        %v3000 = vunpack.c.h.b16 %v2904
        %v3001 = vpack.c.b16 %v2939, %v2937
        %v3002 = vpack.c.b16 %v2940, %v2938
        %v3003 = vpack.c.b16 %v2943, %v2941
        %v3004 = vpack.c.b16 %v2944, %v2942
        %v3005 = vpack.c.b16 %v2947, %v2945
        %v3006 = vpack.c.b16 %v2948, %v2946
        %v3007 = vpack.c.b16 %v2951, %v2949
        %v3008 = vpack.c.b16 %v2952, %v2950
        %v3009 = vpack.c.b16 %v2955, %v2953
        %v3010 = vpack.c.b16 %v2956, %v2954
        %v3011 = vpack.c.b16 %v2959, %v2957
        %v3012 = vpack.c.b16 %v2960, %v2958
        %v3013 = vpack.c.b16 %v2963, %v2961
        %v3014 = vpack.c.b16 %v2964, %v2962
        %v3015 = vpack.c.b16 %v2967, %v2965
        %v3016 = vpack.c.b16 %v2968, %v2966
        %v3017 = vpack.c.b16 %v2971, %v2969
        %v3018 = vpack.c.b16 %v2972, %v2970
        %v3019 = vpack.c.b16 %v2975, %v2973
        %v3020 = vpack.c.b16 %v2976, %v2974
        %v3021 = vpack.c.b16 %v2979, %v2977
        %v3022 = vpack.c.b16 %v2980, %v2978
        %v3023 = vpack.c.b16 %v2983, %v2981
        %v3024 = vpack.c.b16 %v2984, %v2982
        %v3025 = vpack.c.b16 %v2987, %v2985
        %v3026 = vpack.c.b16 %v2988, %v2986
        %v3027 = vpack.c.b16 %v2991, %v2989
        %v3028 = vpack.c.b16 %v2992, %v2990
        %v3029 = vpack.c.b16 %v2995, %v2993
        %v3030 = vpack.c.b16 %v2996, %v2994
        %v3031 = vpack.c.b16 %v2999, %v2997
        %v3032 = vpack.c.b16 %v3000, %v2998
        %3065 = vmatpush.bf16.msra.mxu0 %v859
        %3066 = vmatpush.bf16.msra.mxu0 %v858
        %3067 = vmatpush.bf16.msra.mxu0 %v857
        %3068 = vmatpush.bf16.msra.mxu0 %v856
        %3069 = vmatpush.bf16.msra.mxu0 %v855
        %3070 = vmatpush.bf16.msra.mxu0 %v854
        %3071 = vmatpush.bf16.msra.mxu0 %v853
        %3072 = vmatpush.bf16.msra.mxu0 %v852
        %3073 = vmatmul.bf16.gmra.mxu0 %v3001
        %v3074 = vpop.f32.mrf.mxu0
        %v3075 = vadd.f32 0.0, %v3074
        %v3076 = vpop.f32.mrf.mxu0
        %v3077 = vadd.f32 0.0, %v3076
        %3078 = vmatmul.bf16.gmra.mxu0 %v3003
        %v3079 = vpop.f32.mrf.mxu0
        %v3080 = vadd.f32 0.0, %v3079
        %v3081 = vpop.f32.mrf.mxu0
        %v3082 = vadd.f32 0.0, %v3081
        %3083 = vmatmul.bf16.gmra.mxu0 %v3005
        %v3084 = vpop.f32.mrf.mxu0
        %v3085 = vadd.f32 0.0, %v3084
        %v3086 = vpop.f32.mrf.mxu0
        %v3087 = vadd.f32 0.0, %v3086
        %3088 = vmatmul.bf16.gmra.mxu0 %v3007
        %v3089 = vpop.f32.mrf.mxu0
        %v3090 = vadd.f32 0.0, %v3089
        %v3091 = vpop.f32.mrf.mxu0
        %v3092 = vadd.f32 0.0, %v3091
        %3093 = vmatmul.bf16.gmra.mxu0 %v3009
        %v3094 = vpop.f32.mrf.mxu0
        %v3095 = vadd.f32 0.0, %v3094
        %v3096 = vpop.f32.mrf.mxu0
        %v3097 = vadd.f32 0.0, %v3096
        %3098 = vmatmul.bf16.gmra.mxu0 %v3011
        %v3099 = vpop.f32.mrf.mxu0
        %v3100 = vadd.f32 0.0, %v3099
        %v3101 = vpop.f32.mrf.mxu0
        %v3102 = vadd.f32 0.0, %v3101
        %3103 = vmatmul.bf16.gmra.mxu0 %v3013
        %v3104 = vpop.f32.mrf.mxu0
        %v3105 = vadd.f32 0.0, %v3104
        %v3106 = vpop.f32.mrf.mxu0
        %v3107 = vadd.f32 0.0, %v3106
        %3108 = vmatmul.bf16.gmra.mxu0 %v3015
        %v3109 = vpop.f32.mrf.mxu0
        %v3110 = vadd.f32 0.0, %v3109
        %v3111 = vpop.f32.mrf.mxu0
        %v3112 = vadd.f32 0.0, %v3111
        %3113 = vmatmul.bf16.gmra.mxu0 %v3017
        %v3114 = vpop.f32.mrf.mxu0
        %v3115 = vadd.f32 0.0, %v3114
        %v3116 = vpop.f32.mrf.mxu0
        %v3117 = vadd.f32 0.0, %v3116
        %3118 = vmatmul.bf16.gmra.mxu0 %v3019
        %v3119 = vpop.f32.mrf.mxu0
        %v3120 = vadd.f32 0.0, %v3119
        %v3121 = vpop.f32.mrf.mxu0
        %v3122 = vadd.f32 0.0, %v3121
        %3123 = vmatmul.bf16.gmra.mxu0 %v3021
        %v3124 = vpop.f32.mrf.mxu0
        %v3125 = vadd.f32 0.0, %v3124
        %v3126 = vpop.f32.mrf.mxu0
        %v3127 = vadd.f32 0.0, %v3126
        %3128 = vmatmul.bf16.gmra.mxu0 %v3023
        %v3129 = vpop.f32.mrf.mxu0
        %v3130 = vadd.f32 0.0, %v3129
        %v3131 = vpop.f32.mrf.mxu0
        %v3132 = vadd.f32 0.0, %v3131
        %3133 = vmatmul.bf16.gmra.mxu0 %v3025
        %v3134 = vpop.f32.mrf.mxu0
        %v3135 = vadd.f32 0.0, %v3134
        %v3136 = vpop.f32.mrf.mxu0
        %v3137 = vadd.f32 0.0, %v3136
        %3138 = vmatmul.bf16.gmra.mxu0 %v3027
        %v3139 = vpop.f32.mrf.mxu0
        %v3140 = vadd.f32 0.0, %v3139
        %v3141 = vpop.f32.mrf.mxu0
        %v3142 = vadd.f32 0.0, %v3141
        %3143 = vmatmul.bf16.gmra.mxu0 %v3029
        %v3144 = vpop.f32.mrf.mxu0
        %v3145 = vadd.f32 0.0, %v3144
        %v3146 = vpop.f32.mrf.mxu0
        %v3147 = vadd.f32 0.0, %v3146
        %3148 = vmatmul.bf16.gmra.mxu0 %v3031
        %v3149 = vpop.f32.mrf.mxu0
        %v3150 = vadd.f32 0.0, %v3149
        %v3151 = vpop.f32.mrf.mxu0
        %v3152 = vadd.f32 0.0, %v3151
        %3153 = vdwg.mxu0
        %3154 = vmatpush.bf16.msra.mxu0 %v867
        %3155 = vmatpush.bf16.msra.mxu0 %v866
        %3156 = vmatpush.bf16.msra.mxu0 %v865
        %3157 = vmatpush.bf16.msra.mxu0 %v864
        %3158 = vmatpush.bf16.msra.mxu0 %v863
        %3159 = vmatpush.bf16.msra.mxu0 %v862
        %3160 = vmatpush.bf16.msra.mxu0 %v861
        %3161 = vmatpush.bf16.msra.mxu0 %v860
        %3162 = vmatmul.bf16.gmra.mxu0 %v3002
        %v3163 = vpop.f32.mrf.mxu0
        %v3164 = vadd.f32 %v3075, %v3163
        %v3165 = vpop.f32.mrf.mxu0
        %v3166 = vadd.f32 %v3077, %v3165
        %3167 = vmatmul.bf16.gmra.mxu0 %v3004
        %v3168 = vpop.f32.mrf.mxu0
        %v3169 = vadd.f32 %v3080, %v3168
        %v3170 = vpop.f32.mrf.mxu0
        %v3171 = vadd.f32 %v3082, %v3170
        %3172 = vmatmul.bf16.gmra.mxu0 %v3006
        %v3173 = vpop.f32.mrf.mxu0
        %v3174 = vadd.f32 %v3085, %v3173
        %v3175 = vpop.f32.mrf.mxu0
        %v3176 = vadd.f32 %v3087, %v3175
        %3177 = vmatmul.bf16.gmra.mxu0 %v3008
        %v3178 = vpop.f32.mrf.mxu0
        %v3179 = vadd.f32 %v3090, %v3178
        %v3180 = vpop.f32.mrf.mxu0
        %v3181 = vadd.f32 %v3092, %v3180
        %3182 = vmatmul.bf16.gmra.mxu0 %v3010
        %v3183 = vpop.f32.mrf.mxu0
        %v3184 = vadd.f32 %v3095, %v3183
        %v3185 = vpop.f32.mrf.mxu0
        %v3186 = vadd.f32 %v3097, %v3185
        %3187 = vmatmul.bf16.gmra.mxu0 %v3012
        %v3188 = vpop.f32.mrf.mxu0
        %v3189 = vadd.f32 %v3100, %v3188
        %v3190 = vpop.f32.mrf.mxu0
        %v3191 = vadd.f32 %v3102, %v3190
        %3192 = vmatmul.bf16.gmra.mxu0 %v3014
        %v3193 = vpop.f32.mrf.mxu0
        %v3194 = vadd.f32 %v3105, %v3193
        %v3195 = vpop.f32.mrf.mxu0
        %v3196 = vadd.f32 %v3107, %v3195
        %3197 = vmatmul.bf16.gmra.mxu0 %v3016
        %v3198 = vpop.f32.mrf.mxu0
        %v3199 = vadd.f32 %v3110, %v3198
        %v3200 = vpop.f32.mrf.mxu0
        %v3201 = vadd.f32 %v3112, %v3200
        %3202 = vmatmul.bf16.gmra.mxu0 %v3018
        %v3203 = vpop.f32.mrf.mxu0
        %v3204 = vadd.f32 %v3115, %v3203
        %v3205 = vpop.f32.mrf.mxu0
        %v3206 = vadd.f32 %v3117, %v3205
        %3207 = vmatmul.bf16.gmra.mxu0 %v3020
        %v3208 = vpop.f32.mrf.mxu0
        %v3209 = vadd.f32 %v3120, %v3208
        %v3210 = vpop.f32.mrf.mxu0
        %v3211 = vadd.f32 %v3122, %v3210
        %3212 = vmatmul.bf16.gmra.mxu0 %v3022
        %v3213 = vpop.f32.mrf.mxu0
        %v3214 = vadd.f32 %v3125, %v3213
        %v3215 = vpop.f32.mrf.mxu0
        %v3216 = vadd.f32 %v3127, %v3215
        %3217 = vmatmul.bf16.gmra.mxu0 %v3024
        %v3218 = vpop.f32.mrf.mxu0
        %v3219 = vadd.f32 %v3130, %v3218
        %v3220 = vpop.f32.mrf.mxu0
        %v3221 = vadd.f32 %v3132, %v3220
        %3222 = vmatmul.bf16.gmra.mxu0 %v3026
        %v3223 = vpop.f32.mrf.mxu0
        %v3224 = vadd.f32 %v3135, %v3223
        %v3225 = vpop.f32.mrf.mxu0
        %v3226 = vadd.f32 %v3137, %v3225
        %3227 = vmatmul.bf16.gmra.mxu0 %v3028
        %v3228 = vpop.f32.mrf.mxu0
        %v3229 = vadd.f32 %v3140, %v3228
        %v3230 = vpop.f32.mrf.mxu0
        %v3231 = vadd.f32 %v3142, %v3230
        %3232 = vmatmul.bf16.gmra.mxu0 %v3030
        %v3233 = vpop.f32.mrf.mxu0
        %v3234 = vadd.f32 %v3145, %v3233
        %v3235 = vpop.f32.mrf.mxu0
        %v3236 = vadd.f32 %v3147, %v3235
        %3237 = vmatmul.bf16.gmra.mxu0 %v3032
        %v3238 = vpop.f32.mrf.mxu0
        %v3239 = vadd.f32 %v3150, %v3238
        %v3240 = vpop.f32.mrf.mxu0
        %v3241 = vadd.f32 %v3152, %v3240
        %3242 = vdwg.mxu0
        %v3243 = vpack.c.bf16 %v3166, %v3164
        %v3244 = vpack.c.bf16 %v3171, %v3169
        %v3245 = vpack.c.bf16 %v3176, %v3174
        %v3246 = vpack.c.bf16 %v3181, %v3179
        %v3247 = vpack.c.bf16 %v3186, %v3184
        %v3248 = vpack.c.bf16 %v3191, %v3189
        %v3249 = vpack.c.bf16 %v3196, %v3194
        %v3250 = vpack.c.bf16 %v3201, %v3199
        %v3251 = vpack.c.bf16 %v3206, %v3204
        %v3252 = vpack.c.bf16 %v3211, %v3209
        %v3253 = vpack.c.bf16 %v3216, %v3214
        %v3254 = vpack.c.bf16 %v3221, %v3219
        %v3255 = vpack.c.bf16 %v3226, %v3224
        %v3256 = vpack.c.bf16 %v3231, %v3229
        %v3257 = vpack.c.bf16 %v3236, %v3234
        %v3258 = vpack.c.bf16 %v3241, %v3239
        %s3259 = scalar_lea.vmem %s2, 8
        %v3260 = vld [vmem:[%s3259] sm:$0x3]
        %v3262 = vsel %vm1468, %v3243, 0
        %v3265 = vsel %vm1468, %v3244, 0
        %v3268 = vsel %vm1468, %v3245, 0
        %v3271 = vsel %vm1468, %v3246, 0
        %v3274 = vsel %vm1468, %v3247, 0
        %v3277 = vsel %vm1468, %v3248, 0
        %v3280 = vsel %vm1468, %v3249, 0
        %v3283 = vsel %vm1468, %v3250, 0
        %v3286 = vsel %vm1468, %v3251, 0
        %v3289 = vsel %vm1468, %v3252, 0
        %v3292 = vsel %vm1468, %v3253, 0
        %v3295 = vsel %vm1468, %v3254, 0
        %v3298 = vsel %vm1468, %v3255, 0
        %v3301 = vsel %vm1468, %v3256, 0
        %v3304 = vsel %vm1468, %v3257, 0
        %v3307 = vsel %vm1468, %v3258, 0
        %v3310 = vsel %vm1517, %v3260, 0
        %3312 = vmatpush.bf16.msra.mxu0 0
        %3313 = vmatpush.bf16.msra.mxu0 0
        %3314 = vmatpush.bf16.msra.mxu0 0
        %3315 = vmatpush.bf16.msra.mxu0 0
        %3316 = vmatpush.bf16.msra.mxu0 0
        %3317 = vmatpush.bf16.msra.mxu0 0
        %3318 = vmatpush.bf16.msra.mxu0 0
        %3319 = vmatpush.bf16.msra.mxu0 %v3310
        %3320 = vmatmul.bf16.gmra.mxu0 %v3262
        %v3321 = vpop.f32.mrf.mxu0
        %v3322 = vadd.f32 0.0, %v3321
        %v3323 = vpop.f32.mrf.mxu0
        %v3324 = vadd.f32 0.0, %v3323
        %3325 = vmatmul.bf16.gmra.mxu0 %v3265
        %v3326 = vpop.f32.mrf.mxu0
        %v3327 = vadd.f32 0.0, %v3326
        %v3328 = vpop.f32.mrf.mxu0
        %v3329 = vadd.f32 0.0, %v3328
        %3330 = vmatmul.bf16.gmra.mxu0 %v3268
        %v3331 = vpop.f32.mrf.mxu0
        %v3332 = vadd.f32 0.0, %v3331
        %v3333 = vpop.f32.mrf.mxu0
        %v3334 = vadd.f32 0.0, %v3333
        %3335 = vmatmul.bf16.gmra.mxu0 %v3271
        %v3336 = vpop.f32.mrf.mxu0
        %v3337 = vadd.f32 0.0, %v3336
        %v3338 = vpop.f32.mrf.mxu0
        %v3339 = vadd.f32 0.0, %v3338
        %3340 = vmatmul.bf16.gmra.mxu0 %v3274
        %v3341 = vpop.f32.mrf.mxu0
        %v3342 = vadd.f32 0.0, %v3341
        %v3343 = vpop.f32.mrf.mxu0
        %v3344 = vadd.f32 0.0, %v3343
        %3345 = vmatmul.bf16.gmra.mxu0 %v3277
        %v3346 = vpop.f32.mrf.mxu0
        %v3347 = vadd.f32 0.0, %v3346
        %v3348 = vpop.f32.mrf.mxu0
        %v3349 = vadd.f32 0.0, %v3348
        %3350 = vmatmul.bf16.gmra.mxu0 %v3280
        %v3351 = vpop.f32.mrf.mxu0
        %v3352 = vadd.f32 0.0, %v3351
        %v3353 = vpop.f32.mrf.mxu0
        %v3354 = vadd.f32 0.0, %v3353
        %3355 = vmatmul.bf16.gmra.mxu0 %v3283
        %v3356 = vpop.f32.mrf.mxu0
        %v3357 = vadd.f32 0.0, %v3356
        %v3358 = vpop.f32.mrf.mxu0
        %v3359 = vadd.f32 0.0, %v3358
        %3360 = vmatmul.bf16.gmra.mxu0 %v3286
        %v3361 = vpop.f32.mrf.mxu0
        %v3362 = vadd.f32 0.0, %v3361
        %v3363 = vpop.f32.mrf.mxu0
        %v3364 = vadd.f32 0.0, %v3363
        %3365 = vmatmul.bf16.gmra.mxu0 %v3289
        %v3366 = vpop.f32.mrf.mxu0
        %v3367 = vadd.f32 0.0, %v3366
        %v3368 = vpop.f32.mrf.mxu0
        %v3369 = vadd.f32 0.0, %v3368
        %3370 = vmatmul.bf16.gmra.mxu0 %v3292
        %v3371 = vpop.f32.mrf.mxu0
        %v3372 = vadd.f32 0.0, %v3371
        %v3373 = vpop.f32.mrf.mxu0
        %v3374 = vadd.f32 0.0, %v3373
        %3375 = vmatmul.bf16.gmra.mxu0 %v3295
        %v3376 = vpop.f32.mrf.mxu0
        %v3377 = vadd.f32 0.0, %v3376
        %v3378 = vpop.f32.mrf.mxu0
        %v3379 = vadd.f32 0.0, %v3378
        %3380 = vmatmul.bf16.gmra.mxu0 %v3298
        %v3381 = vpop.f32.mrf.mxu0
        %v3382 = vadd.f32 0.0, %v3381
        %v3383 = vpop.f32.mrf.mxu0
        %v3384 = vadd.f32 0.0, %v3383
        %3385 = vmatmul.bf16.gmra.mxu0 %v3301
        %v3386 = vpop.f32.mrf.mxu0
        %v3387 = vadd.f32 0.0, %v3386
        %v3388 = vpop.f32.mrf.mxu0
        %v3389 = vadd.f32 0.0, %v3388
        %3390 = vmatmul.bf16.gmra.mxu0 %v3304
        %v3391 = vpop.f32.mrf.mxu0
        %v3392 = vadd.f32 0.0, %v3391
        %v3393 = vpop.f32.mrf.mxu0
        %v3394 = vadd.f32 0.0, %v3393
        %3395 = vmatmul.bf16.gmra.mxu0 %v3307
        %v3396 = vpop.f32.mrf.mxu0
        %v3397 = vadd.f32 0.0, %v3396
        %v3398 = vpop.f32.mrf.mxu0
        %v3399 = vadd.f32 0.0, %v3398
        %3400 = vdwg.mxu0
        %v3401 = vadd.f32 %v2840, %v3322
        %v3402 = vadd.f32 %v2841, %v3324
        %v3403 = vadd.f32 %v2842, %v3327
        %v3404 = vadd.f32 %v2843, %v3329
        %v3405 = vadd.f32 %v2844, %v3332
        %v3406 = vadd.f32 %v2845, %v3334
        %v3407 = vadd.f32 %v2846, %v3337
        %v3408 = vadd.f32 %v2847, %v3339
        %v3409 = vadd.f32 %v2848, %v3342
        %v3410 = vadd.f32 %v2849, %v3344
        %v3411 = vadd.f32 %v2850, %v3347
        %v3412 = vadd.f32 %v2851, %v3349
        %v3413 = vadd.f32 %v2852, %v3352
        %v3414 = vadd.f32 %v2853, %v3354
        %v3415 = vadd.f32 %v2854, %v3357
        %v3416 = vadd.f32 %v2855, %v3359
        %v3417 = vadd.f32 %v2856, %v3362
        %v3418 = vadd.f32 %v2857, %v3364
        %v3419 = vadd.f32 %v2858, %v3367
        %v3420 = vadd.f32 %v2859, %v3369
        %v3421 = vadd.f32 %v2860, %v3372
        %v3422 = vadd.f32 %v2861, %v3374
        %v3423 = vadd.f32 %v2862, %v3377
        %v3424 = vadd.f32 %v2863, %v3379
        %v3425 = vadd.f32 %v2864, %v3382
        %v3426 = vadd.f32 %v2865, %v3384
        %v3427 = vadd.f32 %v2866, %v3387
        %v3428 = vadd.f32 %v2867, %v3389
        %v3429 = vadd.f32 %v2868, %v3392
        %v3430 = vadd.f32 %v2869, %v3394
        %v3431 = vadd.f32 %v2870, %v3397
        %v3432 = vadd.f32 %v2871, %v3399
        %s3433 = scalar_lea.vmem [#allocation2], 1280
        %v3434 = vld [vmem:[%s3433] sm:$0xff]
        %v3435 = vld [vmem:[%s3433 + $0x8] sm:$0xff]
        %v3436 = vld [vmem:[%s3433 + $0x10] sm:$0xff]
        %v3437 = vld [vmem:[%s3433 + $0x18] sm:$0xff]
        %v3438 = vld [vmem:[%s3433 + $0x20] sm:$0xff]
        %v3439 = vld [vmem:[%s3433 + $0x28] sm:$0xff]
        %v3440 = vld [vmem:[%s3433 + $0x30] sm:$0xff]
        %v3441 = vld [vmem:[%s3433 + $0x38] sm:$0xff]
        %v3442 = vld [vmem:[%s3433 + $0x40] sm:$0xff]
        %v3443 = vld [vmem:[%s3433 + $0x48] sm:$0xff]
        %v3444 = vld [vmem:[%s3433 + $0x50] sm:$0xff]
        %v3445 = vld [vmem:[%s3433 + $0x58] sm:$0xff]
        %v3446 = vld [vmem:[%s3433 + $0x60] sm:$0xff]
        %v3447 = vld [vmem:[%s3433 + $0x68] sm:$0xff]
        %v3448 = vld [vmem:[%s3433 + $0x70] sm:$0xff]
        %v3449 = vld [vmem:[%s3433 + $0x78] sm:$0xff]
        %v3450 = vld [vmem:[%s3433 + $0x80] sm:$0xff]
        %v3451 = vld [vmem:[%s3433 + $0x88] sm:$0xff]
        %v3452 = vld [vmem:[%s3433 + $0x90] sm:$0xff]
        %v3453 = vld [vmem:[%s3433 + $0x98] sm:$0xff]
        %v3454 = vld [vmem:[%s3433 + $0xa0] sm:$0xff]
        %v3455 = vld [vmem:[%s3433 + $0xa8] sm:$0xff]
        %v3456 = vld [vmem:[%s3433 + $0xb0] sm:$0xff]
        %v3457 = vld [vmem:[%s3433 + $0xb8] sm:$0xff]
        %v3458 = vld [vmem:[%s3433 + $0xc0] sm:$0xff]
        %v3459 = vld [vmem:[%s3433 + $0xc8] sm:$0xff]
        %v3460 = vld [vmem:[%s3433 + $0xd0] sm:$0xff]
        %v3461 = vld [vmem:[%s3433 + $0xd8] sm:$0xff]
        %v3462 = vld [vmem:[%s3433 + $0xe0] sm:$0xff]
        %v3463 = vld [vmem:[%s3433 + $0xe8] sm:$0xff]
        %v3464 = vld [vmem:[%s3433 + $0xf0] sm:$0xff]
        %v3465 = vld [vmem:[%s3433 + $0xf8] sm:$0xff]
        %v3498 = vunpack.c.l.b16 %v3434
        %v3499 = vunpack.c.h.b16 %v3434
        %v3500 = vunpack.c.l.b16 %v3435
        %v3501 = vunpack.c.h.b16 %v3435
        %v3502 = vunpack.c.l.b16 %v3436
        %v3503 = vunpack.c.h.b16 %v3436
        %v3504 = vunpack.c.l.b16 %v3437
        %v3505 = vunpack.c.h.b16 %v3437
        %v3506 = vunpack.c.l.b16 %v3438
        %v3507 = vunpack.c.h.b16 %v3438
        %v3508 = vunpack.c.l.b16 %v3439
        %v3509 = vunpack.c.h.b16 %v3439
        %v3510 = vunpack.c.l.b16 %v3440
        %v3511 = vunpack.c.h.b16 %v3440
        %v3512 = vunpack.c.l.b16 %v3441
        %v3513 = vunpack.c.h.b16 %v3441
        %v3514 = vunpack.c.l.b16 %v3442
        %v3515 = vunpack.c.h.b16 %v3442
        %v3516 = vunpack.c.l.b16 %v3443
        %v3517 = vunpack.c.h.b16 %v3443
        %v3518 = vunpack.c.l.b16 %v3444
        %v3519 = vunpack.c.h.b16 %v3444
        %v3520 = vunpack.c.l.b16 %v3445
        %v3521 = vunpack.c.h.b16 %v3445
        %v3522 = vunpack.c.l.b16 %v3446
        %v3523 = vunpack.c.h.b16 %v3446
        %v3524 = vunpack.c.l.b16 %v3447
        %v3525 = vunpack.c.h.b16 %v3447
        %v3526 = vunpack.c.l.b16 %v3448
        %v3527 = vunpack.c.h.b16 %v3448
        %v3528 = vunpack.c.l.b16 %v3449
        %v3529 = vunpack.c.h.b16 %v3449
        %v3530 = vunpack.c.l.b16 %v3450
        %v3531 = vunpack.c.h.b16 %v3450
        %v3532 = vunpack.c.l.b16 %v3451
        %v3533 = vunpack.c.h.b16 %v3451
        %v3534 = vunpack.c.l.b16 %v3452
        %v3535 = vunpack.c.h.b16 %v3452
        %v3536 = vunpack.c.l.b16 %v3453
        %v3537 = vunpack.c.h.b16 %v3453
        %v3538 = vunpack.c.l.b16 %v3454
        %v3539 = vunpack.c.h.b16 %v3454
        %v3540 = vunpack.c.l.b16 %v3455
        %v3541 = vunpack.c.h.b16 %v3455
        %v3542 = vunpack.c.l.b16 %v3456
        %v3543 = vunpack.c.h.b16 %v3456
        %v3544 = vunpack.c.l.b16 %v3457
        %v3545 = vunpack.c.h.b16 %v3457
        %v3546 = vunpack.c.l.b16 %v3458
        %v3547 = vunpack.c.h.b16 %v3458
        %v3548 = vunpack.c.l.b16 %v3459
        %v3549 = vunpack.c.h.b16 %v3459
        %v3550 = vunpack.c.l.b16 %v3460
        %v3551 = vunpack.c.h.b16 %v3460
        %v3552 = vunpack.c.l.b16 %v3461
        %v3553 = vunpack.c.h.b16 %v3461
        %v3554 = vunpack.c.l.b16 %v3462
        %v3555 = vunpack.c.h.b16 %v3462
        %v3556 = vunpack.c.l.b16 %v3463
        %v3557 = vunpack.c.h.b16 %v3463
        %v3558 = vunpack.c.l.b16 %v3464
        %v3559 = vunpack.c.h.b16 %v3464
        %v3560 = vunpack.c.l.b16 %v3465
        %v3561 = vunpack.c.h.b16 %v3465
        %v3562 = vpack.c.b16 %v3500, %v3498
        %v3563 = vpack.c.b16 %v3501, %v3499
        %v3564 = vpack.c.b16 %v3504, %v3502
        %v3565 = vpack.c.b16 %v3505, %v3503
        %v3566 = vpack.c.b16 %v3508, %v3506
        %v3567 = vpack.c.b16 %v3509, %v3507
        %v3568 = vpack.c.b16 %v3512, %v3510
        %v3569 = vpack.c.b16 %v3513, %v3511
        %v3570 = vpack.c.b16 %v3516, %v3514
        %v3571 = vpack.c.b16 %v3517, %v3515
        %v3572 = vpack.c.b16 %v3520, %v3518
        %v3573 = vpack.c.b16 %v3521, %v3519
        %v3574 = vpack.c.b16 %v3524, %v3522
        %v3575 = vpack.c.b16 %v3525, %v3523
        %v3576 = vpack.c.b16 %v3528, %v3526
        %v3577 = vpack.c.b16 %v3529, %v3527
        %v3578 = vpack.c.b16 %v3532, %v3530
        %v3579 = vpack.c.b16 %v3533, %v3531
        %v3580 = vpack.c.b16 %v3536, %v3534
        %v3581 = vpack.c.b16 %v3537, %v3535
        %v3582 = vpack.c.b16 %v3540, %v3538
        %v3583 = vpack.c.b16 %v3541, %v3539
        %v3584 = vpack.c.b16 %v3544, %v3542
        %v3585 = vpack.c.b16 %v3545, %v3543
        %v3586 = vpack.c.b16 %v3548, %v3546
        %v3587 = vpack.c.b16 %v3549, %v3547
        %v3588 = vpack.c.b16 %v3552, %v3550
        %v3589 = vpack.c.b16 %v3553, %v3551
        %v3590 = vpack.c.b16 %v3556, %v3554
        %v3591 = vpack.c.b16 %v3557, %v3555
        %v3592 = vpack.c.b16 %v3560, %v3558
        %v3593 = vpack.c.b16 %v3561, %v3559
        %3626 = vmatpush.bf16.msra.mxu0 %v859
        %3627 = vmatpush.bf16.msra.mxu0 %v858
        %3628 = vmatpush.bf16.msra.mxu0 %v857
        %3629 = vmatpush.bf16.msra.mxu0 %v856
        %3630 = vmatpush.bf16.msra.mxu0 %v855
        %3631 = vmatpush.bf16.msra.mxu0 %v854
        %3632 = vmatpush.bf16.msra.mxu0 %v853
        %3633 = vmatpush.bf16.msra.mxu0 %v852
        %3634 = vmatmul.bf16.gmra.mxu0 %v3562
        %v3635 = vpop.f32.mrf.mxu0
        %v3636 = vadd.f32 0.0, %v3635
        %v3637 = vpop.f32.mrf.mxu0
        %v3638 = vadd.f32 0.0, %v3637
        %3639 = vmatmul.bf16.gmra.mxu0 %v3564
        %v3640 = vpop.f32.mrf.mxu0
        %v3641 = vadd.f32 0.0, %v3640
        %v3642 = vpop.f32.mrf.mxu0
        %v3643 = vadd.f32 0.0, %v3642
        %3644 = vmatmul.bf16.gmra.mxu0 %v3566
        %v3645 = vpop.f32.mrf.mxu0
        %v3646 = vadd.f32 0.0, %v3645
        %v3647 = vpop.f32.mrf.mxu0
        %v3648 = vadd.f32 0.0, %v3647
        %3649 = vmatmul.bf16.gmra.mxu0 %v3568
        %v3650 = vpop.f32.mrf.mxu0
        %v3651 = vadd.f32 0.0, %v3650
        %v3652 = vpop.f32.mrf.mxu0
        %v3653 = vadd.f32 0.0, %v3652
        %3654 = vmatmul.bf16.gmra.mxu0 %v3570
        %v3655 = vpop.f32.mrf.mxu0
        %v3656 = vadd.f32 0.0, %v3655
        %v3657 = vpop.f32.mrf.mxu0
        %v3658 = vadd.f32 0.0, %v3657
        %3659 = vmatmul.bf16.gmra.mxu0 %v3572
        %v3660 = vpop.f32.mrf.mxu0
        %v3661 = vadd.f32 0.0, %v3660
        %v3662 = vpop.f32.mrf.mxu0
        %v3663 = vadd.f32 0.0, %v3662
        %3664 = vmatmul.bf16.gmra.mxu0 %v3574
        %v3665 = vpop.f32.mrf.mxu0
        %v3666 = vadd.f32 0.0, %v3665
        %v3667 = vpop.f32.mrf.mxu0
        %v3668 = vadd.f32 0.0, %v3667
        %3669 = vmatmul.bf16.gmra.mxu0 %v3576
        %v3670 = vpop.f32.mrf.mxu0
        %v3671 = vadd.f32 0.0, %v3670
        %v3672 = vpop.f32.mrf.mxu0
        %v3673 = vadd.f32 0.0, %v3672
        %3674 = vmatmul.bf16.gmra.mxu0 %v3578
        %v3675 = vpop.f32.mrf.mxu0
        %v3676 = vadd.f32 0.0, %v3675
        %v3677 = vpop.f32.mrf.mxu0
        %v3678 = vadd.f32 0.0, %v3677
        %3679 = vmatmul.bf16.gmra.mxu0 %v3580
        %v3680 = vpop.f32.mrf.mxu0
        %v3681 = vadd.f32 0.0, %v3680
        %v3682 = vpop.f32.mrf.mxu0
        %v3683 = vadd.f32 0.0, %v3682
        %3684 = vmatmul.bf16.gmra.mxu0 %v3582
        %v3685 = vpop.f32.mrf.mxu0
        %v3686 = vadd.f32 0.0, %v3685
        %v3687 = vpop.f32.mrf.mxu0
        %v3688 = vadd.f32 0.0, %v3687
        %3689 = vmatmul.bf16.gmra.mxu0 %v3584
        %v3690 = vpop.f32.mrf.mxu0
        %v3691 = vadd.f32 0.0, %v3690
        %v3692 = vpop.f32.mrf.mxu0
        %v3693 = vadd.f32 0.0, %v3692
        %3694 = vmatmul.bf16.gmra.mxu0 %v3586
        %v3695 = vpop.f32.mrf.mxu0
        %v3696 = vadd.f32 0.0, %v3695
        %v3697 = vpop.f32.mrf.mxu0
        %v3698 = vadd.f32 0.0, %v3697
        %3699 = vmatmul.bf16.gmra.mxu0 %v3588
        %v3700 = vpop.f32.mrf.mxu0
        %v3701 = vadd.f32 0.0, %v3700
        %v3702 = vpop.f32.mrf.mxu0
        %v3703 = vadd.f32 0.0, %v3702
        %3704 = vmatmul.bf16.gmra.mxu0 %v3590
        %v3705 = vpop.f32.mrf.mxu0
        %v3706 = vadd.f32 0.0, %v3705
        %v3707 = vpop.f32.mrf.mxu0
        %v3708 = vadd.f32 0.0, %v3707
        %3709 = vmatmul.bf16.gmra.mxu0 %v3592
        %v3710 = vpop.f32.mrf.mxu0
        %v3711 = vadd.f32 0.0, %v3710
        %v3712 = vpop.f32.mrf.mxu0
        %v3713 = vadd.f32 0.0, %v3712
        %3714 = vdwg.mxu0
        %3715 = vmatpush.bf16.msra.mxu0 %v867
        %3716 = vmatpush.bf16.msra.mxu0 %v866
        %3717 = vmatpush.bf16.msra.mxu0 %v865
        %3718 = vmatpush.bf16.msra.mxu0 %v864
        %3719 = vmatpush.bf16.msra.mxu0 %v863
        %3720 = vmatpush.bf16.msra.mxu0 %v862
        %3721 = vmatpush.bf16.msra.mxu0 %v861
        %3722 = vmatpush.bf16.msra.mxu0 %v860
        %3723 = vmatmul.bf16.gmra.mxu0 %v3563
        %v3724 = vpop.f32.mrf.mxu0
        %v3725 = vadd.f32 %v3636, %v3724
        %v3726 = vpop.f32.mrf.mxu0
        %v3727 = vadd.f32 %v3638, %v3726
        %3728 = vmatmul.bf16.gmra.mxu0 %v3565
        %v3729 = vpop.f32.mrf.mxu0
        %v3730 = vadd.f32 %v3641, %v3729
        %v3731 = vpop.f32.mrf.mxu0
        %v3732 = vadd.f32 %v3643, %v3731
        %3733 = vmatmul.bf16.gmra.mxu0 %v3567
        %v3734 = vpop.f32.mrf.mxu0
        %v3735 = vadd.f32 %v3646, %v3734
        %v3736 = vpop.f32.mrf.mxu0
        %v3737 = vadd.f32 %v3648, %v3736
        %3738 = vmatmul.bf16.gmra.mxu0 %v3569
        %v3739 = vpop.f32.mrf.mxu0
        %v3740 = vadd.f32 %v3651, %v3739
        %v3741 = vpop.f32.mrf.mxu0
        %v3742 = vadd.f32 %v3653, %v3741
        %3743 = vmatmul.bf16.gmra.mxu0 %v3571
        %v3744 = vpop.f32.mrf.mxu0
        %v3745 = vadd.f32 %v3656, %v3744
        %v3746 = vpop.f32.mrf.mxu0
        %v3747 = vadd.f32 %v3658, %v3746
        %3748 = vmatmul.bf16.gmra.mxu0 %v3573
        %v3749 = vpop.f32.mrf.mxu0
        %v3750 = vadd.f32 %v3661, %v3749
        %v3751 = vpop.f32.mrf.mxu0
        %v3752 = vadd.f32 %v3663, %v3751
        %3753 = vmatmul.bf16.gmra.mxu0 %v3575
        %v3754 = vpop.f32.mrf.mxu0
        %v3755 = vadd.f32 %v3666, %v3754
        %v3756 = vpop.f32.mrf.mxu0
        %v3757 = vadd.f32 %v3668, %v3756
        %3758 = vmatmul.bf16.gmra.mxu0 %v3577
        %v3759 = vpop.f32.mrf.mxu0
        %v3760 = vadd.f32 %v3671, %v3759
        %v3761 = vpop.f32.mrf.mxu0
        %v3762 = vadd.f32 %v3673, %v3761
        %3763 = vmatmul.bf16.gmra.mxu0 %v3579
        %v3764 = vpop.f32.mrf.mxu0
        %v3765 = vadd.f32 %v3676, %v3764
        %v3766 = vpop.f32.mrf.mxu0
        %v3767 = vadd.f32 %v3678, %v3766
        %3768 = vmatmul.bf16.gmra.mxu0 %v3581
        %v3769 = vpop.f32.mrf.mxu0
        %v3770 = vadd.f32 %v3681, %v3769
        %v3771 = vpop.f32.mrf.mxu0
        %v3772 = vadd.f32 %v3683, %v3771
        %3773 = vmatmul.bf16.gmra.mxu0 %v3583
        %v3774 = vpop.f32.mrf.mxu0
        %v3775 = vadd.f32 %v3686, %v3774
        %v3776 = vpop.f32.mrf.mxu0
        %v3777 = vadd.f32 %v3688, %v3776
        %3778 = vmatmul.bf16.gmra.mxu0 %v3585
        %v3779 = vpop.f32.mrf.mxu0
        %v3780 = vadd.f32 %v3691, %v3779
        %v3781 = vpop.f32.mrf.mxu0
        %v3782 = vadd.f32 %v3693, %v3781
        %3783 = vmatmul.bf16.gmra.mxu0 %v3587
        %v3784 = vpop.f32.mrf.mxu0
        %v3785 = vadd.f32 %v3696, %v3784
        %v3786 = vpop.f32.mrf.mxu0
        %v3787 = vadd.f32 %v3698, %v3786
        %3788 = vmatmul.bf16.gmra.mxu0 %v3589
        %v3789 = vpop.f32.mrf.mxu0
        %v3790 = vadd.f32 %v3701, %v3789
        %v3791 = vpop.f32.mrf.mxu0
        %v3792 = vadd.f32 %v3703, %v3791
        %3793 = vmatmul.bf16.gmra.mxu0 %v3591
        %v3794 = vpop.f32.mrf.mxu0
        %v3795 = vadd.f32 %v3706, %v3794
        %v3796 = vpop.f32.mrf.mxu0
        %v3797 = vadd.f32 %v3708, %v3796
        %3798 = vmatmul.bf16.gmra.mxu0 %v3593
        %v3799 = vpop.f32.mrf.mxu0
        %v3800 = vadd.f32 %v3711, %v3799
        %v3801 = vpop.f32.mrf.mxu0
        %v3802 = vadd.f32 %v3713, %v3801
        %3803 = vdwg.mxu0
        %v3804 = vpack.c.bf16 %v3727, %v3725
        %v3805 = vpack.c.bf16 %v3732, %v3730
        %v3806 = vpack.c.bf16 %v3737, %v3735
        %v3807 = vpack.c.bf16 %v3742, %v3740
        %v3808 = vpack.c.bf16 %v3747, %v3745
        %v3809 = vpack.c.bf16 %v3752, %v3750
        %v3810 = vpack.c.bf16 %v3757, %v3755
        %v3811 = vpack.c.bf16 %v3762, %v3760
        %v3812 = vpack.c.bf16 %v3767, %v3765
        %v3813 = vpack.c.bf16 %v3772, %v3770
        %v3814 = vpack.c.bf16 %v3777, %v3775
        %v3815 = vpack.c.bf16 %v3782, %v3780
        %v3816 = vpack.c.bf16 %v3787, %v3785
        %v3817 = vpack.c.bf16 %v3792, %v3790
        %v3818 = vpack.c.bf16 %v3797, %v3795
        %v3819 = vpack.c.bf16 %v3802, %v3800
        %s3820 = scalar_lea.vmem %s2, 10
        %v3821 = vld [vmem:[%s3820] sm:$0x3]
        %v3823 = vsel %vm1468, %v3804, 0
        %v3826 = vsel %vm1468, %v3805, 0
        %v3829 = vsel %vm1468, %v3806, 0
        %v3832 = vsel %vm1468, %v3807, 0
        %v3835 = vsel %vm1468, %v3808, 0
        %v3838 = vsel %vm1468, %v3809, 0
        %v3841 = vsel %vm1468, %v3810, 0
        %v3844 = vsel %vm1468, %v3811, 0
        %v3847 = vsel %vm1468, %v3812, 0
        %v3850 = vsel %vm1468, %v3813, 0
        %v3853 = vsel %vm1468, %v3814, 0
        %v3856 = vsel %vm1468, %v3815, 0
        %v3859 = vsel %vm1468, %v3816, 0
        %v3862 = vsel %vm1468, %v3817, 0
        %v3865 = vsel %vm1468, %v3818, 0
        %v3868 = vsel %vm1468, %v3819, 0
        %v3871 = vsel %vm1517, %v3821, 0
        %3873 = vmatpush.bf16.msra.mxu0 0
        %3874 = vmatpush.bf16.msra.mxu0 0
        %3875 = vmatpush.bf16.msra.mxu0 0
        %3876 = vmatpush.bf16.msra.mxu0 0
        %3877 = vmatpush.bf16.msra.mxu0 0
        %3878 = vmatpush.bf16.msra.mxu0 0
        %3879 = vmatpush.bf16.msra.mxu0 0
        %3880 = vmatpush.bf16.msra.mxu0 %v3871
        %3881 = vmatmul.bf16.gmra.mxu0 %v3823
        %v3882 = vpop.f32.mrf.mxu0
        %v3883 = vadd.f32 0.0, %v3882
        %v3884 = vpop.f32.mrf.mxu0
        %v3885 = vadd.f32 0.0, %v3884
        %3886 = vmatmul.bf16.gmra.mxu0 %v3826
        %v3887 = vpop.f32.mrf.mxu0
        %v3888 = vadd.f32 0.0, %v3887
        %v3889 = vpop.f32.mrf.mxu0
        %v3890 = vadd.f32 0.0, %v3889
        %3891 = vmatmul.bf16.gmra.mxu0 %v3829
        %v3892 = vpop.f32.mrf.mxu0
        %v3893 = vadd.f32 0.0, %v3892
        %v3894 = vpop.f32.mrf.mxu0
        %v3895 = vadd.f32 0.0, %v3894
        %3896 = vmatmul.bf16.gmra.mxu0 %v3832
        %v3897 = vpop.f32.mrf.mxu0
        %v3898 = vadd.f32 0.0, %v3897
        %v3899 = vpop.f32.mrf.mxu0
        %v3900 = vadd.f32 0.0, %v3899
        %3901 = vmatmul.bf16.gmra.mxu0 %v3835
        %v3902 = vpop.f32.mrf.mxu0
        %v3903 = vadd.f32 0.0, %v3902
        %v3904 = vpop.f32.mrf.mxu0
        %v3905 = vadd.f32 0.0, %v3904
        %3906 = vmatmul.bf16.gmra.mxu0 %v3838
        %v3907 = vpop.f32.mrf.mxu0
        %v3908 = vadd.f32 0.0, %v3907
        %v3909 = vpop.f32.mrf.mxu0
        %v3910 = vadd.f32 0.0, %v3909
        %3911 = vmatmul.bf16.gmra.mxu0 %v3841
        %v3912 = vpop.f32.mrf.mxu0
        %v3913 = vadd.f32 0.0, %v3912
        %v3914 = vpop.f32.mrf.mxu0
        %v3915 = vadd.f32 0.0, %v3914
        %3916 = vmatmul.bf16.gmra.mxu0 %v3844
        %v3917 = vpop.f32.mrf.mxu0
        %v3918 = vadd.f32 0.0, %v3917
        %v3919 = vpop.f32.mrf.mxu0
        %v3920 = vadd.f32 0.0, %v3919
        %3921 = vmatmul.bf16.gmra.mxu0 %v3847
        %v3922 = vpop.f32.mrf.mxu0
        %v3923 = vadd.f32 0.0, %v3922
        %v3924 = vpop.f32.mrf.mxu0
        %v3925 = vadd.f32 0.0, %v3924
        %3926 = vmatmul.bf16.gmra.mxu0 %v3850
        %v3927 = vpop.f32.mrf.mxu0
        %v3928 = vadd.f32 0.0, %v3927
        %v3929 = vpop.f32.mrf.mxu0
        %v3930 = vadd.f32 0.0, %v3929
        %3931 = vmatmul.bf16.gmra.mxu0 %v3853
        %v3932 = vpop.f32.mrf.mxu0
        %v3933 = vadd.f32 0.0, %v3932
        %v3934 = vpop.f32.mrf.mxu0
        %v3935 = vadd.f32 0.0, %v3934
        %3936 = vmatmul.bf16.gmra.mxu0 %v3856
        %v3937 = vpop.f32.mrf.mxu0
        %v3938 = vadd.f32 0.0, %v3937
        %v3939 = vpop.f32.mrf.mxu0
        %v3940 = vadd.f32 0.0, %v3939
        %3941 = vmatmul.bf16.gmra.mxu0 %v3859
        %v3942 = vpop.f32.mrf.mxu0
        %v3943 = vadd.f32 0.0, %v3942
        %v3944 = vpop.f32.mrf.mxu0
        %v3945 = vadd.f32 0.0, %v3944
        %3946 = vmatmul.bf16.gmra.mxu0 %v3862
        %v3947 = vpop.f32.mrf.mxu0
        %v3948 = vadd.f32 0.0, %v3947
        %v3949 = vpop.f32.mrf.mxu0
        %v3950 = vadd.f32 0.0, %v3949
        %3951 = vmatmul.bf16.gmra.mxu0 %v3865
        %v3952 = vpop.f32.mrf.mxu0
        %v3953 = vadd.f32 0.0, %v3952
        %v3954 = vpop.f32.mrf.mxu0
        %v3955 = vadd.f32 0.0, %v3954
        %3956 = vmatmul.bf16.gmra.mxu0 %v3868
        %v3957 = vpop.f32.mrf.mxu0
        %v3958 = vadd.f32 0.0, %v3957
        %v3959 = vpop.f32.mrf.mxu0
        %v3960 = vadd.f32 0.0, %v3959
        %3961 = vdwg.mxu0
        %v3962 = vadd.f32 %v3401, %v3883
        %v3963 = vadd.f32 %v3402, %v3885
        %v3964 = vadd.f32 %v3403, %v3888
        %v3965 = vadd.f32 %v3404, %v3890
        %v3966 = vadd.f32 %v3405, %v3893
        %v3967 = vadd.f32 %v3406, %v3895
        %v3968 = vadd.f32 %v3407, %v3898
        %v3969 = vadd.f32 %v3408, %v3900
        %v3970 = vadd.f32 %v3409, %v3903
        %v3971 = vadd.f32 %v3410, %v3905
        %v3972 = vadd.f32 %v3411, %v3908
        %v3973 = vadd.f32 %v3412, %v3910
        %v3974 = vadd.f32 %v3413, %v3913
        %v3975 = vadd.f32 %v3414, %v3915
        %v3976 = vadd.f32 %v3415, %v3918
        %v3977 = vadd.f32 %v3416, %v3920
        %v3978 = vadd.f32 %v3417, %v3923
        %v3979 = vadd.f32 %v3418, %v3925
        %v3980 = vadd.f32 %v3419, %v3928
        %v3981 = vadd.f32 %v3420, %v3930
        %v3982 = vadd.f32 %v3421, %v3933
        %v3983 = vadd.f32 %v3422, %v3935
        %v3984 = vadd.f32 %v3423, %v3938
        %v3985 = vadd.f32 %v3424, %v3940
        %v3986 = vadd.f32 %v3425, %v3943
        %v3987 = vadd.f32 %v3426, %v3945
        %v3988 = vadd.f32 %v3427, %v3948
        %v3989 = vadd.f32 %v3428, %v3950
        %v3990 = vadd.f32 %v3429, %v3953
        %v3991 = vadd.f32 %v3430, %v3955
        %v3992 = vadd.f32 %v3431, %v3958
        %v3993 = vadd.f32 %v3432, %v3960
        %s3994 = scalar_lea.vmem [#allocation2], 1536
        %v3995 = vld [vmem:[%s3994] sm:$0xff]
        %v3996 = vld [vmem:[%s3994 + $0x8] sm:$0xff]
        %v3997 = vld [vmem:[%s3994 + $0x10] sm:$0xff]
        %v3998 = vld [vmem:[%s3994 + $0x18] sm:$0xff]
        %v3999 = vld [vmem:[%s3994 + $0x20] sm:$0xff]
        %v4000 = vld [vmem:[%s3994 + $0x28] sm:$0xff]
        %v4001 = vld [vmem:[%s3994 + $0x30] sm:$0xff]
        %v4002 = vld [vmem:[%s3994 + $0x38] sm:$0xff]
        %v4003 = vld [vmem:[%s3994 + $0x40] sm:$0xff]
        %v4004 = vld [vmem:[%s3994 + $0x48] sm:$0xff]
        %v4005 = vld [vmem:[%s3994 + $0x50] sm:$0xff]
        %v4006 = vld [vmem:[%s3994 + $0x58] sm:$0xff]
        %v4007 = vld [vmem:[%s3994 + $0x60] sm:$0xff]
        %v4008 = vld [vmem:[%s3994 + $0x68] sm:$0xff]
        %v4009 = vld [vmem:[%s3994 + $0x70] sm:$0xff]
        %v4010 = vld [vmem:[%s3994 + $0x78] sm:$0xff]
        %v4011 = vld [vmem:[%s3994 + $0x80] sm:$0xff]
        %v4012 = vld [vmem:[%s3994 + $0x88] sm:$0xff]
        %v4013 = vld [vmem:[%s3994 + $0x90] sm:$0xff]
        %v4014 = vld [vmem:[%s3994 + $0x98] sm:$0xff]
        %v4015 = vld [vmem:[%s3994 + $0xa0] sm:$0xff]
        %v4016 = vld [vmem:[%s3994 + $0xa8] sm:$0xff]
        %v4017 = vld [vmem:[%s3994 + $0xb0] sm:$0xff]
        %v4018 = vld [vmem:[%s3994 + $0xb8] sm:$0xff]
        %v4019 = vld [vmem:[%s3994 + $0xc0] sm:$0xff]
        %v4020 = vld [vmem:[%s3994 + $0xc8] sm:$0xff]
        %v4021 = vld [vmem:[%s3994 + $0xd0] sm:$0xff]
        %v4022 = vld [vmem:[%s3994 + $0xd8] sm:$0xff]
        %v4023 = vld [vmem:[%s3994 + $0xe0] sm:$0xff]
        %v4024 = vld [vmem:[%s3994 + $0xe8] sm:$0xff]
        %v4025 = vld [vmem:[%s3994 + $0xf0] sm:$0xff]
        %v4026 = vld [vmem:[%s3994 + $0xf8] sm:$0xff]
        %v4059 = vunpack.c.l.b16 %v3995
        %v4060 = vunpack.c.h.b16 %v3995
        %v4061 = vunpack.c.l.b16 %v3996
        %v4062 = vunpack.c.h.b16 %v3996
        %v4063 = vunpack.c.l.b16 %v3997
        %v4064 = vunpack.c.h.b16 %v3997
        %v4065 = vunpack.c.l.b16 %v3998
        %v4066 = vunpack.c.h.b16 %v3998
        %v4067 = vunpack.c.l.b16 %v3999
        %v4068 = vunpack.c.h.b16 %v3999
        %v4069 = vunpack.c.l.b16 %v4000
        %v4070 = vunpack.c.h.b16 %v4000
        %v4071 = vunpack.c.l.b16 %v4001
        %v4072 = vunpack.c.h.b16 %v4001
        %v4073 = vunpack.c.l.b16 %v4002
        %v4074 = vunpack.c.h.b16 %v4002
        %v4075 = vunpack.c.l.b16 %v4003
        %v4076 = vunpack.c.h.b16 %v4003
        %v4077 = vunpack.c.l.b16 %v4004
        %v4078 = vunpack.c.h.b16 %v4004
        %v4079 = vunpack.c.l.b16 %v4005
        %v4080 = vunpack.c.h.b16 %v4005
        %v4081 = vunpack.c.l.b16 %v4006
        %v4082 = vunpack.c.h.b16 %v4006
        %v4083 = vunpack.c.l.b16 %v4007
        %v4084 = vunpack.c.h.b16 %v4007
        %v4085 = vunpack.c.l.b16 %v4008
        %v4086 = vunpack.c.h.b16 %v4008
        %v4087 = vunpack.c.l.b16 %v4009
        %v4088 = vunpack.c.h.b16 %v4009
        %v4089 = vunpack.c.l.b16 %v4010
        %v4090 = vunpack.c.h.b16 %v4010
        %v4091 = vunpack.c.l.b16 %v4011
        %v4092 = vunpack.c.h.b16 %v4011
        %v4093 = vunpack.c.l.b16 %v4012
        %v4094 = vunpack.c.h.b16 %v4012
        %v4095 = vunpack.c.l.b16 %v4013
        %v4096 = vunpack.c.h.b16 %v4013
        %v4097 = vunpack.c.l.b16 %v4014
        %v4098 = vunpack.c.h.b16 %v4014
        %v4099 = vunpack.c.l.b16 %v4015
        %v4100 = vunpack.c.h.b16 %v4015
        %v4101 = vunpack.c.l.b16 %v4016
        %v4102 = vunpack.c.h.b16 %v4016
        %v4103 = vunpack.c.l.b16 %v4017
        %v4104 = vunpack.c.h.b16 %v4017
        %v4105 = vunpack.c.l.b16 %v4018
        %v4106 = vunpack.c.h.b16 %v4018
        %v4107 = vunpack.c.l.b16 %v4019
        %v4108 = vunpack.c.h.b16 %v4019
        %v4109 = vunpack.c.l.b16 %v4020
        %v4110 = vunpack.c.h.b16 %v4020
        %v4111 = vunpack.c.l.b16 %v4021
        %v4112 = vunpack.c.h.b16 %v4021
        %v4113 = vunpack.c.l.b16 %v4022
        %v4114 = vunpack.c.h.b16 %v4022
        %v4115 = vunpack.c.l.b16 %v4023
        %v4116 = vunpack.c.h.b16 %v4023
        %v4117 = vunpack.c.l.b16 %v4024
        %v4118 = vunpack.c.h.b16 %v4024
        %v4119 = vunpack.c.l.b16 %v4025
        %v4120 = vunpack.c.h.b16 %v4025
        %v4121 = vunpack.c.l.b16 %v4026
        %v4122 = vunpack.c.h.b16 %v4026
        %v4123 = vpack.c.b16 %v4061, %v4059
        %v4124 = vpack.c.b16 %v4062, %v4060
        %v4125 = vpack.c.b16 %v4065, %v4063
        %v4126 = vpack.c.b16 %v4066, %v4064
        %v4127 = vpack.c.b16 %v4069, %v4067
        %v4128 = vpack.c.b16 %v4070, %v4068
        %v4129 = vpack.c.b16 %v4073, %v4071
        %v4130 = vpack.c.b16 %v4074, %v4072
        %v4131 = vpack.c.b16 %v4077, %v4075
        %v4132 = vpack.c.b16 %v4078, %v4076
        %v4133 = vpack.c.b16 %v4081, %v4079
        %v4134 = vpack.c.b16 %v4082, %v4080
        %v4135 = vpack.c.b16 %v4085, %v4083
        %v4136 = vpack.c.b16 %v4086, %v4084
        %v4137 = vpack.c.b16 %v4089, %v4087
        %v4138 = vpack.c.b16 %v4090, %v4088
        %v4139 = vpack.c.b16 %v4093, %v4091
        %v4140 = vpack.c.b16 %v4094, %v4092
        %v4141 = vpack.c.b16 %v4097, %v4095
        %v4142 = vpack.c.b16 %v4098, %v4096
        %v4143 = vpack.c.b16 %v4101, %v4099
        %v4144 = vpack.c.b16 %v4102, %v4100
        %v4145 = vpack.c.b16 %v4105, %v4103
        %v4146 = vpack.c.b16 %v4106, %v4104
        %v4147 = vpack.c.b16 %v4109, %v4107
        %v4148 = vpack.c.b16 %v4110, %v4108
        %v4149 = vpack.c.b16 %v4113, %v4111
        %v4150 = vpack.c.b16 %v4114, %v4112
        %v4151 = vpack.c.b16 %v4117, %v4115
        %v4152 = vpack.c.b16 %v4118, %v4116
        %v4153 = vpack.c.b16 %v4121, %v4119
        %v4154 = vpack.c.b16 %v4122, %v4120
        %4187 = vmatpush.bf16.msra.mxu0 %v859
        %4188 = vmatpush.bf16.msra.mxu0 %v858
        %4189 = vmatpush.bf16.msra.mxu0 %v857
        %4190 = vmatpush.bf16.msra.mxu0 %v856
        %4191 = vmatpush.bf16.msra.mxu0 %v855
        %4192 = vmatpush.bf16.msra.mxu0 %v854
        %4193 = vmatpush.bf16.msra.mxu0 %v853
        %4194 = vmatpush.bf16.msra.mxu0 %v852
        %4195 = vmatmul.bf16.gmra.mxu0 %v4123
        %v4196 = vpop.f32.mrf.mxu0
        %v4197 = vadd.f32 0.0, %v4196
        %v4198 = vpop.f32.mrf.mxu0
        %v4199 = vadd.f32 0.0, %v4198
        %4200 = vmatmul.bf16.gmra.mxu0 %v4125
        %v4201 = vpop.f32.mrf.mxu0
        %v4202 = vadd.f32 0.0, %v4201
        %v4203 = vpop.f32.mrf.mxu0
        %v4204 = vadd.f32 0.0, %v4203
        %4205 = vmatmul.bf16.gmra.mxu0 %v4127
        %v4206 = vpop.f32.mrf.mxu0
        %v4207 = vadd.f32 0.0, %v4206
        %v4208 = vpop.f32.mrf.mxu0
        %v4209 = vadd.f32 0.0, %v4208
        %4210 = vmatmul.bf16.gmra.mxu0 %v4129
        %v4211 = vpop.f32.mrf.mxu0
        %v4212 = vadd.f32 0.0, %v4211
        %v4213 = vpop.f32.mrf.mxu0
        %v4214 = vadd.f32 0.0, %v4213
        %4215 = vmatmul.bf16.gmra.mxu0 %v4131
        %v4216 = vpop.f32.mrf.mxu0
        %v4217 = vadd.f32 0.0, %v4216
        %v4218 = vpop.f32.mrf.mxu0
        %v4219 = vadd.f32 0.0, %v4218
        %4220 = vmatmul.bf16.gmra.mxu0 %v4133
        %v4221 = vpop.f32.mrf.mxu0
        %v4222 = vadd.f32 0.0, %v4221
        %v4223 = vpop.f32.mrf.mxu0
        %v4224 = vadd.f32 0.0, %v4223
        %4225 = vmatmul.bf16.gmra.mxu0 %v4135
        %v4226 = vpop.f32.mrf.mxu0
        %v4227 = vadd.f32 0.0, %v4226
        %v4228 = vpop.f32.mrf.mxu0
        %v4229 = vadd.f32 0.0, %v4228
        %4230 = vmatmul.bf16.gmra.mxu0 %v4137
        %v4231 = vpop.f32.mrf.mxu0
        %v4232 = vadd.f32 0.0, %v4231
        %v4233 = vpop.f32.mrf.mxu0
        %v4234 = vadd.f32 0.0, %v4233
        %4235 = vmatmul.bf16.gmra.mxu0 %v4139
        %v4236 = vpop.f32.mrf.mxu0
        %v4237 = vadd.f32 0.0, %v4236
        %v4238 = vpop.f32.mrf.mxu0
        %v4239 = vadd.f32 0.0, %v4238
        %4240 = vmatmul.bf16.gmra.mxu0 %v4141
        %v4241 = vpop.f32.mrf.mxu0
        %v4242 = vadd.f32 0.0, %v4241
        %v4243 = vpop.f32.mrf.mxu0
        %v4244 = vadd.f32 0.0, %v4243
        %4245 = vmatmul.bf16.gmra.mxu0 %v4143
        %v4246 = vpop.f32.mrf.mxu0
        %v4247 = vadd.f32 0.0, %v4246
        %v4248 = vpop.f32.mrf.mxu0
        %v4249 = vadd.f32 0.0, %v4248
        %4250 = vmatmul.bf16.gmra.mxu0 %v4145
        %v4251 = vpop.f32.mrf.mxu0
        %v4252 = vadd.f32 0.0, %v4251
        %v4253 = vpop.f32.mrf.mxu0
        %v4254 = vadd.f32 0.0, %v4253
        %4255 = vmatmul.bf16.gmra.mxu0 %v4147
        %v4256 = vpop.f32.mrf.mxu0
        %v4257 = vadd.f32 0.0, %v4256
        %v4258 = vpop.f32.mrf.mxu0
        %v4259 = vadd.f32 0.0, %v4258
        %4260 = vmatmul.bf16.gmra.mxu0 %v4149
        %v4261 = vpop.f32.mrf.mxu0
        %v4262 = vadd.f32 0.0, %v4261
        %v4263 = vpop.f32.mrf.mxu0
        %v4264 = vadd.f32 0.0, %v4263
        %4265 = vmatmul.bf16.gmra.mxu0 %v4151
        %v4266 = vpop.f32.mrf.mxu0
        %v4267 = vadd.f32 0.0, %v4266
        %v4268 = vpop.f32.mrf.mxu0
        %v4269 = vadd.f32 0.0, %v4268
        %4270 = vmatmul.bf16.gmra.mxu0 %v4153
        %v4271 = vpop.f32.mrf.mxu0
        %v4272 = vadd.f32 0.0, %v4271
        %v4273 = vpop.f32.mrf.mxu0
        %v4274 = vadd.f32 0.0, %v4273
        %4275 = vdwg.mxu0
        %4276 = vmatpush.bf16.msra.mxu0 %v867
        %4277 = vmatpush.bf16.msra.mxu0 %v866
        %4278 = vmatpush.bf16.msra.mxu0 %v865
        %4279 = vmatpush.bf16.msra.mxu0 %v864
        %4280 = vmatpush.bf16.msra.mxu0 %v863
        %4281 = vmatpush.bf16.msra.mxu0 %v862
        %4282 = vmatpush.bf16.msra.mxu0 %v861
        %4283 = vmatpush.bf16.msra.mxu0 %v860
        %4284 = vmatmul.bf16.gmra.mxu0 %v4124
        %v4285 = vpop.f32.mrf.mxu0
        %v4286 = vadd.f32 %v4197, %v4285
        %v4287 = vpop.f32.mrf.mxu0
        %v4288 = vadd.f32 %v4199, %v4287
        %4289 = vmatmul.bf16.gmra.mxu0 %v4126
        %v4290 = vpop.f32.mrf.mxu0
        %v4291 = vadd.f32 %v4202, %v4290
        %v4292 = vpop.f32.mrf.mxu0
        %v4293 = vadd.f32 %v4204, %v4292
        %4294 = vmatmul.bf16.gmra.mxu0 %v4128
        %v4295 = vpop.f32.mrf.mxu0
        %v4296 = vadd.f32 %v4207, %v4295
        %v4297 = vpop.f32.mrf.mxu0
        %v4298 = vadd.f32 %v4209, %v4297
        %4299 = vmatmul.bf16.gmra.mxu0 %v4130
        %v4300 = vpop.f32.mrf.mxu0
        %v4301 = vadd.f32 %v4212, %v4300
        %v4302 = vpop.f32.mrf.mxu0
        %v4303 = vadd.f32 %v4214, %v4302
        %4304 = vmatmul.bf16.gmra.mxu0 %v4132
        %v4305 = vpop.f32.mrf.mxu0
        %v4306 = vadd.f32 %v4217, %v4305
        %v4307 = vpop.f32.mrf.mxu0
        %v4308 = vadd.f32 %v4219, %v4307
        %4309 = vmatmul.bf16.gmra.mxu0 %v4134
        %v4310 = vpop.f32.mrf.mxu0
        %v4311 = vadd.f32 %v4222, %v4310
        %v4312 = vpop.f32.mrf.mxu0
        %v4313 = vadd.f32 %v4224, %v4312
        %4314 = vmatmul.bf16.gmra.mxu0 %v4136
        %v4315 = vpop.f32.mrf.mxu0
        %v4316 = vadd.f32 %v4227, %v4315
        %v4317 = vpop.f32.mrf.mxu0
        %v4318 = vadd.f32 %v4229, %v4317
        %4319 = vmatmul.bf16.gmra.mxu0 %v4138
        %v4320 = vpop.f32.mrf.mxu0
        %v4321 = vadd.f32 %v4232, %v4320
        %v4322 = vpop.f32.mrf.mxu0
        %v4323 = vadd.f32 %v4234, %v4322
        %4324 = vmatmul.bf16.gmra.mxu0 %v4140
        %v4325 = vpop.f32.mrf.mxu0
        %v4326 = vadd.f32 %v4237, %v4325
        %v4327 = vpop.f32.mrf.mxu0
        %v4328 = vadd.f32 %v4239, %v4327
        %4329 = vmatmul.bf16.gmra.mxu0 %v4142
        %v4330 = vpop.f32.mrf.mxu0
        %v4331 = vadd.f32 %v4242, %v4330
        %v4332 = vpop.f32.mrf.mxu0
        %v4333 = vadd.f32 %v4244, %v4332
        %4334 = vmatmul.bf16.gmra.mxu0 %v4144
        %v4335 = vpop.f32.mrf.mxu0
        %v4336 = vadd.f32 %v4247, %v4335
        %v4337 = vpop.f32.mrf.mxu0
        %v4338 = vadd.f32 %v4249, %v4337
        %4339 = vmatmul.bf16.gmra.mxu0 %v4146
        %v4340 = vpop.f32.mrf.mxu0
        %v4341 = vadd.f32 %v4252, %v4340
        %v4342 = vpop.f32.mrf.mxu0
        %v4343 = vadd.f32 %v4254, %v4342
        %4344 = vmatmul.bf16.gmra.mxu0 %v4148
        %v4345 = vpop.f32.mrf.mxu0
        %v4346 = vadd.f32 %v4257, %v4345
        %v4347 = vpop.f32.mrf.mxu0
        %v4348 = vadd.f32 %v4259, %v4347
        %4349 = vmatmul.bf16.gmra.mxu0 %v4150
        %v4350 = vpop.f32.mrf.mxu0
        %v4351 = vadd.f32 %v4262, %v4350
        %v4352 = vpop.f32.mrf.mxu0
        %v4353 = vadd.f32 %v4264, %v4352
        %4354 = vmatmul.bf16.gmra.mxu0 %v4152
        %v4355 = vpop.f32.mrf.mxu0
        %v4356 = vadd.f32 %v4267, %v4355
        %v4357 = vpop.f32.mrf.mxu0
        %v4358 = vadd.f32 %v4269, %v4357
        %4359 = vmatmul.bf16.gmra.mxu0 %v4154
        %v4360 = vpop.f32.mrf.mxu0
        %v4361 = vadd.f32 %v4272, %v4360
        %v4362 = vpop.f32.mrf.mxu0
        %v4363 = vadd.f32 %v4274, %v4362
        %4364 = vdwg.mxu0
        %v4365 = vpack.c.bf16 %v4288, %v4286
        %v4366 = vpack.c.bf16 %v4293, %v4291
        %v4367 = vpack.c.bf16 %v4298, %v4296
        %v4368 = vpack.c.bf16 %v4303, %v4301
        %v4369 = vpack.c.bf16 %v4308, %v4306
        %v4370 = vpack.c.bf16 %v4313, %v4311
        %v4371 = vpack.c.bf16 %v4318, %v4316
        %v4372 = vpack.c.bf16 %v4323, %v4321
        %v4373 = vpack.c.bf16 %v4328, %v4326
        %v4374 = vpack.c.bf16 %v4333, %v4331
        %v4375 = vpack.c.bf16 %v4338, %v4336
        %v4376 = vpack.c.bf16 %v4343, %v4341
        %v4377 = vpack.c.bf16 %v4348, %v4346
        %v4378 = vpack.c.bf16 %v4353, %v4351
        %v4379 = vpack.c.bf16 %v4358, %v4356
        %v4380 = vpack.c.bf16 %v4363, %v4361
        %s4381 = scalar_lea.vmem %s2, 12
        %v4382 = vld [vmem:[%s4381] sm:$0x3]
        %v4384 = vsel %vm1468, %v4365, 0
        %v4387 = vsel %vm1468, %v4366, 0
        %v4390 = vsel %vm1468, %v4367, 0
        %v4393 = vsel %vm1468, %v4368, 0
        %v4396 = vsel %vm1468, %v4369, 0
        %v4399 = vsel %vm1468, %v4370, 0
        %v4402 = vsel %vm1468, %v4371, 0
        %v4405 = vsel %vm1468, %v4372, 0
        %v4408 = vsel %vm1468, %v4373, 0
        %v4411 = vsel %vm1468, %v4374, 0
        %v4414 = vsel %vm1468, %v4375, 0
        %v4417 = vsel %vm1468, %v4376, 0
        %v4420 = vsel %vm1468, %v4377, 0
        %v4423 = vsel %vm1468, %v4378, 0
        %v4426 = vsel %vm1468, %v4379, 0
        %v4429 = vsel %vm1468, %v4380, 0
        %v4432 = vsel %vm1517, %v4382, 0
        %4434 = vmatpush.bf16.msra.mxu0 0
        %4435 = vmatpush.bf16.msra.mxu0 0
        %4436 = vmatpush.bf16.msra.mxu0 0
        %4437 = vmatpush.bf16.msra.mxu0 0
        %4438 = vmatpush.bf16.msra.mxu0 0
        %4439 = vmatpush.bf16.msra.mxu0 0
        %4440 = vmatpush.bf16.msra.mxu0 0
        %4441 = vmatpush.bf16.msra.mxu0 %v4432
        %4442 = vmatmul.bf16.gmra.mxu0 %v4384
        %v4443 = vpop.f32.mrf.mxu0
        %v4444 = vadd.f32 0.0, %v4443
        %v4445 = vpop.f32.mrf.mxu0
        %v4446 = vadd.f32 0.0, %v4445
        %4447 = vmatmul.bf16.gmra.mxu0 %v4387
        %v4448 = vpop.f32.mrf.mxu0
        %v4449 = vadd.f32 0.0, %v4448
        %v4450 = vpop.f32.mrf.mxu0
        %v4451 = vadd.f32 0.0, %v4450
        %4452 = vmatmul.bf16.gmra.mxu0 %v4390
        %v4453 = vpop.f32.mrf.mxu0
        %v4454 = vadd.f32 0.0, %v4453
        %v4455 = vpop.f32.mrf.mxu0
        %v4456 = vadd.f32 0.0, %v4455
        %4457 = vmatmul.bf16.gmra.mxu0 %v4393
        %v4458 = vpop.f32.mrf.mxu0
        %v4459 = vadd.f32 0.0, %v4458
        %v4460 = vpop.f32.mrf.mxu0
        %v4461 = vadd.f32 0.0, %v4460
        %4462 = vmatmul.bf16.gmra.mxu0 %v4396
        %v4463 = vpop.f32.mrf.mxu0
        %v4464 = vadd.f32 0.0, %v4463
        %v4465 = vpop.f32.mrf.mxu0
        %v4466 = vadd.f32 0.0, %v4465
        %4467 = vmatmul.bf16.gmra.mxu0 %v4399
        %v4468 = vpop.f32.mrf.mxu0
        %v4469 = vadd.f32 0.0, %v4468
        %v4470 = vpop.f32.mrf.mxu0
        %v4471 = vadd.f32 0.0, %v4470
        %4472 = vmatmul.bf16.gmra.mxu0 %v4402
        %v4473 = vpop.f32.mrf.mxu0
        %v4474 = vadd.f32 0.0, %v4473
        %v4475 = vpop.f32.mrf.mxu0
        %v4476 = vadd.f32 0.0, %v4475
        %4477 = vmatmul.bf16.gmra.mxu0 %v4405
        %v4478 = vpop.f32.mrf.mxu0
        %v4479 = vadd.f32 0.0, %v4478
        %v4480 = vpop.f32.mrf.mxu0
        %v4481 = vadd.f32 0.0, %v4480
        %4482 = vmatmul.bf16.gmra.mxu0 %v4408
        %v4483 = vpop.f32.mrf.mxu0
        %v4484 = vadd.f32 0.0, %v4483
        %v4485 = vpop.f32.mrf.mxu0
        %v4486 = vadd.f32 0.0, %v4485
        %4487 = vmatmul.bf16.gmra.mxu0 %v4411
        %v4488 = vpop.f32.mrf.mxu0
        %v4489 = vadd.f32 0.0, %v4488
        %v4490 = vpop.f32.mrf.mxu0
        %v4491 = vadd.f32 0.0, %v4490
        %4492 = vmatmul.bf16.gmra.mxu0 %v4414
        %v4493 = vpop.f32.mrf.mxu0
        %v4494 = vadd.f32 0.0, %v4493
        %v4495 = vpop.f32.mrf.mxu0
        %v4496 = vadd.f32 0.0, %v4495
        %4497 = vmatmul.bf16.gmra.mxu0 %v4417
        %v4498 = vpop.f32.mrf.mxu0
        %v4499 = vadd.f32 0.0, %v4498
        %v4500 = vpop.f32.mrf.mxu0
        %v4501 = vadd.f32 0.0, %v4500
        %4502 = vmatmul.bf16.gmra.mxu0 %v4420
        %v4503 = vpop.f32.mrf.mxu0
        %v4504 = vadd.f32 0.0, %v4503
        %v4505 = vpop.f32.mrf.mxu0
        %v4506 = vadd.f32 0.0, %v4505
        %4507 = vmatmul.bf16.gmra.mxu0 %v4423
        %v4508 = vpop.f32.mrf.mxu0
        %v4509 = vadd.f32 0.0, %v4508
        %v4510 = vpop.f32.mrf.mxu0
        %v4511 = vadd.f32 0.0, %v4510
        %4512 = vmatmul.bf16.gmra.mxu0 %v4426
        %v4513 = vpop.f32.mrf.mxu0
        %v4514 = vadd.f32 0.0, %v4513
        %v4515 = vpop.f32.mrf.mxu0
        %v4516 = vadd.f32 0.0, %v4515
        %4517 = vmatmul.bf16.gmra.mxu0 %v4429
        %v4518 = vpop.f32.mrf.mxu0
        %v4519 = vadd.f32 0.0, %v4518
        %v4520 = vpop.f32.mrf.mxu0
        %v4521 = vadd.f32 0.0, %v4520
        %4522 = vdwg.mxu0
        %v4523 = vadd.f32 %v3962, %v4444
        %v4524 = vadd.f32 %v3963, %v4446
        %v4525 = vadd.f32 %v3964, %v4449
        %v4526 = vadd.f32 %v3965, %v4451
        %v4527 = vadd.f32 %v3966, %v4454
        %v4528 = vadd.f32 %v3967, %v4456
        %v4529 = vadd.f32 %v3968, %v4459
        %v4530 = vadd.f32 %v3969, %v4461
        %v4531 = vadd.f32 %v3970, %v4464
        %v4532 = vadd.f32 %v3971, %v4466
        %v4533 = vadd.f32 %v3972, %v4469
        %v4534 = vadd.f32 %v3973, %v4471
        %v4535 = vadd.f32 %v3974, %v4474
        %v4536 = vadd.f32 %v3975, %v4476
        %v4537 = vadd.f32 %v3976, %v4479
        %v4538 = vadd.f32 %v3977, %v4481
        %v4539 = vadd.f32 %v3978, %v4484
        %v4540 = vadd.f32 %v3979, %v4486
        %v4541 = vadd.f32 %v3980, %v4489
        %v4542 = vadd.f32 %v3981, %v4491
        %v4543 = vadd.f32 %v3982, %v4494
        %v4544 = vadd.f32 %v3983, %v4496
        %v4545 = vadd.f32 %v3984, %v4499
        %v4546 = vadd.f32 %v3985, %v4501
        %v4547 = vadd.f32 %v3986, %v4504
        %v4548 = vadd.f32 %v3987, %v4506
        %v4549 = vadd.f32 %v3988, %v4509
        %v4550 = vadd.f32 %v3989, %v4511
        %v4551 = vadd.f32 %v3990, %v4514
        %v4552 = vadd.f32 %v3991, %v4516
        %v4553 = vadd.f32 %v3992, %v4519
        %v4554 = vadd.f32 %v3993, %v4521
        %s4555 = scalar_lea.vmem [#allocation2], 1792
        %v4556 = vld [vmem:[%s4555] sm:$0xff]
        %v4557 = vld [vmem:[%s4555 + $0x8] sm:$0xff]
        %v4558 = vld [vmem:[%s4555 + $0x10] sm:$0xff]
        %v4559 = vld [vmem:[%s4555 + $0x18] sm:$0xff]
        %v4560 = vld [vmem:[%s4555 + $0x20] sm:$0xff]
        %v4561 = vld [vmem:[%s4555 + $0x28] sm:$0xff]
        %v4562 = vld [vmem:[%s4555 + $0x30] sm:$0xff]
        %v4563 = vld [vmem:[%s4555 + $0x38] sm:$0xff]
        %v4564 = vld [vmem:[%s4555 + $0x40] sm:$0xff]
        %v4565 = vld [vmem:[%s4555 + $0x48] sm:$0xff]
        %v4566 = vld [vmem:[%s4555 + $0x50] sm:$0xff]
        %v4567 = vld [vmem:[%s4555 + $0x58] sm:$0xff]
        %v4568 = vld [vmem:[%s4555 + $0x60] sm:$0xff]
        %v4569 = vld [vmem:[%s4555 + $0x68] sm:$0xff]
        %v4570 = vld [vmem:[%s4555 + $0x70] sm:$0xff]
        %v4571 = vld [vmem:[%s4555 + $0x78] sm:$0xff]
        %v4572 = vld [vmem:[%s4555 + $0x80] sm:$0xff]
        %v4573 = vld [vmem:[%s4555 + $0x88] sm:$0xff]
        %v4574 = vld [vmem:[%s4555 + $0x90] sm:$0xff]
        %v4575 = vld [vmem:[%s4555 + $0x98] sm:$0xff]
        %v4576 = vld [vmem:[%s4555 + $0xa0] sm:$0xff]
        %v4577 = vld [vmem:[%s4555 + $0xa8] sm:$0xff]
        %v4578 = vld [vmem:[%s4555 + $0xb0] sm:$0xff]
        %v4579 = vld [vmem:[%s4555 + $0xb8] sm:$0xff]
        %v4580 = vld [vmem:[%s4555 + $0xc0] sm:$0xff]
        %v4581 = vld [vmem:[%s4555 + $0xc8] sm:$0xff]
        %v4582 = vld [vmem:[%s4555 + $0xd0] sm:$0xff]
        %v4583 = vld [vmem:[%s4555 + $0xd8] sm:$0xff]
        %v4584 = vld [vmem:[%s4555 + $0xe0] sm:$0xff]
        %v4585 = vld [vmem:[%s4555 + $0xe8] sm:$0xff]
        %v4586 = vld [vmem:[%s4555 + $0xf0] sm:$0xff]
        %v4587 = vld [vmem:[%s4555 + $0xf8] sm:$0xff]
        %v4620 = vunpack.c.l.b16 %v4556
        %v4621 = vunpack.c.h.b16 %v4556
        %v4622 = vunpack.c.l.b16 %v4557
        %v4623 = vunpack.c.h.b16 %v4557
        %v4624 = vunpack.c.l.b16 %v4558
        %v4625 = vunpack.c.h.b16 %v4558
        %v4626 = vunpack.c.l.b16 %v4559
        %v4627 = vunpack.c.h.b16 %v4559
        %v4628 = vunpack.c.l.b16 %v4560
        %v4629 = vunpack.c.h.b16 %v4560
        %v4630 = vunpack.c.l.b16 %v4561
        %v4631 = vunpack.c.h.b16 %v4561
        %v4632 = vunpack.c.l.b16 %v4562
        %v4633 = vunpack.c.h.b16 %v4562
        %v4634 = vunpack.c.l.b16 %v4563
        %v4635 = vunpack.c.h.b16 %v4563
        %v4636 = vunpack.c.l.b16 %v4564
        %v4637 = vunpack.c.h.b16 %v4564
        %v4638 = vunpack.c.l.b16 %v4565
        %v4639 = vunpack.c.h.b16 %v4565
        %v4640 = vunpack.c.l.b16 %v4566
        %v4641 = vunpack.c.h.b16 %v4566
        %v4642 = vunpack.c.l.b16 %v4567
        %v4643 = vunpack.c.h.b16 %v4567
        %v4644 = vunpack.c.l.b16 %v4568
        %v4645 = vunpack.c.h.b16 %v4568
        %v4646 = vunpack.c.l.b16 %v4569
        %v4647 = vunpack.c.h.b16 %v4569
        %v4648 = vunpack.c.l.b16 %v4570
        %v4649 = vunpack.c.h.b16 %v4570
        %v4650 = vunpack.c.l.b16 %v4571
        %v4651 = vunpack.c.h.b16 %v4571
        %v4652 = vunpack.c.l.b16 %v4572
        %v4653 = vunpack.c.h.b16 %v4572
        %v4654 = vunpack.c.l.b16 %v4573
        %v4655 = vunpack.c.h.b16 %v4573
        %v4656 = vunpack.c.l.b16 %v4574
        %v4657 = vunpack.c.h.b16 %v4574
        %v4658 = vunpack.c.l.b16 %v4575
        %v4659 = vunpack.c.h.b16 %v4575
        %v4660 = vunpack.c.l.b16 %v4576
        %v4661 = vunpack.c.h.b16 %v4576
        %v4662 = vunpack.c.l.b16 %v4577
        %v4663 = vunpack.c.h.b16 %v4577
        %v4664 = vunpack.c.l.b16 %v4578
        %v4665 = vunpack.c.h.b16 %v4578
        %v4666 = vunpack.c.l.b16 %v4579
        %v4667 = vunpack.c.h.b16 %v4579
        %v4668 = vunpack.c.l.b16 %v4580
        %v4669 = vunpack.c.h.b16 %v4580
        %v4670 = vunpack.c.l.b16 %v4581
        %v4671 = vunpack.c.h.b16 %v4581
        %v4672 = vunpack.c.l.b16 %v4582
        %v4673 = vunpack.c.h.b16 %v4582
        %v4674 = vunpack.c.l.b16 %v4583
        %v4675 = vunpack.c.h.b16 %v4583
        %v4676 = vunpack.c.l.b16 %v4584
        %v4677 = vunpack.c.h.b16 %v4584
        %v4678 = vunpack.c.l.b16 %v4585
        %v4679 = vunpack.c.h.b16 %v4585
        %v4680 = vunpack.c.l.b16 %v4586
        %v4681 = vunpack.c.h.b16 %v4586
        %v4682 = vunpack.c.l.b16 %v4587
        %v4683 = vunpack.c.h.b16 %v4587
        %v4684 = vpack.c.b16 %v4622, %v4620
        %v4685 = vpack.c.b16 %v4623, %v4621
        %v4686 = vpack.c.b16 %v4626, %v4624
        %v4687 = vpack.c.b16 %v4627, %v4625
        %v4688 = vpack.c.b16 %v4630, %v4628
        %v4689 = vpack.c.b16 %v4631, %v4629
        %v4690 = vpack.c.b16 %v4634, %v4632
        %v4691 = vpack.c.b16 %v4635, %v4633
        %v4692 = vpack.c.b16 %v4638, %v4636
        %v4693 = vpack.c.b16 %v4639, %v4637
        %v4694 = vpack.c.b16 %v4642, %v4640
        %v4695 = vpack.c.b16 %v4643, %v4641
        %v4696 = vpack.c.b16 %v4646, %v4644
        %v4697 = vpack.c.b16 %v4647, %v4645
        %v4698 = vpack.c.b16 %v4650, %v4648
        %v4699 = vpack.c.b16 %v4651, %v4649
        %v4700 = vpack.c.b16 %v4654, %v4652
        %v4701 = vpack.c.b16 %v4655, %v4653
        %v4702 = vpack.c.b16 %v4658, %v4656
        %v4703 = vpack.c.b16 %v4659, %v4657
        %v4704 = vpack.c.b16 %v4662, %v4660
        %v4705 = vpack.c.b16 %v4663, %v4661
        %v4706 = vpack.c.b16 %v4666, %v4664
        %v4707 = vpack.c.b16 %v4667, %v4665
        %v4708 = vpack.c.b16 %v4670, %v4668
        %v4709 = vpack.c.b16 %v4671, %v4669
        %v4710 = vpack.c.b16 %v4674, %v4672
        %v4711 = vpack.c.b16 %v4675, %v4673
        %v4712 = vpack.c.b16 %v4678, %v4676
        %v4713 = vpack.c.b16 %v4679, %v4677
        %v4714 = vpack.c.b16 %v4682, %v4680
        %v4715 = vpack.c.b16 %v4683, %v4681
        %4748 = vmatpush.bf16.msra.mxu0 %v859
        %4749 = vmatpush.bf16.msra.mxu0 %v858
        %4750 = vmatpush.bf16.msra.mxu0 %v857
        %4751 = vmatpush.bf16.msra.mxu0 %v856
        %4752 = vmatpush.bf16.msra.mxu0 %v855
        %4753 = vmatpush.bf16.msra.mxu0 %v854
        %4754 = vmatpush.bf16.msra.mxu0 %v853
        %4755 = vmatpush.bf16.msra.mxu0 %v852
        %4756 = vmatmul.bf16.gmra.mxu0 %v4684
        %v4757 = vpop.f32.mrf.mxu0
        %v4758 = vadd.f32 0.0, %v4757
        %v4759 = vpop.f32.mrf.mxu0
        %v4760 = vadd.f32 0.0, %v4759
        %4761 = vmatmul.bf16.gmra.mxu0 %v4686
        %v4762 = vpop.f32.mrf.mxu0
        %v4763 = vadd.f32 0.0, %v4762
        %v4764 = vpop.f32.mrf.mxu0
        %v4765 = vadd.f32 0.0, %v4764
        %4766 = vmatmul.bf16.gmra.mxu0 %v4688
        %v4767 = vpop.f32.mrf.mxu0
        %v4768 = vadd.f32 0.0, %v4767
        %v4769 = vpop.f32.mrf.mxu0
        %v4770 = vadd.f32 0.0, %v4769
        %4771 = vmatmul.bf16.gmra.mxu0 %v4690
        %v4772 = vpop.f32.mrf.mxu0
        %v4773 = vadd.f32 0.0, %v4772
        %v4774 = vpop.f32.mrf.mxu0
        %v4775 = vadd.f32 0.0, %v4774
        %4776 = vmatmul.bf16.gmra.mxu0 %v4692
        %v4777 = vpop.f32.mrf.mxu0
        %v4778 = vadd.f32 0.0, %v4777
        %v4779 = vpop.f32.mrf.mxu0
        %v4780 = vadd.f32 0.0, %v4779
        %4781 = vmatmul.bf16.gmra.mxu0 %v4694
        %v4782 = vpop.f32.mrf.mxu0
        %v4783 = vadd.f32 0.0, %v4782
        %v4784 = vpop.f32.mrf.mxu0
        %v4785 = vadd.f32 0.0, %v4784
        %4786 = vmatmul.bf16.gmra.mxu0 %v4696
        %v4787 = vpop.f32.mrf.mxu0
        %v4788 = vadd.f32 0.0, %v4787
        %v4789 = vpop.f32.mrf.mxu0
        %v4790 = vadd.f32 0.0, %v4789
        %4791 = vmatmul.bf16.gmra.mxu0 %v4698
        %v4792 = vpop.f32.mrf.mxu0
        %v4793 = vadd.f32 0.0, %v4792
        %v4794 = vpop.f32.mrf.mxu0
        %v4795 = vadd.f32 0.0, %v4794
        %4796 = vmatmul.bf16.gmra.mxu0 %v4700
        %v4797 = vpop.f32.mrf.mxu0
        %v4798 = vadd.f32 0.0, %v4797
        %v4799 = vpop.f32.mrf.mxu0
        %v4800 = vadd.f32 0.0, %v4799
        %4801 = vmatmul.bf16.gmra.mxu0 %v4702
        %v4802 = vpop.f32.mrf.mxu0
        %v4803 = vadd.f32 0.0, %v4802
        %v4804 = vpop.f32.mrf.mxu0
        %v4805 = vadd.f32 0.0, %v4804
        %4806 = vmatmul.bf16.gmra.mxu0 %v4704
        %v4807 = vpop.f32.mrf.mxu0
        %v4808 = vadd.f32 0.0, %v4807
        %v4809 = vpop.f32.mrf.mxu0
        %v4810 = vadd.f32 0.0, %v4809
        %4811 = vmatmul.bf16.gmra.mxu0 %v4706
        %v4812 = vpop.f32.mrf.mxu0
        %v4813 = vadd.f32 0.0, %v4812
        %v4814 = vpop.f32.mrf.mxu0
        %v4815 = vadd.f32 0.0, %v4814
        %4816 = vmatmul.bf16.gmra.mxu0 %v4708
        %v4817 = vpop.f32.mrf.mxu0
        %v4818 = vadd.f32 0.0, %v4817
        %v4819 = vpop.f32.mrf.mxu0
        %v4820 = vadd.f32 0.0, %v4819
        %4821 = vmatmul.bf16.gmra.mxu0 %v4710
        %v4822 = vpop.f32.mrf.mxu0
        %v4823 = vadd.f32 0.0, %v4822
        %v4824 = vpop.f32.mrf.mxu0
        %v4825 = vadd.f32 0.0, %v4824
        %4826 = vmatmul.bf16.gmra.mxu0 %v4712
        %v4827 = vpop.f32.mrf.mxu0
        %v4828 = vadd.f32 0.0, %v4827
        %v4829 = vpop.f32.mrf.mxu0
        %v4830 = vadd.f32 0.0, %v4829
        %4831 = vmatmul.bf16.gmra.mxu0 %v4714
        %v4832 = vpop.f32.mrf.mxu0
        %v4833 = vadd.f32 0.0, %v4832
        %v4834 = vpop.f32.mrf.mxu0
        %v4835 = vadd.f32 0.0, %v4834
        %4836 = vdwg.mxu0
        %4837 = vmatpush.bf16.msra.mxu0 %v867
        %4838 = vmatpush.bf16.msra.mxu0 %v866
        %4839 = vmatpush.bf16.msra.mxu0 %v865
        %4840 = vmatpush.bf16.msra.mxu0 %v864
        %4841 = vmatpush.bf16.msra.mxu0 %v863
        %4842 = vmatpush.bf16.msra.mxu0 %v862
        %4843 = vmatpush.bf16.msra.mxu0 %v861
        %4844 = vmatpush.bf16.msra.mxu0 %v860
        %4845 = vmatmul.bf16.gmra.mxu0 %v4685
        %v4846 = vpop.f32.mrf.mxu0
        %v4847 = vadd.f32 %v4758, %v4846
        %v4848 = vpop.f32.mrf.mxu0
        %v4849 = vadd.f32 %v4760, %v4848
        %4850 = vmatmul.bf16.gmra.mxu0 %v4687
        %v4851 = vpop.f32.mrf.mxu0
        %v4852 = vadd.f32 %v4763, %v4851
        %v4853 = vpop.f32.mrf.mxu0
        %v4854 = vadd.f32 %v4765, %v4853
        %4855 = vmatmul.bf16.gmra.mxu0 %v4689
        %v4856 = vpop.f32.mrf.mxu0
        %v4857 = vadd.f32 %v4768, %v4856
        %v4858 = vpop.f32.mrf.mxu0
        %v4859 = vadd.f32 %v4770, %v4858
        %4860 = vmatmul.bf16.gmra.mxu0 %v4691
        %v4861 = vpop.f32.mrf.mxu0
        %v4862 = vadd.f32 %v4773, %v4861
        %v4863 = vpop.f32.mrf.mxu0
        %v4864 = vadd.f32 %v4775, %v4863
        %4865 = vmatmul.bf16.gmra.mxu0 %v4693
        %v4866 = vpop.f32.mrf.mxu0
        %v4867 = vadd.f32 %v4778, %v4866
        %v4868 = vpop.f32.mrf.mxu0
        %v4869 = vadd.f32 %v4780, %v4868
        %4870 = vmatmul.bf16.gmra.mxu0 %v4695
        %v4871 = vpop.f32.mrf.mxu0
        %v4872 = vadd.f32 %v4783, %v4871
        %v4873 = vpop.f32.mrf.mxu0
        %v4874 = vadd.f32 %v4785, %v4873
        %4875 = vmatmul.bf16.gmra.mxu0 %v4697
        %v4876 = vpop.f32.mrf.mxu0
        %v4877 = vadd.f32 %v4788, %v4876
        %v4878 = vpop.f32.mrf.mxu0
        %v4879 = vadd.f32 %v4790, %v4878
        %4880 = vmatmul.bf16.gmra.mxu0 %v4699
        %v4881 = vpop.f32.mrf.mxu0
        %v4882 = vadd.f32 %v4793, %v4881
        %v4883 = vpop.f32.mrf.mxu0
        %v4884 = vadd.f32 %v4795, %v4883
        %4885 = vmatmul.bf16.gmra.mxu0 %v4701
        %v4886 = vpop.f32.mrf.mxu0
        %v4887 = vadd.f32 %v4798, %v4886
        %v4888 = vpop.f32.mrf.mxu0
        %v4889 = vadd.f32 %v4800, %v4888
        %4890 = vmatmul.bf16.gmra.mxu0 %v4703
        %v4891 = vpop.f32.mrf.mxu0
        %v4892 = vadd.f32 %v4803, %v4891
        %v4893 = vpop.f32.mrf.mxu0
        %v4894 = vadd.f32 %v4805, %v4893
        %4895 = vmatmul.bf16.gmra.mxu0 %v4705
        %v4896 = vpop.f32.mrf.mxu0
        %v4897 = vadd.f32 %v4808, %v4896
        %v4898 = vpop.f32.mrf.mxu0
        %v4899 = vadd.f32 %v4810, %v4898
        %4900 = vmatmul.bf16.gmra.mxu0 %v4707
        %v4901 = vpop.f32.mrf.mxu0
        %v4902 = vadd.f32 %v4813, %v4901
        %v4903 = vpop.f32.mrf.mxu0
        %v4904 = vadd.f32 %v4815, %v4903
        %4905 = vmatmul.bf16.gmra.mxu0 %v4709
        %v4906 = vpop.f32.mrf.mxu0
        %v4907 = vadd.f32 %v4818, %v4906
        %v4908 = vpop.f32.mrf.mxu0
        %v4909 = vadd.f32 %v4820, %v4908
        %4910 = vmatmul.bf16.gmra.mxu0 %v4711
        %v4911 = vpop.f32.mrf.mxu0
        %v4912 = vadd.f32 %v4823, %v4911
        %v4913 = vpop.f32.mrf.mxu0
        %v4914 = vadd.f32 %v4825, %v4913
        %4915 = vmatmul.bf16.gmra.mxu0 %v4713
        %v4916 = vpop.f32.mrf.mxu0
        %v4917 = vadd.f32 %v4828, %v4916
        %v4918 = vpop.f32.mrf.mxu0
        %v4919 = vadd.f32 %v4830, %v4918
        %4920 = vmatmul.bf16.gmra.mxu0 %v4715
        %v4921 = vpop.f32.mrf.mxu0
        %v4922 = vadd.f32 %v4833, %v4921
        %v4923 = vpop.f32.mrf.mxu0
        %v4924 = vadd.f32 %v4835, %v4923
        %4925 = vdwg.mxu0
        %v4926 = vpack.c.bf16 %v4849, %v4847
        %v4927 = vpack.c.bf16 %v4854, %v4852
        %v4928 = vpack.c.bf16 %v4859, %v4857
        %v4929 = vpack.c.bf16 %v4864, %v4862
        %v4930 = vpack.c.bf16 %v4869, %v4867
        %v4931 = vpack.c.bf16 %v4874, %v4872
        %v4932 = vpack.c.bf16 %v4879, %v4877
        %v4933 = vpack.c.bf16 %v4884, %v4882
        %v4934 = vpack.c.bf16 %v4889, %v4887
        %v4935 = vpack.c.bf16 %v4894, %v4892
        %v4936 = vpack.c.bf16 %v4899, %v4897
        %v4937 = vpack.c.bf16 %v4904, %v4902
        %v4938 = vpack.c.bf16 %v4909, %v4907
        %v4939 = vpack.c.bf16 %v4914, %v4912
        %v4940 = vpack.c.bf16 %v4919, %v4917
        %v4941 = vpack.c.bf16 %v4924, %v4922
        %s4942 = scalar_lea.vmem %s2, 14
        %v4943 = vld [vmem:[%s4942] sm:$0x3]
        %v4945 = vsel %vm1468, %v4926, 0
        %v4948 = vsel %vm1468, %v4927, 0
        %v4951 = vsel %vm1468, %v4928, 0
        %v4954 = vsel %vm1468, %v4929, 0
        %v4957 = vsel %vm1468, %v4930, 0
        %v4960 = vsel %vm1468, %v4931, 0
        %v4963 = vsel %vm1468, %v4932, 0
        %v4966 = vsel %vm1468, %v4933, 0
        %v4969 = vsel %vm1468, %v4934, 0
        %v4972 = vsel %vm1468, %v4935, 0
        %v4975 = vsel %vm1468, %v4936, 0
        %v4978 = vsel %vm1468, %v4937, 0
        %v4981 = vsel %vm1468, %v4938, 0
        %v4984 = vsel %vm1468, %v4939, 0
        %v4987 = vsel %vm1468, %v4940, 0
        %v4990 = vsel %vm1468, %v4941, 0
        %v4993 = vsel %vm1517, %v4943, 0
        %4995 = vmatpush.bf16.msra.mxu0 0
        %4996 = vmatpush.bf16.msra.mxu0 0
        %4997 = vmatpush.bf16.msra.mxu0 0
        %4998 = vmatpush.bf16.msra.mxu0 0
        %4999 = vmatpush.bf16.msra.mxu0 0
        %5000 = vmatpush.bf16.msra.mxu0 0
        %5001 = vmatpush.bf16.msra.mxu0 0
        %5002 = vmatpush.bf16.msra.mxu0 %v4993
        %5003 = vmatmul.bf16.gmra.mxu0 %v4945
        %v5004 = vpop.f32.mrf.mxu0
        %v5005 = vadd.f32 0.0, %v5004
        %v5006 = vpop.f32.mrf.mxu0
        %v5007 = vadd.f32 0.0, %v5006
        %5008 = vmatmul.bf16.gmra.mxu0 %v4948
        %v5009 = vpop.f32.mrf.mxu0
        %v5010 = vadd.f32 0.0, %v5009
        %v5011 = vpop.f32.mrf.mxu0
        %v5012 = vadd.f32 0.0, %v5011
        %5013 = vmatmul.bf16.gmra.mxu0 %v4951
        %v5014 = vpop.f32.mrf.mxu0
        %v5015 = vadd.f32 0.0, %v5014
        %v5016 = vpop.f32.mrf.mxu0
        %v5017 = vadd.f32 0.0, %v5016
        %5018 = vmatmul.bf16.gmra.mxu0 %v4954
        %v5019 = vpop.f32.mrf.mxu0
        %v5020 = vadd.f32 0.0, %v5019
        %v5021 = vpop.f32.mrf.mxu0
        %v5022 = vadd.f32 0.0, %v5021
        %5023 = vmatmul.bf16.gmra.mxu0 %v4957
        %v5024 = vpop.f32.mrf.mxu0
        %v5025 = vadd.f32 0.0, %v5024
        %v5026 = vpop.f32.mrf.mxu0
        %v5027 = vadd.f32 0.0, %v5026
        %5028 = vmatmul.bf16.gmra.mxu0 %v4960
        %v5029 = vpop.f32.mrf.mxu0
        %v5030 = vadd.f32 0.0, %v5029
        %v5031 = vpop.f32.mrf.mxu0
        %v5032 = vadd.f32 0.0, %v5031
        %5033 = vmatmul.bf16.gmra.mxu0 %v4963
        %v5034 = vpop.f32.mrf.mxu0
        %v5035 = vadd.f32 0.0, %v5034
        %v5036 = vpop.f32.mrf.mxu0
        %v5037 = vadd.f32 0.0, %v5036
        %5038 = vmatmul.bf16.gmra.mxu0 %v4966
        %v5039 = vpop.f32.mrf.mxu0
        %v5040 = vadd.f32 0.0, %v5039
        %v5041 = vpop.f32.mrf.mxu0
        %v5042 = vadd.f32 0.0, %v5041
        %5043 = vmatmul.bf16.gmra.mxu0 %v4969
        %v5044 = vpop.f32.mrf.mxu0
        %v5045 = vadd.f32 0.0, %v5044
        %v5046 = vpop.f32.mrf.mxu0
        %v5047 = vadd.f32 0.0, %v5046
        %5048 = vmatmul.bf16.gmra.mxu0 %v4972
        %v5049 = vpop.f32.mrf.mxu0
        %v5050 = vadd.f32 0.0, %v5049
        %v5051 = vpop.f32.mrf.mxu0
        %v5052 = vadd.f32 0.0, %v5051
        %5053 = vmatmul.bf16.gmra.mxu0 %v4975
        %v5054 = vpop.f32.mrf.mxu0
        %v5055 = vadd.f32 0.0, %v5054
        %v5056 = vpop.f32.mrf.mxu0
        %v5057 = vadd.f32 0.0, %v5056
        %5058 = vmatmul.bf16.gmra.mxu0 %v4978
        %v5059 = vpop.f32.mrf.mxu0
        %v5060 = vadd.f32 0.0, %v5059
        %v5061 = vpop.f32.mrf.mxu0
        %v5062 = vadd.f32 0.0, %v5061
        %5063 = vmatmul.bf16.gmra.mxu0 %v4981
        %v5064 = vpop.f32.mrf.mxu0
        %v5065 = vadd.f32 0.0, %v5064
        %v5066 = vpop.f32.mrf.mxu0
        %v5067 = vadd.f32 0.0, %v5066
        %5068 = vmatmul.bf16.gmra.mxu0 %v4984
        %v5069 = vpop.f32.mrf.mxu0
        %v5070 = vadd.f32 0.0, %v5069
        %v5071 = vpop.f32.mrf.mxu0
        %v5072 = vadd.f32 0.0, %v5071
        %5073 = vmatmul.bf16.gmra.mxu0 %v4987
        %v5074 = vpop.f32.mrf.mxu0
        %v5075 = vadd.f32 0.0, %v5074
        %v5076 = vpop.f32.mrf.mxu0
        %v5077 = vadd.f32 0.0, %v5076
        %5078 = vmatmul.bf16.gmra.mxu0 %v4990
        %v5079 = vpop.f32.mrf.mxu0
        %v5080 = vadd.f32 0.0, %v5079
        %v5081 = vpop.f32.mrf.mxu0
        %v5082 = vadd.f32 0.0, %v5081
        %5083 = vdwg.mxu0
        %v5084 = vadd.f32 %v4523, %v5005
        %v5085 = vadd.f32 %v4524, %v5007
        %v5086 = vadd.f32 %v4525, %v5010
        %v5087 = vadd.f32 %v4526, %v5012
        %v5088 = vadd.f32 %v4527, %v5015
        %v5089 = vadd.f32 %v4528, %v5017
        %v5090 = vadd.f32 %v4529, %v5020
        %v5091 = vadd.f32 %v4530, %v5022
        %v5092 = vadd.f32 %v4531, %v5025
        %v5093 = vadd.f32 %v4532, %v5027
        %v5094 = vadd.f32 %v4533, %v5030
        %v5095 = vadd.f32 %v4534, %v5032
        %v5096 = vadd.f32 %v4535, %v5035
        %v5097 = vadd.f32 %v4536, %v5037
        %v5098 = vadd.f32 %v4537, %v5040
        %v5099 = vadd.f32 %v4538, %v5042
        %v5100 = vadd.f32 %v4539, %v5045
        %v5101 = vadd.f32 %v4540, %v5047
        %v5102 = vadd.f32 %v4541, %v5050
        %v5103 = vadd.f32 %v4542, %v5052
        %v5104 = vadd.f32 %v4543, %v5055
        %v5105 = vadd.f32 %v4544, %v5057
        %v5106 = vadd.f32 %v4545, %v5060
        %v5107 = vadd.f32 %v4546, %v5062
        %v5108 = vadd.f32 %v4547, %v5065
        %v5109 = vadd.f32 %v4548, %v5067
        %v5110 = vadd.f32 %v4549, %v5070
        %v5111 = vadd.f32 %v4550, %v5072
        %v5112 = vadd.f32 %v4551, %v5075
        %v5113 = vadd.f32 %v4552, %v5077
        %v5114 = vadd.f32 %v4553, %v5080
        %v5115 = vadd.f32 %v4554, %v5082
        %s5116 = scalar_lea.vmem [#allocation2], 2048
        %v5117 = vld [vmem:[%s5116] sm:$0xff]
        %v5118 = vld [vmem:[%s5116 + $0x8] sm:$0xff]
        %v5119 = vld [vmem:[%s5116 + $0x10] sm:$0xff]
        %v5120 = vld [vmem:[%s5116 + $0x18] sm:$0xff]
        %v5121 = vld [vmem:[%s5116 + $0x20] sm:$0xff]
        %v5122 = vld [vmem:[%s5116 + $0x28] sm:$0xff]
        %v5123 = vld [vmem:[%s5116 + $0x30] sm:$0xff]
        %v5124 = vld [vmem:[%s5116 + $0x38] sm:$0xff]
        %v5125 = vld [vmem:[%s5116 + $0x40] sm:$0xff]
        %v5126 = vld [vmem:[%s5116 + $0x48] sm:$0xff]
        %v5127 = vld [vmem:[%s5116 + $0x50] sm:$0xff]
        %v5128 = vld [vmem:[%s5116 + $0x58] sm:$0xff]
        %v5129 = vld [vmem:[%s5116 + $0x60] sm:$0xff]
        %v5130 = vld [vmem:[%s5116 + $0x68] sm:$0xff]
        %v5131 = vld [vmem:[%s5116 + $0x70] sm:$0xff]
        %v5132 = vld [vmem:[%s5116 + $0x78] sm:$0xff]
        %v5133 = vld [vmem:[%s5116 + $0x80] sm:$0xff]
        %v5134 = vld [vmem:[%s5116 + $0x88] sm:$0xff]
        %v5135 = vld [vmem:[%s5116 + $0x90] sm:$0xff]
        %v5136 = vld [vmem:[%s5116 + $0x98] sm:$0xff]
        %v5137 = vld [vmem:[%s5116 + $0xa0] sm:$0xff]
        %v5138 = vld [vmem:[%s5116 + $0xa8] sm:$0xff]
        %v5139 = vld [vmem:[%s5116 + $0xb0] sm:$0xff]
        %v5140 = vld [vmem:[%s5116 + $0xb8] sm:$0xff]
        %v5141 = vld [vmem:[%s5116 + $0xc0] sm:$0xff]
        %v5142 = vld [vmem:[%s5116 + $0xc8] sm:$0xff]
        %v5143 = vld [vmem:[%s5116 + $0xd0] sm:$0xff]
        %v5144 = vld [vmem:[%s5116 + $0xd8] sm:$0xff]
        %v5145 = vld [vmem:[%s5116 + $0xe0] sm:$0xff]
        %v5146 = vld [vmem:[%s5116 + $0xe8] sm:$0xff]
        %v5147 = vld [vmem:[%s5116 + $0xf0] sm:$0xff]
        %v5148 = vld [vmem:[%s5116 + $0xf8] sm:$0xff]
        %v5181 = vunpack.c.l.b16 %v5117
        %v5182 = vunpack.c.h.b16 %v5117
        %v5183 = vunpack.c.l.b16 %v5118
        %v5184 = vunpack.c.h.b16 %v5118
        %v5185 = vunpack.c.l.b16 %v5119
        %v5186 = vunpack.c.h.b16 %v5119
        %v5187 = vunpack.c.l.b16 %v5120
        %v5188 = vunpack.c.h.b16 %v5120
        %v5189 = vunpack.c.l.b16 %v5121
        %v5190 = vunpack.c.h.b16 %v5121
        %v5191 = vunpack.c.l.b16 %v5122
        %v5192 = vunpack.c.h.b16 %v5122
        %v5193 = vunpack.c.l.b16 %v5123
        %v5194 = vunpack.c.h.b16 %v5123
        %v5195 = vunpack.c.l.b16 %v5124
        %v5196 = vunpack.c.h.b16 %v5124
        %v5197 = vunpack.c.l.b16 %v5125
        %v5198 = vunpack.c.h.b16 %v5125
        %v5199 = vunpack.c.l.b16 %v5126
        %v5200 = vunpack.c.h.b16 %v5126
        %v5201 = vunpack.c.l.b16 %v5127
        %v5202 = vunpack.c.h.b16 %v5127
        %v5203 = vunpack.c.l.b16 %v5128
        %v5204 = vunpack.c.h.b16 %v5128
        %v5205 = vunpack.c.l.b16 %v5129
        %v5206 = vunpack.c.h.b16 %v5129
        %v5207 = vunpack.c.l.b16 %v5130
        %v5208 = vunpack.c.h.b16 %v5130
        %v5209 = vunpack.c.l.b16 %v5131
        %v5210 = vunpack.c.h.b16 %v5131
        %v5211 = vunpack.c.l.b16 %v5132
        %v5212 = vunpack.c.h.b16 %v5132
        %v5213 = vunpack.c.l.b16 %v5133
        %v5214 = vunpack.c.h.b16 %v5133
        %v5215 = vunpack.c.l.b16 %v5134
        %v5216 = vunpack.c.h.b16 %v5134
        %v5217 = vunpack.c.l.b16 %v5135
        %v5218 = vunpack.c.h.b16 %v5135
        %v5219 = vunpack.c.l.b16 %v5136
        %v5220 = vunpack.c.h.b16 %v5136
        %v5221 = vunpack.c.l.b16 %v5137
        %v5222 = vunpack.c.h.b16 %v5137
        %v5223 = vunpack.c.l.b16 %v5138
        %v5224 = vunpack.c.h.b16 %v5138
        %v5225 = vunpack.c.l.b16 %v5139
        %v5226 = vunpack.c.h.b16 %v5139
        %v5227 = vunpack.c.l.b16 %v5140
        %v5228 = vunpack.c.h.b16 %v5140
        %v5229 = vunpack.c.l.b16 %v5141
        %v5230 = vunpack.c.h.b16 %v5141
        %v5231 = vunpack.c.l.b16 %v5142
        %v5232 = vunpack.c.h.b16 %v5142
        %v5233 = vunpack.c.l.b16 %v5143
        %v5234 = vunpack.c.h.b16 %v5143
        %v5235 = vunpack.c.l.b16 %v5144
        %v5236 = vunpack.c.h.b16 %v5144
        %v5237 = vunpack.c.l.b16 %v5145
        %v5238 = vunpack.c.h.b16 %v5145
        %v5239 = vunpack.c.l.b16 %v5146
        %v5240 = vunpack.c.h.b16 %v5146
        %v5241 = vunpack.c.l.b16 %v5147
        %v5242 = vunpack.c.h.b16 %v5147
        %v5243 = vunpack.c.l.b16 %v5148
        %v5244 = vunpack.c.h.b16 %v5148
        %v5245 = vpack.c.b16 %v5183, %v5181
        %v5246 = vpack.c.b16 %v5184, %v5182
        %v5247 = vpack.c.b16 %v5187, %v5185
        %v5248 = vpack.c.b16 %v5188, %v5186
        %v5249 = vpack.c.b16 %v5191, %v5189
        %v5250 = vpack.c.b16 %v5192, %v5190
        %v5251 = vpack.c.b16 %v5195, %v5193
        %v5252 = vpack.c.b16 %v5196, %v5194
        %v5253 = vpack.c.b16 %v5199, %v5197
        %v5254 = vpack.c.b16 %v5200, %v5198
        %v5255 = vpack.c.b16 %v5203, %v5201
        %v5256 = vpack.c.b16 %v5204, %v5202
        %v5257 = vpack.c.b16 %v5207, %v5205
        %v5258 = vpack.c.b16 %v5208, %v5206
        %v5259 = vpack.c.b16 %v5211, %v5209
        %v5260 = vpack.c.b16 %v5212, %v5210
        %v5261 = vpack.c.b16 %v5215, %v5213
        %v5262 = vpack.c.b16 %v5216, %v5214
        %v5263 = vpack.c.b16 %v5219, %v5217
        %v5264 = vpack.c.b16 %v5220, %v5218
        %v5265 = vpack.c.b16 %v5223, %v5221
        %v5266 = vpack.c.b16 %v5224, %v5222
        %v5267 = vpack.c.b16 %v5227, %v5225
        %v5268 = vpack.c.b16 %v5228, %v5226
        %v5269 = vpack.c.b16 %v5231, %v5229
        %v5270 = vpack.c.b16 %v5232, %v5230
        %v5271 = vpack.c.b16 %v5235, %v5233
        %v5272 = vpack.c.b16 %v5236, %v5234
        %v5273 = vpack.c.b16 %v5239, %v5237
        %v5274 = vpack.c.b16 %v5240, %v5238
        %v5275 = vpack.c.b16 %v5243, %v5241
        %v5276 = vpack.c.b16 %v5244, %v5242
        %5309 = vmatpush.bf16.msra.mxu0 %v859
        %5310 = vmatpush.bf16.msra.mxu0 %v858
        %5311 = vmatpush.bf16.msra.mxu0 %v857
        %5312 = vmatpush.bf16.msra.mxu0 %v856
        %5313 = vmatpush.bf16.msra.mxu0 %v855
        %5314 = vmatpush.bf16.msra.mxu0 %v854
        %5315 = vmatpush.bf16.msra.mxu0 %v853
        %5316 = vmatpush.bf16.msra.mxu0 %v852
        %5317 = vmatmul.bf16.gmra.mxu0 %v5245
        %v5318 = vpop.f32.mrf.mxu0
        %v5319 = vadd.f32 0.0, %v5318
        %v5320 = vpop.f32.mrf.mxu0
        %v5321 = vadd.f32 0.0, %v5320
        %5322 = vmatmul.bf16.gmra.mxu0 %v5247
        %v5323 = vpop.f32.mrf.mxu0
        %v5324 = vadd.f32 0.0, %v5323
        %v5325 = vpop.f32.mrf.mxu0
        %v5326 = vadd.f32 0.0, %v5325
        %5327 = vmatmul.bf16.gmra.mxu0 %v5249
        %v5328 = vpop.f32.mrf.mxu0
        %v5329 = vadd.f32 0.0, %v5328
        %v5330 = vpop.f32.mrf.mxu0
        %v5331 = vadd.f32 0.0, %v5330
        %5332 = vmatmul.bf16.gmra.mxu0 %v5251
        %v5333 = vpop.f32.mrf.mxu0
        %v5334 = vadd.f32 0.0, %v5333
        %v5335 = vpop.f32.mrf.mxu0
        %v5336 = vadd.f32 0.0, %v5335
        %5337 = vmatmul.bf16.gmra.mxu0 %v5253
        %v5338 = vpop.f32.mrf.mxu0
        %v5339 = vadd.f32 0.0, %v5338
        %v5340 = vpop.f32.mrf.mxu0
        %v5341 = vadd.f32 0.0, %v5340
        %5342 = vmatmul.bf16.gmra.mxu0 %v5255
        %v5343 = vpop.f32.mrf.mxu0
        %v5344 = vadd.f32 0.0, %v5343
        %v5345 = vpop.f32.mrf.mxu0
        %v5346 = vadd.f32 0.0, %v5345
        %5347 = vmatmul.bf16.gmra.mxu0 %v5257
        %v5348 = vpop.f32.mrf.mxu0
        %v5349 = vadd.f32 0.0, %v5348
        %v5350 = vpop.f32.mrf.mxu0
        %v5351 = vadd.f32 0.0, %v5350
        %5352 = vmatmul.bf16.gmra.mxu0 %v5259
        %v5353 = vpop.f32.mrf.mxu0
        %v5354 = vadd.f32 0.0, %v5353
        %v5355 = vpop.f32.mrf.mxu0
        %v5356 = vadd.f32 0.0, %v5355
        %5357 = vmatmul.bf16.gmra.mxu0 %v5261
        %v5358 = vpop.f32.mrf.mxu0
        %v5359 = vadd.f32 0.0, %v5358
        %v5360 = vpop.f32.mrf.mxu0
        %v5361 = vadd.f32 0.0, %v5360
        %5362 = vmatmul.bf16.gmra.mxu0 %v5263
        %v5363 = vpop.f32.mrf.mxu0
        %v5364 = vadd.f32 0.0, %v5363
        %v5365 = vpop.f32.mrf.mxu0
        %v5366 = vadd.f32 0.0, %v5365
        %5367 = vmatmul.bf16.gmra.mxu0 %v5265
        %v5368 = vpop.f32.mrf.mxu0
        %v5369 = vadd.f32 0.0, %v5368
        %v5370 = vpop.f32.mrf.mxu0
        %v5371 = vadd.f32 0.0, %v5370
        %5372 = vmatmul.bf16.gmra.mxu0 %v5267
        %v5373 = vpop.f32.mrf.mxu0
        %v5374 = vadd.f32 0.0, %v5373
        %v5375 = vpop.f32.mrf.mxu0
        %v5376 = vadd.f32 0.0, %v5375
        %5377 = vmatmul.bf16.gmra.mxu0 %v5269
        %v5378 = vpop.f32.mrf.mxu0
        %v5379 = vadd.f32 0.0, %v5378
        %v5380 = vpop.f32.mrf.mxu0
        %v5381 = vadd.f32 0.0, %v5380
        %5382 = vmatmul.bf16.gmra.mxu0 %v5271
        %v5383 = vpop.f32.mrf.mxu0
        %v5384 = vadd.f32 0.0, %v5383
        %v5385 = vpop.f32.mrf.mxu0
        %v5386 = vadd.f32 0.0, %v5385
        %5387 = vmatmul.bf16.gmra.mxu0 %v5273
        %v5388 = vpop.f32.mrf.mxu0
        %v5389 = vadd.f32 0.0, %v5388
        %v5390 = vpop.f32.mrf.mxu0
        %v5391 = vadd.f32 0.0, %v5390
        %5392 = vmatmul.bf16.gmra.mxu0 %v5275
        %v5393 = vpop.f32.mrf.mxu0
        %v5394 = vadd.f32 0.0, %v5393
        %v5395 = vpop.f32.mrf.mxu0
        %v5396 = vadd.f32 0.0, %v5395
        %5397 = vdwg.mxu0
        %5398 = vmatpush.bf16.msra.mxu0 %v867
        %5399 = vmatpush.bf16.msra.mxu0 %v866
        %5400 = vmatpush.bf16.msra.mxu0 %v865
        %5401 = vmatpush.bf16.msra.mxu0 %v864
        %5402 = vmatpush.bf16.msra.mxu0 %v863
        %5403 = vmatpush.bf16.msra.mxu0 %v862
        %5404 = vmatpush.bf16.msra.mxu0 %v861
        %5405 = vmatpush.bf16.msra.mxu0 %v860
        %5406 = vmatmul.bf16.gmra.mxu0 %v5246
        %v5407 = vpop.f32.mrf.mxu0
        %v5408 = vadd.f32 %v5319, %v5407
        %v5409 = vpop.f32.mrf.mxu0
        %v5410 = vadd.f32 %v5321, %v5409
        %5411 = vmatmul.bf16.gmra.mxu0 %v5248
        %v5412 = vpop.f32.mrf.mxu0
        %v5413 = vadd.f32 %v5324, %v5412
        %v5414 = vpop.f32.mrf.mxu0
        %v5415 = vadd.f32 %v5326, %v5414
        %5416 = vmatmul.bf16.gmra.mxu0 %v5250
        %v5417 = vpop.f32.mrf.mxu0
        %v5418 = vadd.f32 %v5329, %v5417
        %v5419 = vpop.f32.mrf.mxu0
        %v5420 = vadd.f32 %v5331, %v5419
        %5421 = vmatmul.bf16.gmra.mxu0 %v5252
        %v5422 = vpop.f32.mrf.mxu0
        %v5423 = vadd.f32 %v5334, %v5422
        %v5424 = vpop.f32.mrf.mxu0
        %v5425 = vadd.f32 %v5336, %v5424
        %5426 = vmatmul.bf16.gmra.mxu0 %v5254
        %v5427 = vpop.f32.mrf.mxu0
        %v5428 = vadd.f32 %v5339, %v5427
        %v5429 = vpop.f32.mrf.mxu0
        %v5430 = vadd.f32 %v5341, %v5429
        %5431 = vmatmul.bf16.gmra.mxu0 %v5256
        %v5432 = vpop.f32.mrf.mxu0
        %v5433 = vadd.f32 %v5344, %v5432
        %v5434 = vpop.f32.mrf.mxu0
        %v5435 = vadd.f32 %v5346, %v5434
        %5436 = vmatmul.bf16.gmra.mxu0 %v5258
        %v5437 = vpop.f32.mrf.mxu0
        %v5438 = vadd.f32 %v5349, %v5437
        %v5439 = vpop.f32.mrf.mxu0
        %v5440 = vadd.f32 %v5351, %v5439
        %5441 = vmatmul.bf16.gmra.mxu0 %v5260
        %v5442 = vpop.f32.mrf.mxu0
        %v5443 = vadd.f32 %v5354, %v5442
        %v5444 = vpop.f32.mrf.mxu0
        %v5445 = vadd.f32 %v5356, %v5444
        %5446 = vmatmul.bf16.gmra.mxu0 %v5262
        %v5447 = vpop.f32.mrf.mxu0
        %v5448 = vadd.f32 %v5359, %v5447
        %v5449 = vpop.f32.mrf.mxu0
        %v5450 = vadd.f32 %v5361, %v5449
        %5451 = vmatmul.bf16.gmra.mxu0 %v5264
        %v5452 = vpop.f32.mrf.mxu0
        %v5453 = vadd.f32 %v5364, %v5452
        %v5454 = vpop.f32.mrf.mxu0
        %v5455 = vadd.f32 %v5366, %v5454
        %5456 = vmatmul.bf16.gmra.mxu0 %v5266
        %v5457 = vpop.f32.mrf.mxu0
        %v5458 = vadd.f32 %v5369, %v5457
        %v5459 = vpop.f32.mrf.mxu0
        %v5460 = vadd.f32 %v5371, %v5459
        %5461 = vmatmul.bf16.gmra.mxu0 %v5268
        %v5462 = vpop.f32.mrf.mxu0
        %v5463 = vadd.f32 %v5374, %v5462
        %v5464 = vpop.f32.mrf.mxu0
        %v5465 = vadd.f32 %v5376, %v5464
        %5466 = vmatmul.bf16.gmra.mxu0 %v5270
        %v5467 = vpop.f32.mrf.mxu0
        %v5468 = vadd.f32 %v5379, %v5467
        %v5469 = vpop.f32.mrf.mxu0
        %v5470 = vadd.f32 %v5381, %v5469
        %5471 = vmatmul.bf16.gmra.mxu0 %v5272
        %v5472 = vpop.f32.mrf.mxu0
        %v5473 = vadd.f32 %v5384, %v5472
        %v5474 = vpop.f32.mrf.mxu0
        %v5475 = vadd.f32 %v5386, %v5474
        %5476 = vmatmul.bf16.gmra.mxu0 %v5274
        %v5477 = vpop.f32.mrf.mxu0
        %v5478 = vadd.f32 %v5389, %v5477
        %v5479 = vpop.f32.mrf.mxu0
        %v5480 = vadd.f32 %v5391, %v5479
        %5481 = vmatmul.bf16.gmra.mxu0 %v5276
        %v5482 = vpop.f32.mrf.mxu0
        %v5483 = vadd.f32 %v5394, %v5482
        %v5484 = vpop.f32.mrf.mxu0
        %v5485 = vadd.f32 %v5396, %v5484
        %5486 = vdwg.mxu0
        %v5487 = vpack.c.bf16 %v5410, %v5408
        %v5488 = vpack.c.bf16 %v5415, %v5413
        %v5489 = vpack.c.bf16 %v5420, %v5418
        %v5490 = vpack.c.bf16 %v5425, %v5423
        %v5491 = vpack.c.bf16 %v5430, %v5428
        %v5492 = vpack.c.bf16 %v5435, %v5433
        %v5493 = vpack.c.bf16 %v5440, %v5438
        %v5494 = vpack.c.bf16 %v5445, %v5443
        %v5495 = vpack.c.bf16 %v5450, %v5448
        %v5496 = vpack.c.bf16 %v5455, %v5453
        %v5497 = vpack.c.bf16 %v5460, %v5458
        %v5498 = vpack.c.bf16 %v5465, %v5463
        %v5499 = vpack.c.bf16 %v5470, %v5468
        %v5500 = vpack.c.bf16 %v5475, %v5473
        %v5501 = vpack.c.bf16 %v5480, %v5478
        %v5502 = vpack.c.bf16 %v5485, %v5483
        %s5503 = scalar_lea.vmem %s2, 16
        %v5504 = vld [vmem:[%s5503] sm:$0x3]
        %v5506 = vsel %vm1468, %v5487, 0
        %v5509 = vsel %vm1468, %v5488, 0
        %v5512 = vsel %vm1468, %v5489, 0
        %v5515 = vsel %vm1468, %v5490, 0
        %v5518 = vsel %vm1468, %v5491, 0
        %v5521 = vsel %vm1468, %v5492, 0
        %v5524 = vsel %vm1468, %v5493, 0
        %v5527 = vsel %vm1468, %v5494, 0
        %v5530 = vsel %vm1468, %v5495, 0
        %v5533 = vsel %vm1468, %v5496, 0
        %v5536 = vsel %vm1468, %v5497, 0
        %v5539 = vsel %vm1468, %v5498, 0
        %v5542 = vsel %vm1468, %v5499, 0
        %v5545 = vsel %vm1468, %v5500, 0
        %v5548 = vsel %vm1468, %v5501, 0
        %v5551 = vsel %vm1468, %v5502, 0
        %v5554 = vsel %vm1517, %v5504, 0
        %5556 = vmatpush.bf16.msra.mxu0 0
        %5557 = vmatpush.bf16.msra.mxu0 0
        %5558 = vmatpush.bf16.msra.mxu0 0
        %5559 = vmatpush.bf16.msra.mxu0 0
        %5560 = vmatpush.bf16.msra.mxu0 0
        %5561 = vmatpush.bf16.msra.mxu0 0
        %5562 = vmatpush.bf16.msra.mxu0 0
        %5563 = vmatpush.bf16.msra.mxu0 %v5554
        %5564 = vmatmul.bf16.gmra.mxu0 %v5506
        %v5565 = vpop.f32.mrf.mxu0
        %v5566 = vadd.f32 0.0, %v5565
        %v5567 = vpop.f32.mrf.mxu0
        %v5568 = vadd.f32 0.0, %v5567
        %5569 = vmatmul.bf16.gmra.mxu0 %v5509
        %v5570 = vpop.f32.mrf.mxu0
        %v5571 = vadd.f32 0.0, %v5570
        %v5572 = vpop.f32.mrf.mxu0
        %v5573 = vadd.f32 0.0, %v5572
        %5574 = vmatmul.bf16.gmra.mxu0 %v5512
        %v5575 = vpop.f32.mrf.mxu0
        %v5576 = vadd.f32 0.0, %v5575
        %v5577 = vpop.f32.mrf.mxu0
        %v5578 = vadd.f32 0.0, %v5577
        %5579 = vmatmul.bf16.gmra.mxu0 %v5515
        %v5580 = vpop.f32.mrf.mxu0
        %v5581 = vadd.f32 0.0, %v5580
        %v5582 = vpop.f32.mrf.mxu0
        %v5583 = vadd.f32 0.0, %v5582
        %5584 = vmatmul.bf16.gmra.mxu0 %v5518
        %v5585 = vpop.f32.mrf.mxu0
        %v5586 = vadd.f32 0.0, %v5585
        %v5587 = vpop.f32.mrf.mxu0
        %v5588 = vadd.f32 0.0, %v5587
        %5589 = vmatmul.bf16.gmra.mxu0 %v5521
        %v5590 = vpop.f32.mrf.mxu0
        %v5591 = vadd.f32 0.0, %v5590
        %v5592 = vpop.f32.mrf.mxu0
        %v5593 = vadd.f32 0.0, %v5592
        %5594 = vmatmul.bf16.gmra.mxu0 %v5524
        %v5595 = vpop.f32.mrf.mxu0
        %v5596 = vadd.f32 0.0, %v5595
        %v5597 = vpop.f32.mrf.mxu0
        %v5598 = vadd.f32 0.0, %v5597
        %5599 = vmatmul.bf16.gmra.mxu0 %v5527
        %v5600 = vpop.f32.mrf.mxu0
        %v5601 = vadd.f32 0.0, %v5600
        %v5602 = vpop.f32.mrf.mxu0
        %v5603 = vadd.f32 0.0, %v5602
        %5604 = vmatmul.bf16.gmra.mxu0 %v5530
        %v5605 = vpop.f32.mrf.mxu0
        %v5606 = vadd.f32 0.0, %v5605
        %v5607 = vpop.f32.mrf.mxu0
        %v5608 = vadd.f32 0.0, %v5607
        %5609 = vmatmul.bf16.gmra.mxu0 %v5533
        %v5610 = vpop.f32.mrf.mxu0
        %v5611 = vadd.f32 0.0, %v5610
        %v5612 = vpop.f32.mrf.mxu0
        %v5613 = vadd.f32 0.0, %v5612
        %5614 = vmatmul.bf16.gmra.mxu0 %v5536
        %v5615 = vpop.f32.mrf.mxu0
        %v5616 = vadd.f32 0.0, %v5615
        %v5617 = vpop.f32.mrf.mxu0
        %v5618 = vadd.f32 0.0, %v5617
        %5619 = vmatmul.bf16.gmra.mxu0 %v5539
        %v5620 = vpop.f32.mrf.mxu0
        %v5621 = vadd.f32 0.0, %v5620
        %v5622 = vpop.f32.mrf.mxu0
        %v5623 = vadd.f32 0.0, %v5622
        %5624 = vmatmul.bf16.gmra.mxu0 %v5542
        %v5625 = vpop.f32.mrf.mxu0
        %v5626 = vadd.f32 0.0, %v5625
        %v5627 = vpop.f32.mrf.mxu0
        %v5628 = vadd.f32 0.0, %v5627
        %5629 = vmatmul.bf16.gmra.mxu0 %v5545
        %v5630 = vpop.f32.mrf.mxu0
        %v5631 = vadd.f32 0.0, %v5630
        %v5632 = vpop.f32.mrf.mxu0
        %v5633 = vadd.f32 0.0, %v5632
        %5634 = vmatmul.bf16.gmra.mxu0 %v5548
        %v5635 = vpop.f32.mrf.mxu0
        %v5636 = vadd.f32 0.0, %v5635
        %v5637 = vpop.f32.mrf.mxu0
        %v5638 = vadd.f32 0.0, %v5637
        %5639 = vmatmul.bf16.gmra.mxu0 %v5551
        %v5640 = vpop.f32.mrf.mxu0
        %v5641 = vadd.f32 0.0, %v5640
        %v5642 = vpop.f32.mrf.mxu0
        %v5643 = vadd.f32 0.0, %v5642
        %5644 = vdwg.mxu0
        %v5645 = vadd.f32 %v5084, %v5566
        %v5646 = vadd.f32 %v5085, %v5568
        %v5647 = vadd.f32 %v5086, %v5571
        %v5648 = vadd.f32 %v5087, %v5573
        %v5649 = vadd.f32 %v5088, %v5576
        %v5650 = vadd.f32 %v5089, %v5578
        %v5651 = vadd.f32 %v5090, %v5581
        %v5652 = vadd.f32 %v5091, %v5583
        %v5653 = vadd.f32 %v5092, %v5586
        %v5654 = vadd.f32 %v5093, %v5588
        %v5655 = vadd.f32 %v5094, %v5591
        %v5656 = vadd.f32 %v5095, %v5593
        %v5657 = vadd.f32 %v5096, %v5596
        %v5658 = vadd.f32 %v5097, %v5598
        %v5659 = vadd.f32 %v5098, %v5601
        %v5660 = vadd.f32 %v5099, %v5603
        %v5661 = vadd.f32 %v5100, %v5606
        %v5662 = vadd.f32 %v5101, %v5608
        %v5663 = vadd.f32 %v5102, %v5611
        %v5664 = vadd.f32 %v5103, %v5613
        %v5665 = vadd.f32 %v5104, %v5616
        %v5666 = vadd.f32 %v5105, %v5618
        %v5667 = vadd.f32 %v5106, %v5621
        %v5668 = vadd.f32 %v5107, %v5623
        %v5669 = vadd.f32 %v5108, %v5626
        %v5670 = vadd.f32 %v5109, %v5628
        %v5671 = vadd.f32 %v5110, %v5631
        %v5672 = vadd.f32 %v5111, %v5633
        %v5673 = vadd.f32 %v5112, %v5636
        %v5674 = vadd.f32 %v5113, %v5638
        %v5675 = vadd.f32 %v5114, %v5641
        %v5676 = vadd.f32 %v5115, %v5643
        %v5677 = vld [vmem:[#allocation5] sm:$0x1]
        %v5679 = vperm.slane %v5677, 0
        %v5681 = vadd.f32 %v5645, %v5679
        %v5682 = vadd.f32 %v5646, %v5679
        %v5683 = vadd.f32 %v5647, %v5679
        %v5684 = vadd.f32 %v5648, %v5679
        %v5685 = vadd.f32 %v5649, %v5679
        %v5686 = vadd.f32 %v5650, %v5679
        %v5687 = vadd.f32 %v5651, %v5679
        %v5688 = vadd.f32 %v5652, %v5679
        %v5689 = vadd.f32 %v5653, %v5679
        %v5690 = vadd.f32 %v5654, %v5679
        %v5691 = vadd.f32 %v5655, %v5679
        %v5692 = vadd.f32 %v5656, %v5679
        %v5693 = vadd.f32 %v5657, %v5679
        %v5694 = vadd.f32 %v5658, %v5679
        %v5695 = vadd.f32 %v5659, %v5679
        %v5696 = vadd.f32 %v5660, %v5679
        %v5697 = vadd.f32 %v5661, %v5679
        %v5698 = vadd.f32 %v5662, %v5679
        %v5699 = vadd.f32 %v5663, %v5679
        %v5700 = vadd.f32 %v5664, %v5679
        %v5701 = vadd.f32 %v5665, %v5679
        %v5702 = vadd.f32 %v5666, %v5679
        %v5703 = vadd.f32 %v5667, %v5679
        %v5704 = vadd.f32 %v5668, %v5679
        %v5705 = vadd.f32 %v5669, %v5679
        %v5706 = vadd.f32 %v5670, %v5679
        %v5707 = vadd.f32 %v5671, %v5679
        %v5708 = vadd.f32 %v5672, %v5679
        %v5709 = vadd.f32 %v5673, %v5679
        %v5710 = vadd.f32 %v5674, %v5679
        %v5711 = vadd.f32 %v5675, %v5679
        %v5712 = vadd.f32 %v5676, %v5679
        %v5713 = vmax.f32 %v5681, 0.0
        %v5714 = vmax.f32 %v5682, 0.0
        %v5715 = vmax.f32 %v5683, 0.0
        %v5716 = vmax.f32 %v5684, 0.0
        %v5717 = vmax.f32 %v5685, 0.0
        %v5718 = vmax.f32 %v5686, 0.0
        %v5719 = vmax.f32 %v5687, 0.0
        %v5720 = vmax.f32 %v5688, 0.0
        %v5721 = vmax.f32 %v5689, 0.0
        %v5722 = vmax.f32 %v5690, 0.0
        %v5723 = vmax.f32 %v5691, 0.0
        %v5724 = vmax.f32 %v5692, 0.0
        %v5725 = vmax.f32 %v5693, 0.0
        %v5726 = vmax.f32 %v5694, 0.0
        %v5727 = vmax.f32 %v5695, 0.0
        %v5728 = vmax.f32 %v5696, 0.0
        %v5729 = vmax.f32 %v5697, 0.0
        %v5730 = vmax.f32 %v5698, 0.0
        %v5731 = vmax.f32 %v5699, 0.0
        %v5732 = vmax.f32 %v5700, 0.0
        %v5733 = vmax.f32 %v5701, 0.0
        %v5734 = vmax.f32 %v5702, 0.0
        %v5735 = vmax.f32 %v5703, 0.0
        %v5736 = vmax.f32 %v5704, 0.0
        %v5737 = vmax.f32 %v5705, 0.0
        %v5738 = vmax.f32 %v5706, 0.0
        %v5739 = vmax.f32 %v5707, 0.0
        %v5740 = vmax.f32 %v5708, 0.0
        %v5741 = vmax.f32 %v5709, 0.0
        %v5742 = vmax.f32 %v5710, 0.0
        %v5743 = vmax.f32 %v5711, 0.0
        %v5744 = vmax.f32 %v5712, 0.0
        %v5745 = vpack.c.bf16 %v5714, %v5713
        %v5746 = vpack.c.bf16 %v5716, %v5715
        %v5747 = vpack.c.bf16 %v5718, %v5717
        %v5748 = vpack.c.bf16 %v5720, %v5719
        %v5749 = vpack.c.bf16 %v5722, %v5721
        %v5750 = vpack.c.bf16 %v5724, %v5723
        %v5751 = vpack.c.bf16 %v5726, %v5725
        %v5752 = vpack.c.bf16 %v5728, %v5727
        %v5753 = vpack.c.bf16 %v5730, %v5729
        %v5754 = vpack.c.bf16 %v5732, %v5731
        %v5755 = vpack.c.bf16 %v5734, %v5733
        %v5756 = vpack.c.bf16 %v5736, %v5735
        %v5757 = vpack.c.bf16 %v5738, %v5737
        %v5758 = vpack.c.bf16 %v5740, %v5739
        %v5759 = vpack.c.bf16 %v5742, %v5741
        %v5760 = vpack.c.bf16 %v5744, %v5743
        %v5761 = vld [vmem:[#allocation7] sm:$0xff]
        %v5762 = vld [vmem:[#allocation7 + $0x8] sm:$0xff]
        %v5763 = vld [vmem:[#allocation7 + $0x10] sm:$0xff]
        %v5764 = vld [vmem:[#allocation7 + $0x18] sm:$0xff]
        %v5765 = vld [vmem:[#allocation7 + $0x20] sm:$0xff]
        %v5766 = vld [vmem:[#allocation7 + $0x28] sm:$0xff]
        %v5767 = vld [vmem:[#allocation7 + $0x30] sm:$0xff]
        %v5768 = vld [vmem:[#allocation7 + $0x38] sm:$0xff]
        %v5777 = vunpack.c.l.b16 %v5761
        %v5778 = vunpack.c.h.b16 %v5761
        %v5779 = vunpack.c.l.b16 %v5762
        %v5780 = vunpack.c.h.b16 %v5762
        %v5781 = vunpack.c.l.b16 %v5763
        %v5782 = vunpack.c.h.b16 %v5763
        %v5783 = vunpack.c.l.b16 %v5764
        %v5784 = vunpack.c.h.b16 %v5764
        %v5785 = vunpack.c.l.b16 %v5765
        %v5786 = vunpack.c.h.b16 %v5765
        %v5787 = vunpack.c.l.b16 %v5766
        %v5788 = vunpack.c.h.b16 %v5766
        %v5789 = vunpack.c.l.b16 %v5767
        %v5790 = vunpack.c.h.b16 %v5767
        %v5791 = vunpack.c.l.b16 %v5768
        %v5792 = vunpack.c.h.b16 %v5768
        %v5793 = vpack.c.b16 %v5779, %v5777
        %v5794 = vpack.c.b16 %v5780, %v5778
        %v5795 = vpack.c.b16 %v5783, %v5781
        %v5796 = vpack.c.b16 %v5784, %v5782
        %v5797 = vpack.c.b16 %v5787, %v5785
        %v5798 = vpack.c.b16 %v5788, %v5786
        %v5799 = vpack.c.b16 %v5791, %v5789
        %v5800 = vpack.c.b16 %v5792, %v5790
        %5809 = vmatpush.bf16.msra.mxu0 %v5752
        %5810 = vmatpush.bf16.msra.mxu0 %v5751
        %5811 = vmatpush.bf16.msra.mxu0 %v5750
        %5812 = vmatpush.bf16.msra.mxu0 %v5749
        %5813 = vmatpush.bf16.msra.mxu0 %v5748
        %5814 = vmatpush.bf16.msra.mxu0 %v5747
        %5815 = vmatpush.bf16.msra.mxu0 %v5746
        %5816 = vmatpush.bf16.msra.mxu0 %v5745
        %5817 = vmatmul.bf16.gmra.mxu0 %v5793
        %v5818 = vpop.f32.mrf.mxu0
        %v5819 = vadd.f32 0.0, %v5818
        %v5820 = vpop.f32.mrf.mxu0
        %v5821 = vadd.f32 0.0, %v5820
        %5822 = vmatmul.bf16.gmra.mxu0 %v5795
        %v5823 = vpop.f32.mrf.mxu0
        %v5824 = vadd.f32 0.0, %v5823
        %v5825 = vpop.f32.mrf.mxu0
        %v5826 = vadd.f32 0.0, %v5825
        %5827 = vmatmul.bf16.gmra.mxu0 %v5797
        %v5828 = vpop.f32.mrf.mxu0
        %v5829 = vadd.f32 0.0, %v5828
        %v5830 = vpop.f32.mrf.mxu0
        %v5831 = vadd.f32 0.0, %v5830
        %5832 = vmatmul.bf16.gmra.mxu0 %v5799
        %v5833 = vpop.f32.mrf.mxu0
        %v5834 = vadd.f32 0.0, %v5833
        %v5835 = vpop.f32.mrf.mxu0
        %v5836 = vadd.f32 0.0, %v5835
        %5837 = vdwg.mxu0
        %5838 = vmatpush.bf16.msra.mxu0 %v5760
        %5839 = vmatpush.bf16.msra.mxu0 %v5759
        %5840 = vmatpush.bf16.msra.mxu0 %v5758
        %5841 = vmatpush.bf16.msra.mxu0 %v5757
        %5842 = vmatpush.bf16.msra.mxu0 %v5756
        %5843 = vmatpush.bf16.msra.mxu0 %v5755
        %5844 = vmatpush.bf16.msra.mxu0 %v5754
        %5845 = vmatpush.bf16.msra.mxu0 %v5753
        %5846 = vmatmul.bf16.gmra.mxu0 %v5794
        %v5847 = vpop.f32.mrf.mxu0
        %v5848 = vadd.f32 %v5819, %v5847
        %v5849 = vpop.f32.mrf.mxu0
        %v5850 = vadd.f32 %v5821, %v5849
        %5851 = vmatmul.bf16.gmra.mxu0 %v5796
        %v5852 = vpop.f32.mrf.mxu0
        %v5853 = vadd.f32 %v5824, %v5852
        %v5854 = vpop.f32.mrf.mxu0
        %v5855 = vadd.f32 %v5826, %v5854
        %5856 = vmatmul.bf16.gmra.mxu0 %v5798
        %v5857 = vpop.f32.mrf.mxu0
        %v5858 = vadd.f32 %v5829, %v5857
        %v5859 = vpop.f32.mrf.mxu0
        %v5860 = vadd.f32 %v5831, %v5859
        %5861 = vmatmul.bf16.gmra.mxu0 %v5800
        %v5862 = vpop.f32.mrf.mxu0
        %v5863 = vadd.f32 %v5834, %v5862
        %v5864 = vpop.f32.mrf.mxu0
        %v5865 = vadd.f32 %v5836, %v5864
        %5866 = vdwg.mxu0
        %s5867 = scalar_lea.vmem [#allocation7], 64
        %v5868 = vld [vmem:[%s5867] sm:$0xff]
        %v5869 = vld [vmem:[%s5867 + $0x8] sm:$0xff]
        %v5870 = vld [vmem:[%s5867 + $0x10] sm:$0xff]
        %v5871 = vld [vmem:[%s5867 + $0x18] sm:$0xff]
        %v5872 = vld [vmem:[%s5867 + $0x20] sm:$0xff]
        %v5873 = vld [vmem:[%s5867 + $0x28] sm:$0xff]
        %v5874 = vld [vmem:[%s5867 + $0x30] sm:$0xff]
        %v5875 = vld [vmem:[%s5867 + $0x38] sm:$0xff]
        %v5884 = vunpack.c.l.b16 %v5868
        %v5885 = vunpack.c.h.b16 %v5868
        %v5886 = vunpack.c.l.b16 %v5869
        %v5887 = vunpack.c.h.b16 %v5869
        %v5888 = vunpack.c.l.b16 %v5870
        %v5889 = vunpack.c.h.b16 %v5870
        %v5890 = vunpack.c.l.b16 %v5871
        %v5891 = vunpack.c.h.b16 %v5871
        %v5892 = vunpack.c.l.b16 %v5872
        %v5893 = vunpack.c.h.b16 %v5872
        %v5894 = vunpack.c.l.b16 %v5873
        %v5895 = vunpack.c.h.b16 %v5873
        %v5896 = vunpack.c.l.b16 %v5874
        %v5897 = vunpack.c.h.b16 %v5874
        %v5898 = vunpack.c.l.b16 %v5875
        %v5899 = vunpack.c.h.b16 %v5875
        %v5900 = vpack.c.b16 %v5886, %v5884
        %v5901 = vpack.c.b16 %v5887, %v5885
        %v5902 = vpack.c.b16 %v5890, %v5888
        %v5903 = vpack.c.b16 %v5891, %v5889
        %v5904 = vpack.c.b16 %v5894, %v5892
        %v5905 = vpack.c.b16 %v5895, %v5893
        %v5906 = vpack.c.b16 %v5898, %v5896
        %v5907 = vpack.c.b16 %v5899, %v5897
        %5916 = vmatpush.bf16.msra.mxu0 %v5752
        %5917 = vmatpush.bf16.msra.mxu0 %v5751
        %5918 = vmatpush.bf16.msra.mxu0 %v5750
        %5919 = vmatpush.bf16.msra.mxu0 %v5749
        %5920 = vmatpush.bf16.msra.mxu0 %v5748
        %5921 = vmatpush.bf16.msra.mxu0 %v5747
        %5922 = vmatpush.bf16.msra.mxu0 %v5746
        %5923 = vmatpush.bf16.msra.mxu0 %v5745
        %5924 = vmatmul.bf16.gmra.mxu0 %v5900
        %v5925 = vpop.f32.mrf.mxu0
        %v5926 = vadd.f32 0.0, %v5925
        %v5927 = vpop.f32.mrf.mxu0
        %v5928 = vadd.f32 0.0, %v5927
        %5929 = vmatmul.bf16.gmra.mxu0 %v5902
        %v5930 = vpop.f32.mrf.mxu0
        %v5931 = vadd.f32 0.0, %v5930
        %v5932 = vpop.f32.mrf.mxu0
        %v5933 = vadd.f32 0.0, %v5932
        %5934 = vmatmul.bf16.gmra.mxu0 %v5904
        %v5935 = vpop.f32.mrf.mxu0
        %v5936 = vadd.f32 0.0, %v5935
        %v5937 = vpop.f32.mrf.mxu0
        %v5938 = vadd.f32 0.0, %v5937
        %5939 = vmatmul.bf16.gmra.mxu0 %v5906
        %v5940 = vpop.f32.mrf.mxu0
        %v5941 = vadd.f32 0.0, %v5940
        %v5942 = vpop.f32.mrf.mxu0
        %v5943 = vadd.f32 0.0, %v5942
        %5944 = vdwg.mxu0
        %5945 = vmatpush.bf16.msra.mxu0 %v5760
        %5946 = vmatpush.bf16.msra.mxu0 %v5759
        %5947 = vmatpush.bf16.msra.mxu0 %v5758
        %5948 = vmatpush.bf16.msra.mxu0 %v5757
        %5949 = vmatpush.bf16.msra.mxu0 %v5756
        %5950 = vmatpush.bf16.msra.mxu0 %v5755
        %5951 = vmatpush.bf16.msra.mxu0 %v5754
        %5952 = vmatpush.bf16.msra.mxu0 %v5753
        %5953 = vmatmul.bf16.gmra.mxu0 %v5901
        %v5954 = vpop.f32.mrf.mxu0
        %v5955 = vadd.f32 %v5926, %v5954
        %v5956 = vpop.f32.mrf.mxu0
        %v5957 = vadd.f32 %v5928, %v5956
        %5958 = vmatmul.bf16.gmra.mxu0 %v5903
        %v5959 = vpop.f32.mrf.mxu0
        %v5960 = vadd.f32 %v5931, %v5959
        %v5961 = vpop.f32.mrf.mxu0
        %v5962 = vadd.f32 %v5933, %v5961
        %5963 = vmatmul.bf16.gmra.mxu0 %v5905
        %v5964 = vpop.f32.mrf.mxu0
        %v5965 = vadd.f32 %v5936, %v5964
        %v5966 = vpop.f32.mrf.mxu0
        %v5967 = vadd.f32 %v5938, %v5966
        %5968 = vmatmul.bf16.gmra.mxu0 %v5907
        %v5969 = vpop.f32.mrf.mxu0
        %v5970 = vadd.f32 %v5941, %v5969
        %v5971 = vpop.f32.mrf.mxu0
        %v5972 = vadd.f32 %v5943, %v5971
        %5973 = vdwg.mxu0
        %v5974 = vmax.f32 %v5848, %v5955
        %v5975 = vmax.f32 %v5850, %v5957
        %v5976 = vmax.f32 %v5853, %v5960
        %v5977 = vmax.f32 %v5855, %v5962
        %v5978 = vmax.f32 %v5858, %v5965
        %v5979 = vmax.f32 %v5860, %v5967
        %v5980 = vmax.f32 %v5863, %v5970
        %v5981 = vmax.f32 %v5865, %v5972
        %s5982 = scalar_lea.vmem [#allocation7], 128
        %v5983 = vld [vmem:[%s5982] sm:$0xff]
        %v5984 = vld [vmem:[%s5982 + $0x8] sm:$0xff]
        %v5985 = vld [vmem:[%s5982 + $0x10] sm:$0xff]
        %v5986 = vld [vmem:[%s5982 + $0x18] sm:$0xff]
        %v5987 = vld [vmem:[%s5982 + $0x20] sm:$0xff]
        %v5988 = vld [vmem:[%s5982 + $0x28] sm:$0xff]
        %v5989 = vld [vmem:[%s5982 + $0x30] sm:$0xff]
        %v5990 = vld [vmem:[%s5982 + $0x38] sm:$0xff]
        %v5999 = vunpack.c.l.b16 %v5983
        %v6000 = vunpack.c.h.b16 %v5983
        %v6001 = vunpack.c.l.b16 %v5984
        %v6002 = vunpack.c.h.b16 %v5984
        %v6003 = vunpack.c.l.b16 %v5985
        %v6004 = vunpack.c.h.b16 %v5985
        %v6005 = vunpack.c.l.b16 %v5986
        %v6006 = vunpack.c.h.b16 %v5986
        %v6007 = vunpack.c.l.b16 %v5987
        %v6008 = vunpack.c.h.b16 %v5987
        %v6009 = vunpack.c.l.b16 %v5988
        %v6010 = vunpack.c.h.b16 %v5988
        %v6011 = vunpack.c.l.b16 %v5989
        %v6012 = vunpack.c.h.b16 %v5989
        %v6013 = vunpack.c.l.b16 %v5990
        %v6014 = vunpack.c.h.b16 %v5990
        %v6015 = vpack.c.b16 %v6001, %v5999
        %v6016 = vpack.c.b16 %v6002, %v6000
        %v6017 = vpack.c.b16 %v6005, %v6003
        %v6018 = vpack.c.b16 %v6006, %v6004
        %v6019 = vpack.c.b16 %v6009, %v6007
        %v6020 = vpack.c.b16 %v6010, %v6008
        %v6021 = vpack.c.b16 %v6013, %v6011
        %v6022 = vpack.c.b16 %v6014, %v6012
        %6031 = vmatpush.bf16.msra.mxu0 %v5752
        %6032 = vmatpush.bf16.msra.mxu0 %v5751
        %6033 = vmatpush.bf16.msra.mxu0 %v5750
        %6034 = vmatpush.bf16.msra.mxu0 %v5749
        %6035 = vmatpush.bf16.msra.mxu0 %v5748
        %6036 = vmatpush.bf16.msra.mxu0 %v5747
        %6037 = vmatpush.bf16.msra.mxu0 %v5746
        %6038 = vmatpush.bf16.msra.mxu0 %v5745
        %6039 = vmatmul.bf16.gmra.mxu0 %v6015
        %v6040 = vpop.f32.mrf.mxu0
        %v6041 = vadd.f32 0.0, %v6040
        %v6042 = vpop.f32.mrf.mxu0
        %v6043 = vadd.f32 0.0, %v6042
        %6044 = vmatmul.bf16.gmra.mxu0 %v6017
        %v6045 = vpop.f32.mrf.mxu0
        %v6046 = vadd.f32 0.0, %v6045
        %v6047 = vpop.f32.mrf.mxu0
        %v6048 = vadd.f32 0.0, %v6047
        %6049 = vmatmul.bf16.gmra.mxu0 %v6019
        %v6050 = vpop.f32.mrf.mxu0
        %v6051 = vadd.f32 0.0, %v6050
        %v6052 = vpop.f32.mrf.mxu0
        %v6053 = vadd.f32 0.0, %v6052
        %6054 = vmatmul.bf16.gmra.mxu0 %v6021
        %v6055 = vpop.f32.mrf.mxu0
        %v6056 = vadd.f32 0.0, %v6055
        %v6057 = vpop.f32.mrf.mxu0
        %v6058 = vadd.f32 0.0, %v6057
        %6059 = vdwg.mxu0
        %6060 = vmatpush.bf16.msra.mxu0 %v5760
        %6061 = vmatpush.bf16.msra.mxu0 %v5759
        %6062 = vmatpush.bf16.msra.mxu0 %v5758
        %6063 = vmatpush.bf16.msra.mxu0 %v5757
        %6064 = vmatpush.bf16.msra.mxu0 %v5756
        %6065 = vmatpush.bf16.msra.mxu0 %v5755
        %6066 = vmatpush.bf16.msra.mxu0 %v5754
        %6067 = vmatpush.bf16.msra.mxu0 %v5753
        %6068 = vmatmul.bf16.gmra.mxu0 %v6016
        %v6069 = vpop.f32.mrf.mxu0
        %v6070 = vadd.f32 %v6041, %v6069
        %v6071 = vpop.f32.mrf.mxu0
        %v6072 = vadd.f32 %v6043, %v6071
        %6073 = vmatmul.bf16.gmra.mxu0 %v6018
        %v6074 = vpop.f32.mrf.mxu0
        %v6075 = vadd.f32 %v6046, %v6074
        %v6076 = vpop.f32.mrf.mxu0
        %v6077 = vadd.f32 %v6048, %v6076
        %6078 = vmatmul.bf16.gmra.mxu0 %v6020
        %v6079 = vpop.f32.mrf.mxu0
        %v6080 = vadd.f32 %v6051, %v6079
        %v6081 = vpop.f32.mrf.mxu0
        %v6082 = vadd.f32 %v6053, %v6081
        %6083 = vmatmul.bf16.gmra.mxu0 %v6022
        %v6084 = vpop.f32.mrf.mxu0
        %v6085 = vadd.f32 %v6056, %v6084
        %v6086 = vpop.f32.mrf.mxu0
        %v6087 = vadd.f32 %v6058, %v6086
        %6088 = vdwg.mxu0
        %v6089 = vmax.f32 %v5974, %v6070
        %v6090 = vmax.f32 %v5975, %v6072
        %v6091 = vmax.f32 %v5976, %v6075
        %v6092 = vmax.f32 %v5977, %v6077
        %v6093 = vmax.f32 %v5978, %v6080
        %v6094 = vmax.f32 %v5979, %v6082
        %v6095 = vmax.f32 %v5980, %v6085
        %v6096 = vmax.f32 %v5981, %v6087
        %s6097 = scalar_lea.vmem [#allocation7], 192
        %v6098 = vld [vmem:[%s6097] sm:$0xff]
        %v6099 = vld [vmem:[%s6097 + $0x8] sm:$0xff]
        %v6100 = vld [vmem:[%s6097 + $0x10] sm:$0xff]
        %v6101 = vld [vmem:[%s6097 + $0x18] sm:$0xff]
        %v6102 = vld [vmem:[%s6097 + $0x20] sm:$0xff]
        %v6103 = vld [vmem:[%s6097 + $0x28] sm:$0xff]
        %v6104 = vld [vmem:[%s6097 + $0x30] sm:$0xff]
        %v6105 = vld [vmem:[%s6097 + $0x38] sm:$0xff]
        %v6114 = vunpack.c.l.b16 %v6098
        %v6115 = vunpack.c.h.b16 %v6098
        %v6116 = vunpack.c.l.b16 %v6099
        %v6117 = vunpack.c.h.b16 %v6099
        %v6118 = vunpack.c.l.b16 %v6100
        %v6119 = vunpack.c.h.b16 %v6100
        %v6120 = vunpack.c.l.b16 %v6101
        %v6121 = vunpack.c.h.b16 %v6101
        %v6122 = vunpack.c.l.b16 %v6102
        %v6123 = vunpack.c.h.b16 %v6102
        %v6124 = vunpack.c.l.b16 %v6103
        %v6125 = vunpack.c.h.b16 %v6103
        %v6126 = vunpack.c.l.b16 %v6104
        %v6127 = vunpack.c.h.b16 %v6104
        %v6128 = vunpack.c.l.b16 %v6105
        %v6129 = vunpack.c.h.b16 %v6105
        %v6130 = vpack.c.b16 %v6116, %v6114
        %v6131 = vpack.c.b16 %v6117, %v6115
        %v6132 = vpack.c.b16 %v6120, %v6118
        %v6133 = vpack.c.b16 %v6121, %v6119
        %v6134 = vpack.c.b16 %v6124, %v6122
        %v6135 = vpack.c.b16 %v6125, %v6123
        %v6136 = vpack.c.b16 %v6128, %v6126
        %v6137 = vpack.c.b16 %v6129, %v6127
        %6146 = vmatpush.bf16.msra.mxu0 %v5752
        %6147 = vmatpush.bf16.msra.mxu0 %v5751
        %6148 = vmatpush.bf16.msra.mxu0 %v5750
        %6149 = vmatpush.bf16.msra.mxu0 %v5749
        %6150 = vmatpush.bf16.msra.mxu0 %v5748
        %6151 = vmatpush.bf16.msra.mxu0 %v5747
        %6152 = vmatpush.bf16.msra.mxu0 %v5746
        %6153 = vmatpush.bf16.msra.mxu0 %v5745
        %6154 = vmatmul.bf16.gmra.mxu0 %v6130
        %v6155 = vpop.f32.mrf.mxu0
        %v6156 = vadd.f32 0.0, %v6155
        %v6157 = vpop.f32.mrf.mxu0
        %v6158 = vadd.f32 0.0, %v6157
        %6159 = vmatmul.bf16.gmra.mxu0 %v6132
        %v6160 = vpop.f32.mrf.mxu0
        %v6161 = vadd.f32 0.0, %v6160
        %v6162 = vpop.f32.mrf.mxu0
        %v6163 = vadd.f32 0.0, %v6162
        %6164 = vmatmul.bf16.gmra.mxu0 %v6134
        %v6165 = vpop.f32.mrf.mxu0
        %v6166 = vadd.f32 0.0, %v6165
        %v6167 = vpop.f32.mrf.mxu0
        %v6168 = vadd.f32 0.0, %v6167
        %6169 = vmatmul.bf16.gmra.mxu0 %v6136
        %v6170 = vpop.f32.mrf.mxu0
        %v6171 = vadd.f32 0.0, %v6170
        %v6172 = vpop.f32.mrf.mxu0
        %v6173 = vadd.f32 0.0, %v6172
        %6174 = vdwg.mxu0
        %6175 = vmatpush.bf16.msra.mxu0 %v5760
        %6176 = vmatpush.bf16.msra.mxu0 %v5759
        %6177 = vmatpush.bf16.msra.mxu0 %v5758
        %6178 = vmatpush.bf16.msra.mxu0 %v5757
        %6179 = vmatpush.bf16.msra.mxu0 %v5756
        %6180 = vmatpush.bf16.msra.mxu0 %v5755
        %6181 = vmatpush.bf16.msra.mxu0 %v5754
        %6182 = vmatpush.bf16.msra.mxu0 %v5753
        %6183 = vmatmul.bf16.gmra.mxu0 %v6131
        %v6184 = vpop.f32.mrf.mxu0
        %v6185 = vadd.f32 %v6156, %v6184
        %v6186 = vpop.f32.mrf.mxu0
        %v6187 = vadd.f32 %v6158, %v6186
        %6188 = vmatmul.bf16.gmra.mxu0 %v6133
        %v6189 = vpop.f32.mrf.mxu0
        %v6190 = vadd.f32 %v6161, %v6189
        %v6191 = vpop.f32.mrf.mxu0
        %v6192 = vadd.f32 %v6163, %v6191
        %6193 = vmatmul.bf16.gmra.mxu0 %v6135
        %v6194 = vpop.f32.mrf.mxu0
        %v6195 = vadd.f32 %v6166, %v6194
        %v6196 = vpop.f32.mrf.mxu0
        %v6197 = vadd.f32 %v6168, %v6196
        %6198 = vmatmul.bf16.gmra.mxu0 %v6137
        %v6199 = vpop.f32.mrf.mxu0
        %v6200 = vadd.f32 %v6171, %v6199
        %v6201 = vpop.f32.mrf.mxu0
        %v6202 = vadd.f32 %v6173, %v6201
        %6203 = vdwg.mxu0
        %v6204 = vmax.f32 %v6089, %v6185
        %v6205 = vmax.f32 %v6090, %v6187
        %v6206 = vmax.f32 %v6091, %v6190
        %v6207 = vmax.f32 %v6092, %v6192
        %v6208 = vmax.f32 %v6093, %v6195
        %v6209 = vmax.f32 %v6094, %v6197
        %v6210 = vmax.f32 %v6095, %v6200
        %v6211 = vmax.f32 %v6096, %v6202
        %v6212 = vpack.c.bf16 %v6205, %v6204
        %v6213 = vpack.c.bf16 %v6207, %v6206
        %v6214 = vpack.c.bf16 %v6209, %v6208
        %v6215 = vpack.c.bf16 %v6211, %v6210
        %v6216 = vld [vmem:[#allocation8] sm:$0xf]
        %v6217 = vld [vmem:[#allocation8 + $0x4] sm:$0xf]
        %v6218 = vld [vmem:[#allocation8 + $0x8] sm:$0xf]
        %v6219 = vld [vmem:[#allocation8 + $0xc] sm:$0xf]
        %v6220 = vld [vmem:[#allocation8 + $0x10] sm:$0xf]
        %v6221 = vld [vmem:[#allocation8 + $0x14] sm:$0xf]
        %v6222 = vld [vmem:[#allocation8 + $0x18] sm:$0xf]
        %v6223 = vld [vmem:[#allocation8 + $0x1c] sm:$0xf]
        %v6232 = vunpack.c.l.b16 %v6216
        %v6233 = vunpack.c.l.b16 %v6217
        %v6234 = vunpack.c.l.b16 %v6218
        %v6235 = vunpack.c.l.b16 %v6219
        %v6236 = vunpack.c.l.b16 %v6220
        %v6237 = vunpack.c.l.b16 %v6221
        %v6238 = vunpack.c.l.b16 %v6222
        %v6239 = vunpack.c.l.b16 %v6223
        %v6240 = vpack.c.b16 %v6233, %v6232
        %v6241 = vpack.c.b16 %v6235, %v6234
        %v6242 = vpack.c.b16 %v6237, %v6236
        %v6243 = vpack.c.b16 %v6239, %v6238
        %vm6244 = vcmask 523264
        %v6246 = vsel %vm6244, %v6240, 0
        %v6249 = vsel %vm6244, %v6241, 0
        %v6252 = vsel %vm6244, %v6242, 0
        %v6255 = vsel %vm6244, %v6243, 0
        %6257 = vmatpush.bf16.msra.mxu0 0
        %6258 = vmatpush.bf16.msra.mxu0 0
        %6259 = vmatpush.bf16.msra.mxu0 0
        %6260 = vmatpush.bf16.msra.mxu0 0
        %6261 = vmatpush.bf16.msra.mxu0 %v6215
        %6262 = vmatpush.bf16.msra.mxu0 %v6214
        %6263 = vmatpush.bf16.msra.mxu0 %v6213
        %6264 = vmatpush.bf16.msra.mxu0 %v6212
        %6265 = vmatmul.bf16.gmra.mxu0 %v6246
        %v6266 = vpop.f32.mrf.mxu0
        %v6267 = vadd.f32 0.0, %v6266
        %v6268 = vpop.f32.mrf.mxu0
        %v6269 = vadd.f32 0.0, %v6268
        %6270 = vmatmul.bf16.gmra.mxu0 %v6249
        %v6271 = vpop.f32.mrf.mxu0
        %v6272 = vadd.f32 0.0, %v6271
        %v6273 = vpop.f32.mrf.mxu0
        %v6274 = vadd.f32 0.0, %v6273
        %6275 = vmatmul.bf16.gmra.mxu0 %v6252
        %v6276 = vpop.f32.mrf.mxu0
        %v6277 = vadd.f32 0.0, %v6276
        %v6278 = vpop.f32.mrf.mxu0
        %v6279 = vadd.f32 0.0, %v6278
        %6280 = vmatmul.bf16.gmra.mxu0 %v6255
        %v6281 = vpop.f32.mrf.mxu0
        %v6282 = vadd.f32 0.0, %v6281
        %v6283 = vpop.f32.mrf.mxu0
        %v6284 = vadd.f32 0.0, %v6283
        %6285 = vdwg.mxu0
        %v6286 = vpack.c.bf16 %v6269, %v6267
        %v6287 = vpack.c.bf16 %v6274, %v6272
        %v6288 = vpack.c.bf16 %v6279, %v6277
        %v6289 = vpack.c.bf16 %v6284, %v6282
        %v6290 = vld [vmem:[%s6] sm:$0xf]
        %s6291 = scalar_lea.vmem [#allocation8], 32
        %v6292 = vld [vmem:[%s6291] sm:$0xf]
        %v6293 = vld [vmem:[%s6291 + $0x4] sm:$0xf]
        %v6294 = vld [vmem:[%s6291 + $0x8] sm:$0xf]
        %v6295 = vld [vmem:[%s6291 + $0xc] sm:$0xf]
        %v6296 = vld [vmem:[%s6291 + $0x10] sm:$0xf]
        %v6297 = vld [vmem:[%s6291 + $0x14] sm:$0xf]
        %v6298 = vld [vmem:[%s6291 + $0x18] sm:$0xf]
        %v6299 = vld [vmem:[%s6291 + $0x1c] sm:$0xf]
        %v6308 = vunpack.c.l.b16 %v6292
        %v6309 = vunpack.c.l.b16 %v6293
        %v6310 = vunpack.c.l.b16 %v6294
        %v6311 = vunpack.c.l.b16 %v6295
        %v6312 = vunpack.c.l.b16 %v6296
        %v6313 = vunpack.c.l.b16 %v6297
        %v6314 = vunpack.c.l.b16 %v6298
        %v6315 = vunpack.c.l.b16 %v6299
        %v6316 = vpack.c.b16 %v6309, %v6308
        %v6317 = vpack.c.b16 %v6311, %v6310
        %v6318 = vpack.c.b16 %v6313, %v6312
        %v6319 = vpack.c.b16 %v6315, %v6314
        %v6321 = vsel %vm6244, %v6316, 0
        %v6324 = vsel %vm6244, %v6317, 0
        %v6327 = vsel %vm6244, %v6318, 0
        %v6330 = vsel %vm6244, %v6319, 0
        %6332 = vmatpush.bf16.msra.mxu0 0
        %6333 = vmatpush.bf16.msra.mxu0 0
        %6334 = vmatpush.bf16.msra.mxu0 0
        %6335 = vmatpush.bf16.msra.mxu0 0
        %6336 = vmatpush.bf16.msra.mxu0 %v6215
        %6337 = vmatpush.bf16.msra.mxu0 %v6214
        %6338 = vmatpush.bf16.msra.mxu0 %v6213
        %6339 = vmatpush.bf16.msra.mxu0 %v6212
        %6340 = vmatmul.bf16.gmra.mxu0 %v6321
        %v6341 = vpop.f32.mrf.mxu0
        %v6342 = vadd.f32 0.0, %v6341
        %v6343 = vpop.f32.mrf.mxu0
        %v6344 = vadd.f32 0.0, %v6343
        %6345 = vmatmul.bf16.gmra.mxu0 %v6324
        %v6346 = vpop.f32.mrf.mxu0
        %v6347 = vadd.f32 0.0, %v6346
        %v6348 = vpop.f32.mrf.mxu0
        %v6349 = vadd.f32 0.0, %v6348
        %6350 = vmatmul.bf16.gmra.mxu0 %v6327
        %v6351 = vpop.f32.mrf.mxu0
        %v6352 = vadd.f32 0.0, %v6351
        %v6353 = vpop.f32.mrf.mxu0
        %v6354 = vadd.f32 0.0, %v6353
        %6355 = vmatmul.bf16.gmra.mxu0 %v6330
        %v6356 = vpop.f32.mrf.mxu0
        %v6357 = vadd.f32 0.0, %v6356
        %v6358 = vpop.f32.mrf.mxu0
        %v6359 = vadd.f32 0.0, %v6358
        %6360 = vdwg.mxu0
        %v6361 = vpack.c.bf16 %v6344, %v6342
        %v6362 = vpack.c.bf16 %v6349, %v6347
        %v6363 = vpack.c.bf16 %v6354, %v6352
        %v6364 = vpack.c.bf16 %v6359, %v6357
        %s6365 = scalar_lea.vmem %s6, 4
        %v6366 = vld [vmem:[%s6365] sm:$0xf]
        %vm6367 = vcmask 64512
        %v6369 = vsel %vm6367, %v6361, 0
        %v6372 = vsel %vm6367, %v6362, 0
        %v6375 = vsel %vm6367, %v6363, 0
        %v6378 = vsel %vm6367, %v6364, 0
        %vm6380 = vcmask 1043456
        %v6382 = vsel %vm6380, %v6366, 0
        %6384 = vmatpush.bf16.msra.mxu0 0
        %6385 = vmatpush.bf16.msra.mxu0 0
        %6386 = vmatpush.bf16.msra.mxu0 0
        %6387 = vmatpush.bf16.msra.mxu0 0
        %6388 = vmatpush.bf16.msra.mxu0 0
        %6389 = vmatpush.bf16.msra.mxu0 0
        %6390 = vmatpush.bf16.msra.mxu0 0
        %6391 = vmatpush.bf16.msra.mxu0 %v6382
        %6392 = vmatmul.bf16.gmra.mxu0 %v6369
        %v6393 = vpop.f32.mrf.mxu0
        %v6394 = vadd.f32 0.0, %v6393
        %v6395 = vpop.f32.mrf.mxu0
        %v6396 = vadd.f32 0.0, %v6395
        %6397 = vmatmul.bf16.gmra.mxu0 %v6372
        %v6398 = vpop.f32.mrf.mxu0
        %v6399 = vadd.f32 0.0, %v6398
        %v6400 = vpop.f32.mrf.mxu0
        %v6401 = vadd.f32 0.0, %v6400
        %6402 = vmatmul.bf16.gmra.mxu0 %v6375
        %v6403 = vpop.f32.mrf.mxu0
        %v6404 = vadd.f32 0.0, %v6403
        %v6405 = vpop.f32.mrf.mxu0
        %v6406 = vadd.f32 0.0, %v6405
        %6407 = vmatmul.bf16.gmra.mxu0 %v6378
        %v6408 = vpop.f32.mrf.mxu0
        %v6409 = vadd.f32 0.0, %v6408
        %v6410 = vpop.f32.mrf.mxu0
        %v6411 = vadd.f32 0.0, %v6410
        %6412 = vdwg.mxu0
        %v6414 = vsel %vm6367, %v6286, 0
        %v6417 = vsel %vm6367, %v6287, 0
        %v6420 = vsel %vm6367, %v6288, 0
        %v6423 = vsel %vm6367, %v6289, 0
        %v6426 = vsel %vm6380, %v6290, 0
        %6428 = vmatpush.bf16.msra.mxu0 0
        %6429 = vmatpush.bf16.msra.mxu0 0
        %6430 = vmatpush.bf16.msra.mxu0 0
        %6431 = vmatpush.bf16.msra.mxu0 0
        %6432 = vmatpush.bf16.msra.mxu0 0
        %6433 = vmatpush.bf16.msra.mxu0 0
        %6434 = vmatpush.bf16.msra.mxu0 0
        %6435 = vmatpush.bf16.msra.mxu0 %v6426
        %6436 = vmatmul.bf16.gmra.mxu0 %v6414
        %v6437 = vpop.f32.mrf.mxu0
        %v6438 = vadd.f32 %v6394, %v6437
        %v6439 = vpop.f32.mrf.mxu0
        %v6440 = vadd.f32 %v6396, %v6439
        %6441 = vmatmul.bf16.gmra.mxu0 %v6417
        %v6442 = vpop.f32.mrf.mxu0
        %v6443 = vadd.f32 %v6399, %v6442
        %v6444 = vpop.f32.mrf.mxu0
        %v6445 = vadd.f32 %v6401, %v6444
        %6446 = vmatmul.bf16.gmra.mxu0 %v6420
        %v6447 = vpop.f32.mrf.mxu0
        %v6448 = vadd.f32 %v6404, %v6447
        %v6449 = vpop.f32.mrf.mxu0
        %v6450 = vadd.f32 %v6406, %v6449
        %6451 = vmatmul.bf16.gmra.mxu0 %v6423
        %v6452 = vpop.f32.mrf.mxu0
        %v6453 = vadd.f32 %v6409, %v6452
        %v6454 = vpop.f32.mrf.mxu0
        %v6455 = vadd.f32 %v6411, %v6454
        %6456 = vdwg.mxu0
        %s6457 = scalar_lea.vmem [#allocation8], 64
        %v6458 = vld [vmem:[%s6457] sm:$0xf]
        %v6459 = vld [vmem:[%s6457 + $0x4] sm:$0xf]
        %v6460 = vld [vmem:[%s6457 + $0x8] sm:$0xf]
        %v6461 = vld [vmem:[%s6457 + $0xc] sm:$0xf]
        %v6462 = vld [vmem:[%s6457 + $0x10] sm:$0xf]
        %v6463 = vld [vmem:[%s6457 + $0x14] sm:$0xf]
        %v6464 = vld [vmem:[%s6457 + $0x18] sm:$0xf]
        %v6465 = vld [vmem:[%s6457 + $0x1c] sm:$0xf]
        %v6474 = vunpack.c.l.b16 %v6458
        %v6475 = vunpack.c.l.b16 %v6459
        %v6476 = vunpack.c.l.b16 %v6460
        %v6477 = vunpack.c.l.b16 %v6461
        %v6478 = vunpack.c.l.b16 %v6462
        %v6479 = vunpack.c.l.b16 %v6463
        %v6480 = vunpack.c.l.b16 %v6464
        %v6481 = vunpack.c.l.b16 %v6465
        %v6482 = vpack.c.b16 %v6475, %v6474
        %v6483 = vpack.c.b16 %v6477, %v6476
        %v6484 = vpack.c.b16 %v6479, %v6478
        %v6485 = vpack.c.b16 %v6481, %v6480
        %v6487 = vsel %vm6244, %v6482, 0
        %v6490 = vsel %vm6244, %v6483, 0
        %v6493 = vsel %vm6244, %v6484, 0
        %v6496 = vsel %vm6244, %v6485, 0
        %6498 = vmatpush.bf16.msra.mxu0 0
        %6499 = vmatpush.bf16.msra.mxu0 0
        %6500 = vmatpush.bf16.msra.mxu0 0
        %6501 = vmatpush.bf16.msra.mxu0 0
        %6502 = vmatpush.bf16.msra.mxu0 %v6215
        %6503 = vmatpush.bf16.msra.mxu0 %v6214
        %6504 = vmatpush.bf16.msra.mxu0 %v6213
        %6505 = vmatpush.bf16.msra.mxu0 %v6212
        %6506 = vmatmul.bf16.gmra.mxu0 %v6487
        %v6507 = vpop.f32.mrf.mxu0
        %v6508 = vadd.f32 0.0, %v6507
        %v6509 = vpop.f32.mrf.mxu0
        %v6510 = vadd.f32 0.0, %v6509
        %6511 = vmatmul.bf16.gmra.mxu0 %v6490
        %v6512 = vpop.f32.mrf.mxu0
        %v6513 = vadd.f32 0.0, %v6512
        %v6514 = vpop.f32.mrf.mxu0
        %v6515 = vadd.f32 0.0, %v6514
        %6516 = vmatmul.bf16.gmra.mxu0 %v6493
        %v6517 = vpop.f32.mrf.mxu0
        %v6518 = vadd.f32 0.0, %v6517
        %v6519 = vpop.f32.mrf.mxu0
        %v6520 = vadd.f32 0.0, %v6519
        %6521 = vmatmul.bf16.gmra.mxu0 %v6496
        %v6522 = vpop.f32.mrf.mxu0
        %v6523 = vadd.f32 0.0, %v6522
        %v6524 = vpop.f32.mrf.mxu0
        %v6525 = vadd.f32 0.0, %v6524
        %6526 = vdwg.mxu0
        %v6527 = vpack.c.bf16 %v6510, %v6508
        %v6528 = vpack.c.bf16 %v6515, %v6513
        %v6529 = vpack.c.bf16 %v6520, %v6518
        %v6530 = vpack.c.bf16 %v6525, %v6523
        %s6531 = scalar_lea.vmem %s6, 8
        %v6532 = vld [vmem:[%s6531] sm:$0xf]
        %v6534 = vsel %vm6367, %v6527, 0
        %v6537 = vsel %vm6367, %v6528, 0
        %v6540 = vsel %vm6367, %v6529, 0
        %v6543 = vsel %vm6367, %v6530, 0
        %v6546 = vsel %vm6380, %v6532, 0
        %6548 = vmatpush.bf16.msra.mxu0 0
        %6549 = vmatpush.bf16.msra.mxu0 0
        %6550 = vmatpush.bf16.msra.mxu0 0
        %6551 = vmatpush.bf16.msra.mxu0 0
        %6552 = vmatpush.bf16.msra.mxu0 0
        %6553 = vmatpush.bf16.msra.mxu0 0
        %6554 = vmatpush.bf16.msra.mxu0 0
        %6555 = vmatpush.bf16.msra.mxu0 %v6546
        %6556 = vmatmul.bf16.gmra.mxu0 %v6534
        %v6557 = vpop.f32.mrf.mxu0
        %v6558 = vadd.f32 0.0, %v6557
        %v6559 = vpop.f32.mrf.mxu0
        %v6560 = vadd.f32 0.0, %v6559
        %6561 = vmatmul.bf16.gmra.mxu0 %v6537
        %v6562 = vpop.f32.mrf.mxu0
        %v6563 = vadd.f32 0.0, %v6562
        %v6564 = vpop.f32.mrf.mxu0
        %v6565 = vadd.f32 0.0, %v6564
        %6566 = vmatmul.bf16.gmra.mxu0 %v6540
        %v6567 = vpop.f32.mrf.mxu0
        %v6568 = vadd.f32 0.0, %v6567
        %v6569 = vpop.f32.mrf.mxu0
        %v6570 = vadd.f32 0.0, %v6569
        %6571 = vmatmul.bf16.gmra.mxu0 %v6543
        %v6572 = vpop.f32.mrf.mxu0
        %v6573 = vadd.f32 0.0, %v6572
        %v6574 = vpop.f32.mrf.mxu0
        %v6575 = vadd.f32 0.0, %v6574
        %6576 = vdwg.mxu0
        %v6577 = vadd.f32 %v6438, %v6558
        %v6578 = vadd.f32 %v6440, %v6560
        %v6579 = vadd.f32 %v6443, %v6563
        %v6580 = vadd.f32 %v6445, %v6565
        %v6581 = vadd.f32 %v6448, %v6568
        %v6582 = vadd.f32 %v6450, %v6570
        %v6583 = vadd.f32 %v6453, %v6573
        %v6584 = vadd.f32 %v6455, %v6575
        %s6585 = scalar_lea.vmem [#allocation8], 96
        %v6586 = vld [vmem:[%s6585] sm:$0xf]
        %v6587 = vld [vmem:[%s6585 + $0x4] sm:$0xf]
        %v6588 = vld [vmem:[%s6585 + $0x8] sm:$0xf]
        %v6589 = vld [vmem:[%s6585 + $0xc] sm:$0xf]
        %v6590 = vld [vmem:[%s6585 + $0x10] sm:$0xf]
        %v6591 = vld [vmem:[%s6585 + $0x14] sm:$0xf]
        %v6592 = vld [vmem:[%s6585 + $0x18] sm:$0xf]
        %v6593 = vld [vmem:[%s6585 + $0x1c] sm:$0xf]
        %v6602 = vunpack.c.l.b16 %v6586
        %v6603 = vunpack.c.l.b16 %v6587
        %v6604 = vunpack.c.l.b16 %v6588
        %v6605 = vunpack.c.l.b16 %v6589
        %v6606 = vunpack.c.l.b16 %v6590
        %v6607 = vunpack.c.l.b16 %v6591
        %v6608 = vunpack.c.l.b16 %v6592
        %v6609 = vunpack.c.l.b16 %v6593
        %v6610 = vpack.c.b16 %v6603, %v6602
        %v6611 = vpack.c.b16 %v6605, %v6604
        %v6612 = vpack.c.b16 %v6607, %v6606
        %v6613 = vpack.c.b16 %v6609, %v6608
        %v6615 = vsel %vm6244, %v6610, 0
        %v6618 = vsel %vm6244, %v6611, 0
        %v6621 = vsel %vm6244, %v6612, 0
        %v6624 = vsel %vm6244, %v6613, 0
        %6626 = vmatpush.bf16.msra.mxu0 0
        %6627 = vmatpush.bf16.msra.mxu0 0
        %6628 = vmatpush.bf16.msra.mxu0 0
        %6629 = vmatpush.bf16.msra.mxu0 0
        %6630 = vmatpush.bf16.msra.mxu0 %v6215
        %6631 = vmatpush.bf16.msra.mxu0 %v6214
        %6632 = vmatpush.bf16.msra.mxu0 %v6213
        %6633 = vmatpush.bf16.msra.mxu0 %v6212
        %6634 = vmatmul.bf16.gmra.mxu0 %v6615
        %v6635 = vpop.f32.mrf.mxu0
        %v6636 = vadd.f32 0.0, %v6635
        %v6637 = vpop.f32.mrf.mxu0
        %v6638 = vadd.f32 0.0, %v6637
        %6639 = vmatmul.bf16.gmra.mxu0 %v6618
        %v6640 = vpop.f32.mrf.mxu0
        %v6641 = vadd.f32 0.0, %v6640
        %v6642 = vpop.f32.mrf.mxu0
        %v6643 = vadd.f32 0.0, %v6642
        %6644 = vmatmul.bf16.gmra.mxu0 %v6621
        %v6645 = vpop.f32.mrf.mxu0
        %v6646 = vadd.f32 0.0, %v6645
        %v6647 = vpop.f32.mrf.mxu0
        %v6648 = vadd.f32 0.0, %v6647
        %6649 = vmatmul.bf16.gmra.mxu0 %v6624
        %v6650 = vpop.f32.mrf.mxu0
        %v6651 = vadd.f32 0.0, %v6650
        %v6652 = vpop.f32.mrf.mxu0
        %v6653 = vadd.f32 0.0, %v6652
        %6654 = vdwg.mxu0
        %v6655 = vpack.c.bf16 %v6638, %v6636
        %v6656 = vpack.c.bf16 %v6643, %v6641
        %v6657 = vpack.c.bf16 %v6648, %v6646
        %v6658 = vpack.c.bf16 %v6653, %v6651
        %s6659 = scalar_lea.vmem %s6, 12
        %v6660 = vld [vmem:[%s6659] sm:$0xf]
        %v6662 = vsel %vm6367, %v6655, 0
        %v6665 = vsel %vm6367, %v6656, 0
        %v6668 = vsel %vm6367, %v6657, 0
        %v6671 = vsel %vm6367, %v6658, 0
        %v6674 = vsel %vm6380, %v6660, 0
        %6676 = vmatpush.bf16.msra.mxu0 0
        %6677 = vmatpush.bf16.msra.mxu0 0
        %6678 = vmatpush.bf16.msra.mxu0 0
        %6679 = vmatpush.bf16.msra.mxu0 0
        %6680 = vmatpush.bf16.msra.mxu0 0
        %6681 = vmatpush.bf16.msra.mxu0 0
        %6682 = vmatpush.bf16.msra.mxu0 0
        %6683 = vmatpush.bf16.msra.mxu0 %v6674
        %6684 = vmatmul.bf16.gmra.mxu0 %v6662
        %v6685 = vpop.f32.mrf.mxu0
        %v6686 = vadd.f32 0.0, %v6685
        %v6687 = vpop.f32.mrf.mxu0
        %v6688 = vadd.f32 0.0, %v6687
        %6689 = vmatmul.bf16.gmra.mxu0 %v6665
        %v6690 = vpop.f32.mrf.mxu0
        %v6691 = vadd.f32 0.0, %v6690
        %v6692 = vpop.f32.mrf.mxu0
        %v6693 = vadd.f32 0.0, %v6692
        %6694 = vmatmul.bf16.gmra.mxu0 %v6668
        %v6695 = vpop.f32.mrf.mxu0
        %v6696 = vadd.f32 0.0, %v6695
        %v6697 = vpop.f32.mrf.mxu0
        %v6698 = vadd.f32 0.0, %v6697
        %6699 = vmatmul.bf16.gmra.mxu0 %v6671
        %v6700 = vpop.f32.mrf.mxu0
        %v6701 = vadd.f32 0.0, %v6700
        %v6702 = vpop.f32.mrf.mxu0
        %v6703 = vadd.f32 0.0, %v6702
        %6704 = vdwg.mxu0
        %v6705 = vadd.f32 %v6577, %v6686
        %v6706 = vadd.f32 %v6578, %v6688
        %v6707 = vadd.f32 %v6579, %v6691
        %v6708 = vadd.f32 %v6580, %v6693
        %v6709 = vadd.f32 %v6581, %v6696
        %v6710 = vadd.f32 %v6582, %v6698
        %v6711 = vadd.f32 %v6583, %v6701
        %v6712 = vadd.f32 %v6584, %v6703
        %s6713 = scalar_lea.vmem [#allocation8], 128
        %v6714 = vld [vmem:[%s6713] sm:$0xf]
        %v6715 = vld [vmem:[%s6713 + $0x4] sm:$0xf]
        %v6716 = vld [vmem:[%s6713 + $0x8] sm:$0xf]
        %v6717 = vld [vmem:[%s6713 + $0xc] sm:$0xf]
        %v6718 = vld [vmem:[%s6713 + $0x10] sm:$0xf]
        %v6719 = vld [vmem:[%s6713 + $0x14] sm:$0xf]
        %v6720 = vld [vmem:[%s6713 + $0x18] sm:$0xf]
        %v6721 = vld [vmem:[%s6713 + $0x1c] sm:$0xf]
        %v6730 = vunpack.c.l.b16 %v6714
        %v6731 = vunpack.c.l.b16 %v6715
        %v6732 = vunpack.c.l.b16 %v6716
        %v6733 = vunpack.c.l.b16 %v6717
        %v6734 = vunpack.c.l.b16 %v6718
        %v6735 = vunpack.c.l.b16 %v6719
        %v6736 = vunpack.c.l.b16 %v6720
        %v6737 = vunpack.c.l.b16 %v6721
        %v6738 = vpack.c.b16 %v6731, %v6730
        %v6739 = vpack.c.b16 %v6733, %v6732
        %v6740 = vpack.c.b16 %v6735, %v6734
        %v6741 = vpack.c.b16 %v6737, %v6736
        %v6743 = vsel %vm6244, %v6738, 0
        %v6746 = vsel %vm6244, %v6739, 0
        %v6749 = vsel %vm6244, %v6740, 0
        %v6752 = vsel %vm6244, %v6741, 0
        %6754 = vmatpush.bf16.msra.mxu0 0
        %6755 = vmatpush.bf16.msra.mxu0 0
        %6756 = vmatpush.bf16.msra.mxu0 0
        %6757 = vmatpush.bf16.msra.mxu0 0
        %6758 = vmatpush.bf16.msra.mxu0 %v6215
        %6759 = vmatpush.bf16.msra.mxu0 %v6214
        %6760 = vmatpush.bf16.msra.mxu0 %v6213
        %6761 = vmatpush.bf16.msra.mxu0 %v6212
        %6762 = vmatmul.bf16.gmra.mxu0 %v6743
        %v6763 = vpop.f32.mrf.mxu0
        %v6764 = vadd.f32 0.0, %v6763
        %v6765 = vpop.f32.mrf.mxu0
        %v6766 = vadd.f32 0.0, %v6765
        %6767 = vmatmul.bf16.gmra.mxu0 %v6746
        %v6768 = vpop.f32.mrf.mxu0
        %v6769 = vadd.f32 0.0, %v6768
        %v6770 = vpop.f32.mrf.mxu0
        %v6771 = vadd.f32 0.0, %v6770
        %6772 = vmatmul.bf16.gmra.mxu0 %v6749
        %v6773 = vpop.f32.mrf.mxu0
        %v6774 = vadd.f32 0.0, %v6773
        %v6775 = vpop.f32.mrf.mxu0
        %v6776 = vadd.f32 0.0, %v6775
        %6777 = vmatmul.bf16.gmra.mxu0 %v6752
        %v6778 = vpop.f32.mrf.mxu0
        %v6779 = vadd.f32 0.0, %v6778
        %v6780 = vpop.f32.mrf.mxu0
        %v6781 = vadd.f32 0.0, %v6780
        %6782 = vdwg.mxu0
        %v6783 = vpack.c.bf16 %v6766, %v6764
        %v6784 = vpack.c.bf16 %v6771, %v6769
        %v6785 = vpack.c.bf16 %v6776, %v6774
        %v6786 = vpack.c.bf16 %v6781, %v6779
        %s6787 = scalar_lea.vmem %s6, 16
        %v6788 = vld [vmem:[%s6787] sm:$0xf]
        %v6790 = vsel %vm6367, %v6783, 0
        %v6793 = vsel %vm6367, %v6784, 0
        %v6796 = vsel %vm6367, %v6785, 0
        %v6799 = vsel %vm6367, %v6786, 0
        %v6802 = vsel %vm6380, %v6788, 0
        %6804 = vmatpush.bf16.msra.mxu0 0
        %6805 = vmatpush.bf16.msra.mxu0 0
        %6806 = vmatpush.bf16.msra.mxu0 0
        %6807 = vmatpush.bf16.msra.mxu0 0
        %6808 = vmatpush.bf16.msra.mxu0 0
        %6809 = vmatpush.bf16.msra.mxu0 0
        %6810 = vmatpush.bf16.msra.mxu0 0
        %6811 = vmatpush.bf16.msra.mxu0 %v6802
        %6812 = vmatmul.bf16.gmra.mxu0 %v6790
        %v6813 = vpop.f32.mrf.mxu0
        %v6814 = vadd.f32 0.0, %v6813
        %v6815 = vpop.f32.mrf.mxu0
        %v6816 = vadd.f32 0.0, %v6815
        %6817 = vmatmul.bf16.gmra.mxu0 %v6793
        %v6818 = vpop.f32.mrf.mxu0
        %v6819 = vadd.f32 0.0, %v6818
        %v6820 = vpop.f32.mrf.mxu0
        %v6821 = vadd.f32 0.0, %v6820
        %6822 = vmatmul.bf16.gmra.mxu0 %v6796
        %v6823 = vpop.f32.mrf.mxu0
        %v6824 = vadd.f32 0.0, %v6823
        %v6825 = vpop.f32.mrf.mxu0
        %v6826 = vadd.f32 0.0, %v6825
        %6827 = vmatmul.bf16.gmra.mxu0 %v6799
        %v6828 = vpop.f32.mrf.mxu0
        %v6829 = vadd.f32 0.0, %v6828
        %v6830 = vpop.f32.mrf.mxu0
        %v6831 = vadd.f32 0.0, %v6830
        %6832 = vdwg.mxu0
        %v6833 = vadd.f32 %v6705, %v6814
        %v6834 = vadd.f32 %v6706, %v6816
        %v6835 = vadd.f32 %v6707, %v6819
        %v6836 = vadd.f32 %v6708, %v6821
        %v6837 = vadd.f32 %v6709, %v6824
        %v6838 = vadd.f32 %v6710, %v6826
        %v6839 = vadd.f32 %v6711, %v6829
        %v6840 = vadd.f32 %v6712, %v6831
        %s6841 = scalar_lea.vmem [#allocation8], 160
        %v6842 = vld [vmem:[%s6841] sm:$0xf]
        %v6843 = vld [vmem:[%s6841 + $0x4] sm:$0xf]
        %v6844 = vld [vmem:[%s6841 + $0x8] sm:$0xf]
        %v6845 = vld [vmem:[%s6841 + $0xc] sm:$0xf]
        %v6846 = vld [vmem:[%s6841 + $0x10] sm:$0xf]
        %v6847 = vld [vmem:[%s6841 + $0x14] sm:$0xf]
        %v6848 = vld [vmem:[%s6841 + $0x18] sm:$0xf]
        %v6849 = vld [vmem:[%s6841 + $0x1c] sm:$0xf]
        %v6858 = vunpack.c.l.b16 %v6842
        %v6859 = vunpack.c.l.b16 %v6843
        %v6860 = vunpack.c.l.b16 %v6844
        %v6861 = vunpack.c.l.b16 %v6845
        %v6862 = vunpack.c.l.b16 %v6846
        %v6863 = vunpack.c.l.b16 %v6847
        %v6864 = vunpack.c.l.b16 %v6848
        %v6865 = vunpack.c.l.b16 %v6849
        %v6866 = vpack.c.b16 %v6859, %v6858
        %v6867 = vpack.c.b16 %v6861, %v6860
        %v6868 = vpack.c.b16 %v6863, %v6862
        %v6869 = vpack.c.b16 %v6865, %v6864
        %v6871 = vsel %vm6244, %v6866, 0
        %v6874 = vsel %vm6244, %v6867, 0
        %v6877 = vsel %vm6244, %v6868, 0
        %v6880 = vsel %vm6244, %v6869, 0
        %6882 = vmatpush.bf16.msra.mxu0 0
        %6883 = vmatpush.bf16.msra.mxu0 0
        %6884 = vmatpush.bf16.msra.mxu0 0
        %6885 = vmatpush.bf16.msra.mxu0 0
        %6886 = vmatpush.bf16.msra.mxu0 %v6215
        %6887 = vmatpush.bf16.msra.mxu0 %v6214
        %6888 = vmatpush.bf16.msra.mxu0 %v6213
        %6889 = vmatpush.bf16.msra.mxu0 %v6212
        %6890 = vmatmul.bf16.gmra.mxu0 %v6871
        %v6891 = vpop.f32.mrf.mxu0
        %v6892 = vadd.f32 0.0, %v6891
        %v6893 = vpop.f32.mrf.mxu0
        %v6894 = vadd.f32 0.0, %v6893
        %6895 = vmatmul.bf16.gmra.mxu0 %v6874
        %v6896 = vpop.f32.mrf.mxu0
        %v6897 = vadd.f32 0.0, %v6896
        %v6898 = vpop.f32.mrf.mxu0
        %v6899 = vadd.f32 0.0, %v6898
        %6900 = vmatmul.bf16.gmra.mxu0 %v6877
        %v6901 = vpop.f32.mrf.mxu0
        %v6902 = vadd.f32 0.0, %v6901
        %v6903 = vpop.f32.mrf.mxu0
        %v6904 = vadd.f32 0.0, %v6903
        %6905 = vmatmul.bf16.gmra.mxu0 %v6880
        %v6906 = vpop.f32.mrf.mxu0
        %v6907 = vadd.f32 0.0, %v6906
        %v6908 = vpop.f32.mrf.mxu0
        %v6909 = vadd.f32 0.0, %v6908
        %6910 = vdwg.mxu0
        %v6911 = vpack.c.bf16 %v6894, %v6892
        %v6912 = vpack.c.bf16 %v6899, %v6897
        %v6913 = vpack.c.bf16 %v6904, %v6902
        %v6914 = vpack.c.bf16 %v6909, %v6907
        %s6915 = scalar_lea.vmem %s6, 20
        %v6916 = vld [vmem:[%s6915] sm:$0xf]
        %v6918 = vsel %vm6367, %v6911, 0
        %v6921 = vsel %vm6367, %v6912, 0
        %v6924 = vsel %vm6367, %v6913, 0
        %v6927 = vsel %vm6367, %v6914, 0
        %v6930 = vsel %vm6380, %v6916, 0
        %6932 = vmatpush.bf16.msra.mxu0 0
        %6933 = vmatpush.bf16.msra.mxu0 0
        %6934 = vmatpush.bf16.msra.mxu0 0
        %6935 = vmatpush.bf16.msra.mxu0 0
        %6936 = vmatpush.bf16.msra.mxu0 0
        %6937 = vmatpush.bf16.msra.mxu0 0
        %6938 = vmatpush.bf16.msra.mxu0 0
        %6939 = vmatpush.bf16.msra.mxu0 %v6930
        %6940 = vmatmul.bf16.gmra.mxu0 %v6918
        %v6941 = vpop.f32.mrf.mxu0
        %v6942 = vadd.f32 0.0, %v6941
        %v6943 = vpop.f32.mrf.mxu0
        %v6944 = vadd.f32 0.0, %v6943
        %6945 = vmatmul.bf16.gmra.mxu0 %v6921
        %v6946 = vpop.f32.mrf.mxu0
        %v6947 = vadd.f32 0.0, %v6946
        %v6948 = vpop.f32.mrf.mxu0
        %v6949 = vadd.f32 0.0, %v6948
        %6950 = vmatmul.bf16.gmra.mxu0 %v6924
        %v6951 = vpop.f32.mrf.mxu0
        %v6952 = vadd.f32 0.0, %v6951
        %v6953 = vpop.f32.mrf.mxu0
        %v6954 = vadd.f32 0.0, %v6953
        %6955 = vmatmul.bf16.gmra.mxu0 %v6927
        %v6956 = vpop.f32.mrf.mxu0
        %v6957 = vadd.f32 0.0, %v6956
        %v6958 = vpop.f32.mrf.mxu0
        %v6959 = vadd.f32 0.0, %v6958
        %6960 = vdwg.mxu0
        %v6961 = vadd.f32 %v6833, %v6942
        %v6962 = vadd.f32 %v6834, %v6944
        %v6963 = vadd.f32 %v6835, %v6947
        %v6964 = vadd.f32 %v6836, %v6949
        %v6965 = vadd.f32 %v6837, %v6952
        %v6966 = vadd.f32 %v6838, %v6954
        %v6967 = vadd.f32 %v6839, %v6957
        %v6968 = vadd.f32 %v6840, %v6959
        %s6969 = scalar_lea.vmem [#allocation8], 192
        %v6970 = vld [vmem:[%s6969] sm:$0xf]
        %v6971 = vld [vmem:[%s6969 + $0x4] sm:$0xf]
        %v6972 = vld [vmem:[%s6969 + $0x8] sm:$0xf]
        %v6973 = vld [vmem:[%s6969 + $0xc] sm:$0xf]
        %v6974 = vld [vmem:[%s6969 + $0x10] sm:$0xf]
        %v6975 = vld [vmem:[%s6969 + $0x14] sm:$0xf]
        %v6976 = vld [vmem:[%s6969 + $0x18] sm:$0xf]
        %v6977 = vld [vmem:[%s6969 + $0x1c] sm:$0xf]
        %v6986 = vunpack.c.l.b16 %v6970
        %v6987 = vunpack.c.l.b16 %v6971
        %v6988 = vunpack.c.l.b16 %v6972
        %v6989 = vunpack.c.l.b16 %v6973
        %v6990 = vunpack.c.l.b16 %v6974
        %v6991 = vunpack.c.l.b16 %v6975
        %v6992 = vunpack.c.l.b16 %v6976
        %v6993 = vunpack.c.l.b16 %v6977
        %v6994 = vpack.c.b16 %v6987, %v6986
        %v6995 = vpack.c.b16 %v6989, %v6988
        %v6996 = vpack.c.b16 %v6991, %v6990
        %v6997 = vpack.c.b16 %v6993, %v6992
        %v6999 = vsel %vm6244, %v6994, 0
        %v7002 = vsel %vm6244, %v6995, 0
        %v7005 = vsel %vm6244, %v6996, 0
        %v7008 = vsel %vm6244, %v6997, 0
        %7010 = vmatpush.bf16.msra.mxu0 0
        %7011 = vmatpush.bf16.msra.mxu0 0
        %7012 = vmatpush.bf16.msra.mxu0 0
        %7013 = vmatpush.bf16.msra.mxu0 0
        %7014 = vmatpush.bf16.msra.mxu0 %v6215
        %7015 = vmatpush.bf16.msra.mxu0 %v6214
        %7016 = vmatpush.bf16.msra.mxu0 %v6213
        %7017 = vmatpush.bf16.msra.mxu0 %v6212
        %7018 = vmatmul.bf16.gmra.mxu0 %v6999
        %v7019 = vpop.f32.mrf.mxu0
        %v7020 = vadd.f32 0.0, %v7019
        %v7021 = vpop.f32.mrf.mxu0
        %v7022 = vadd.f32 0.0, %v7021
        %7023 = vmatmul.bf16.gmra.mxu0 %v7002
        %v7024 = vpop.f32.mrf.mxu0
        %v7025 = vadd.f32 0.0, %v7024
        %v7026 = vpop.f32.mrf.mxu0
        %v7027 = vadd.f32 0.0, %v7026
        %7028 = vmatmul.bf16.gmra.mxu0 %v7005
        %v7029 = vpop.f32.mrf.mxu0
        %v7030 = vadd.f32 0.0, %v7029
        %v7031 = vpop.f32.mrf.mxu0
        %v7032 = vadd.f32 0.0, %v7031
        %7033 = vmatmul.bf16.gmra.mxu0 %v7008
        %v7034 = vpop.f32.mrf.mxu0
        %v7035 = vadd.f32 0.0, %v7034
        %v7036 = vpop.f32.mrf.mxu0
        %v7037 = vadd.f32 0.0, %v7036
        %7038 = vdwg.mxu0
        %v7039 = vpack.c.bf16 %v7022, %v7020
        %v7040 = vpack.c.bf16 %v7027, %v7025
        %v7041 = vpack.c.bf16 %v7032, %v7030
        %v7042 = vpack.c.bf16 %v7037, %v7035
        %s7043 = scalar_lea.vmem %s6, 24
        %v7044 = vld [vmem:[%s7043] sm:$0xf]
        %v7046 = vsel %vm6367, %v7039, 0
        %v7049 = vsel %vm6367, %v7040, 0
        %v7052 = vsel %vm6367, %v7041, 0
        %v7055 = vsel %vm6367, %v7042, 0
        %v7058 = vsel %vm6380, %v7044, 0
        %7060 = vmatpush.bf16.msra.mxu0 0
        %7061 = vmatpush.bf16.msra.mxu0 0
        %7062 = vmatpush.bf16.msra.mxu0 0
        %7063 = vmatpush.bf16.msra.mxu0 0
        %7064 = vmatpush.bf16.msra.mxu0 0
        %7065 = vmatpush.bf16.msra.mxu0 0
        %7066 = vmatpush.bf16.msra.mxu0 0
        %7067 = vmatpush.bf16.msra.mxu0 %v7058
        %7068 = vmatmul.bf16.gmra.mxu0 %v7046
        %v7069 = vpop.f32.mrf.mxu0
        %v7070 = vadd.f32 0.0, %v7069
        %v7071 = vpop.f32.mrf.mxu0
        %v7072 = vadd.f32 0.0, %v7071
        %7073 = vmatmul.bf16.gmra.mxu0 %v7049
        %v7074 = vpop.f32.mrf.mxu0
        %v7075 = vadd.f32 0.0, %v7074
        %v7076 = vpop.f32.mrf.mxu0
        %v7077 = vadd.f32 0.0, %v7076
        %7078 = vmatmul.bf16.gmra.mxu0 %v7052
        %v7079 = vpop.f32.mrf.mxu0
        %v7080 = vadd.f32 0.0, %v7079
        %v7081 = vpop.f32.mrf.mxu0
        %v7082 = vadd.f32 0.0, %v7081
        %7083 = vmatmul.bf16.gmra.mxu0 %v7055
        %v7084 = vpop.f32.mrf.mxu0
        %v7085 = vadd.f32 0.0, %v7084
        %v7086 = vpop.f32.mrf.mxu0
        %v7087 = vadd.f32 0.0, %v7086
        %7088 = vdwg.mxu0
        %v7089 = vadd.f32 %v6961, %v7070
        %v7090 = vadd.f32 %v6962, %v7072
        %v7091 = vadd.f32 %v6963, %v7075
        %v7092 = vadd.f32 %v6964, %v7077
        %v7093 = vadd.f32 %v6965, %v7080
        %v7094 = vadd.f32 %v6966, %v7082
        %v7095 = vadd.f32 %v6967, %v7085
        %v7096 = vadd.f32 %v6968, %v7087
        %s7097 = scalar_lea.vmem [#allocation8], 224
        %v7098 = vld [vmem:[%s7097] sm:$0xf]
        %v7099 = vld [vmem:[%s7097 + $0x4] sm:$0xf]
        %v7100 = vld [vmem:[%s7097 + $0x8] sm:$0xf]
        %v7101 = vld [vmem:[%s7097 + $0xc] sm:$0xf]
        %v7102 = vld [vmem:[%s7097 + $0x10] sm:$0xf]
        %v7103 = vld [vmem:[%s7097 + $0x14] sm:$0xf]
        %v7104 = vld [vmem:[%s7097 + $0x18] sm:$0xf]
        %v7105 = vld [vmem:[%s7097 + $0x1c] sm:$0xf]
        %v7114 = vunpack.c.l.b16 %v7098
        %v7115 = vunpack.c.l.b16 %v7099
        %v7116 = vunpack.c.l.b16 %v7100
        %v7117 = vunpack.c.l.b16 %v7101
        %v7118 = vunpack.c.l.b16 %v7102
        %v7119 = vunpack.c.l.b16 %v7103
        %v7120 = vunpack.c.l.b16 %v7104
        %v7121 = vunpack.c.l.b16 %v7105
        %v7122 = vpack.c.b16 %v7115, %v7114
        %v7123 = vpack.c.b16 %v7117, %v7116
        %v7124 = vpack.c.b16 %v7119, %v7118
        %v7125 = vpack.c.b16 %v7121, %v7120
        %v7127 = vsel %vm6244, %v7122, 0
        %v7130 = vsel %vm6244, %v7123, 0
        %v7133 = vsel %vm6244, %v7124, 0
        %v7136 = vsel %vm6244, %v7125, 0
        %7138 = vmatpush.bf16.msra.mxu0 0
        %7139 = vmatpush.bf16.msra.mxu0 0
        %7140 = vmatpush.bf16.msra.mxu0 0
        %7141 = vmatpush.bf16.msra.mxu0 0
        %7142 = vmatpush.bf16.msra.mxu0 %v6215
        %7143 = vmatpush.bf16.msra.mxu0 %v6214
        %7144 = vmatpush.bf16.msra.mxu0 %v6213
        %7145 = vmatpush.bf16.msra.mxu0 %v6212
        %7146 = vmatmul.bf16.gmra.mxu0 %v7127
        %v7147 = vpop.f32.mrf.mxu0
        %v7148 = vadd.f32 0.0, %v7147
        %v7149 = vpop.f32.mrf.mxu0
        %v7150 = vadd.f32 0.0, %v7149
        %7151 = vmatmul.bf16.gmra.mxu0 %v7130
        %v7152 = vpop.f32.mrf.mxu0
        %v7153 = vadd.f32 0.0, %v7152
        %v7154 = vpop.f32.mrf.mxu0
        %v7155 = vadd.f32 0.0, %v7154
        %7156 = vmatmul.bf16.gmra.mxu0 %v7133
        %v7157 = vpop.f32.mrf.mxu0
        %v7158 = vadd.f32 0.0, %v7157
        %v7159 = vpop.f32.mrf.mxu0
        %v7160 = vadd.f32 0.0, %v7159
        %7161 = vmatmul.bf16.gmra.mxu0 %v7136
        %v7162 = vpop.f32.mrf.mxu0
        %v7163 = vadd.f32 0.0, %v7162
        %v7164 = vpop.f32.mrf.mxu0
        %v7165 = vadd.f32 0.0, %v7164
        %7166 = vdwg.mxu0
        %v7167 = vpack.c.bf16 %v7150, %v7148
        %v7168 = vpack.c.bf16 %v7155, %v7153
        %v7169 = vpack.c.bf16 %v7160, %v7158
        %v7170 = vpack.c.bf16 %v7165, %v7163
        %s7171 = scalar_lea.vmem %s6, 28
        %v7172 = vld [vmem:[%s7171] sm:$0xf]
        %v7174 = vsel %vm6367, %v7167, 0
        %v7177 = vsel %vm6367, %v7168, 0
        %v7180 = vsel %vm6367, %v7169, 0
        %v7183 = vsel %vm6367, %v7170, 0
        %v7186 = vsel %vm6380, %v7172, 0
        %7188 = vmatpush.bf16.msra.mxu0 0
        %7189 = vmatpush.bf16.msra.mxu0 0
        %7190 = vmatpush.bf16.msra.mxu0 0
        %7191 = vmatpush.bf16.msra.mxu0 0
        %7192 = vmatpush.bf16.msra.mxu0 0
        %7193 = vmatpush.bf16.msra.mxu0 0
        %7194 = vmatpush.bf16.msra.mxu0 0
        %7195 = vmatpush.bf16.msra.mxu0 %v7186
        %7196 = vmatmul.bf16.gmra.mxu0 %v7174
        %v7197 = vpop.f32.mrf.mxu0
        %v7198 = vadd.f32 0.0, %v7197
        %v7199 = vpop.f32.mrf.mxu0
        %v7200 = vadd.f32 0.0, %v7199
        %7201 = vmatmul.bf16.gmra.mxu0 %v7177
        %v7202 = vpop.f32.mrf.mxu0
        %v7203 = vadd.f32 0.0, %v7202
        %v7204 = vpop.f32.mrf.mxu0
        %v7205 = vadd.f32 0.0, %v7204
        %7206 = vmatmul.bf16.gmra.mxu0 %v7180
        %v7207 = vpop.f32.mrf.mxu0
        %v7208 = vadd.f32 0.0, %v7207
        %v7209 = vpop.f32.mrf.mxu0
        %v7210 = vadd.f32 0.0, %v7209
        %7211 = vmatmul.bf16.gmra.mxu0 %v7183
        %v7212 = vpop.f32.mrf.mxu0
        %v7213 = vadd.f32 0.0, %v7212
        %v7214 = vpop.f32.mrf.mxu0
        %v7215 = vadd.f32 0.0, %v7214
        %7216 = vdwg.mxu0
        %v7217 = vadd.f32 %v7089, %v7198
        %v7218 = vadd.f32 %v7090, %v7200
        %v7219 = vadd.f32 %v7091, %v7203
        %v7220 = vadd.f32 %v7092, %v7205
        %v7221 = vadd.f32 %v7093, %v7208
        %v7222 = vadd.f32 %v7094, %v7210
        %v7223 = vadd.f32 %v7095, %v7213
        %v7224 = vadd.f32 %v7096, %v7215
        %s7225 = scalar_lea.vmem [#allocation8], 256
        %v7226 = vld [vmem:[%s7225] sm:$0xf]
        %v7227 = vld [vmem:[%s7225 + $0x4] sm:$0xf]
        %v7228 = vld [vmem:[%s7225 + $0x8] sm:$0xf]
        %v7229 = vld [vmem:[%s7225 + $0xc] sm:$0xf]
        %v7230 = vld [vmem:[%s7225 + $0x10] sm:$0xf]
        %v7231 = vld [vmem:[%s7225 + $0x14] sm:$0xf]
        %v7232 = vld [vmem:[%s7225 + $0x18] sm:$0xf]
        %v7233 = vld [vmem:[%s7225 + $0x1c] sm:$0xf]
        %v7242 = vunpack.c.l.b16 %v7226
        %v7243 = vunpack.c.l.b16 %v7227
        %v7244 = vunpack.c.l.b16 %v7228
        %v7245 = vunpack.c.l.b16 %v7229
        %v7246 = vunpack.c.l.b16 %v7230
        %v7247 = vunpack.c.l.b16 %v7231
        %v7248 = vunpack.c.l.b16 %v7232
        %v7249 = vunpack.c.l.b16 %v7233
        %v7250 = vpack.c.b16 %v7243, %v7242
        %v7251 = vpack.c.b16 %v7245, %v7244
        %v7252 = vpack.c.b16 %v7247, %v7246
        %v7253 = vpack.c.b16 %v7249, %v7248
        %v7255 = vsel %vm6244, %v7250, 0
        %v7258 = vsel %vm6244, %v7251, 0
        %v7261 = vsel %vm6244, %v7252, 0
        %v7264 = vsel %vm6244, %v7253, 0
        %7266 = vmatpush.bf16.msra.mxu0 0
        %7267 = vmatpush.bf16.msra.mxu0 0
        %7268 = vmatpush.bf16.msra.mxu0 0
        %7269 = vmatpush.bf16.msra.mxu0 0
        %7270 = vmatpush.bf16.msra.mxu0 %v6215
        %7271 = vmatpush.bf16.msra.mxu0 %v6214
        %7272 = vmatpush.bf16.msra.mxu0 %v6213
        %7273 = vmatpush.bf16.msra.mxu0 %v6212
        %7274 = vmatmul.bf16.gmra.mxu0 %v7255
        %v7275 = vpop.f32.mrf.mxu0
        %v7276 = vadd.f32 0.0, %v7275
        %v7277 = vpop.f32.mrf.mxu0
        %v7278 = vadd.f32 0.0, %v7277
        %7279 = vmatmul.bf16.gmra.mxu0 %v7258
        %v7280 = vpop.f32.mrf.mxu0
        %v7281 = vadd.f32 0.0, %v7280
        %v7282 = vpop.f32.mrf.mxu0
        %v7283 = vadd.f32 0.0, %v7282
        %7284 = vmatmul.bf16.gmra.mxu0 %v7261
        %v7285 = vpop.f32.mrf.mxu0
        %v7286 = vadd.f32 0.0, %v7285
        %v7287 = vpop.f32.mrf.mxu0
        %v7288 = vadd.f32 0.0, %v7287
        %7289 = vmatmul.bf16.gmra.mxu0 %v7264
        %v7290 = vpop.f32.mrf.mxu0
        %v7291 = vadd.f32 0.0, %v7290
        %v7292 = vpop.f32.mrf.mxu0
        %v7293 = vadd.f32 0.0, %v7292
        %7294 = vdwg.mxu0
        %v7295 = vpack.c.bf16 %v7278, %v7276
        %v7296 = vpack.c.bf16 %v7283, %v7281
        %v7297 = vpack.c.bf16 %v7288, %v7286
        %v7298 = vpack.c.bf16 %v7293, %v7291
        %s7299 = scalar_lea.vmem %s6, 32
        %v7300 = vld [vmem:[%s7299] sm:$0xf]
        %v7302 = vsel %vm6367, %v7295, 0
        %v7305 = vsel %vm6367, %v7296, 0
        %v7308 = vsel %vm6367, %v7297, 0
        %v7311 = vsel %vm6367, %v7298, 0
        %v7314 = vsel %vm6380, %v7300, 0
        %7316 = vmatpush.bf16.msra.mxu0 0
        %7317 = vmatpush.bf16.msra.mxu0 0
        %7318 = vmatpush.bf16.msra.mxu0 0
        %7319 = vmatpush.bf16.msra.mxu0 0
        %7320 = vmatpush.bf16.msra.mxu0 0
        %7321 = vmatpush.bf16.msra.mxu0 0
        %7322 = vmatpush.bf16.msra.mxu0 0
        %7323 = vmatpush.bf16.msra.mxu0 %v7314
        %7324 = vmatmul.bf16.gmra.mxu0 %v7302
        %v7325 = vpop.f32.mrf.mxu0
        %v7326 = vadd.f32 0.0, %v7325
        %v7327 = vpop.f32.mrf.mxu0
        %v7328 = vadd.f32 0.0, %v7327
        %7329 = vmatmul.bf16.gmra.mxu0 %v7305
        %v7330 = vpop.f32.mrf.mxu0
        %v7331 = vadd.f32 0.0, %v7330
        %v7332 = vpop.f32.mrf.mxu0
        %v7333 = vadd.f32 0.0, %v7332
        %7334 = vmatmul.bf16.gmra.mxu0 %v7308
        %v7335 = vpop.f32.mrf.mxu0
        %v7336 = vadd.f32 0.0, %v7335
        %v7337 = vpop.f32.mrf.mxu0
        %v7338 = vadd.f32 0.0, %v7337
        %7339 = vmatmul.bf16.gmra.mxu0 %v7311
        %v7340 = vpop.f32.mrf.mxu0
        %v7341 = vadd.f32 0.0, %v7340
        %v7342 = vpop.f32.mrf.mxu0
        %v7343 = vadd.f32 0.0, %v7342
        %7344 = vdwg.mxu0
        %v7345 = vadd.f32 %v7217, %v7326
        %v7346 = vadd.f32 %v7218, %v7328
        %v7347 = vadd.f32 %v7219, %v7331
        %v7348 = vadd.f32 %v7220, %v7333
        %v7349 = vadd.f32 %v7221, %v7336
        %v7350 = vadd.f32 %v7222, %v7338
        %v7351 = vadd.f32 %v7223, %v7341
        %v7352 = vadd.f32 %v7224, %v7343
        %v7353 = vld [vmem:[#allocation10] sm:$0x1]
        %v7355 = vperm.slane %v7353, 0
        %v7357 = vadd.f32 %v7345, %v7355
        %v7358 = vadd.f32 %v7346, %v7355
        %v7359 = vadd.f32 %v7347, %v7355
        %v7360 = vadd.f32 %v7348, %v7355
        %v7361 = vadd.f32 %v7349, %v7355
        %v7362 = vadd.f32 %v7350, %v7355
        %v7363 = vadd.f32 %v7351, %v7355
        %v7364 = vadd.f32 %v7352, %v7355
        %v7365 = vmax.f32 %v7357, 0.0
        %v7366 = vmax.f32 %v7358, 0.0
        %v7367 = vmax.f32 %v7359, 0.0
        %v7368 = vmax.f32 %v7360, 0.0
        %v7369 = vmax.f32 %v7361, 0.0
        %v7370 = vmax.f32 %v7362, 0.0
        %v7371 = vmax.f32 %v7363, 0.0
        %v7372 = vmax.f32 %v7364, 0.0
        %v7373 = vpack.c.bf16 %v7366, %v7365
        %v7374 = vpack.c.bf16 %v7368, %v7367
        %v7375 = vpack.c.bf16 %v7370, %v7369
        %v7376 = vpack.c.bf16 %v7372, %v7371
        %v7377 = vld [vmem:[#allocation11] sm:$0xf]
        %v7378 = vld [vmem:[#allocation11 + $0x4] sm:$0xf]
        %v7381 = vunpack.c.l.b16 %v7377
        %v7382 = vunpack.c.l.b16 %v7378
        %v7383 = vpack.c.b16 %v7382, %v7381
        %v7385 = vsel %vm6244, %v7383, 0
        %7387 = vmatpush.bf16.msra.mxu0 0
        %7388 = vmatpush.bf16.msra.mxu0 0
        %7389 = vmatpush.bf16.msra.mxu0 0
        %7390 = vmatpush.bf16.msra.mxu0 0
        %7391 = vmatpush.bf16.msra.mxu0 %v7376
        %7392 = vmatpush.bf16.msra.mxu0 %v7375
        %7393 = vmatpush.bf16.msra.mxu0 %v7374
        %7394 = vmatpush.bf16.msra.mxu0 %v7373
        %7395 = vmatmul.bf16.gmra.mxu0 %v7385
        %v7396 = vpop.f32.mrf.mxu0
        %v7397 = vadd.f32 0.0, %v7396
        %v7398 = vpop.f32.mrf.mxu0
        %v7399 = vadd.f32 0.0, %v7398
        %7400 = vdwg.mxu0
        %s7401 = scalar_lea.vmem [#allocation11], 8
        %v7402 = vld [vmem:[%s7401] sm:$0xf]
        %v7403 = vld [vmem:[%s7401 + $0x4] sm:$0xf]
        %v7406 = vunpack.c.l.b16 %v7402
        %v7407 = vunpack.c.l.b16 %v7403
        %v7408 = vpack.c.b16 %v7407, %v7406
        %v7410 = vsel %vm6244, %v7408, 0
        %7412 = vmatpush.bf16.msra.mxu0 0
        %7413 = vmatpush.bf16.msra.mxu0 0
        %7414 = vmatpush.bf16.msra.mxu0 0
        %7415 = vmatpush.bf16.msra.mxu0 0
        %7416 = vmatpush.bf16.msra.mxu0 %v7376
        %7417 = vmatpush.bf16.msra.mxu0 %v7375
        %7418 = vmatpush.bf16.msra.mxu0 %v7374
        %7419 = vmatpush.bf16.msra.mxu0 %v7373
        %7420 = vmatmul.bf16.gmra.mxu0 %v7410
        %v7421 = vpop.f32.mrf.mxu0
        %v7422 = vadd.f32 0.0, %v7421
        %v7423 = vpop.f32.mrf.mxu0
        %v7424 = vadd.f32 0.0, %v7423
        %7425 = vdwg.mxu0
        %v7426 = vmax.f32 %v7397, %v7422
        %v7427 = vmax.f32 %v7399, %v7424
        %s7428 = scalar_lea.vmem [#allocation11], 16
        %v7429 = vld [vmem:[%s7428] sm:$0xf]
        %v7430 = vld [vmem:[%s7428 + $0x4] sm:$0xf]
        %v7433 = vunpack.c.l.b16 %v7429
        %v7434 = vunpack.c.l.b16 %v7430
        %v7435 = vpack.c.b16 %v7434, %v7433
        %v7437 = vsel %vm6244, %v7435, 0
        %7439 = vmatpush.bf16.msra.mxu0 0
        %7440 = vmatpush.bf16.msra.mxu0 0
        %7441 = vmatpush.bf16.msra.mxu0 0
        %7442 = vmatpush.bf16.msra.mxu0 0
        %7443 = vmatpush.bf16.msra.mxu0 %v7376
        %7444 = vmatpush.bf16.msra.mxu0 %v7375
        %7445 = vmatpush.bf16.msra.mxu0 %v7374
        %7446 = vmatpush.bf16.msra.mxu0 %v7373
        %7447 = vmatmul.bf16.gmra.mxu0 %v7437
        %v7448 = vpop.f32.mrf.mxu0
        %v7449 = vadd.f32 0.0, %v7448
        %v7450 = vpop.f32.mrf.mxu0
        %v7451 = vadd.f32 0.0, %v7450
        %7452 = vdwg.mxu0
        %v7453 = vmax.f32 %v7426, %v7449
        %v7454 = vmax.f32 %v7427, %v7451
        %s7455 = scalar_lea.vmem [#allocation11], 24
        %v7456 = vld [vmem:[%s7455] sm:$0xf]
        %v7457 = vld [vmem:[%s7455 + $0x4] sm:$0xf]
        %v7460 = vunpack.c.l.b16 %v7456
        %v7461 = vunpack.c.l.b16 %v7457
        %v7462 = vpack.c.b16 %v7461, %v7460
        %v7464 = vsel %vm6244, %v7462, 0
        %7466 = vmatpush.bf16.msra.mxu0 0
        %7467 = vmatpush.bf16.msra.mxu0 0
        %7468 = vmatpush.bf16.msra.mxu0 0
        %7469 = vmatpush.bf16.msra.mxu0 0
        %7470 = vmatpush.bf16.msra.mxu0 %v7376
        %7471 = vmatpush.bf16.msra.mxu0 %v7375
        %7472 = vmatpush.bf16.msra.mxu0 %v7374
        %7473 = vmatpush.bf16.msra.mxu0 %v7373
        %7474 = vmatmul.bf16.gmra.mxu0 %v7464
        %v7475 = vpop.f32.mrf.mxu0
        %v7476 = vadd.f32 0.0, %v7475
        %v7477 = vpop.f32.mrf.mxu0
        %v7478 = vadd.f32 0.0, %v7477
        %7479 = vdwg.mxu0
        %v7480 = vmax.f32 %v7453, %v7476
        %v7481 = vmax.f32 %v7454, %v7478
        %v7482 = vpack.c.bf16 %v7480, %v7480
        %v7483 = vpack.c.bf16 %v7481, %v7481
        %v7484 = vld [vmem:[%s9] sm:$0xf]
        %v7485 = vld [vmem:[%s9 + $0x4] sm:$0xf]
        %s7486 = scalar_lea.vmem %s9, 8
        %v7487 = vld [vmem:[%s7486] sm:$0xf]
        %v7488 = vld [vmem:[%s7486 + $0x4] sm:$0xf]
        %v7490 = vunpack.c.l.b16 %v7482
        %v7491 = vpack.c.b16 %v7490, %v7490
        %v7493 = vshrl.u32 %v7491, 16
        %v7497 = vunpack.c.l.b16 %v7487
        %v7498 = vunpack.c.l.b16 %v7488
        %v7499 = vpack.c.b16 %v7498, %v7497
        %vm7501 = vcmask 130048
        %v7503 = vsel %vm7501, %v7493, 0
        %7505 = vmatpush.bf16.msra.mxu0 0
        %7506 = vmatpush.bf16.msra.mxu0 0
        %7507 = vmatpush.bf16.msra.mxu0 0
        %7508 = vmatpush.bf16.msra.mxu0 0
        %7509 = vmatpush.bf16.msra.mxu0 0
        %7510 = vmatpush.bf16.msra.mxu0 0
        %7511 = vmatpush.bf16.msra.mxu0 0
        %7512 = vmatpush.bf16.msra.mxu0 %v7499
        %7513 = vmatmul.bf16.gmra.mxu0 %v7503
        %v7514 = vpop.f32.mrf.mxu0
        %v7515 = vadd.f32 0.0, %v7514
        %v7516 = vpop.f32.mrf.mxu0
        %7517 = vdwg.mxu0
        %v7520 = vunpack.c.l.b16 %v7484
        %v7521 = vunpack.c.l.b16 %v7485
        %v7522 = vpack.c.b16 %v7521, %v7520
        %v7525 = vsel %vm7501, %v7482, 0
        %7527 = vmatpush.bf16.msra.mxu0 0
        %7528 = vmatpush.bf16.msra.mxu0 0
        %7529 = vmatpush.bf16.msra.mxu0 0
        %7530 = vmatpush.bf16.msra.mxu0 0
        %7531 = vmatpush.bf16.msra.mxu0 0
        %7532 = vmatpush.bf16.msra.mxu0 0
        %7533 = vmatpush.bf16.msra.mxu0 0
        %7534 = vmatpush.bf16.msra.mxu0 %v7522
        %7535 = vmatmul.bf16.gmra.mxu0 %v7525
        %v7536 = vpop.f32.mrf.mxu0
        %v7537 = vadd.f32 %v7515, %v7536
        %v7538 = vpop.f32.mrf.mxu0
        %7539 = vdwg.mxu0
        %s7540 = scalar_lea.vmem %s9, 16
        %v7541 = vld [vmem:[%s7540] sm:$0xf]
        %v7542 = vld [vmem:[%s7540 + $0x4] sm:$0xf]
        %v7543 = vrot.slane %v7491, 1
        %v7546 = vunpack.c.l.b16 %v7541
        %v7547 = vunpack.c.l.b16 %v7542
        %v7548 = vpack.c.b16 %v7547, %v7546
        %v7551 = vsel %vm7501, %v7543, 0
        %7553 = vmatpush.bf16.msra.mxu0 0
        %7554 = vmatpush.bf16.msra.mxu0 0
        %7555 = vmatpush.bf16.msra.mxu0 0
        %7556 = vmatpush.bf16.msra.mxu0 0
        %7557 = vmatpush.bf16.msra.mxu0 0
        %7558 = vmatpush.bf16.msra.mxu0 0
        %7559 = vmatpush.bf16.msra.mxu0 0
        %7560 = vmatpush.bf16.msra.mxu0 %v7548
        %7561 = vmatmul.bf16.gmra.mxu0 %v7551
        %v7562 = vpop.f32.mrf.mxu0
        %v7563 = vadd.f32 0.0, %v7562
        %v7564 = vpop.f32.mrf.mxu0
        %7565 = vdwg.mxu0
        %v7566 = vadd.f32 %v7537, %v7563
        %s7567 = scalar_lea.vmem %s9, 24
        %v7568 = vld [vmem:[%s7567] sm:$0xf]
        %v7569 = vld [vmem:[%s7567 + $0x4] sm:$0xf]
        %v7570 = vrot.slane %v7493, 1
        %v7573 = vunpack.c.l.b16 %v7568
        %v7574 = vunpack.c.l.b16 %v7569
        %v7575 = vpack.c.b16 %v7574, %v7573
        %v7578 = vsel %vm7501, %v7570, 0
        %7580 = vmatpush.bf16.msra.mxu0 0
        %7581 = vmatpush.bf16.msra.mxu0 0
        %7582 = vmatpush.bf16.msra.mxu0 0
        %7583 = vmatpush.bf16.msra.mxu0 0
        %7584 = vmatpush.bf16.msra.mxu0 0
        %7585 = vmatpush.bf16.msra.mxu0 0
        %7586 = vmatpush.bf16.msra.mxu0 0
        %7587 = vmatpush.bf16.msra.mxu0 %v7575
        %7588 = vmatmul.bf16.gmra.mxu0 %v7578
        %v7589 = vpop.f32.mrf.mxu0
        %v7590 = vadd.f32 0.0, %v7589
        %v7591 = vpop.f32.mrf.mxu0
        %7592 = vdwg.mxu0
        %v7593 = vadd.f32 %v7566, %v7590
        %s7594 = scalar_lea.vmem %s9, 32
        %v7595 = vld [vmem:[%s7594] sm:$0xf]
        %v7596 = vld [vmem:[%s7594 + $0x4] sm:$0xf]
        %v7597 = vrot.slane %v7491, 2
        %v7600 = vunpack.c.l.b16 %v7595
        %v7601 = vunpack.c.l.b16 %v7596
        %v7602 = vpack.c.b16 %v7601, %v7600
        %v7605 = vsel %vm7501, %v7597, 0
        %7607 = vmatpush.bf16.msra.mxu0 0
        %7608 = vmatpush.bf16.msra.mxu0 0
        %7609 = vmatpush.bf16.msra.mxu0 0
        %7610 = vmatpush.bf16.msra.mxu0 0
        %7611 = vmatpush.bf16.msra.mxu0 0
        %7612 = vmatpush.bf16.msra.mxu0 0
        %7613 = vmatpush.bf16.msra.mxu0 0
        %7614 = vmatpush.bf16.msra.mxu0 %v7602
        %7615 = vmatmul.bf16.gmra.mxu0 %v7605
        %v7616 = vpop.f32.mrf.mxu0
        %v7617 = vadd.f32 0.0, %v7616
        %v7618 = vpop.f32.mrf.mxu0
        %7619 = vdwg.mxu0
        %v7620 = vadd.f32 %v7593, %v7617
        %s7621 = scalar_lea.vmem %s9, 40
        %v7622 = vld [vmem:[%s7621] sm:$0xf]
        %v7623 = vld [vmem:[%s7621 + $0x4] sm:$0xf]
        %v7624 = vrot.slane %v7493, 2
        %v7627 = vunpack.c.l.b16 %v7622
        %v7628 = vunpack.c.l.b16 %v7623
        %v7629 = vpack.c.b16 %v7628, %v7627
        %v7632 = vsel %vm7501, %v7624, 0
        %7634 = vmatpush.bf16.msra.mxu0 0
        %7635 = vmatpush.bf16.msra.mxu0 0
        %7636 = vmatpush.bf16.msra.mxu0 0
        %7637 = vmatpush.bf16.msra.mxu0 0
        %7638 = vmatpush.bf16.msra.mxu0 0
        %7639 = vmatpush.bf16.msra.mxu0 0
        %7640 = vmatpush.bf16.msra.mxu0 0
        %7641 = vmatpush.bf16.msra.mxu0 %v7629
        %7642 = vmatmul.bf16.gmra.mxu0 %v7632
        %v7643 = vpop.f32.mrf.mxu0
        %v7644 = vadd.f32 0.0, %v7643
        %v7645 = vpop.f32.mrf.mxu0
        %7646 = vdwg.mxu0
        %v7647 = vadd.f32 %v7620, %v7644
        %s7648 = scalar_lea.vmem %s9, 48
        %v7649 = vld [vmem:[%s7648] sm:$0xf]
        %v7650 = vld [vmem:[%s7648 + $0x4] sm:$0xf]
        %v7651 = vrot.slane %v7491, 3
        %v7654 = vunpack.c.l.b16 %v7649
        %v7655 = vunpack.c.l.b16 %v7650
        %v7656 = vpack.c.b16 %v7655, %v7654
        %v7659 = vsel %vm7501, %v7651, 0
        %7661 = vmatpush.bf16.msra.mxu0 0
        %7662 = vmatpush.bf16.msra.mxu0 0
        %7663 = vmatpush.bf16.msra.mxu0 0
        %7664 = vmatpush.bf16.msra.mxu0 0
        %7665 = vmatpush.bf16.msra.mxu0 0
        %7666 = vmatpush.bf16.msra.mxu0 0
        %7667 = vmatpush.bf16.msra.mxu0 0
        %7668 = vmatpush.bf16.msra.mxu0 %v7656
        %7669 = vmatmul.bf16.gmra.mxu0 %v7659
        %v7670 = vpop.f32.mrf.mxu0
        %v7671 = vadd.f32 0.0, %v7670
        %v7672 = vpop.f32.mrf.mxu0
        %7673 = vdwg.mxu0
        %v7674 = vadd.f32 %v7647, %v7671
        %s7675 = scalar_lea.vmem %s9, 56
        %v7676 = vld [vmem:[%s7675] sm:$0xf]
        %v7677 = vld [vmem:[%s7675 + $0x4] sm:$0xf]
        %v7678 = vrot.slane %v7493, 3
        %v7681 = vunpack.c.l.b16 %v7676
        %v7682 = vunpack.c.l.b16 %v7677
        %v7683 = vpack.c.b16 %v7682, %v7681
        %v7686 = vsel %vm7501, %v7678, 0
        %7688 = vmatpush.bf16.msra.mxu0 0
        %7689 = vmatpush.bf16.msra.mxu0 0
        %7690 = vmatpush.bf16.msra.mxu0 0
        %7691 = vmatpush.bf16.msra.mxu0 0
        %7692 = vmatpush.bf16.msra.mxu0 0
        %7693 = vmatpush.bf16.msra.mxu0 0
        %7694 = vmatpush.bf16.msra.mxu0 0
        %7695 = vmatpush.bf16.msra.mxu0 %v7683
        %7696 = vmatmul.bf16.gmra.mxu0 %v7686
        %v7697 = vpop.f32.mrf.mxu0
        %v7698 = vadd.f32 0.0, %v7697
        %v7699 = vpop.f32.mrf.mxu0
        %7700 = vdwg.mxu0
        %v7701 = vadd.f32 %v7674, %v7698
        %s7702 = scalar_lea.vmem %s9, 64
        %v7703 = vld [vmem:[%s7702] sm:$0xf]
        %v7704 = vld [vmem:[%s7702 + $0x4] sm:$0xf]
        %v7707 = vunpack.c.l.b16 %v7703
        %v7708 = vunpack.c.l.b16 %v7704
        %v7709 = vpack.c.b16 %v7708, %v7707
        %v7712 = vsel %vm7501, %v7483, 0
        %7714 = vmatpush.bf16.msra.mxu0 0
        %7715 = vmatpush.bf16.msra.mxu0 0
        %7716 = vmatpush.bf16.msra.mxu0 0
        %7717 = vmatpush.bf16.msra.mxu0 0
        %7718 = vmatpush.bf16.msra.mxu0 0
        %7719 = vmatpush.bf16.msra.mxu0 0
        %7720 = vmatpush.bf16.msra.mxu0 0
        %7721 = vmatpush.bf16.msra.mxu0 %v7709
        %7722 = vmatmul.bf16.gmra.mxu0 %v7712
        %v7723 = vpop.f32.mrf.mxu0
        %v7724 = vadd.f32 0.0, %v7723
        %v7725 = vpop.f32.mrf.mxu0
        %7726 = vdwg.mxu0
        %v7727 = vadd.f32 %v7701, %v7724
        %s7728 = scalar_lea.vmem %s9, 72
        %v7729 = vld [vmem:[%s7728] sm:$0xf]
        %v7730 = vld [vmem:[%s7728 + $0x4] sm:$0xf]
        %v7732 = vunpack.c.l.b16 %v7483
        %v7733 = vpack.c.b16 %v7732, %v7732
        %v7735 = vshrl.u32 %v7733, 16
        %v7739 = vunpack.c.l.b16 %v7729
        %v7740 = vunpack.c.l.b16 %v7730
        %v7741 = vpack.c.b16 %v7740, %v7739
        %v7744 = vsel %vm7501, %v7735, 0
        %7746 = vmatpush.bf16.msra.mxu0 0
        %7747 = vmatpush.bf16.msra.mxu0 0
        %7748 = vmatpush.bf16.msra.mxu0 0
        %7749 = vmatpush.bf16.msra.mxu0 0
        %7750 = vmatpush.bf16.msra.mxu0 0
        %7751 = vmatpush.bf16.msra.mxu0 0
        %7752 = vmatpush.bf16.msra.mxu0 0
        %7753 = vmatpush.bf16.msra.mxu0 %v7741
        %7754 = vmatmul.bf16.gmra.mxu0 %v7744
        %v7755 = vpop.f32.mrf.mxu0
        %v7756 = vadd.f32 0.0, %v7755
        %v7757 = vpop.f32.mrf.mxu0
        %7758 = vdwg.mxu0
        %v7759 = vadd.f32 %v7727, %v7756
        %s7760 = scalar_lea.vmem %s9, 80
        %v7761 = vld [vmem:[%s7760] sm:$0xf]
        %v7762 = vld [vmem:[%s7760 + $0x4] sm:$0xf]
        %v7763 = vrot.slane %v7733, 1
        %v7766 = vunpack.c.l.b16 %v7761
        %v7767 = vunpack.c.l.b16 %v7762
        %v7768 = vpack.c.b16 %v7767, %v7766
        %v7771 = vsel %vm7501, %v7763, 0
        %7773 = vmatpush.bf16.msra.mxu0 0
        %7774 = vmatpush.bf16.msra.mxu0 0
        %7775 = vmatpush.bf16.msra.mxu0 0
        %7776 = vmatpush.bf16.msra.mxu0 0
        %7777 = vmatpush.bf16.msra.mxu0 0
        %7778 = vmatpush.bf16.msra.mxu0 0
        %7779 = vmatpush.bf16.msra.mxu0 0
        %7780 = vmatpush.bf16.msra.mxu0 %v7768
        %7781 = vmatmul.bf16.gmra.mxu0 %v7771
        %v7782 = vpop.f32.mrf.mxu0
        %v7783 = vadd.f32 0.0, %v7782
        %v7784 = vpop.f32.mrf.mxu0
        %7785 = vdwg.mxu0
        %v7786 = vadd.f32 %v7759, %v7783
        %s7787 = scalar_lea.vmem %s9, 88
        %v7788 = vld [vmem:[%s7787] sm:$0xf]
        %v7789 = vld [vmem:[%s7787 + $0x4] sm:$0xf]
        %v7790 = vrot.slane %v7735, 1
        %v7793 = vunpack.c.l.b16 %v7788
        %v7794 = vunpack.c.l.b16 %v7789
        %v7795 = vpack.c.b16 %v7794, %v7793
        %v7798 = vsel %vm7501, %v7790, 0
        %7800 = vmatpush.bf16.msra.mxu0 0
        %7801 = vmatpush.bf16.msra.mxu0 0
        %7802 = vmatpush.bf16.msra.mxu0 0
        %7803 = vmatpush.bf16.msra.mxu0 0
        %7804 = vmatpush.bf16.msra.mxu0 0
        %7805 = vmatpush.bf16.msra.mxu0 0
        %7806 = vmatpush.bf16.msra.mxu0 0
        %7807 = vmatpush.bf16.msra.mxu0 %v7795
        %7808 = vmatmul.bf16.gmra.mxu0 %v7798
        %v7809 = vpop.f32.mrf.mxu0
        %v7810 = vadd.f32 0.0, %v7809
        %v7811 = vpop.f32.mrf.mxu0
        %7812 = vdwg.mxu0
        %v7813 = vadd.f32 %v7786, %v7810
        %s7814 = scalar_lea.vmem %s9, 96
        %v7815 = vld [vmem:[%s7814] sm:$0xf]
        %v7816 = vld [vmem:[%s7814 + $0x4] sm:$0xf]
        %v7817 = vrot.slane %v7733, 2
        %v7820 = vunpack.c.l.b16 %v7815
        %v7821 = vunpack.c.l.b16 %v7816
        %v7822 = vpack.c.b16 %v7821, %v7820
        %v7825 = vsel %vm7501, %v7817, 0
        %7827 = vmatpush.bf16.msra.mxu0 0
        %7828 = vmatpush.bf16.msra.mxu0 0
        %7829 = vmatpush.bf16.msra.mxu0 0
        %7830 = vmatpush.bf16.msra.mxu0 0
        %7831 = vmatpush.bf16.msra.mxu0 0
        %7832 = vmatpush.bf16.msra.mxu0 0
        %7833 = vmatpush.bf16.msra.mxu0 0
        %7834 = vmatpush.bf16.msra.mxu0 %v7822
        %7835 = vmatmul.bf16.gmra.mxu0 %v7825
        %v7836 = vpop.f32.mrf.mxu0
        %v7837 = vadd.f32 0.0, %v7836
        %v7838 = vpop.f32.mrf.mxu0
        %7839 = vdwg.mxu0
        %v7840 = vadd.f32 %v7813, %v7837
        %s7841 = scalar_lea.vmem %s9, 104
        %v7842 = vld [vmem:[%s7841] sm:$0xf]
        %v7843 = vld [vmem:[%s7841 + $0x4] sm:$0xf]
        %v7844 = vrot.slane %v7735, 2
        %v7847 = vunpack.c.l.b16 %v7842
        %v7848 = vunpack.c.l.b16 %v7843
        %v7849 = vpack.c.b16 %v7848, %v7847
        %v7852 = vsel %vm7501, %v7844, 0
        %7854 = vmatpush.bf16.msra.mxu0 0
        %7855 = vmatpush.bf16.msra.mxu0 0
        %7856 = vmatpush.bf16.msra.mxu0 0
        %7857 = vmatpush.bf16.msra.mxu0 0
        %7858 = vmatpush.bf16.msra.mxu0 0
        %7859 = vmatpush.bf16.msra.mxu0 0
        %7860 = vmatpush.bf16.msra.mxu0 0
        %7861 = vmatpush.bf16.msra.mxu0 %v7849
        %7862 = vmatmul.bf16.gmra.mxu0 %v7852
        %v7863 = vpop.f32.mrf.mxu0
        %v7864 = vadd.f32 0.0, %v7863
        %v7865 = vpop.f32.mrf.mxu0
        %7866 = vdwg.mxu0
        %v7867 = vadd.f32 %v7840, %v7864
        %s7868 = scalar_lea.vmem %s9, 112
        %v7869 = vld [vmem:[%s7868] sm:$0xf]
        %v7870 = vld [vmem:[%s7868 + $0x4] sm:$0xf]
        %v7871 = vrot.slane %v7733, 3
        %v7874 = vunpack.c.l.b16 %v7869
        %v7875 = vunpack.c.l.b16 %v7870
        %v7876 = vpack.c.b16 %v7875, %v7874
        %v7879 = vsel %vm7501, %v7871, 0
        %7881 = vmatpush.bf16.msra.mxu0 0
        %7882 = vmatpush.bf16.msra.mxu0 0
        %7883 = vmatpush.bf16.msra.mxu0 0
        %7884 = vmatpush.bf16.msra.mxu0 0
        %7885 = vmatpush.bf16.msra.mxu0 0
        %7886 = vmatpush.bf16.msra.mxu0 0
        %7887 = vmatpush.bf16.msra.mxu0 0
        %7888 = vmatpush.bf16.msra.mxu0 %v7876
        %7889 = vmatmul.bf16.gmra.mxu0 %v7879
        %v7890 = vpop.f32.mrf.mxu0
        %v7891 = vadd.f32 0.0, %v7890
        %v7892 = vpop.f32.mrf.mxu0
        %7893 = vdwg.mxu0
        %v7894 = vadd.f32 %v7867, %v7891
        %s7895 = scalar_lea.vmem %s9, 120
        %v7896 = vld [vmem:[%s7895] sm:$0xf]
        %v7897 = vld [vmem:[%s7895 + $0x4] sm:$0xf]
        %v7898 = vrot.slane %v7735, 3
        %v7901 = vunpack.c.l.b16 %v7896
        %v7902 = vunpack.c.l.b16 %v7897
        %v7903 = vpack.c.b16 %v7902, %v7901
        %v7906 = vsel %vm7501, %v7898, 0
        %7908 = vmatpush.bf16.msra.mxu0 0
        %7909 = vmatpush.bf16.msra.mxu0 0
        %7910 = vmatpush.bf16.msra.mxu0 0
        %7911 = vmatpush.bf16.msra.mxu0 0
        %7912 = vmatpush.bf16.msra.mxu0 0
        %7913 = vmatpush.bf16.msra.mxu0 0
        %7914 = vmatpush.bf16.msra.mxu0 0
        %7915 = vmatpush.bf16.msra.mxu0 %v7903
        %7916 = vmatmul.bf16.gmra.mxu0 %v7906
        %v7917 = vpop.f32.mrf.mxu0
        %v7918 = vadd.f32 0.0, %v7917
        %v7919 = vpop.f32.mrf.mxu0
        %7920 = vdwg.mxu0
        %v7921 = vadd.f32 %v7894, %v7918
        %v7922 = vld [vmem:[#allocation13] sm:$0x1]
        %v7923 = vadd.f32 %v7921, %v7922
        %v7924 = vmax.f32 %v7923, 0.0
        %v7925 = vpack.c.bf16 %v7924, %v7924
        %v7926 = vld [vmem:[%s11] sm:$0xf]
        %v7927 = vld [vmem:[%s11 + $0x4] sm:$0xf]
        %v7928 = vld [vmem:[%s11 + $0x8] sm:$0xf]
        %v7929 = vld [vmem:[%s11 + $0xc] sm:$0xf]
        %v7930 = vld [vmem:[#allocation14] sm:$0x1]
        %v7935 = vunpack.c.l.b16 %v7926
        %v7936 = vunpack.c.l.b16 %v7927
        %v7937 = vunpack.c.l.b16 %v7928
        %v7938 = vunpack.c.l.b16 %v7929
        %v7939 = vpack.c.b16 %v7936, %v7935
        %v7940 = vpack.c.b16 %v7938, %v7937
        %vm7943 = vcmask 261120
        %v7945 = vsel %vm7943, %v7925, 0
        %7947 = vmatpush.bf16.msra.mxu0 0
        %7948 = vmatpush.bf16.msra.mxu0 0
        %7949 = vmatpush.bf16.msra.mxu0 0
        %7950 = vmatpush.bf16.msra.mxu0 0
        %7951 = vmatpush.bf16.msra.mxu0 0
        %7952 = vmatpush.bf16.msra.mxu0 0
        %7953 = vmatpush.bf16.msra.mxu0 %v7940
        %7954 = vmatpush.bf16.msra.mxu0 %v7939
        %7955 = vmatmul.bf16.gmra.mxu0 %v7945
        %v7956 = vpop.f32.mrf.mxu0
        %v7957 = vadd.f32 %v7930, %v7956
        %v7958 = vpop.f32.mrf.mxu0
        %7959 = vdwg.mxu0
        %vm7960 = vcmask 73728
        %7961 = vst.msk [vmem:[%s557] sm:$0x1] %vm7960, %v7957
        %s7962 = sand.u32 %s318, 1
        %s7963 = scalar_lea.sflag [#allocation4], %s7962
        %s7964 = sand.u32 %s318, 1
        %s7965 = scalar_lea.vmem [#allocation16], %s7964
        // Predicated region
        $region105: #{cnn_forward.1} parent=71 // pred_check
          %p7966 = pneg %p328
        $region106: #{cnn_forward.1} parent=71 // pred_check_branch
          %7968 = sbr.rel (%p7966) target = $region108
        $region107: #{cnn_forward.1} parent=71 // pred_region
          %7970 = vsyncadd %s7963, 0
          %s7971 = scalar_lea.hbm %s13, %s32
          %s7973 = sshll.u32 %s7965, 4
          %s7974 = int_to_ptr.vmem [resolvable:$true] %s7973
          %s7975 = sshll.u32 %s7971, 4
          %s7976 = int_to_ptr.hbm [resolvable:$true] %s7975
          %7978 = dma.vmem_to_hbm [thread:$0]  %s7974, 16, %s7976, %s7963
        $region108: #{cnn_forward.1} parent=71 // pred_fallthru
          _
      $region72: #{cnn_forward.1} parent=5 // pred_fallthru
        _
      %p7979 = scmp.le.s32.totalorder 2, %s27
      // Predicated region
      $region109: #{cnn_forward.1} parent=5 // pred_check
        %p7980 = pneg %p7979
      $region110: #{cnn_forward.1} parent=5 // pred_check_branch
        %7982 = sbr.rel (%p7980) target = $region112
      $region111: #{cnn_forward.1} parent=5 // pred_region
        %s7983 = ssub.s32 %s27, 2
        // Predicated region
        $region113: #{cnn_forward.1} parent=111 // pred_check
          %p7984 = pneg %p334
        $region114: #{cnn_forward.1} parent=111 // pred_check_branch
          %7986 = sbr.rel (%p7984) target = $region116
        $region115: #{cnn_forward.1} parent=111 // pred_region
          %s7987 = sand.u32 %s319, 1
          %s7988 = scalar_lea.sflag [#allocation4], %s7987
          %s7989 = sand.u32 %s319, 1
          %s7990 = scalar_lea.vmem [#allocation16], %s7989
          %7992 = dma.done %s7988, 16
        $region116: #{cnn_forward.1} parent=111 // pred_fallthru
          _
      $region112: #{cnn_forward.1} parent=5 // pred_fallthru
        _
    $region6: #{cnn_forward.1} parent=1 // loop_footer
      %s31 = sadd.s32 1, %s27
    $region7: #{cnn_forward.1} parent=1 // loop_footer_branch
      %26 = sbr.rel target = $region3
    $region8: #{cnn_forward.1} parent=1 // loop_exit
      _
    %7993 = vsyncpa [#allocation3], 1
    %s7994 = scalar_lea.sflag [#allocation3], 1
    %7995 = vsyncpa %s7994, 1
    %7996 = vsyncpa [#allocation6], 1
    %7997 = vsyncpa [#allocation9], 1
    %7998 = vsyncpa [#allocation12], 1
    %7999 = vsyncpa [#allocation15], 1
    %8000 = vsyncpa [#allocation4], 1
    %s8001 = scalar_lea.sflag [#allocation4], 1
    %8002 = vsyncpa %s8001, 1

</llo_original>
